<compile_context>
chip_gen: v5e
topology: v5e:2x2
jax: 0.10.0
libtpu: 0.0.40
codegen_flags: <defaults>
</compile_context>

<pallas_src>
import functools
import math

import jax
import jax.numpy as jnp
from jax.experimental import pallas as pl
from jax.experimental.pallas import tpu as pltpu


def autopad(k, p=None):
    if p is None:
        p = k // 2 if isinstance(k, int) else [x // 2 for x in k]
    return p


def _round_up(x, m):
    return ((x + m - 1) // m) * m


def _conv_bn_silu_kernel(x_hbm, w_ref, bias_ref, o_ref, xbuf, sem, *,
                         ksize, wp, th, halo_rows, tc, w_slice, approx,
                         mm_precision):
    # x_hbm:    (N, Hp_pad*Wp, C1p)  padded input, flat rows, HBM (pl.ANY)
    # w_ref:    (K, K, C1p, C2p|TC)  BN-scale-folded weights (compute dtype)
    # bias_ref: (1,  C2p|TC)         folded BN bias (f32)
    # o_ref:    (1, TH*Wp, TC)       flat output tile
    # xbuf:     (2, halo_rows+pad, C1p)  double-buffered halo window (VMEM)
    # sem:      (2,)                 DMA semaphores
    n = pl.program_id(0)
    h = pl.program_id(1)
    c2 = pl.program_id(2)
    num_h = pl.num_programs(1)
    slot = h % 2

    def start_fetch(h_idx, slot_idx):
        pltpu.make_async_copy(
            x_hbm.at[n, pl.ds(h_idx * (th * wp), halo_rows)],
            xbuf.at[slot_idx, pl.ds(0, halo_rows)],
            sem.at[slot_idx]).start()

    # NOTE: the halo reuse across c2 tiles and the h->h+1 prefetch chain rely
    # on the (h, c2) grid axes being sequential ("arbitrary"); only the batch
    # axis is "parallel", and the chain never crosses it, so splitting batch
    # across TensorCores is safe.
    @pl.when((h == 0) & (c2 == 0))
    def _prime():
        start_fetch(0, 0)               # first tile of this image: exposed DMA

    @pl.when(c2 == 0)
    def _wait_and_prefetch():
        pltpu.make_async_copy(
            x_hbm.at[n, pl.ds(0, halo_rows)],          # dummy src (shape only)
            xbuf.at[slot, pl.ds(0, halo_rows)],
            sem.at[slot]).wait()

        @pl.when(h + 1 < num_h)
        def _():
            start_fetch(h + 1, 1 - slot)               # overlap with compute

    if w_slice:
        c_off = pl.multiple_of(c2 * tc, 128)
        bias = bias_ref[:, pl.ds(c_off, tc)]
    else:
        bias = bias_ref[...]

    # K*K shifted matmuls on the MXU. Each tap's LHS is a *contiguous* row
    # slice of the flat halo buffer (no strided reshape copies); the handful
    # of wrapped columns only affect w >= Wo, which the wrapper slices off.
    acc = None
    for kh in range(ksize):
        for kw in range(ksize):
            lhs = xbuf[slot, pl.ds(kh * wp + kw, th * wp), :]
            rhs = (w_ref[kh, kw, :, pl.ds(c_off, tc)] if w_slice
                   else w_ref[kh, kw])
            contrib = jnp.dot(lhs, rhs,
                              preferred_element_type=jnp.float32,
                              precision=mm_precision)
            acc = contrib if acc is None else acc + contrib

    # Epilogue: folded-BN bias + SiLU. Exact divide on the f32 path; approx
    # EUP reciprocal (separate issue slot) on the bf16 fast path.
    y = acc + bias
    denom = 1.0 + jnp.exp(-y)
    sig = pl.reciprocal(denom, approx=True) if approx else 1.0 / denom
    o_ref[0] = (y * sig).astype(o_ref.dtype)


def conv_bn_silu(x_nchw, weight_oihw, gamma, beta, running_mean, running_var,
                 *, k, s=1, p=None, eps=1e-5,
                 compute_dtype=jnp.bfloat16, out_dtype=None,
                 tile_h=None, tile_c2=None):
    """Forward of YOLOv5 `Conv` (conv -> bn(running stats) -> silu), NCHW in/out."""
    # TODO(synk): stride > 1, groups > 1, act=False / custom activations, an
    # im2col path for the C1=3 stem, and a v7x fp8 path are not implemented.
    assert s == 1, "only stride=1 implemented"
    p = autopad(k, p)

    N, C1, H, W = x_nchw.shape
    C2 = weight_oihw.shape[0]
    Ho = (H + 2 * p - k) // s + 1
    Wo = (W + 2 * p - k) // s + 1
    Hp, Wp = H + 2 * p, W + 2 * p
    out_dtype = x_nchw.dtype if out_dtype is None else out_dtype

    # Lane-dense channel padding (multiples of 128).
    C1p = _round_up(C1, 128)
    C2p = _round_up(C2, 128)

    # Output-channel tile: 256 fills the v6e/v7x 2x256 MXU; 128 otherwise.
    if tile_c2 is None:
        TC = 256 if (C2p % 256 == 0) else 128
    else:
        TC = min(int(tile_c2), C2p)
    assert TC % 128 == 0 and C2p % TC == 0

    # Row tile: ~16 rows keeps acc/out blocks modest (v7x 64 MiB VMEM) while
    # M = TH*Wp stays far above the MXU height. Ho need not divide TH: the
    # bottom tile is zero-padded and the extra rows are sliced off afterwards.
    TH = 16 if tile_h is None else int(tile_h)
    TH = max(1, min(TH, Ho))
    TH = _round_up(TH, 8 // math.gcd(Wp, 8))   # keep TH*Wp sublane-aligned

    HT = (Ho + TH - 1) // TH
    Ho_pad = HT * TH
    Hp_pad = Ho_pad + k - 1               # padded-input rows the last tile needs
    halo_rows = (TH + k - 1) * Wp
    xbuf_rows = halo_rows + _round_up(k, 8)    # slack for the kw-shifted slices

    # ---- plain-JAX glue: BN fold (inference form), layout, padding ---------
    scale = gamma / jnp.sqrt(running_var + eps)                  # (C2,)
    bias = beta - running_mean * scale                           # (C2,)

    w_hwio = jnp.transpose(weight_oihw, (2, 3, 1, 0)) * scale[None, None, None, :]
    w_hwio = jnp.pad(w_hwio, ((0, 0), (0, 0), (0, C1p - C1), (0, C2p - C2)))
    w_hwio = w_hwio.astype(compute_dtype)
    bias_p = jnp.pad(bias.astype(jnp.float32), (0, C2p - C2)).reshape(1, C2p)

    # NCHW -> NHWC, cast, spatial halo pad + bottom tile pad + channel pad,
    # then flatten rows so the kernel can index the halo window contiguously.
    # TODO(synk): keep activations in this layout end-to-end for a full net.
    x_nhwc = jnp.transpose(x_nchw, (0, 2, 3, 1)).astype(compute_dtype)
    x_pad = jnp.pad(x_nhwc,
                    ((0, 0), (p, p + (Hp_pad - Hp)), (p, p), (0, C1p - C1)))
    x_flat = x_pad.reshape(N, Hp_pad * Wp, C1p)

    # ---- weight residency & VMEM budget -------------------------------------
    cbytes = jnp.dtype(compute_dtype).itemsize
    obytes = jnp.dtype(out_dtype).itemsize
    w_bytes_full = k * k * C1p * C2p * cbytes
    weights_resident = w_bytes_full <= (6 << 20)
    w_slice = weights_resident and (C2p > TC)

    if weights_resident:
        w_spec = pl.BlockSpec((k, k, C1p, C2p), lambda n, h, c: (0, 0, 0, 0))
        b_spec = pl.BlockSpec((1, C2p), lambda n, h, c: (0, 0))
        w_blk_bytes = w_bytes_full
    else:
        w_spec = pl.BlockSpec((k, k, C1p, TC), lambda n, h, c: (0, 0, 0, c))
        b_spec = pl.BlockSpec((1, TC), lambda n, h, c: (0, c))
        w_blk_bytes = k * k * C1p * TC * cbytes

    est = (2 * w_blk_bytes                       # weights (conservatively 2x)
           + 2 * C2p * 4                         # bias
           + 2 * TH * Wp * TC * obytes           # double-buffered output block
           + 2 * xbuf_rows * C1p * cbytes        # halo double buffer
           + 3 * TH * Wp * TC * 4)               # f32 accumulation temporaries
    vmem_limit = int(min(max(int(1.3 * est), 8 << 20), 48 << 20))

    grid = (N, HT, C2p // TC)
    mm_precision = (jax.lax.Precision.HIGHEST
                    if jnp.dtype(compute_dtype) == jnp.dtype(jnp.float32)
                    else None)

    kernel = functools.partial(
        _conv_bn_silu_kernel,
        ksize=k, wp=Wp, th=TH, halo_rows=halo_rows, tc=TC,
        w_slice=w_slice,
        approx=(jnp.dtype(compute_dtype) != jnp.dtype(jnp.float32)),
        mm_precision=mm_precision)

    out_flat = pl.pallas_call(
        kernel,
        out_shape=jax.ShapeDtypeStruct((N, Ho_pad * Wp, C2p), out_dtype),
        grid_spec=pltpu.PrefetchScalarGridSpec(
            num_scalar_prefetch=0,
            grid=grid,
            in_specs=[
                pl.BlockSpec(memory_space=pl.ANY),        # padded input in HBM
                w_spec,
                b_spec,
            ],
            out_specs=pl.BlockSpec((1, TH * Wp, TC), lambda n, h, c: (n, h, c)),
            scratch_shapes=[
                pltpu.VMEM((2, xbuf_rows, C1p), compute_dtype),  # halo buffers
                pltpu.SemaphoreType.DMA((2,)),
            ]),
        compiler_params=pltpu.CompilerParams(
            dimension_semantics=("parallel", "arbitrary", "arbitrary"),
            vmem_limit_bytes=vmem_limit),
    )(x_flat, w_hwio, bias_p)

    # Drop padded rows / wrapped columns / padded channels, NHWC -> NCHW.
    out = out_flat.reshape(N, Ho_pad, Wp, C2p)[:, :Ho, :Wo, :C2]
    return jnp.transpose(out, (0, 3, 1, 2))


def _reference(x_nchw, weight_oihw, gamma, beta, running_mean, running_var,
               *, k, s=1, p=None, eps=1e-5):
    """Pure-JAX reference (lax conv + BN(running stats) + SiLU), NCHW."""
    p = autopad(k, p)
    y = jax.lax.conv_general_dilated(
        x_nchw, weight_oihw, window_strides=(s, s),
        padding=((p, p), (p, p)),
        dimension_numbers=("NCHW", "OIHW", "NCHW"))
    scale = (gamma / jnp.sqrt(running_var + eps)).reshape(1, -1, 1, 1)
    bias = (beta - running_mean * gamma / jnp.sqrt(running_var + eps)).reshape(1, -1, 1, 1)
    y = y * scale + bias
    return y * jax.nn.sigmoid(y)


if __name__ == "__main__":
    # Conv(c1=4, c2=8, k=3, s=1) on a (2, 4, 16, 16) NCHW input.
    N, C1, H, W = 2, 4, 16, 16
    C2, K = 8, 3

    key = jax.random.PRNGKey(0)
    kx, kw_, kg, kb, km, kv = jax.random.split(key, 6)

    x = jax.random.normal(kx, (N, C1, H, W), dtype=jnp.float32)
    weight = jax.random.normal(kw_, (C2, C1, K, K), dtype=jnp.float32) * 0.1
    gamma = 1.0 + 0.1 * jax.random.normal(kg, (C2,), dtype=jnp.float32)
    beta = 0.1 * jax.random.normal(kb, (C2,), dtype=jnp.float32)
    running_mean = 0.1 * jax.random.normal(km, (C2,), dtype=jnp.float32)
    running_var = jnp.abs(1.0 + 0.1 * jax.random.normal(kv, (C2,), dtype=jnp.float32))

    ref = _reference(x, weight, gamma, beta, running_mean, running_var, k=K, s=1)

    # f32 path (exact sigmoid, HIGHEST-precision matmuls): tight check of the
    # flat halo indexing, multi-h-tile double-buffered DMA, and BN fold.
    out_f32 = conv_bn_silu(x, weight, gamma, beta, running_mean, running_var,
                           k=K, s=1, compute_dtype=jnp.float32, tile_h=8)
    out_f32 = jax.block_until_ready(out_f32)
    assert out_f32.shape == (N, C2, H, W)
    err_f32 = float(jnp.max(jnp.abs(out_f32 - ref)))
    assert err_f32 < 2e-3, err_f32

    # bf16 fast path (defaults): MXU-native dtype, approx-EUP sigmoid.
    out_bf16 = conv_bn_silu(x, weight, gamma, beta, running_mean, running_var,
                            k=K, s=1)
    out_bf16 = jax.block_until_ready(out_bf16)
    assert out_bf16.shape == (N, C2, H, W)
    err_bf16 = float(jnp.max(jnp.abs(out_bf16.astype(jnp.float32) - ref)))
    assert err_bf16 < 5e-2, err_bf16

    # 1x1 Conv variant (YOLOv5 default k=1) through the same kernel.
    w1 = jax.random.normal(kw_, (C2, C1, 1, 1), dtype=jnp.float32) * 0.1
    ref1 = _reference(x, w1, gamma, beta, running_mean, running_var, k=1, s=1)
    out1 = conv_bn_silu(x, w1, gamma, beta, running_mean, running_var, k=1, s=1)
    out1 = jax.block_until_ready(out1)
    err_1 = float(jnp.max(jnp.abs(out1.astype(jnp.float32) - ref1)))
    assert err_1 < 5e-2, err_1

    print("KERNEL_OK")
</pallas_src>

<mosaic_0001>
module attributes {stable_mosaic.version = 11 : i64} {
  func.func @_conv_bn_silu_kernel(%arg0: i32, %arg1: i32, %arg2: i32, %arg3: memref<2x324x128xf32, #tpu.memory_space<any>>, %arg4: memref<3x3x128x128xf32, #tpu.memory_space<vmem>>, %arg5: memref<1x128xf32, #tpu.memory_space<vmem>>, %arg6: memref<1x144x128xf32, #tpu.memory_space<vmem>>, %arg7: memref<2x188x128xf32, #tpu.memory_space<vmem>>, %arg8: memref<2x!tpu.dma_semaphore, #tpu.memory_space<semaphore_mem>>) attributes {dimension_semantics = [#tpu.dimension_semantics<parallel>, #tpu.dimension_semantics<arbitrary>, #tpu.dimension_semantics<arbitrary>], iteration_bounds = array<i64: 2, 2, 1>, scalar_prefetch = 0 : i64, scratch_operands = 2 : i64, tpu.core_type = #tpu.core_type<tc>, window_params = [{}, {pipeline_mode = #tpu.pipeline_mode<synchronous>, transform_indices = @transform_1, window_bounds = array<i64: 3, 3, 128, 128>}, {pipeline_mode = #tpu.pipeline_mode<synchronous>, transform_indices = @transform_2, window_bounds = array<i64: 1, 128>}, {transform_indices = @transform_3, window_bounds = array<i64: 1, 144, 128>}]} {
    %c2_i32 = arith.constant 2 : i32
    %c0_i32 = arith.constant 0 : i32
    %0 = arith.cmpi eq, %c2_i32, %c0_i32 : i32
    %c1_i32 = arith.constant 1 : i32
    %1 = arith.select %0, %c1_i32, %c2_i32 : i32
    %2 = arith.remsi %arg1, %1 : i32
    %c0_i32_0 = arith.constant 0 : i32
    %3 = arith.cmpi ne, %2, %c0_i32_0 : i32
    %c0_i32_1 = arith.constant 0 : i32
    %4 = arith.cmpi slt, %2, %c0_i32_1 : i32
    %c0_i32_2 = arith.constant 0 : i32
    %5 = arith.cmpi slt, %1, %c0_i32_2 : i32
    %6 = arith.xori %4, %5 : i1
    %7 = arith.andi %6, %3 : i1
    %8 = arith.addi %2, %1 : i32
    %9 = arith.select %7, %8, %2 : i32
    %c0_i32_3 = arith.constant 0 : i32
    %10 = arith.cmpi eq, %arg1, %c0_i32_3 : i32
    %c0_i32_4 = arith.constant 0 : i32
    %11 = arith.cmpi eq, %arg2, %c0_i32_4 : i32
    %12 = arith.andi %10, %11 : i1
    %13 = arith.extui %12 : i1 to i32
    %c0_i32_5 = arith.constant 0 : i32
    %14 = arith.cmpi ne, %13, %c0_i32_5 : i32
    scf.if %14 {
      %c0_i32_69 = arith.constant 0 : i32
      %c0_i32_70 = arith.constant 0 : i32
      %c0_i32_71 = arith.constant 0 : i32
      %c0_i32_72 = arith.constant 0 : i32
      %94 = tpu.memref_slice %arg3[%arg0, %c0_i32_71, %c0_i32_72] : memref<2x324x128xf32, #tpu.memory_space<any>> -> memref<1x180x128xf32, #tpu.memory_space<any>>
      %95 = tpu.memref_squeeze %94 : memref<1x180x128xf32, #tpu.memory_space<any>> -> memref<180x128xf32, #tpu.memory_space<any>>
      %c0_i32_73 = arith.constant 0 : i32
      %c0_i32_74 = arith.constant 0 : i32
      %96 = tpu.memref_slice %arg7[%c0_i32_69, %c0_i32_73, %c0_i32_74] : memref<2x188x128xf32, #tpu.memory_space<vmem>> -> memref<1x180x128xf32, #tpu.memory_space<vmem>>
      %97 = tpu.memref_squeeze %96 : memref<1x180x128xf32, #tpu.memory_space<vmem>> -> memref<180x128xf32, #tpu.memory_space<vmem>>
      %98 = tpu.memref_slice %arg8[%c0_i32_70] : memref<2x!tpu.dma_semaphore, #tpu.memory_space<semaphore_mem>> -> memref<1x!tpu.dma_semaphore, #tpu.memory_space<semaphore_mem>>
      %99 = tpu.memref_squeeze %98 : memref<1x!tpu.dma_semaphore, #tpu.memory_space<semaphore_mem>> -> memref<!tpu.dma_semaphore, #tpu.memory_space<semaphore_mem>>
      tpu.enqueue_dma source(%95 : memref<180x128xf32, #tpu.memory_space<any>>) target(%97 : memref<180x128xf32, #tpu.memory_space<vmem>>) target_semaphore(%99 : memref<!tpu.dma_semaphore, #tpu.memory_space<semaphore_mem>>)
    } else {
    }
    %c0_i32_6 = arith.constant 0 : i32
    %15 = arith.cmpi eq, %arg2, %c0_i32_6 : i32
    %16 = arith.extui %15 : i1 to i32
    %c0_i32_7 = arith.constant 0 : i32
    %17 = arith.cmpi ne, %16, %c0_i32_7 : i32
    scf.if %17 {
      %c0_i32_69 = arith.constant 0 : i32
      %c0_i32_70 = arith.constant 0 : i32
      %94 = tpu.memref_slice %arg3[%arg0, %c0_i32_69, %c0_i32_70] : memref<2x324x128xf32, #tpu.memory_space<any>> -> memref<1x180x128xf32, #tpu.memory_space<any>>
      %95 = tpu.memref_squeeze %94 : memref<1x180x128xf32, #tpu.memory_space<any>> -> memref<180x128xf32, #tpu.memory_space<any>>
      %c0_i32_71 = arith.constant 0 : i32
      %c0_i32_72 = arith.constant 0 : i32
      %96 = tpu.memref_slice %arg7[%9, %c0_i32_71, %c0_i32_72] : memref<2x188x128xf32, #tpu.memory_space<vmem>> -> memref<1x180x128xf32, #tpu.memory_space<vmem>>
      %97 = tpu.memref_squeeze %96 : memref<1x180x128xf32, #tpu.memory_space<vmem>> -> memref<180x128xf32, #tpu.memory_space<vmem>>
      %98 = tpu.memref_slice %arg8[%9] : memref<2x!tpu.dma_semaphore, #tpu.memory_space<semaphore_mem>> -> memref<1x!tpu.dma_semaphore, #tpu.memory_space<semaphore_mem>>
      %99 = tpu.memref_squeeze %98 : memref<1x!tpu.dma_semaphore, #tpu.memory_space<semaphore_mem>> -> memref<!tpu.dma_semaphore, #tpu.memory_space<semaphore_mem>>
      tpu.wait_dma2 semaphore(%99 : memref<!tpu.dma_semaphore, #tpu.memory_space<semaphore_mem>>) src(%95 : memref<180x128xf32, #tpu.memory_space<any>>) dst(%97 : memref<180x128xf32, #tpu.memory_space<vmem>>)
      %c1_i32_73 = arith.constant 1 : i32
      %100 = arith.addi %arg1, %c1_i32_73 : i32
      %c2_i32_74 = arith.constant 2 : i32
      %101 = arith.cmpi slt, %100, %c2_i32_74 : i32
      %102 = arith.extui %101 : i1 to i32
      %c0_i32_75 = arith.constant 0 : i32
      %103 = arith.cmpi ne, %102, %c0_i32_75 : i32
      scf.if %103 {
        %c1_i32_76 = arith.constant 1 : i32
        %104 = arith.addi %arg1, %c1_i32_76 : i32
        %c1_i32_77 = arith.constant 1 : i32
        %105 = arith.subi %c1_i32_77, %9 : i32
        %c144_i32 = arith.constant 144 : i32
        %106 = arith.muli %104, %c144_i32 : i32
        %c0_i32_78 = arith.constant 0 : i32
        %107 = tpu.memref_slice %arg3[%arg0, %106, %c0_i32_78] : memref<2x324x128xf32, #tpu.memory_space<any>> -> memref<1x180x128xf32, #tpu.memory_space<any>>
        %108 = tpu.memref_squeeze %107 : memref<1x180x128xf32, #tpu.memory_space<any>> -> memref<180x128xf32, #tpu.memory_space<any>>
        %c0_i32_79 = arith.constant 0 : i32
        %c0_i32_80 = arith.constant 0 : i32
        %109 = tpu.memref_slice %arg7[%105, %c0_i32_79, %c0_i32_80] : memref<2x188x128xf32, #tpu.memory_space<vmem>> -> memref<1x180x128xf32, #tpu.memory_space<vmem>>
        %110 = tpu.memref_squeeze %109 : memref<1x180x128xf32, #tpu.memory_space<vmem>> -> memref<180x128xf32, #tpu.memory_space<vmem>>
        %111 = tpu.memref_slice %arg8[%105] : memref<2x!tpu.dma_semaphore, #tpu.memory_space<semaphore_mem>> -> memref<1x!tpu.dma_semaphore, #tpu.memory_space<semaphore_mem>>
        %112 = tpu.memref_squeeze %111 : memref<1x!tpu.dma_semaphore, #tpu.memory_space<semaphore_mem>> -> memref<!tpu.dma_semaphore, #tpu.memory_space<semaphore_mem>>
        tpu.enqueue_dma source(%108 : memref<180x128xf32, #tpu.memory_space<any>>) target(%110 : memref<180x128xf32, #tpu.memory_space<vmem>>) target_semaphore(%112 : memref<!tpu.dma_semaphore, #tpu.memory_space<semaphore_mem>>)
      } else {
      }
    } else {
    }
    %c0 = arith.constant 0 : index
    %c0_8 = arith.constant 0 : index
    %18 = vector.load %arg5[%c0, %c0_8] : memref<1x128xf32, #tpu.memory_space<vmem>>, vector<1x128xf32>
    %19 = arith.index_cast %9 : i32 to index
    %c0_9 = arith.constant 0 : index
    %c0_10 = arith.constant 0 : index
    %20 = vector.load %arg7[%19, %c0_9, %c0_10] : memref<2x188x128xf32, #tpu.memory_space<vmem>>, vector<1x144x128xf32>
    %21 = vector.shape_cast %20 : vector<1x144x128xf32> to vector<144x128xf32>
    %c0_11 = arith.constant 0 : index
    %c0_12 = arith.constant 0 : index
    %c0_13 = arith.constant 0 : index
    %c0_14 = arith.constant 0 : index
    %22 = vector.load %arg4[%c0_11, %c0_12, %c0_13, %c0_14] : memref<3x3x128x128xf32, #tpu.memory_space<vmem>>, vector<1x1x128x128xf32>
    %23 = vector.shape_cast %22 : vector<1x1x128x128xf32> to vector<128x128xf32>
    %cst = arith.constant dense<0.000000e+00> : vector<144x128xf32>
    %24 = tpu.matmul %21, %23, %cst {dimension_numbers = #tpu.dot_dimension_numbers<[1], [0], [0], [1], [0, 0, 1, 1], [], []>, precision = #tpu.contract_precision<fp32>} : vector<144x128xf32>, vector<128x128xf32>, vector<144x128xf32> -> vector<144x128xf32>
    %25 = arith.index_cast %9 : i32 to index
    %c1 = arith.constant 1 : index
    %c0_15 = arith.constant 0 : index
    %26 = vector.load %arg7[%25, %c1, %c0_15] : memref<2x188x128xf32, #tpu.memory_space<vmem>>, vector<1x144x128xf32>
    %27 = vector.shape_cast %26 : vector<1x144x128xf32> to vector<144x128xf32>
    %c0_16 = arith.constant 0 : index
    %c1_17 = arith.constant 1 : index
    %c0_18 = arith.constant 0 : index
    %c0_19 = arith.constant 0 : index
    %28 = vector.load %arg4[%c0_16, %c1_17, %c0_18, %c0_19] : memref<3x3x128x128xf32, #tpu.memory_space<vmem>>, vector<1x1x128x128xf32>
    %29 = vector.shape_cast %28 : vector<1x1x128x128xf32> to vector<128x128xf32>
    %cst_20 = arith.constant dense<0.000000e+00> : vector<144x128xf32>
    %30 = tpu.matmul %27, %29, %cst_20 {dimension_numbers = #tpu.dot_dimension_numbers<[1], [0], [0], [1], [0, 0, 1, 1], [], []>, precision = #tpu.contract_precision<fp32>} : vector<144x128xf32>, vector<128x128xf32>, vector<144x128xf32> -> vector<144x128xf32>
    %31 = arith.addf %24, %30 : vector<144x128xf32>
    %32 = arith.index_cast %9 : i32 to index
    %c2 = arith.constant 2 : index
    %c0_21 = arith.constant 0 : index
    %33 = vector.load %arg7[%32, %c2, %c0_21] : memref<2x188x128xf32, #tpu.memory_space<vmem>>, vector<1x144x128xf32>
    %34 = vector.shape_cast %33 : vector<1x144x128xf32> to vector<144x128xf32>
    %c0_22 = arith.constant 0 : index
    %c2_23 = arith.constant 2 : index
    %c0_24 = arith.constant 0 : index
    %c0_25 = arith.constant 0 : index
    %35 = vector.load %arg4[%c0_22, %c2_23, %c0_24, %c0_25] : memref<3x3x128x128xf32, #tpu.memory_space<vmem>>, vector<1x1x128x128xf32>
    %36 = vector.shape_cast %35 : vector<1x1x128x128xf32> to vector<128x128xf32>
    %cst_26 = arith.constant dense<0.000000e+00> : vector<144x128xf32>
    %37 = tpu.matmul %34, %36, %cst_26 {dimension_numbers = #tpu.dot_dimension_numbers<[1], [0], [0], [1], [0, 0, 1, 1], [], []>, precision = #tpu.contract_precision<fp32>} : vector<144x128xf32>, vector<128x128xf32>, vector<144x128xf32> -> vector<144x128xf32>
    %38 = arith.addf %31, %37 : vector<144x128xf32>
    %39 = arith.index_cast %9 : i32 to index
    %c18 = arith.constant 18 : index
    %c0_27 = arith.constant 0 : index
    %40 = vector.load %arg7[%39, %c18, %c0_27] : memref<2x188x128xf32, #tpu.memory_space<vmem>>, vector<1x144x128xf32>
    %41 = vector.shape_cast %40 : vector<1x144x128xf32> to vector<144x128xf32>
    %c1_28 = arith.constant 1 : index
    %c0_29 = arith.constant 0 : index
    %c0_30 = arith.constant 0 : index
    %c0_31 = arith.constant 0 : index
    %42 = vector.load %arg4[%c1_28, %c0_29, %c0_30, %c0_31] : memref<3x3x128x128xf32, #tpu.memory_space<vmem>>, vector<1x1x128x128xf32>
    %43 = vector.shape_cast %42 : vector<1x1x128x128xf32> to vector<128x128xf32>
    %cst_32 = arith.constant dense<0.000000e+00> : vector<144x128xf32>
    %44 = tpu.matmul %41, %43, %cst_32 {dimension_numbers = #tpu.dot_dimension_numbers<[1], [0], [0], [1], [0, 0, 1, 1], [], []>, precision = #tpu.contract_precision<fp32>} : vector<144x128xf32>, vector<128x128xf32>, vector<144x128xf32> -> vector<144x128xf32>
    %45 = arith.addf %38, %44 : vector<144x128xf32>
    %46 = arith.index_cast %9 : i32 to index
    %c19 = arith.constant 19 : index
    %c0_33 = arith.constant 0 : index
    %47 = vector.load %arg7[%46, %c19, %c0_33] : memref<2x188x128xf32, #tpu.memory_space<vmem>>, vector<1x144x128xf32>
    %48 = vector.shape_cast %47 : vector<1x144x128xf32> to vector<144x128xf32>
    %c1_34 = arith.constant 1 : index
    %c1_35 = arith.constant 1 : index
    %c0_36 = arith.constant 0 : index
    %c0_37 = arith.constant 0 : index
    %49 = vector.load %arg4[%c1_34, %c1_35, %c0_36, %c0_37] : memref<3x3x128x128xf32, #tpu.memory_space<vmem>>, vector<1x1x128x128xf32>
    %50 = vector.shape_cast %49 : vector<1x1x128x128xf32> to vector<128x128xf32>
    %cst_38 = arith.constant dense<0.000000e+00> : vector<144x128xf32>
    %51 = tpu.matmul %48, %50, %cst_38 {dimension_numbers = #tpu.dot_dimension_numbers<[1], [0], [0], [1], [0, 0, 1, 1], [], []>, precision = #tpu.contract_precision<fp32>} : vector<144x128xf32>, vector<128x128xf32>, vector<144x128xf32> -> vector<144x128xf32>
    %52 = arith.addf %45, %51 : vector<144x128xf32>
    %53 = arith.index_cast %9 : i32 to index
    %c20 = arith.constant 20 : index
    %c0_39 = arith.constant 0 : index
    %54 = vector.load %arg7[%53, %c20, %c0_39] : memref<2x188x128xf32, #tpu.memory_space<vmem>>, vector<1x144x128xf32>
    %55 = vector.shape_cast %54 : vector<1x144x128xf32> to vector<144x128xf32>
    %c1_40 = arith.constant 1 : index
    %c2_41 = arith.constant 2 : index
    %c0_42 = arith.constant 0 : index
    %c0_43 = arith.constant 0 : index
    %56 = vector.load %arg4[%c1_40, %c2_41, %c0_42, %c0_43] : memref<3x3x128x128xf32, #tpu.memory_space<vmem>>, vector<1x1x128x128xf32>
    %57 = vector.shape_cast %56 : vector<1x1x128x128xf32> to vector<128x128xf32>
    %cst_44 = arith.constant dense<0.000000e+00> : vector<144x128xf32>
    %58 = tpu.matmul %55, %57, %cst_44 {dimension_numbers = #tpu.dot_dimension_numbers<[1], [0], [0], [1], [0, 0, 1, 1], [], []>, precision = #tpu.contract_precision<fp32>} : vector<144x128xf32>, vector<128x128xf32>, vector<144x128xf32> -> vector<144x128xf32>
    %59 = arith.addf %52, %58 : vector<144x128xf32>
    %60 = arith.index_cast %9 : i32 to index
    %c36 = arith.constant 36 : index
    %c0_45 = arith.constant 0 : index
    %61 = vector.load %arg7[%60, %c36, %c0_45] : memref<2x188x128xf32, #tpu.memory_space<vmem>>, vector<1x144x128xf32>
    %62 = vector.shape_cast %61 : vector<1x144x128xf32> to vector<144x128xf32>
    %c2_46 = arith.constant 2 : index
    %c0_47 = arith.constant 0 : index
    %c0_48 = arith.constant 0 : index
    %c0_49 = arith.constant 0 : index
    %63 = vector.load %arg4[%c2_46, %c0_47, %c0_48, %c0_49] : memref<3x3x128x128xf32, #tpu.memory_space<vmem>>, vector<1x1x128x128xf32>
    %64 = vector.shape_cast %63 : vector<1x1x128x128xf32> to vector<128x128xf32>
    %cst_50 = arith.constant dense<0.000000e+00> : vector<144x128xf32>
    %65 = tpu.matmul %62, %64, %cst_50 {dimension_numbers = #tpu.dot_dimension_numbers<[1], [0], [0], [1], [0, 0, 1, 1], [], []>, precision = #tpu.contract_precision<fp32>} : vector<144x128xf32>, vector<128x128xf32>, vector<144x128xf32> -> vector<144x128xf32>
    %66 = arith.addf %59, %65 : vector<144x128xf32>
    %67 = arith.index_cast %9 : i32 to index
    %c37 = arith.constant 37 : index
    %c0_51 = arith.constant 0 : index
    %68 = vector.load %arg7[%67, %c37, %c0_51] : memref<2x188x128xf32, #tpu.memory_space<vmem>>, vector<1x144x128xf32>
    %69 = vector.shape_cast %68 : vector<1x144x128xf32> to vector<144x128xf32>
    %c2_52 = arith.constant 2 : index
    %c1_53 = arith.constant 1 : index
    %c0_54 = arith.constant 0 : index
    %c0_55 = arith.constant 0 : index
    %70 = vector.load %arg4[%c2_52, %c1_53, %c0_54, %c0_55] : memref<3x3x128x128xf32, #tpu.memory_space<vmem>>, vector<1x1x128x128xf32>
    %71 = vector.shape_cast %70 : vector<1x1x128x128xf32> to vector<128x128xf32>
    %cst_56 = arith.constant dense<0.000000e+00> : vector<144x128xf32>
    %72 = tpu.matmul %69, %71, %cst_56 {dimension_numbers = #tpu.dot_dimension_numbers<[1], [0], [0], [1], [0, 0, 1, 1], [], []>, precision = #tpu.contract_precision<fp32>} : vector<144x128xf32>, vector<128x128xf32>, vector<144x128xf32> -> vector<144x128xf32>
    %73 = arith.addf %66, %72 : vector<144x128xf32>
    %74 = arith.index_cast %9 : i32 to index
    %c38 = arith.constant 38 : index
    %c0_57 = arith.constant 0 : index
    %75 = vector.load %arg7[%74, %c38, %c0_57] : memref<2x188x128xf32, #tpu.memory_space<vmem>>, vector<1x144x128xf32>
    %76 = vector.shape_cast %75 : vector<1x144x128xf32> to vector<144x128xf32>
    %c2_58 = arith.constant 2 : index
    %c2_59 = arith.constant 2 : index
    %c0_60 = arith.constant 0 : index
    %c0_61 = arith.constant 0 : index
    %77 = vector.load %arg4[%c2_58, %c2_59, %c0_60, %c0_61] : memref<3x3x128x128xf32, #tpu.memory_space<vmem>>, vector<1x1x128x128xf32>
    %78 = vector.shape_cast %77 : vector<1x1x128x128xf32> to vector<128x128xf32>
    %cst_62 = arith.constant dense<0.000000e+00> : vector<144x128xf32>
    %79 = tpu.matmul %76, %78, %cst_62 {dimension_numbers = #tpu.dot_dimension_numbers<[1], [0], [0], [1], [0, 0, 1, 1], [], []>, precision = #tpu.contract_precision<fp32>} : vector<144x128xf32>, vector<128x128xf32>, vector<144x128xf32> -> vector<144x128xf32>
    %80 = arith.addf %73, %79 : vector<144x128xf32>
    %81 = vector.broadcast %18 : vector<1x128xf32> to vector<144x128xf32>
    %82 = arith.addf %80, %81 : vector<144x128xf32>
    %cst_63 = arith.constant 0.000000e+00 : f32
    %83 = vector.broadcast %cst_63 : f32 to vector<144x128xf32>
    %84 = arith.subf %83, %82 : vector<144x128xf32>
    %85 = math.exp %84 : vector<144x128xf32>
    %cst_64 = arith.constant 1.000000e+00 : f32
    %86 = vector.broadcast %cst_64 : f32 to vector<144x128xf32>
    %87 = arith.addf %86, %85 : vector<144x128xf32>
    %cst_65 = arith.constant 1.000000e+00 : f32
    %88 = vector.broadcast %cst_65 : f32 to vector<144x128xf32>
    %89 = arith.divf %88, %87 : vector<144x128xf32>
    %90 = arith.mulf %82, %89 : vector<144x128xf32>
    %c0_66 = arith.constant 0 : index
    %c0_67 = arith.constant 0 : index
    %c0_68 = arith.constant 0 : index
    %91 = vector.load %arg6[%c0_66, %c0_67, %c0_68] : memref<1x144x128xf32, #tpu.memory_space<vmem>>, vector<1x144x128xf32>
    %92 = vector.shape_cast %91 : vector<1x144x128xf32> to vector<144x128xf32>
    %93 = vector.shape_cast %90 : vector<144x128xf32> to vector<1x144x128xf32>
    tpu.vector_store %arg6[%c0_66, %c0_67, %c0_68], %93 {strides = array<i32>} : memref<1x144x128xf32, #tpu.memory_space<vmem>>, vector<1x144x128xf32>,
    return
  }
  func.func @transform_1(%arg0: i32, %arg1: i32, %arg2: i32) -> (i32, i32, i32, i32) {
    %c0_i32 = arith.constant 0 : i32
    %c0_i32_0 = arith.constant 0 : i32
    %c0_i32_1 = arith.constant 0 : i32
    %c0_i32_2 = arith.constant 0 : i32
    %c0_i32_3 = arith.constant 0 : i32
    return %c0_i32, %c0_i32_0, %c0_i32_1, %c0_i32_2 : i32, i32, i32, i32
  }
  func.func @transform_2(%arg0: i32, %arg1: i32, %arg2: i32) -> (i32, i32) {
    %c0_i32 = arith.constant 0 : i32
    %c0_i32_0 = arith.constant 0 : i32
    %c0_i32_1 = arith.constant 0 : i32
    return %c0_i32, %c0_i32_0 : i32, i32
  }
  func.func @transform_3(%arg0: i32, %arg1: i32, %arg2: i32) -> (i32, i32, i32) {
    %c0_i32 = arith.constant 0 : i32
    return %arg0, %arg1, %arg2 : i32, i32, i32
  }
}

</mosaic_0001>

<llo_original>
// kernel: tpu_custom_call.1
$region0: #{tpu_custom_call.1}
  #allocation0 [shape = 'u32[]', space=smem, size = 0x4, offset = 0x4, fixed_abs, tag = 'smem constant byte address 0x4 - core index']
  #allocation1 [shape = 'u32[72,128]{1,0:T(1,128)}', space=vmem, size = 0x9000, scoped, tag = 'internal scratch']
  #allocation2 [shape = 'f32[2,188,128]{2,1,0:T(8,128)}', space=vmem, size = 0x30000, scoped, tag = 'scratch operand']
  #allocation3 [shape = 's32[2]{0}', space=sflag, size = 0x8, scoped, tag = 'scratch operand']
  #allocation6 [shape = 's32[]', space=sflag, size = 0x4, offset = 0, fixed_abs, tag = 'sflag constant byte address 0x0 - dummy sync flag']
  #allocation7 [shape = 's32[]', space=sflag, size = 0x4, offset = 0, fixed_abs, tag = 'sflag constant byte address 0x0 - dummy sync flag']
  %s0 = inlined_call_operand.vmem [shape: f32[2,324,128], index: 0, kind: input, shape index: {}]
  %s1 = inlined_call_operand.vmem [shape: f32[3,3,128,128], index: 1, kind: input, shape index: {}]
  %s2 = inlined_call_operand.vmem [shape: f32[1,128], index: 2, kind: input, shape index: {}]
  %s3 = inlined_call_operand.hbm [shape: f32[2,288,128], index: 3, kind: output, shape index: {}]
  %s4 = sld [smem:[#allocation0]]
  $region97: #{tpu_custom_call.1} parent=0
    _
  %s6 = ssub.s32 1, %s4
  %s7 = scalar_select 0, %s6, %s4
  $region1: #{tpu_custom_call.1} parent=0
    #allocation4 [shape = 'u8[147456]{0}', space=vmem, size = 0x24000, scoped, tag = 'output window, operand 0']
    #allocation5 [shape = 's32[2]{0}', space=sflag, size = 0x8, scoped, tag = 'scoped memory for tpu_custom_call.1']
    %8 = vsyncpa [#allocation5], 0
    %s9 = scalar_lea.sflag [#allocation5], 1
    %10 = vsyncpa %s9, 0
    loop: start=0, step=1, limit=6
    $region2: #{tpu_custom_call.1} parent=1 // loop_pre_header
      _
    $region3: #{tpu_custom_call.1} parent=1 // loop_header
      %s12 = sphi 0, %s16
      %p13 = scmp.ge.s32.totalorder %s12, 6
      %s19 = sphi 0, %s38
      %s20 = sphi 0, %s34
      %s21 = sphi 0, %s30
      %s22 = sphi 0, %s19
      %s23 = sphi 0, %s20
      %s24 = sphi 0, %s21
      %s25 = sphi 0, %s22
      %s26 = sphi 0, %s23
      %s27 = sphi 0, %s24
      %s39 = sphi 0, %s39
      %s41 = sphi 0, %s39
      %s42 = sphi 0, %s41
      %s56 = sphi 0, %s42
      %s60 = sphi 0, %s60
      %s62 = sphi 0, %s60
      %s63 = sphi 0, %s62
      %s77 = sphi 0, %s63
      %s87 = sphi 0, %s89
      %s90 = sphi 0, %s87
      %s91 = sphi 0, %s90
      %s107 = sphi 0, %s91
    $region4: #{tpu_custom_call.1} parent=1 // loop_header_branch
      %15 = sbr.rel (%p13) target = $region8
    $region5: #{tpu_custom_call.1} parent=1 // loop_body
      %s17 = ssub.s32 %s12, 1
      %s18 = ssub.s32 %s12, 2
      %s28 = sadd.s32 1, %s21
      %p29 = scmp.ge.s32.totalorder %s28, 1
      %s30 = scalar_select %p29, 0, %s28
      %s31 = sadd.s32 1, %s20
      %s32 = scalar_select %p29, %s31, %s20
      %p33 = scmp.ge.s32.totalorder %s32, 2
      %s34 = scalar_select %p33, 0, %s32
      %s35 = sadd.s32 1, %s19
      %s36 = scalar_select %p33, %s35, %s19
      %p37 = scmp.ge.s32.totalorder %s36, 2
      %s38 = scalar_select %p37, 0, %s36
      %s40 = sadd.s32 %s39, 1
      %p43 = scmp.eq.s32.totalorder %s12, 3
      %p44 = scmp.ne.s32.totalorder %s39, %s41
      %p45 = scmp.eq.s32.totalorder %s12, 0
      %p46 = por %p44, %p45
      %p47 = scmp.ne.s32.totalorder %s39, %s41
      %p48 = scmp.eq.s32.totalorder %s17, 3
      %p49 = por %p47, %p48
      %p50 = scmp.ne.s32.totalorder %s41, %s42
      %p51 = scmp.eq.s32.totalorder %s17, 0
      %p52 = por %p50, %p51
      %p53 = scmp.ne.s32.totalorder %s41, %s42
      %p54 = scmp.eq.s32.totalorder %s18, 3
      %p55 = por %p53, %p54
      %p57 = scmp.ne.s32.totalorder %s42, %s56
      %p58 = scmp.eq.s32.totalorder %s18, 0
      %p59 = por %p57, %p58
      %s61 = sadd.s32 %s60, 1
      %p64 = scmp.eq.s32.totalorder %s12, 3
      %p65 = scmp.ne.s32.totalorder %s60, %s62
      %p66 = scmp.eq.s32.totalorder %s12, 0
      %p67 = por %p65, %p66
      %p68 = scmp.ne.s32.totalorder %s60, %s62
      %p69 = scmp.eq.s32.totalorder %s17, 3
      %p70 = por %p68, %p69
      %p71 = scmp.ne.s32.totalorder %s62, %s63
      %p72 = scmp.eq.s32.totalorder %s17, 0
      %p73 = por %p71, %p72
      %p74 = scmp.ne.s32.totalorder %s62, %s63
      %p75 = scmp.eq.s32.totalorder %s18, 3
      %p76 = por %p74, %p75
      %p78 = scmp.ne.s32.totalorder %s63, %s77
      %p79 = scmp.eq.s32.totalorder %s18, 0
      %p80 = por %p78, %p79
      %s81 = ssub.s32 %s19, %s38
      %s82 = ssub.s32 %s20, %s34
      %s83 = sor.u32 %s81, %s82
      %s84 = ssub.s32 %s21, %s30
      %s85 = sor.u32 %s83, %s84
      %p86 = scmp.eq.s32.totalorder %s85, 0
      %s88 = sadd.s32 %s87, 1
      %s89 = scalar_select %p86, %s87, %s88
      %p92 = pneg %p86
      %p93 = scmp.eq.s32.totalorder %s12, 3
      %p94 = por %p92, %p93
      %p95 = scmp.ne.s32.totalorder %s87, %s90
      %p96 = scmp.eq.s32.totalorder %s12, 0
      %p97 = por %p95, %p96
      %p98 = scmp.ne.s32.totalorder %s87, %s90
      %p99 = scmp.eq.s32.totalorder %s17, 3
      %p100 = por %p98, %p99
      %p101 = scmp.ne.s32.totalorder %s90, %s91
      %p102 = scmp.eq.s32.totalorder %s17, 0
      %p103 = por %p101, %p102
      %p104 = scmp.ne.s32.totalorder %s90, %s91
      %p105 = scmp.eq.s32.totalorder %s18, 3
      %p106 = por %p104, %p105
      %p108 = scmp.ne.s32.totalorder %s91, %s107
      %p109 = scmp.eq.s32.totalorder %s18, 0
      %p110 = por %p108, %p109
      %p111 = scmp.le.s32.totalorder 1, %s12
      %p112 = scmp.lt.s32.totalorder %s12, 5
      %p113 = pnand %p111, %p112
      %p114 = pneg %p113
      // Predicated region
      $region9: #{tpu_custom_call.1} parent=5 // pred_check
        _
      $region10: #{tpu_custom_call.1} parent=5 // pred_check_branch
        %116 = sbr.rel (%p113) target = $region12
      $region11: #{tpu_custom_call.1} parent=5 // pred_region
        %s117 = ssub.s32 %s12, 1
        // Predicated region
        $region13: #{tpu_custom_call.1} parent=11 // pred_check
          %p118 = pneg %p52
        $region14: #{tpu_custom_call.1} parent=11 // pred_check_branch
          %120 = sbr.rel (%p118) target = $region16
        $region15: #{tpu_custom_call.1} parent=11 // pred_region
          _
        $region16: #{tpu_custom_call.1} parent=11 // pred_fallthru
          _
        // Predicated region
        $region17: #{tpu_custom_call.1} parent=11 // pred_check
          %p121 = pneg %p73
        $region18: #{tpu_custom_call.1} parent=11 // pred_check_branch
          %123 = sbr.rel (%p121) target = $region20
        $region19: #{tpu_custom_call.1} parent=11 // pred_region
          _
        $region20: #{tpu_custom_call.1} parent=11 // pred_fallthru
          _
      $region12: #{tpu_custom_call.1} parent=5 // pred_fallthru
        _
      %p124 = scmp.lt.s32.totalorder %s12, 4
      // Predicated region
      $region21: #{tpu_custom_call.1} parent=5 // pred_check
        %p125 = pneg %p124
      $region22: #{tpu_custom_call.1} parent=5 // pred_check_branch
        %127 = sbr.rel (%p125) target = $region24
      $region23: #{tpu_custom_call.1} parent=5 // pred_region
        _
      $region24: #{tpu_custom_call.1} parent=5 // pred_fallthru
        _
      %p128 = scmp.le.s32.totalorder 1, %s12
      %p129 = scmp.lt.s32.totalorder %s12, 5
      %p130 = pnand %p128, %p129
      %p131 = pneg %p130
      // Predicated region
      $region25: #{tpu_custom_call.1} parent=5 // pred_check
        _
      $region26: #{tpu_custom_call.1} parent=5 // pred_check_branch
        %133 = sbr.rel (%p130) target = $region28
      $region27: #{tpu_custom_call.1} parent=5 // pred_region
        %s134 = ssub.s32 %s12, 1
        %p135 = pneg %p52
        %p136 = pneg %p49
        %p137 = pneg %p73
        %p138 = pneg %p70
        %p139 = pneg %p103
        %p140 = pneg %p100
        %s141 = sand.u32 %s90, 1
        %s142 = scalar_lea.sflag [#allocation5], %s141
        %s143 = sand.u32 %s90, 1
        %s144 = smul.addr %s143, 144
        %s145 = scalar_lea.vmem [#allocation4], %s144
        %s146 = smul.u32 18, %s23
        %p147 = scmp.lt.s32.totalorder %s23, 0
        %s148 = ssub.s32 0, %s23
        %s149 = scalar_select %p147, %s148, %s23
        %s150 = sand.u32 %s149, 1
        %s151 = ssub.s32 0, %s150
        %s152 = scalar_select %p147, %s151, %s150
        %p153 = scmp.ne.s32.totalorder %s152, 0
        %p154 = scmp.lt.s32.totalorder %s152, 0
        %p155 = pnand %p154, %p153
        %p156 = pneg %p155
        %s157 = sadd.s32 %s152, 2
        %s158 = scalar_select %p156, %s157, %s152
        %p159 = scmp.eq.s32.totalorder %s23, 0
        %p160 = scmp.eq.s32.totalorder %s24, 0
        %p161 = pnand %p159, %p160
        %p162 = pneg %p161
        // Predicated region
        $region29: #{tpu_custom_call.1} parent=27 // pred_check
          _
        $region30: #{tpu_custom_call.1} parent=27 // pred_check_branch
          %164 = sbr.rel (%p161) target = $region32
        $region31: #{tpu_custom_call.1} parent=27 // pred_region
          %s165 = smul.u32 %s22, 328
          %s166 = scalar_lea.vmem %s0, %s165
          // Predicated region
          $region33: #{tpu_custom_call.1} parent=31 // pred_check
            _
          $region34: #{tpu_custom_call.1} parent=31 // pred_check_branch
            %168 = sbr.rel (0) target = $region36
          $region35: #{tpu_custom_call.1} parent=31 // pred_region
            %s169 = scalar_lea.vmem %s166, 176
            %s170 = scalar_lea.vmem [#allocation2], 176
            loop: start=0, step=1, limit=1
            $region37: #{tpu_custom_call.1} parent=35 // loop_pre_header
              _
            $region38: #{tpu_custom_call.1} parent=35 // loop_header
              %s172 = sphi 0, %s176
              %p173 = scmp.ge.s32.totalorder %s172, 1
              %s177 = sphi %s166, %s166
              %s178 = sphi [#allocation2], [#allocation2]
            $region39: #{tpu_custom_call.1} parent=35 // loop_header_branch
              %175 = sbr.rel (%p173) target = $region43
            $region40: #{tpu_custom_call.1} parent=35 // loop_body
              %v179 = vld [vmem:[%s177] sm:$0xff]
              %180 = vst [vmem:[%s178] sm:$0xff] %v179
              %v181 = vld [vmem:[%s177 + $0x8] sm:$0xff]
              %182 = vst [vmem:[%s178 + $0x8] sm:$0xff] %v181
              %v183 = vld [vmem:[%s177 + $0x10] sm:$0xff]
              %184 = vst [vmem:[%s178 + $0x10] sm:$0xff] %v183
              %v185 = vld [vmem:[%s177 + $0x18] sm:$0xff]
              %186 = vst [vmem:[%s178 + $0x18] sm:$0xff] %v185
              %v187 = vld [vmem:[%s177 + $0x20] sm:$0xff]
              %188 = vst [vmem:[%s178 + $0x20] sm:$0xff] %v187
              %v189 = vld [vmem:[%s177 + $0x28] sm:$0xff]
              %190 = vst [vmem:[%s178 + $0x28] sm:$0xff] %v189
              %v191 = vld [vmem:[%s177 + $0x30] sm:$0xff]
              %192 = vst [vmem:[%s178 + $0x30] sm:$0xff] %v191
              %v193 = vld [vmem:[%s177 + $0x38] sm:$0xff]
              %194 = vst [vmem:[%s178 + $0x38] sm:$0xff] %v193
              %v195 = vld [vmem:[%s177 + $0x40] sm:$0xff]
              %196 = vst [vmem:[%s178 + $0x40] sm:$0xff] %v195
              %v197 = vld [vmem:[%s177 + $0x48] sm:$0xff]
              %198 = vst [vmem:[%s178 + $0x48] sm:$0xff] %v197
              %v199 = vld [vmem:[%s177 + $0x50] sm:$0xff]
              %200 = vst [vmem:[%s178 + $0x50] sm:$0xff] %v199
              %v201 = vld [vmem:[%s177 + $0x58] sm:$0xff]
              %202 = vst [vmem:[%s178 + $0x58] sm:$0xff] %v201
              %v203 = vld [vmem:[%s177 + $0x60] sm:$0xff]
              %204 = vst [vmem:[%s178 + $0x60] sm:$0xff] %v203
              %v205 = vld [vmem:[%s177 + $0x68] sm:$0xff]
              %206 = vst [vmem:[%s178 + $0x68] sm:$0xff] %v205
              %v207 = vld [vmem:[%s177 + $0x70] sm:$0xff]
              %208 = vst [vmem:[%s178 + $0x70] sm:$0xff] %v207
              %v209 = vld [vmem:[%s177 + $0x78] sm:$0xff]
              %210 = vst [vmem:[%s178 + $0x78] sm:$0xff] %v209
              %v211 = vld [vmem:[%s177 + $0x80] sm:$0xff]
              %212 = vst [vmem:[%s178 + $0x80] sm:$0xff] %v211
              %v213 = vld [vmem:[%s177 + $0x88] sm:$0xff]
              %214 = vst [vmem:[%s178 + $0x88] sm:$0xff] %v213
              %v215 = vld [vmem:[%s177 + $0x90] sm:$0xff]
              %216 = vst [vmem:[%s178 + $0x90] sm:$0xff] %v215
              %v217 = vld [vmem:[%s177 + $0x98] sm:$0xff]
              %218 = vst [vmem:[%s178 + $0x98] sm:$0xff] %v217
              %v219 = vld [vmem:[%s177 + $0xa0] sm:$0xff]
              %220 = vst [vmem:[%s178 + $0xa0] sm:$0xff] %v219
              %v221 = vld [vmem:[%s177 + $0xa8] sm:$0xff]
              %222 = vst [vmem:[%s178 + $0xa8] sm:$0xff] %v221
            $region41: #{tpu_custom_call.1} parent=35 // loop_footer
              %s176 = sadd.s32 1, %s172
            $region42: #{tpu_custom_call.1} parent=35 // loop_footer_branch
              %171 = sbr.rel target = $region38
            $region43: #{tpu_custom_call.1} parent=35 // loop_exit
              _
            %s224 = ssub.s32 16, 1
            loop: start=0, step=1, limit=1
            $region44: #{tpu_custom_call.1} parent=35 // loop_pre_header
              _
            $region45: #{tpu_custom_call.1} parent=35 // loop_header
              %s226 = sphi 0, %s230
              %p227 = scmp.ge.s32.totalorder %s226, 1
              %s231 = sphi %s169, %s169
              %s232 = sphi %s170, %s170
            $region46: #{tpu_custom_call.1} parent=35 // loop_header_branch
              %229 = sbr.rel (%p227) target = $region50
            $region47: #{tpu_custom_call.1} parent=35 // loop_body
              %v233 = vld [vmem:[%s231] sm:%s224]
              %234 = vst [vmem:[%s232] sm:%s224] %v233
            $region48: #{tpu_custom_call.1} parent=35 // loop_footer
              %s230 = sadd.s32 1, %s226
            $region49: #{tpu_custom_call.1} parent=35 // loop_footer_branch
              %225 = sbr.rel target = $region45
            $region50: #{tpu_custom_call.1} parent=35 // loop_exit
              _
          $region36: #{tpu_custom_call.1} parent=31 // pred_fallthru
            _
          // Predicated region
          $region51: #{tpu_custom_call.1} parent=31 // pred_check
            _
          $region52: #{tpu_custom_call.1} parent=31 // pred_check_branch
            %237 = sbr.rel (0) target = $region54
          $region53: #{tpu_custom_call.1} parent=31 // pred_region
            %238 = vsyncadd [#allocation3], 2880
          $region54: #{tpu_custom_call.1} parent=31 // pred_fallthru
            _
        $region32: #{tpu_custom_call.1} parent=27 // pred_fallthru
          _
        // Predicated region
        $region55: #{tpu_custom_call.1} parent=27 // pred_check
          %p239 = pneg %p160
        $region56: #{tpu_custom_call.1} parent=27 // pred_check_branch
          %241 = sbr.rel (%p239) target = $region58
        $region57: #{tpu_custom_call.1} parent=27 // pred_region
          %s242 = scalar_lea.sflag [#allocation3], %s158
          %s243 = smul.u32 180, 1
          %s244 = sshll.u32 %s243, 4
          %245 = dma.done %s242, %s244
          %s246 = sadd.s32 %s23, 1
          %p247 = scmp.lt.s32.totalorder %s246, 2
          // Predicated region
          $region59: #{tpu_custom_call.1} parent=57 // pred_check
            %p248 = pneg %p247
          $region60: #{tpu_custom_call.1} parent=57 // pred_check_branch
            %250 = sbr.rel (%p248) target = $region62
          $region61: #{tpu_custom_call.1} parent=57 // pred_region
            %s251 = ssub.s32 1, %s158
            %s252 = smul.u32 %s246, 144
            %s253 = smul.u32 %s22, 328
            %s254 = sadd.s32 %s252, %s253
            %s255 = scalar_lea.vmem %s0, %s254
            %s256 = smul.u32 %s251, 192
            %s257 = scalar_lea.vmem [#allocation2], %s256
            %s258 = scalar_lea.sflag [#allocation3], %s251
            // Predicated region
            $region63: #{tpu_custom_call.1} parent=61 // pred_check
              _
            $region64: #{tpu_custom_call.1} parent=61 // pred_check_branch
              %260 = sbr.rel (0) target = $region66
            $region65: #{tpu_custom_call.1} parent=61 // pred_region
              %s261 = scalar_lea.vmem %s255, 176
              %s262 = scalar_lea.vmem %s257, 176 [#allocation2]
              loop: start=0, step=1, limit=1
              $region67: #{tpu_custom_call.1} parent=65 // loop_pre_header
                _
              $region68: #{tpu_custom_call.1} parent=65 // loop_header
                %s264 = sphi 0, %s268
                %p265 = scmp.ge.s32.totalorder %s264, 1
                %s269 = sphi %s255, %s255
                %s270 = sphi %s257, %s257
              $region69: #{tpu_custom_call.1} parent=65 // loop_header_branch
                %267 = sbr.rel (%p265) target = $region73
              $region70: #{tpu_custom_call.1} parent=65 // loop_body
                %v271 = vld [vmem:[%s269] sm:$0xff]
                %272 = vst [vmem:[%s270] sm:$0xff] %v271
                %v273 = vld [vmem:[%s269 + $0x8] sm:$0xff]
                %274 = vst [vmem:[%s270 + $0x8] sm:$0xff] %v273
                %v275 = vld [vmem:[%s269 + $0x10] sm:$0xff]
                %276 = vst [vmem:[%s270 + $0x10] sm:$0xff] %v275
                %v277 = vld [vmem:[%s269 + $0x18] sm:$0xff]
                %278 = vst [vmem:[%s270 + $0x18] sm:$0xff] %v277
                %v279 = vld [vmem:[%s269 + $0x20] sm:$0xff]
                %280 = vst [vmem:[%s270 + $0x20] sm:$0xff] %v279
                %v281 = vld [vmem:[%s269 + $0x28] sm:$0xff]
                %282 = vst [vmem:[%s270 + $0x28] sm:$0xff] %v281
                %v283 = vld [vmem:[%s269 + $0x30] sm:$0xff]
                %284 = vst [vmem:[%s270 + $0x30] sm:$0xff] %v283
                %v285 = vld [vmem:[%s269 + $0x38] sm:$0xff]
                %286 = vst [vmem:[%s270 + $0x38] sm:$0xff] %v285
                %v287 = vld [vmem:[%s269 + $0x40] sm:$0xff]
                %288 = vst [vmem:[%s270 + $0x40] sm:$0xff] %v287
                %v289 = vld [vmem:[%s269 + $0x48] sm:$0xff]
                %290 = vst [vmem:[%s270 + $0x48] sm:$0xff] %v289
                %v291 = vld [vmem:[%s269 + $0x50] sm:$0xff]
                %292 = vst [vmem:[%s270 + $0x50] sm:$0xff] %v291
                %v293 = vld [vmem:[%s269 + $0x58] sm:$0xff]
                %294 = vst [vmem:[%s270 + $0x58] sm:$0xff] %v293
                %v295 = vld [vmem:[%s269 + $0x60] sm:$0xff]
                %296 = vst [vmem:[%s270 + $0x60] sm:$0xff] %v295
                %v297 = vld [vmem:[%s269 + $0x68] sm:$0xff]
                %298 = vst [vmem:[%s270 + $0x68] sm:$0xff] %v297
                %v299 = vld [vmem:[%s269 + $0x70] sm:$0xff]
                %300 = vst [vmem:[%s270 + $0x70] sm:$0xff] %v299
                %v301 = vld [vmem:[%s269 + $0x78] sm:$0xff]
                %302 = vst [vmem:[%s270 + $0x78] sm:$0xff] %v301
                %v303 = vld [vmem:[%s269 + $0x80] sm:$0xff]
                %304 = vst [vmem:[%s270 + $0x80] sm:$0xff] %v303
                %v305 = vld [vmem:[%s269 + $0x88] sm:$0xff]
                %306 = vst [vmem:[%s270 + $0x88] sm:$0xff] %v305
                %v307 = vld [vmem:[%s269 + $0x90] sm:$0xff]
                %308 = vst [vmem:[%s270 + $0x90] sm:$0xff] %v307
                %v309 = vld [vmem:[%s269 + $0x98] sm:$0xff]
                %310 = vst [vmem:[%s270 + $0x98] sm:$0xff] %v309
                %v311 = vld [vmem:[%s269 + $0xa0] sm:$0xff]
                %312 = vst [vmem:[%s270 + $0xa0] sm:$0xff] %v311
                %v313 = vld [vmem:[%s269 + $0xa8] sm:$0xff]
                %314 = vst [vmem:[%s270 + $0xa8] sm:$0xff] %v313
              $region71: #{tpu_custom_call.1} parent=65 // loop_footer
                %s268 = sadd.s32 1, %s264
              $region72: #{tpu_custom_call.1} parent=65 // loop_footer_branch
                %263 = sbr.rel target = $region68
              $region73: #{tpu_custom_call.1} parent=65 // loop_exit
                _
              %s316 = ssub.s32 16, 1
              loop: start=0, step=1, limit=1
              $region74: #{tpu_custom_call.1} parent=65 // loop_pre_header
                _
              $region75: #{tpu_custom_call.1} parent=65 // loop_header
                %s318 = sphi 0, %s322
                %p319 = scmp.ge.s32.totalorder %s318, 1
                %s323 = sphi %s261, %s261
                %s324 = sphi %s262, %s262
              $region76: #{tpu_custom_call.1} parent=65 // loop_header_branch
                %321 = sbr.rel (%p319) target = $region80
              $region77: #{tpu_custom_call.1} parent=65 // loop_body
                %v325 = vld [vmem:[%s323] sm:%s316]
                %326 = vst [vmem:[%s324] sm:%s316] %v325
              $region78: #{tpu_custom_call.1} parent=65 // loop_footer
                %s322 = sadd.s32 1, %s318
              $region79: #{tpu_custom_call.1} parent=65 // loop_footer_branch
                %317 = sbr.rel target = $region75
              $region80: #{tpu_custom_call.1} parent=65 // loop_exit
                _
            $region66: #{tpu_custom_call.1} parent=61 // pred_fallthru
              _
            // Predicated region
            $region81: #{tpu_custom_call.1} parent=61 // pred_check
              _
            $region82: #{tpu_custom_call.1} parent=61 // pred_check_branch
              %329 = sbr.rel (0) target = $region84
            $region83: #{tpu_custom_call.1} parent=61 // pred_region
              %330 = vsyncadd %s258, 2880
            $region84: #{tpu_custom_call.1} parent=61 // pred_fallthru
              _
          $region62: #{tpu_custom_call.1} parent=57 // pred_fallthru
            _
        $region58: #{tpu_custom_call.1} parent=27 // pred_fallthru
          _
        %v331 = vld [vmem:[%s2] sm:$0x1]
        %s332 = smul.u32 %s158, 192
        %s333 = scalar_lea.vmem [#allocation2], %s332
        %v334 = vld [vmem:[%s333] sm:$0xff]
        %v335 = vld [vmem:[%s333 + $0x8] sm:$0xff]
        %v336 = vld [vmem:[%s333 + $0x10] sm:$0xff]
        %v337 = vld [vmem:[%s333 + $0x18] sm:$0xff]
        %v338 = vld [vmem:[%s333 + $0x20] sm:$0xff]
        %v339 = vld [vmem:[%s333 + $0x28] sm:$0xff]
        %v340 = vld [vmem:[%s333 + $0x30] sm:$0xff]
        %v341 = vld [vmem:[%s333 + $0x38] sm:$0xff]
        %v342 = vld [vmem:[%s333 + $0x40] sm:$0xff]
        %v343 = vld [vmem:[%s333 + $0x48] sm:$0xff]
        %v344 = vld [vmem:[%s333 + $0x50] sm:$0xff]
        %v345 = vld [vmem:[%s333 + $0x58] sm:$0xff]
        %v346 = vld [vmem:[%s333 + $0x60] sm:$0xff]
        %v347 = vld [vmem:[%s333 + $0x68] sm:$0xff]
        %v348 = vld [vmem:[%s333 + $0x70] sm:$0xff]
        %v349 = vld [vmem:[%s333 + $0x78] sm:$0xff]
        %v350 = vld [vmem:[%s333 + $0x80] sm:$0xff]
        %v351 = vld [vmem:[%s333 + $0x88] sm:$0xff]
        %v352 = vld [vmem:[%s1] sm:$0xff]
        %v353 = vld [vmem:[%s1 + $0x8] sm:$0xff]
        %v354 = vld [vmem:[%s1 + $0x10] sm:$0xff]
        %v355 = vld [vmem:[%s1 + $0x18] sm:$0xff]
        %v356 = vld [vmem:[%s1 + $0x20] sm:$0xff]
        %v357 = vld [vmem:[%s1 + $0x28] sm:$0xff]
        %v358 = vld [vmem:[%s1 + $0x30] sm:$0xff]
        %v359 = vld [vmem:[%s1 + $0x38] sm:$0xff]
        %v360 = vld [vmem:[%s1 + $0x40] sm:$0xff]
        %v361 = vld [vmem:[%s1 + $0x48] sm:$0xff]
        %v362 = vld [vmem:[%s1 + $0x50] sm:$0xff]
        %v363 = vld [vmem:[%s1 + $0x58] sm:$0xff]
        %v364 = vld [vmem:[%s1 + $0x60] sm:$0xff]
        %v365 = vld [vmem:[%s1 + $0x68] sm:$0xff]
        %v366 = vld [vmem:[%s1 + $0x70] sm:$0xff]
        %v367 = vld [vmem:[%s1 + $0x78] sm:$0xff]
        %v368 = vld [vmem:[%s333 + $0x1] sm:$0xff]
        %v369 = vld [vmem:[%s333 + $0x9] sm:$0xff]
        %v370 = vld [vmem:[%s333 + $0x11] sm:$0xff]
        %v371 = vld [vmem:[%s333 + $0x19] sm:$0xff]
        %v372 = vld [vmem:[%s333 + $0x21] sm:$0xff]
        %v373 = vld [vmem:[%s333 + $0x29] sm:$0xff]
        %v374 = vld [vmem:[%s333 + $0x31] sm:$0xff]
        %v375 = vld [vmem:[%s333 + $0x39] sm:$0xff]
        %v376 = vld [vmem:[%s333 + $0x41] sm:$0xff]
        %v377 = vld [vmem:[%s333 + $0x49] sm:$0xff]
        %v378 = vld [vmem:[%s333 + $0x51] sm:$0xff]
        %v379 = vld [vmem:[%s333 + $0x59] sm:$0xff]
        %v380 = vld [vmem:[%s333 + $0x61] sm:$0xff]
        %v381 = vld [vmem:[%s333 + $0x69] sm:$0xff]
        %v382 = vld [vmem:[%s333 + $0x71] sm:$0xff]
        %v383 = vld [vmem:[%s333 + $0x79] sm:$0xff]
        %v384 = vld [vmem:[%s333 + $0x81] sm:$0xff]
        %v385 = vld [vmem:[%s333 + $0x89] sm:$0xff]
        %s386 = scalar_lea.vmem %s1, 128
        %v387 = vld [vmem:[%s386] sm:$0xff]
        %v388 = vld [vmem:[%s386 + $0x8] sm:$0xff]
        %v389 = vld [vmem:[%s386 + $0x10] sm:$0xff]
        %v390 = vld [vmem:[%s386 + $0x18] sm:$0xff]
        %v391 = vld [vmem:[%s386 + $0x20] sm:$0xff]
        %v392 = vld [vmem:[%s386 + $0x28] sm:$0xff]
        %v393 = vld [vmem:[%s386 + $0x30] sm:$0xff]
        %v394 = vld [vmem:[%s386 + $0x38] sm:$0xff]
        %v395 = vld [vmem:[%s386 + $0x40] sm:$0xff]
        %v396 = vld [vmem:[%s386 + $0x48] sm:$0xff]
        %v397 = vld [vmem:[%s386 + $0x50] sm:$0xff]
        %v398 = vld [vmem:[%s386 + $0x58] sm:$0xff]
        %v399 = vld [vmem:[%s386 + $0x60] sm:$0xff]
        %v400 = vld [vmem:[%s386 + $0x68] sm:$0xff]
        %v401 = vld [vmem:[%s386 + $0x70] sm:$0xff]
        %v402 = vld [vmem:[%s386 + $0x78] sm:$0xff]
        %v403 = vand.u32 %v402, 4294901760
        %404 = vmatpush.msra.mxu0 %v403
        %v405 = vand.u32 %v401, 4294901760
        %406 = vmatpush.msra.mxu0 %v405
        %v407 = vand.u32 %v400, 4294901760
        %408 = vmatpush.msra.mxu0 %v407
        %v409 = vand.u32 %v399, 4294901760
        %410 = vmatpush.msra.mxu0 %v409
        %v411 = vand.u32 %v398, 4294901760
        %412 = vmatpush.msra.mxu0 %v411
        %v413 = vand.u32 %v397, 4294901760
        %414 = vmatpush.msra.mxu0 %v413
        %v415 = vand.u32 %v396, 4294901760
        %416 = vmatpush.msra.mxu0 %v415
        %v417 = vand.u32 %v395, 4294901760
        %418 = vmatpush.msra.mxu0 %v417
        %v419 = vand.u32 %v394, 4294901760
        %420 = vmatpush.msra.mxu0 %v419
        %v421 = vand.u32 %v393, 4294901760
        %422 = vmatpush.msra.mxu0 %v421
        %v423 = vand.u32 %v392, 4294901760
        %424 = vmatpush.msra.mxu0 %v423
        %v425 = vand.u32 %v391, 4294901760
        %426 = vmatpush.msra.mxu0 %v425
        %v427 = vand.u32 %v390, 4294901760
        %428 = vmatpush.msra.mxu0 %v427
        %v429 = vand.u32 %v389, 4294901760
        %430 = vmatpush.msra.mxu0 %v429
        %v431 = vand.u32 %v388, 4294901760
        %432 = vmatpush.msra.mxu0 %v431
        %v433 = vand.u32 %v387, 4294901760
        %434 = vmatpush.msra.mxu0 %v433
        %v435 = vand.u32 %v368, 4294901760
        %v436 = vsub.f32 %v368, %v435
        %v437 = vand.u32 %v436, 4294901760
        %v438 = vsub.f32 %v436, %v437
        %v439 = vand.u32 %v438, 4294901760
        %440 = vmatmul.f32.gmra.mxu0 %v439
        %v441 = vpop.f32.mrf.mxu0
        %v442 = vadd.f32 0.0, %v441
        %v443 = vand.u32 %v369, 4294901760
        %v444 = vsub.f32 %v369, %v443
        %v445 = vand.u32 %v444, 4294901760
        %v446 = vsub.f32 %v444, %v445
        %v447 = vand.u32 %v446, 4294901760
        %448 = vmatmul.f32.gmra.mxu0 %v447
        %v449 = vpop.f32.mrf.mxu0
        %v450 = vadd.f32 0.0, %v449
        %v451 = vand.u32 %v370, 4294901760
        %v452 = vsub.f32 %v370, %v451
        %v453 = vand.u32 %v452, 4294901760
        %v454 = vsub.f32 %v452, %v453
        %v455 = vand.u32 %v454, 4294901760
        %456 = vmatmul.f32.gmra.mxu0 %v455
        %v457 = vpop.f32.mrf.mxu0
        %v458 = vadd.f32 0.0, %v457
        %v459 = vand.u32 %v371, 4294901760
        %v460 = vsub.f32 %v371, %v459
        %v461 = vand.u32 %v460, 4294901760
        %v462 = vsub.f32 %v460, %v461
        %v463 = vand.u32 %v462, 4294901760
        %464 = vmatmul.f32.gmra.mxu0 %v463
        %v465 = vpop.f32.mrf.mxu0
        %v466 = vadd.f32 0.0, %v465
        %v467 = vand.u32 %v372, 4294901760
        %v468 = vsub.f32 %v372, %v467
        %v469 = vand.u32 %v468, 4294901760
        %v470 = vsub.f32 %v468, %v469
        %v471 = vand.u32 %v470, 4294901760
        %472 = vmatmul.f32.gmra.mxu0 %v471
        %v473 = vpop.f32.mrf.mxu0
        %v474 = vadd.f32 0.0, %v473
        %v475 = vand.u32 %v373, 4294901760
        %v476 = vsub.f32 %v373, %v475
        %v477 = vand.u32 %v476, 4294901760
        %v478 = vsub.f32 %v476, %v477
        %v479 = vand.u32 %v478, 4294901760
        %480 = vmatmul.f32.gmra.mxu0 %v479
        %v481 = vpop.f32.mrf.mxu0
        %v482 = vadd.f32 0.0, %v481
        %v483 = vand.u32 %v374, 4294901760
        %v484 = vsub.f32 %v374, %v483
        %v485 = vand.u32 %v484, 4294901760
        %v486 = vsub.f32 %v484, %v485
        %v487 = vand.u32 %v486, 4294901760
        %488 = vmatmul.f32.gmra.mxu0 %v487
        %v489 = vpop.f32.mrf.mxu0
        %v490 = vadd.f32 0.0, %v489
        %v491 = vand.u32 %v375, 4294901760
        %v492 = vsub.f32 %v375, %v491
        %v493 = vand.u32 %v492, 4294901760
        %v494 = vsub.f32 %v492, %v493
        %v495 = vand.u32 %v494, 4294901760
        %496 = vmatmul.f32.gmra.mxu0 %v495
        %v497 = vpop.f32.mrf.mxu0
        %v498 = vadd.f32 0.0, %v497
        %v499 = vand.u32 %v376, 4294901760
        %v500 = vsub.f32 %v376, %v499
        %v501 = vand.u32 %v500, 4294901760
        %v502 = vsub.f32 %v500, %v501
        %v503 = vand.u32 %v502, 4294901760
        %504 = vmatmul.f32.gmra.mxu0 %v503
        %v505 = vpop.f32.mrf.mxu0
        %v506 = vadd.f32 0.0, %v505
        %v507 = vand.u32 %v377, 4294901760
        %v508 = vsub.f32 %v377, %v507
        %v509 = vand.u32 %v508, 4294901760
        %v510 = vsub.f32 %v508, %v509
        %v511 = vand.u32 %v510, 4294901760
        %512 = vmatmul.f32.gmra.mxu0 %v511
        %v513 = vpop.f32.mrf.mxu0
        %v514 = vadd.f32 0.0, %v513
        %v515 = vand.u32 %v378, 4294901760
        %v516 = vsub.f32 %v378, %v515
        %v517 = vand.u32 %v516, 4294901760
        %v518 = vsub.f32 %v516, %v517
        %v519 = vand.u32 %v518, 4294901760
        %520 = vmatmul.f32.gmra.mxu0 %v519
        %v521 = vpop.f32.mrf.mxu0
        %v522 = vadd.f32 0.0, %v521
        %v523 = vand.u32 %v379, 4294901760
        %v524 = vsub.f32 %v379, %v523
        %v525 = vand.u32 %v524, 4294901760
        %v526 = vsub.f32 %v524, %v525
        %v527 = vand.u32 %v526, 4294901760
        %528 = vmatmul.f32.gmra.mxu0 %v527
        %v529 = vpop.f32.mrf.mxu0
        %v530 = vadd.f32 0.0, %v529
        %v531 = vand.u32 %v380, 4294901760
        %v532 = vsub.f32 %v380, %v531
        %v533 = vand.u32 %v532, 4294901760
        %v534 = vsub.f32 %v532, %v533
        %v535 = vand.u32 %v534, 4294901760
        %536 = vmatmul.f32.gmra.mxu0 %v535
        %v537 = vpop.f32.mrf.mxu0
        %v538 = vadd.f32 0.0, %v537
        %v539 = vand.u32 %v381, 4294901760
        %v540 = vsub.f32 %v381, %v539
        %v541 = vand.u32 %v540, 4294901760
        %v542 = vsub.f32 %v540, %v541
        %v543 = vand.u32 %v542, 4294901760
        %544 = vmatmul.f32.gmra.mxu0 %v543
        %v545 = vpop.f32.mrf.mxu0
        %v546 = vadd.f32 0.0, %v545
        %v547 = vand.u32 %v382, 4294901760
        %v548 = vsub.f32 %v382, %v547
        %v549 = vand.u32 %v548, 4294901760
        %v550 = vsub.f32 %v548, %v549
        %v551 = vand.u32 %v550, 4294901760
        %552 = vmatmul.f32.gmra.mxu0 %v551
        %v553 = vpop.f32.mrf.mxu0
        %v554 = vadd.f32 0.0, %v553
        %v555 = vand.u32 %v383, 4294901760
        %v556 = vsub.f32 %v383, %v555
        %v557 = vand.u32 %v556, 4294901760
        %v558 = vsub.f32 %v556, %v557
        %v559 = vand.u32 %v558, 4294901760
        %560 = vmatmul.f32.gmra.mxu0 %v559
        %v561 = vpop.f32.mrf.mxu0
        %v562 = vadd.f32 0.0, %v561
        %v563 = vand.u32 %v384, 4294901760
        %v564 = vsub.f32 %v384, %v563
        %v565 = vand.u32 %v564, 4294901760
        %v566 = vsub.f32 %v564, %v565
        %v567 = vand.u32 %v566, 4294901760
        %568 = vmatmul.f32.gmra.mxu0 %v567
        %v569 = vpop.f32.mrf.mxu0
        %v570 = vadd.f32 0.0, %v569
        %v571 = vand.u32 %v385, 4294901760
        %v572 = vsub.f32 %v385, %v571
        %v573 = vand.u32 %v572, 4294901760
        %v574 = vsub.f32 %v572, %v573
        %v575 = vand.u32 %v574, 4294901760
        %576 = vmatmul.f32.gmra.mxu0 %v575
        %v577 = vpop.f32.mrf.mxu0
        %v578 = vadd.f32 0.0, %v577
        %579 = vdwg.mxu0
        %v580 = vand.u32 %v402, 4294901760
        %v581 = vsub.f32 %v402, %v580
        %v582 = vand.u32 %v581, 4294901760
        %v583 = vsub.f32 %v581, %v582
        %v584 = vand.u32 %v583, 4294901760
        %585 = vmatpush.msra.mxu0 %v584
        %v586 = vand.u32 %v401, 4294901760
        %v587 = vsub.f32 %v401, %v586
        %v588 = vand.u32 %v587, 4294901760
        %v589 = vsub.f32 %v587, %v588
        %v590 = vand.u32 %v589, 4294901760
        %591 = vmatpush.msra.mxu0 %v590
        %v592 = vand.u32 %v400, 4294901760
        %v593 = vsub.f32 %v400, %v592
        %v594 = vand.u32 %v593, 4294901760
        %v595 = vsub.f32 %v593, %v594
        %v596 = vand.u32 %v595, 4294901760
        %597 = vmatpush.msra.mxu0 %v596
        %v598 = vand.u32 %v399, 4294901760
        %v599 = vsub.f32 %v399, %v598
        %v600 = vand.u32 %v599, 4294901760
        %v601 = vsub.f32 %v599, %v600
        %v602 = vand.u32 %v601, 4294901760
        %603 = vmatpush.msra.mxu0 %v602
        %v604 = vand.u32 %v398, 4294901760
        %v605 = vsub.f32 %v398, %v604
        %v606 = vand.u32 %v605, 4294901760
        %v607 = vsub.f32 %v605, %v606
        %v608 = vand.u32 %v607, 4294901760
        %609 = vmatpush.msra.mxu0 %v608
        %v610 = vand.u32 %v397, 4294901760
        %v611 = vsub.f32 %v397, %v610
        %v612 = vand.u32 %v611, 4294901760
        %v613 = vsub.f32 %v611, %v612
        %v614 = vand.u32 %v613, 4294901760
        %615 = vmatpush.msra.mxu0 %v614
        %v616 = vand.u32 %v396, 4294901760
        %v617 = vsub.f32 %v396, %v616
        %v618 = vand.u32 %v617, 4294901760
        %v619 = vsub.f32 %v617, %v618
        %v620 = vand.u32 %v619, 4294901760
        %621 = vmatpush.msra.mxu0 %v620
        %v622 = vand.u32 %v395, 4294901760
        %v623 = vsub.f32 %v395, %v622
        %v624 = vand.u32 %v623, 4294901760
        %v625 = vsub.f32 %v623, %v624
        %v626 = vand.u32 %v625, 4294901760
        %627 = vmatpush.msra.mxu0 %v626
        %v628 = vand.u32 %v394, 4294901760
        %v629 = vsub.f32 %v394, %v628
        %v630 = vand.u32 %v629, 4294901760
        %v631 = vsub.f32 %v629, %v630
        %v632 = vand.u32 %v631, 4294901760
        %633 = vmatpush.msra.mxu0 %v632
        %v634 = vand.u32 %v393, 4294901760
        %v635 = vsub.f32 %v393, %v634
        %v636 = vand.u32 %v635, 4294901760
        %v637 = vsub.f32 %v635, %v636
        %v638 = vand.u32 %v637, 4294901760
        %639 = vmatpush.msra.mxu0 %v638
        %v640 = vand.u32 %v392, 4294901760
        %v641 = vsub.f32 %v392, %v640
        %v642 = vand.u32 %v641, 4294901760
        %v643 = vsub.f32 %v641, %v642
        %v644 = vand.u32 %v643, 4294901760
        %645 = vmatpush.msra.mxu0 %v644
        %v646 = vand.u32 %v391, 4294901760
        %v647 = vsub.f32 %v391, %v646
        %v648 = vand.u32 %v647, 4294901760
        %v649 = vsub.f32 %v647, %v648
        %v650 = vand.u32 %v649, 4294901760
        %651 = vmatpush.msra.mxu0 %v650
        %v652 = vand.u32 %v390, 4294901760
        %v653 = vsub.f32 %v390, %v652
        %v654 = vand.u32 %v653, 4294901760
        %v655 = vsub.f32 %v653, %v654
        %v656 = vand.u32 %v655, 4294901760
        %657 = vmatpush.msra.mxu0 %v656
        %v658 = vand.u32 %v389, 4294901760
        %v659 = vsub.f32 %v389, %v658
        %v660 = vand.u32 %v659, 4294901760
        %v661 = vsub.f32 %v659, %v660
        %v662 = vand.u32 %v661, 4294901760
        %663 = vmatpush.msra.mxu0 %v662
        %v664 = vand.u32 %v388, 4294901760
        %v665 = vsub.f32 %v388, %v664
        %v666 = vand.u32 %v665, 4294901760
        %v667 = vsub.f32 %v665, %v666
        %v668 = vand.u32 %v667, 4294901760
        %669 = vmatpush.msra.mxu0 %v668
        %v670 = vand.u32 %v387, 4294901760
        %v671 = vsub.f32 %v387, %v670
        %v672 = vand.u32 %v671, 4294901760
        %v673 = vsub.f32 %v671, %v672
        %v674 = vand.u32 %v673, 4294901760
        %675 = vmatpush.msra.mxu0 %v674
        %v676 = vand.u32 %v368, 4294901760
        %677 = vmatmul.f32.gmra.mxu0 %v676
        %v678 = vpop.f32.mrf.mxu0
        %v679 = vadd.f32 %v442, %v678
        %v680 = vand.u32 %v369, 4294901760
        %681 = vmatmul.f32.gmra.mxu0 %v680
        %v682 = vpop.f32.mrf.mxu0
        %v683 = vadd.f32 %v450, %v682
        %v684 = vand.u32 %v370, 4294901760
        %685 = vmatmul.f32.gmra.mxu0 %v684
        %v686 = vpop.f32.mrf.mxu0
        %v687 = vadd.f32 %v458, %v686
        %v688 = vand.u32 %v371, 4294901760
        %689 = vmatmul.f32.gmra.mxu0 %v688
        %v690 = vpop.f32.mrf.mxu0
        %v691 = vadd.f32 %v466, %v690
        %v692 = vand.u32 %v372, 4294901760
        %693 = vmatmul.f32.gmra.mxu0 %v692
        %v694 = vpop.f32.mrf.mxu0
        %v695 = vadd.f32 %v474, %v694
        %v696 = vand.u32 %v373, 4294901760
        %697 = vmatmul.f32.gmra.mxu0 %v696
        %v698 = vpop.f32.mrf.mxu0
        %v699 = vadd.f32 %v482, %v698
        %v700 = vand.u32 %v374, 4294901760
        %701 = vmatmul.f32.gmra.mxu0 %v700
        %v702 = vpop.f32.mrf.mxu0
        %v703 = vadd.f32 %v490, %v702
        %v704 = vand.u32 %v375, 4294901760
        %705 = vmatmul.f32.gmra.mxu0 %v704
        %v706 = vpop.f32.mrf.mxu0
        %v707 = vadd.f32 %v498, %v706
        %v708 = vand.u32 %v376, 4294901760
        %709 = vmatmul.f32.gmra.mxu0 %v708
        %v710 = vpop.f32.mrf.mxu0
        %v711 = vadd.f32 %v506, %v710
        %v712 = vand.u32 %v377, 4294901760
        %713 = vmatmul.f32.gmra.mxu0 %v712
        %v714 = vpop.f32.mrf.mxu0
        %v715 = vadd.f32 %v514, %v714
        %v716 = vand.u32 %v378, 4294901760
        %717 = vmatmul.f32.gmra.mxu0 %v716
        %v718 = vpop.f32.mrf.mxu0
        %v719 = vadd.f32 %v522, %v718
        %v720 = vand.u32 %v379, 4294901760
        %721 = vmatmul.f32.gmra.mxu0 %v720
        %v722 = vpop.f32.mrf.mxu0
        %v723 = vadd.f32 %v530, %v722
        %v724 = vand.u32 %v380, 4294901760
        %725 = vmatmul.f32.gmra.mxu0 %v724
        %v726 = vpop.f32.mrf.mxu0
        %v727 = vadd.f32 %v538, %v726
        %v728 = vand.u32 %v381, 4294901760
        %729 = vmatmul.f32.gmra.mxu0 %v728
        %v730 = vpop.f32.mrf.mxu0
        %v731 = vadd.f32 %v546, %v730
        %v732 = vand.u32 %v382, 4294901760
        %733 = vmatmul.f32.gmra.mxu0 %v732
        %v734 = vpop.f32.mrf.mxu0
        %v735 = vadd.f32 %v554, %v734
        %v736 = vand.u32 %v383, 4294901760
        %737 = vmatmul.f32.gmra.mxu0 %v736
        %v738 = vpop.f32.mrf.mxu0
        %v739 = vadd.f32 %v562, %v738
        %v740 = vand.u32 %v384, 4294901760
        %741 = vmatmul.f32.gmra.mxu0 %v740
        %v742 = vpop.f32.mrf.mxu0
        %v743 = vadd.f32 %v570, %v742
        %v744 = vand.u32 %v385, 4294901760
        %745 = vmatmul.f32.gmra.mxu0 %v744
        %v746 = vpop.f32.mrf.mxu0
        %v747 = vadd.f32 %v578, %v746
        %748 = vdwg.mxu0
        %v749 = vand.u32 %v402, 4294901760
        %v750 = vsub.f32 %v402, %v749
        %751 = vmatpush.msra.mxu0 %v750
        %v752 = vand.u32 %v401, 4294901760
        %v753 = vsub.f32 %v401, %v752
        %754 = vmatpush.msra.mxu0 %v753
        %v755 = vand.u32 %v400, 4294901760
        %v756 = vsub.f32 %v400, %v755
        %757 = vmatpush.msra.mxu0 %v756
        %v758 = vand.u32 %v399, 4294901760
        %v759 = vsub.f32 %v399, %v758
        %760 = vmatpush.msra.mxu0 %v759
        %v761 = vand.u32 %v398, 4294901760
        %v762 = vsub.f32 %v398, %v761
        %763 = vmatpush.msra.mxu0 %v762
        %v764 = vand.u32 %v397, 4294901760
        %v765 = vsub.f32 %v397, %v764
        %766 = vmatpush.msra.mxu0 %v765
        %v767 = vand.u32 %v396, 4294901760
        %v768 = vsub.f32 %v396, %v767
        %769 = vmatpush.msra.mxu0 %v768
        %v770 = vand.u32 %v395, 4294901760
        %v771 = vsub.f32 %v395, %v770
        %772 = vmatpush.msra.mxu0 %v771
        %v773 = vand.u32 %v394, 4294901760
        %v774 = vsub.f32 %v394, %v773
        %775 = vmatpush.msra.mxu0 %v774
        %v776 = vand.u32 %v393, 4294901760
        %v777 = vsub.f32 %v393, %v776
        %778 = vmatpush.msra.mxu0 %v777
        %v779 = vand.u32 %v392, 4294901760
        %v780 = vsub.f32 %v392, %v779
        %781 = vmatpush.msra.mxu0 %v780
        %v782 = vand.u32 %v391, 4294901760
        %v783 = vsub.f32 %v391, %v782
        %784 = vmatpush.msra.mxu0 %v783
        %v785 = vand.u32 %v390, 4294901760
        %v786 = vsub.f32 %v390, %v785
        %787 = vmatpush.msra.mxu0 %v786
        %v788 = vand.u32 %v389, 4294901760
        %v789 = vsub.f32 %v389, %v788
        %790 = vmatpush.msra.mxu0 %v789
        %v791 = vand.u32 %v388, 4294901760
        %v792 = vsub.f32 %v388, %v791
        %793 = vmatpush.msra.mxu0 %v792
        %v794 = vand.u32 %v387, 4294901760
        %v795 = vsub.f32 %v387, %v794
        %796 = vmatpush.msra.mxu0 %v795
        %v797 = vand.u32 %v368, 4294901760
        %v798 = vsub.f32 %v368, %v797
        %799 = vmatmul.f32.gmra.mxu0 %v798
        %v800 = vpop.f32.mrf.mxu0
        %v801 = vadd.f32 %v679, %v800
        %v802 = vand.u32 %v369, 4294901760
        %v803 = vsub.f32 %v369, %v802
        %804 = vmatmul.f32.gmra.mxu0 %v803
        %v805 = vpop.f32.mrf.mxu0
        %v806 = vadd.f32 %v683, %v805
        %v807 = vand.u32 %v370, 4294901760
        %v808 = vsub.f32 %v370, %v807
        %809 = vmatmul.f32.gmra.mxu0 %v808
        %v810 = vpop.f32.mrf.mxu0
        %v811 = vadd.f32 %v687, %v810
        %v812 = vand.u32 %v371, 4294901760
        %v813 = vsub.f32 %v371, %v812
        %814 = vmatmul.f32.gmra.mxu0 %v813
        %v815 = vpop.f32.mrf.mxu0
        %v816 = vadd.f32 %v691, %v815
        %v817 = vand.u32 %v372, 4294901760
        %v818 = vsub.f32 %v372, %v817
        %819 = vmatmul.f32.gmra.mxu0 %v818
        %v820 = vpop.f32.mrf.mxu0
        %v821 = vadd.f32 %v695, %v820
        %v822 = vand.u32 %v373, 4294901760
        %v823 = vsub.f32 %v373, %v822
        %824 = vmatmul.f32.gmra.mxu0 %v823
        %v825 = vpop.f32.mrf.mxu0
        %v826 = vadd.f32 %v699, %v825
        %v827 = vand.u32 %v374, 4294901760
        %v828 = vsub.f32 %v374, %v827
        %829 = vmatmul.f32.gmra.mxu0 %v828
        %v830 = vpop.f32.mrf.mxu0
        %v831 = vadd.f32 %v703, %v830
        %v832 = vand.u32 %v375, 4294901760
        %v833 = vsub.f32 %v375, %v832
        %834 = vmatmul.f32.gmra.mxu0 %v833
        %v835 = vpop.f32.mrf.mxu0
        %v836 = vadd.f32 %v707, %v835
        %v837 = vand.u32 %v376, 4294901760
        %v838 = vsub.f32 %v376, %v837
        %839 = vmatmul.f32.gmra.mxu0 %v838
        %v840 = vpop.f32.mrf.mxu0
        %v841 = vadd.f32 %v711, %v840
        %v842 = vand.u32 %v377, 4294901760
        %v843 = vsub.f32 %v377, %v842
        %844 = vmatmul.f32.gmra.mxu0 %v843
        %v845 = vpop.f32.mrf.mxu0
        %v846 = vadd.f32 %v715, %v845
        %v847 = vand.u32 %v378, 4294901760
        %v848 = vsub.f32 %v378, %v847
        %849 = vmatmul.f32.gmra.mxu0 %v848
        %v850 = vpop.f32.mrf.mxu0
        %v851 = vadd.f32 %v719, %v850
        %v852 = vand.u32 %v379, 4294901760
        %v853 = vsub.f32 %v379, %v852
        %854 = vmatmul.f32.gmra.mxu0 %v853
        %v855 = vpop.f32.mrf.mxu0
        %v856 = vadd.f32 %v723, %v855
        %v857 = vand.u32 %v380, 4294901760
        %v858 = vsub.f32 %v380, %v857
        %859 = vmatmul.f32.gmra.mxu0 %v858
        %v860 = vpop.f32.mrf.mxu0
        %v861 = vadd.f32 %v727, %v860
        %v862 = vand.u32 %v381, 4294901760
        %v863 = vsub.f32 %v381, %v862
        %864 = vmatmul.f32.gmra.mxu0 %v863
        %v865 = vpop.f32.mrf.mxu0
        %v866 = vadd.f32 %v731, %v865
        %v867 = vand.u32 %v382, 4294901760
        %v868 = vsub.f32 %v382, %v867
        %869 = vmatmul.f32.gmra.mxu0 %v868
        %v870 = vpop.f32.mrf.mxu0
        %v871 = vadd.f32 %v735, %v870
        %v872 = vand.u32 %v383, 4294901760
        %v873 = vsub.f32 %v383, %v872
        %874 = vmatmul.f32.gmra.mxu0 %v873
        %v875 = vpop.f32.mrf.mxu0
        %v876 = vadd.f32 %v739, %v875
        %v877 = vand.u32 %v384, 4294901760
        %v878 = vsub.f32 %v384, %v877
        %879 = vmatmul.f32.gmra.mxu0 %v878
        %v880 = vpop.f32.mrf.mxu0
        %v881 = vadd.f32 %v743, %v880
        %v882 = vand.u32 %v385, 4294901760
        %v883 = vsub.f32 %v385, %v882
        %884 = vmatmul.f32.gmra.mxu0 %v883
        %v885 = vpop.f32.mrf.mxu0
        %v886 = vadd.f32 %v747, %v885
        %887 = vdwg.mxu0
        %v888 = vand.u32 %v402, 4294901760
        %889 = vmatpush.msra.mxu0 %v888
        %v890 = vand.u32 %v401, 4294901760
        %891 = vmatpush.msra.mxu0 %v890
        %v892 = vand.u32 %v400, 4294901760
        %893 = vmatpush.msra.mxu0 %v892
        %v894 = vand.u32 %v399, 4294901760
        %895 = vmatpush.msra.mxu0 %v894
        %v896 = vand.u32 %v398, 4294901760
        %897 = vmatpush.msra.mxu0 %v896
        %v898 = vand.u32 %v397, 4294901760
        %899 = vmatpush.msra.mxu0 %v898
        %v900 = vand.u32 %v396, 4294901760
        %901 = vmatpush.msra.mxu0 %v900
        %v902 = vand.u32 %v395, 4294901760
        %903 = vmatpush.msra.mxu0 %v902
        %v904 = vand.u32 %v394, 4294901760
        %905 = vmatpush.msra.mxu0 %v904
        %v906 = vand.u32 %v393, 4294901760
        %907 = vmatpush.msra.mxu0 %v906
        %v908 = vand.u32 %v392, 4294901760
        %909 = vmatpush.msra.mxu0 %v908
        %v910 = vand.u32 %v391, 4294901760
        %911 = vmatpush.msra.mxu0 %v910
        %v912 = vand.u32 %v390, 4294901760
        %913 = vmatpush.msra.mxu0 %v912
        %v914 = vand.u32 %v389, 4294901760
        %915 = vmatpush.msra.mxu0 %v914
        %v916 = vand.u32 %v388, 4294901760
        %917 = vmatpush.msra.mxu0 %v916
        %v918 = vand.u32 %v387, 4294901760
        %919 = vmatpush.msra.mxu0 %v918
        %v920 = vand.u32 %v368, 4294901760
        %v921 = vsub.f32 %v368, %v920
        %v922 = vand.u32 %v921, 4294901760
        %923 = vmatmul.f32.gmra.mxu0 %v922
        %v924 = vpop.f32.mrf.mxu0
        %v925 = vadd.f32 %v801, %v924
        %v926 = vand.u32 %v369, 4294901760
        %v927 = vsub.f32 %v369, %v926
        %v928 = vand.u32 %v927, 4294901760
        %929 = vmatmul.f32.gmra.mxu0 %v928
        %v930 = vpop.f32.mrf.mxu0
        %v931 = vadd.f32 %v806, %v930
        %v932 = vand.u32 %v370, 4294901760
        %v933 = vsub.f32 %v370, %v932
        %v934 = vand.u32 %v933, 4294901760
        %935 = vmatmul.f32.gmra.mxu0 %v934
        %v936 = vpop.f32.mrf.mxu0
        %v937 = vadd.f32 %v811, %v936
        %v938 = vand.u32 %v371, 4294901760
        %v939 = vsub.f32 %v371, %v938
        %v940 = vand.u32 %v939, 4294901760
        %941 = vmatmul.f32.gmra.mxu0 %v940
        %v942 = vpop.f32.mrf.mxu0
        %v943 = vadd.f32 %v816, %v942
        %v944 = vand.u32 %v372, 4294901760
        %v945 = vsub.f32 %v372, %v944
        %v946 = vand.u32 %v945, 4294901760
        %947 = vmatmul.f32.gmra.mxu0 %v946
        %v948 = vpop.f32.mrf.mxu0
        %v949 = vadd.f32 %v821, %v948
        %v950 = vand.u32 %v373, 4294901760
        %v951 = vsub.f32 %v373, %v950
        %v952 = vand.u32 %v951, 4294901760
        %953 = vmatmul.f32.gmra.mxu0 %v952
        %v954 = vpop.f32.mrf.mxu0
        %v955 = vadd.f32 %v826, %v954
        %v956 = vand.u32 %v374, 4294901760
        %v957 = vsub.f32 %v374, %v956
        %v958 = vand.u32 %v957, 4294901760
        %959 = vmatmul.f32.gmra.mxu0 %v958
        %v960 = vpop.f32.mrf.mxu0
        %v961 = vadd.f32 %v831, %v960
        %v962 = vand.u32 %v375, 4294901760
        %v963 = vsub.f32 %v375, %v962
        %v964 = vand.u32 %v963, 4294901760
        %965 = vmatmul.f32.gmra.mxu0 %v964
        %v966 = vpop.f32.mrf.mxu0
        %v967 = vadd.f32 %v836, %v966
        %v968 = vand.u32 %v376, 4294901760
        %v969 = vsub.f32 %v376, %v968
        %v970 = vand.u32 %v969, 4294901760
        %971 = vmatmul.f32.gmra.mxu0 %v970
        %v972 = vpop.f32.mrf.mxu0
        %v973 = vadd.f32 %v841, %v972
        %v974 = vand.u32 %v377, 4294901760
        %v975 = vsub.f32 %v377, %v974
        %v976 = vand.u32 %v975, 4294901760
        %977 = vmatmul.f32.gmra.mxu0 %v976
        %v978 = vpop.f32.mrf.mxu0
        %v979 = vadd.f32 %v846, %v978
        %v980 = vand.u32 %v378, 4294901760
        %v981 = vsub.f32 %v378, %v980
        %v982 = vand.u32 %v981, 4294901760
        %983 = vmatmul.f32.gmra.mxu0 %v982
        %v984 = vpop.f32.mrf.mxu0
        %v985 = vadd.f32 %v851, %v984
        %v986 = vand.u32 %v379, 4294901760
        %v987 = vsub.f32 %v379, %v986
        %v988 = vand.u32 %v987, 4294901760
        %989 = vmatmul.f32.gmra.mxu0 %v988
        %v990 = vpop.f32.mrf.mxu0
        %v991 = vadd.f32 %v856, %v990
        %v992 = vand.u32 %v380, 4294901760
        %v993 = vsub.f32 %v380, %v992
        %v994 = vand.u32 %v993, 4294901760
        %995 = vmatmul.f32.gmra.mxu0 %v994
        %v996 = vpop.f32.mrf.mxu0
        %v997 = vadd.f32 %v861, %v996
        %v998 = vand.u32 %v381, 4294901760
        %v999 = vsub.f32 %v381, %v998
        %v1000 = vand.u32 %v999, 4294901760
        %1001 = vmatmul.f32.gmra.mxu0 %v1000
        %v1002 = vpop.f32.mrf.mxu0
        %v1003 = vadd.f32 %v866, %v1002
        %v1004 = vand.u32 %v382, 4294901760
        %v1005 = vsub.f32 %v382, %v1004
        %v1006 = vand.u32 %v1005, 4294901760
        %1007 = vmatmul.f32.gmra.mxu0 %v1006
        %v1008 = vpop.f32.mrf.mxu0
        %v1009 = vadd.f32 %v871, %v1008
        %v1010 = vand.u32 %v383, 4294901760
        %v1011 = vsub.f32 %v383, %v1010
        %v1012 = vand.u32 %v1011, 4294901760
        %1013 = vmatmul.f32.gmra.mxu0 %v1012
        %v1014 = vpop.f32.mrf.mxu0
        %v1015 = vadd.f32 %v876, %v1014
        %v1016 = vand.u32 %v384, 4294901760
        %v1017 = vsub.f32 %v384, %v1016
        %v1018 = vand.u32 %v1017, 4294901760
        %1019 = vmatmul.f32.gmra.mxu0 %v1018
        %v1020 = vpop.f32.mrf.mxu0
        %v1021 = vadd.f32 %v881, %v1020
        %v1022 = vand.u32 %v385, 4294901760
        %v1023 = vsub.f32 %v385, %v1022
        %v1024 = vand.u32 %v1023, 4294901760
        %1025 = vmatmul.f32.gmra.mxu0 %v1024
        %v1026 = vpop.f32.mrf.mxu0
        %v1027 = vadd.f32 %v886, %v1026
        %1028 = vdwg.mxu0
        %v1029 = vand.u32 %v402, 4294901760
        %v1030 = vsub.f32 %v402, %v1029
        %v1031 = vand.u32 %v1030, 4294901760
        %1032 = vmatpush.msra.mxu0 %v1031
        %v1033 = vand.u32 %v401, 4294901760
        %v1034 = vsub.f32 %v401, %v1033
        %v1035 = vand.u32 %v1034, 4294901760
        %1036 = vmatpush.msra.mxu0 %v1035
        %v1037 = vand.u32 %v400, 4294901760
        %v1038 = vsub.f32 %v400, %v1037
        %v1039 = vand.u32 %v1038, 4294901760
        %1040 = vmatpush.msra.mxu0 %v1039
        %v1041 = vand.u32 %v399, 4294901760
        %v1042 = vsub.f32 %v399, %v1041
        %v1043 = vand.u32 %v1042, 4294901760
        %1044 = vmatpush.msra.mxu0 %v1043
        %v1045 = vand.u32 %v398, 4294901760
        %v1046 = vsub.f32 %v398, %v1045
        %v1047 = vand.u32 %v1046, 4294901760
        %1048 = vmatpush.msra.mxu0 %v1047
        %v1049 = vand.u32 %v397, 4294901760
        %v1050 = vsub.f32 %v397, %v1049
        %v1051 = vand.u32 %v1050, 4294901760
        %1052 = vmatpush.msra.mxu0 %v1051
        %v1053 = vand.u32 %v396, 4294901760
        %v1054 = vsub.f32 %v396, %v1053
        %v1055 = vand.u32 %v1054, 4294901760
        %1056 = vmatpush.msra.mxu0 %v1055
        %v1057 = vand.u32 %v395, 4294901760
        %v1058 = vsub.f32 %v395, %v1057
        %v1059 = vand.u32 %v1058, 4294901760
        %1060 = vmatpush.msra.mxu0 %v1059
        %v1061 = vand.u32 %v394, 4294901760
        %v1062 = vsub.f32 %v394, %v1061
        %v1063 = vand.u32 %v1062, 4294901760
        %1064 = vmatpush.msra.mxu0 %v1063
        %v1065 = vand.u32 %v393, 4294901760
        %v1066 = vsub.f32 %v393, %v1065
        %v1067 = vand.u32 %v1066, 4294901760
        %1068 = vmatpush.msra.mxu0 %v1067
        %v1069 = vand.u32 %v392, 4294901760
        %v1070 = vsub.f32 %v392, %v1069
        %v1071 = vand.u32 %v1070, 4294901760
        %1072 = vmatpush.msra.mxu0 %v1071
        %v1073 = vand.u32 %v391, 4294901760
        %v1074 = vsub.f32 %v391, %v1073
        %v1075 = vand.u32 %v1074, 4294901760
        %1076 = vmatpush.msra.mxu0 %v1075
        %v1077 = vand.u32 %v390, 4294901760
        %v1078 = vsub.f32 %v390, %v1077
        %v1079 = vand.u32 %v1078, 4294901760
        %1080 = vmatpush.msra.mxu0 %v1079
        %v1081 = vand.u32 %v389, 4294901760
        %v1082 = vsub.f32 %v389, %v1081
        %v1083 = vand.u32 %v1082, 4294901760
        %1084 = vmatpush.msra.mxu0 %v1083
        %v1085 = vand.u32 %v388, 4294901760
        %v1086 = vsub.f32 %v388, %v1085
        %v1087 = vand.u32 %v1086, 4294901760
        %1088 = vmatpush.msra.mxu0 %v1087
        %v1089 = vand.u32 %v387, 4294901760
        %v1090 = vsub.f32 %v387, %v1089
        %v1091 = vand.u32 %v1090, 4294901760
        %1092 = vmatpush.msra.mxu0 %v1091
        %v1093 = vand.u32 %v368, 4294901760
        %1094 = vmatmul.f32.gmra.mxu0 %v1093
        %v1095 = vpop.f32.mrf.mxu0
        %v1096 = vadd.f32 %v925, %v1095
        %v1097 = vand.u32 %v369, 4294901760
        %1098 = vmatmul.f32.gmra.mxu0 %v1097
        %v1099 = vpop.f32.mrf.mxu0
        %v1100 = vadd.f32 %v931, %v1099
        %v1101 = vand.u32 %v370, 4294901760
        %1102 = vmatmul.f32.gmra.mxu0 %v1101
        %v1103 = vpop.f32.mrf.mxu0
        %v1104 = vadd.f32 %v937, %v1103
        %v1105 = vand.u32 %v371, 4294901760
        %1106 = vmatmul.f32.gmra.mxu0 %v1105
        %v1107 = vpop.f32.mrf.mxu0
        %v1108 = vadd.f32 %v943, %v1107
        %v1109 = vand.u32 %v372, 4294901760
        %1110 = vmatmul.f32.gmra.mxu0 %v1109
        %v1111 = vpop.f32.mrf.mxu0
        %v1112 = vadd.f32 %v949, %v1111
        %v1113 = vand.u32 %v373, 4294901760
        %1114 = vmatmul.f32.gmra.mxu0 %v1113
        %v1115 = vpop.f32.mrf.mxu0
        %v1116 = vadd.f32 %v955, %v1115
        %v1117 = vand.u32 %v374, 4294901760
        %1118 = vmatmul.f32.gmra.mxu0 %v1117
        %v1119 = vpop.f32.mrf.mxu0
        %v1120 = vadd.f32 %v961, %v1119
        %v1121 = vand.u32 %v375, 4294901760
        %1122 = vmatmul.f32.gmra.mxu0 %v1121
        %v1123 = vpop.f32.mrf.mxu0
        %v1124 = vadd.f32 %v967, %v1123
        %v1125 = vand.u32 %v376, 4294901760
        %1126 = vmatmul.f32.gmra.mxu0 %v1125
        %v1127 = vpop.f32.mrf.mxu0
        %v1128 = vadd.f32 %v973, %v1127
        %v1129 = vand.u32 %v377, 4294901760
        %1130 = vmatmul.f32.gmra.mxu0 %v1129
        %v1131 = vpop.f32.mrf.mxu0
        %v1132 = vadd.f32 %v979, %v1131
        %v1133 = vand.u32 %v378, 4294901760
        %1134 = vmatmul.f32.gmra.mxu0 %v1133
        %v1135 = vpop.f32.mrf.mxu0
        %v1136 = vadd.f32 %v985, %v1135
        %v1137 = vand.u32 %v379, 4294901760
        %1138 = vmatmul.f32.gmra.mxu0 %v1137
        %v1139 = vpop.f32.mrf.mxu0
        %v1140 = vadd.f32 %v991, %v1139
        %v1141 = vand.u32 %v380, 4294901760
        %1142 = vmatmul.f32.gmra.mxu0 %v1141
        %v1143 = vpop.f32.mrf.mxu0
        %v1144 = vadd.f32 %v997, %v1143
        %v1145 = vand.u32 %v381, 4294901760
        %1146 = vmatmul.f32.gmra.mxu0 %v1145
        %v1147 = vpop.f32.mrf.mxu0
        %v1148 = vadd.f32 %v1003, %v1147
        %v1149 = vand.u32 %v382, 4294901760
        %1150 = vmatmul.f32.gmra.mxu0 %v1149
        %v1151 = vpop.f32.mrf.mxu0
        %v1152 = vadd.f32 %v1009, %v1151
        %v1153 = vand.u32 %v383, 4294901760
        %1154 = vmatmul.f32.gmra.mxu0 %v1153
        %v1155 = vpop.f32.mrf.mxu0
        %v1156 = vadd.f32 %v1015, %v1155
        %v1157 = vand.u32 %v384, 4294901760
        %1158 = vmatmul.f32.gmra.mxu0 %v1157
        %v1159 = vpop.f32.mrf.mxu0
        %v1160 = vadd.f32 %v1021, %v1159
        %v1161 = vand.u32 %v385, 4294901760
        %1162 = vmatmul.f32.gmra.mxu0 %v1161
        %v1163 = vpop.f32.mrf.mxu0
        %v1164 = vadd.f32 %v1027, %v1163
        %1165 = vdwg.mxu0
        %v1166 = vand.u32 %v402, 4294901760
        %1167 = vmatpush.msra.mxu0 %v1166
        %v1168 = vand.u32 %v401, 4294901760
        %1169 = vmatpush.msra.mxu0 %v1168
        %v1170 = vand.u32 %v400, 4294901760
        %1171 = vmatpush.msra.mxu0 %v1170
        %v1172 = vand.u32 %v399, 4294901760
        %1173 = vmatpush.msra.mxu0 %v1172
        %v1174 = vand.u32 %v398, 4294901760
        %1175 = vmatpush.msra.mxu0 %v1174
        %v1176 = vand.u32 %v397, 4294901760
        %1177 = vmatpush.msra.mxu0 %v1176
        %v1178 = vand.u32 %v396, 4294901760
        %1179 = vmatpush.msra.mxu0 %v1178
        %v1180 = vand.u32 %v395, 4294901760
        %1181 = vmatpush.msra.mxu0 %v1180
        %v1182 = vand.u32 %v394, 4294901760
        %1183 = vmatpush.msra.mxu0 %v1182
        %v1184 = vand.u32 %v393, 4294901760
        %1185 = vmatpush.msra.mxu0 %v1184
        %v1186 = vand.u32 %v392, 4294901760
        %1187 = vmatpush.msra.mxu0 %v1186
        %v1188 = vand.u32 %v391, 4294901760
        %1189 = vmatpush.msra.mxu0 %v1188
        %v1190 = vand.u32 %v390, 4294901760
        %1191 = vmatpush.msra.mxu0 %v1190
        %v1192 = vand.u32 %v389, 4294901760
        %1193 = vmatpush.msra.mxu0 %v1192
        %v1194 = vand.u32 %v388, 4294901760
        %1195 = vmatpush.msra.mxu0 %v1194
        %v1196 = vand.u32 %v387, 4294901760
        %1197 = vmatpush.msra.mxu0 %v1196
        %v1198 = vand.u32 %v368, 4294901760
        %1199 = vmatmul.f32.gmra.mxu0 %v1198
        %v1200 = vpop.f32.mrf.mxu0
        %v1201 = vadd.f32 %v1096, %v1200
        %v1202 = vand.u32 %v369, 4294901760
        %1203 = vmatmul.f32.gmra.mxu0 %v1202
        %v1204 = vpop.f32.mrf.mxu0
        %v1205 = vadd.f32 %v1100, %v1204
        %v1206 = vand.u32 %v370, 4294901760
        %1207 = vmatmul.f32.gmra.mxu0 %v1206
        %v1208 = vpop.f32.mrf.mxu0
        %v1209 = vadd.f32 %v1104, %v1208
        %v1210 = vand.u32 %v371, 4294901760
        %1211 = vmatmul.f32.gmra.mxu0 %v1210
        %v1212 = vpop.f32.mrf.mxu0
        %v1213 = vadd.f32 %v1108, %v1212
        %v1214 = vand.u32 %v372, 4294901760
        %1215 = vmatmul.f32.gmra.mxu0 %v1214
        %v1216 = vpop.f32.mrf.mxu0
        %v1217 = vadd.f32 %v1112, %v1216
        %v1218 = vand.u32 %v373, 4294901760
        %1219 = vmatmul.f32.gmra.mxu0 %v1218
        %v1220 = vpop.f32.mrf.mxu0
        %v1221 = vadd.f32 %v1116, %v1220
        %v1222 = vand.u32 %v374, 4294901760
        %1223 = vmatmul.f32.gmra.mxu0 %v1222
        %v1224 = vpop.f32.mrf.mxu0
        %v1225 = vadd.f32 %v1120, %v1224
        %v1226 = vand.u32 %v375, 4294901760
        %1227 = vmatmul.f32.gmra.mxu0 %v1226
        %v1228 = vpop.f32.mrf.mxu0
        %v1229 = vadd.f32 %v1124, %v1228
        %v1230 = vand.u32 %v376, 4294901760
        %1231 = vmatmul.f32.gmra.mxu0 %v1230
        %v1232 = vpop.f32.mrf.mxu0
        %v1233 = vadd.f32 %v1128, %v1232
        %v1234 = vand.u32 %v377, 4294901760
        %1235 = vmatmul.f32.gmra.mxu0 %v1234
        %v1236 = vpop.f32.mrf.mxu0
        %v1237 = vadd.f32 %v1132, %v1236
        %v1238 = vand.u32 %v378, 4294901760
        %1239 = vmatmul.f32.gmra.mxu0 %v1238
        %v1240 = vpop.f32.mrf.mxu0
        %v1241 = vadd.f32 %v1136, %v1240
        %v1242 = vand.u32 %v379, 4294901760
        %1243 = vmatmul.f32.gmra.mxu0 %v1242
        %v1244 = vpop.f32.mrf.mxu0
        %v1245 = vadd.f32 %v1140, %v1244
        %v1246 = vand.u32 %v380, 4294901760
        %1247 = vmatmul.f32.gmra.mxu0 %v1246
        %v1248 = vpop.f32.mrf.mxu0
        %v1249 = vadd.f32 %v1144, %v1248
        %v1250 = vand.u32 %v381, 4294901760
        %1251 = vmatmul.f32.gmra.mxu0 %v1250
        %v1252 = vpop.f32.mrf.mxu0
        %v1253 = vadd.f32 %v1148, %v1252
        %v1254 = vand.u32 %v382, 4294901760
        %1255 = vmatmul.f32.gmra.mxu0 %v1254
        %v1256 = vpop.f32.mrf.mxu0
        %v1257 = vadd.f32 %v1152, %v1256
        %v1258 = vand.u32 %v383, 4294901760
        %1259 = vmatmul.f32.gmra.mxu0 %v1258
        %v1260 = vpop.f32.mrf.mxu0
        %v1261 = vadd.f32 %v1156, %v1260
        %v1262 = vand.u32 %v384, 4294901760
        %1263 = vmatmul.f32.gmra.mxu0 %v1262
        %v1264 = vpop.f32.mrf.mxu0
        %v1265 = vadd.f32 %v1160, %v1264
        %v1266 = vand.u32 %v385, 4294901760
        %1267 = vmatmul.f32.gmra.mxu0 %v1266
        %v1268 = vpop.f32.mrf.mxu0
        %v1269 = vadd.f32 %v1164, %v1268
        %1270 = vdwg.mxu0
        %v1271 = vand.u32 %v367, 4294901760
        %1272 = vmatpush.msra.mxu0 %v1271
        %v1273 = vand.u32 %v366, 4294901760
        %1274 = vmatpush.msra.mxu0 %v1273
        %v1275 = vand.u32 %v365, 4294901760
        %1276 = vmatpush.msra.mxu0 %v1275
        %v1277 = vand.u32 %v364, 4294901760
        %1278 = vmatpush.msra.mxu0 %v1277
        %v1279 = vand.u32 %v363, 4294901760
        %1280 = vmatpush.msra.mxu0 %v1279
        %v1281 = vand.u32 %v362, 4294901760
        %1282 = vmatpush.msra.mxu0 %v1281
        %v1283 = vand.u32 %v361, 4294901760
        %1284 = vmatpush.msra.mxu0 %v1283
        %v1285 = vand.u32 %v360, 4294901760
        %1286 = vmatpush.msra.mxu0 %v1285
        %v1287 = vand.u32 %v359, 4294901760
        %1288 = vmatpush.msra.mxu0 %v1287
        %v1289 = vand.u32 %v358, 4294901760
        %1290 = vmatpush.msra.mxu0 %v1289
        %v1291 = vand.u32 %v357, 4294901760
        %1292 = vmatpush.msra.mxu0 %v1291
        %v1293 = vand.u32 %v356, 4294901760
        %1294 = vmatpush.msra.mxu0 %v1293
        %v1295 = vand.u32 %v355, 4294901760
        %1296 = vmatpush.msra.mxu0 %v1295
        %v1297 = vand.u32 %v354, 4294901760
        %1298 = vmatpush.msra.mxu0 %v1297
        %v1299 = vand.u32 %v353, 4294901760
        %1300 = vmatpush.msra.mxu0 %v1299
        %v1301 = vand.u32 %v352, 4294901760
        %1302 = vmatpush.msra.mxu0 %v1301
        %v1303 = vand.u32 %v334, 4294901760
        %v1304 = vsub.f32 %v334, %v1303
        %v1305 = vand.u32 %v1304, 4294901760
        %v1306 = vsub.f32 %v1304, %v1305
        %v1307 = vand.u32 %v1306, 4294901760
        %1308 = vmatmul.f32.gmra.mxu0 %v1307
        %v1309 = vpop.f32.mrf.mxu0
        %v1310 = vadd.f32 %v1201, %v1309
        %v1311 = vand.u32 %v335, 4294901760
        %v1312 = vsub.f32 %v335, %v1311
        %v1313 = vand.u32 %v1312, 4294901760
        %v1314 = vsub.f32 %v1312, %v1313
        %v1315 = vand.u32 %v1314, 4294901760
        %1316 = vmatmul.f32.gmra.mxu0 %v1315
        %v1317 = vpop.f32.mrf.mxu0
        %v1318 = vadd.f32 %v1205, %v1317
        %v1319 = vand.u32 %v336, 4294901760
        %v1320 = vsub.f32 %v336, %v1319
        %v1321 = vand.u32 %v1320, 4294901760
        %v1322 = vsub.f32 %v1320, %v1321
        %v1323 = vand.u32 %v1322, 4294901760
        %1324 = vmatmul.f32.gmra.mxu0 %v1323
        %v1325 = vpop.f32.mrf.mxu0
        %v1326 = vadd.f32 %v1209, %v1325
        %v1327 = vand.u32 %v337, 4294901760
        %v1328 = vsub.f32 %v337, %v1327
        %v1329 = vand.u32 %v1328, 4294901760
        %v1330 = vsub.f32 %v1328, %v1329
        %v1331 = vand.u32 %v1330, 4294901760
        %1332 = vmatmul.f32.gmra.mxu0 %v1331
        %v1333 = vpop.f32.mrf.mxu0
        %v1334 = vadd.f32 %v1213, %v1333
        %v1335 = vand.u32 %v338, 4294901760
        %v1336 = vsub.f32 %v338, %v1335
        %v1337 = vand.u32 %v1336, 4294901760
        %v1338 = vsub.f32 %v1336, %v1337
        %v1339 = vand.u32 %v1338, 4294901760
        %1340 = vmatmul.f32.gmra.mxu0 %v1339
        %v1341 = vpop.f32.mrf.mxu0
        %v1342 = vadd.f32 %v1217, %v1341
        %v1343 = vand.u32 %v339, 4294901760
        %v1344 = vsub.f32 %v339, %v1343
        %v1345 = vand.u32 %v1344, 4294901760
        %v1346 = vsub.f32 %v1344, %v1345
        %v1347 = vand.u32 %v1346, 4294901760
        %1348 = vmatmul.f32.gmra.mxu0 %v1347
        %v1349 = vpop.f32.mrf.mxu0
        %v1350 = vadd.f32 %v1221, %v1349
        %v1351 = vand.u32 %v340, 4294901760
        %v1352 = vsub.f32 %v340, %v1351
        %v1353 = vand.u32 %v1352, 4294901760
        %v1354 = vsub.f32 %v1352, %v1353
        %v1355 = vand.u32 %v1354, 4294901760
        %1356 = vmatmul.f32.gmra.mxu0 %v1355
        %v1357 = vpop.f32.mrf.mxu0
        %v1358 = vadd.f32 %v1225, %v1357
        %v1359 = vand.u32 %v341, 4294901760
        %v1360 = vsub.f32 %v341, %v1359
        %v1361 = vand.u32 %v1360, 4294901760
        %v1362 = vsub.f32 %v1360, %v1361
        %v1363 = vand.u32 %v1362, 4294901760
        %1364 = vmatmul.f32.gmra.mxu0 %v1363
        %v1365 = vpop.f32.mrf.mxu0
        %v1366 = vadd.f32 %v1229, %v1365
        %v1367 = vand.u32 %v342, 4294901760
        %v1368 = vsub.f32 %v342, %v1367
        %v1369 = vand.u32 %v1368, 4294901760
        %v1370 = vsub.f32 %v1368, %v1369
        %v1371 = vand.u32 %v1370, 4294901760
        %1372 = vmatmul.f32.gmra.mxu0 %v1371
        %v1373 = vpop.f32.mrf.mxu0
        %v1374 = vadd.f32 %v1233, %v1373
        %v1375 = vand.u32 %v343, 4294901760
        %v1376 = vsub.f32 %v343, %v1375
        %v1377 = vand.u32 %v1376, 4294901760
        %v1378 = vsub.f32 %v1376, %v1377
        %v1379 = vand.u32 %v1378, 4294901760
        %1380 = vmatmul.f32.gmra.mxu0 %v1379
        %v1381 = vpop.f32.mrf.mxu0
        %v1382 = vadd.f32 %v1237, %v1381
        %v1383 = vand.u32 %v344, 4294901760
        %v1384 = vsub.f32 %v344, %v1383
        %v1385 = vand.u32 %v1384, 4294901760
        %v1386 = vsub.f32 %v1384, %v1385
        %v1387 = vand.u32 %v1386, 4294901760
        %1388 = vmatmul.f32.gmra.mxu0 %v1387
        %v1389 = vpop.f32.mrf.mxu0
        %v1390 = vadd.f32 %v1241, %v1389
        %v1391 = vand.u32 %v345, 4294901760
        %v1392 = vsub.f32 %v345, %v1391
        %v1393 = vand.u32 %v1392, 4294901760
        %v1394 = vsub.f32 %v1392, %v1393
        %v1395 = vand.u32 %v1394, 4294901760
        %1396 = vmatmul.f32.gmra.mxu0 %v1395
        %v1397 = vpop.f32.mrf.mxu0
        %v1398 = vadd.f32 %v1245, %v1397
        %v1399 = vand.u32 %v346, 4294901760
        %v1400 = vsub.f32 %v346, %v1399
        %v1401 = vand.u32 %v1400, 4294901760
        %v1402 = vsub.f32 %v1400, %v1401
        %v1403 = vand.u32 %v1402, 4294901760
        %1404 = vmatmul.f32.gmra.mxu0 %v1403
        %v1405 = vpop.f32.mrf.mxu0
        %v1406 = vadd.f32 %v1249, %v1405
        %v1407 = vand.u32 %v347, 4294901760
        %v1408 = vsub.f32 %v347, %v1407
        %v1409 = vand.u32 %v1408, 4294901760
        %v1410 = vsub.f32 %v1408, %v1409
        %v1411 = vand.u32 %v1410, 4294901760
        %1412 = vmatmul.f32.gmra.mxu0 %v1411
        %v1413 = vpop.f32.mrf.mxu0
        %v1414 = vadd.f32 %v1253, %v1413
        %v1415 = vand.u32 %v348, 4294901760
        %v1416 = vsub.f32 %v348, %v1415
        %v1417 = vand.u32 %v1416, 4294901760
        %v1418 = vsub.f32 %v1416, %v1417
        %v1419 = vand.u32 %v1418, 4294901760
        %1420 = vmatmul.f32.gmra.mxu0 %v1419
        %v1421 = vpop.f32.mrf.mxu0
        %v1422 = vadd.f32 %v1257, %v1421
        %v1423 = vand.u32 %v349, 4294901760
        %v1424 = vsub.f32 %v349, %v1423
        %v1425 = vand.u32 %v1424, 4294901760
        %v1426 = vsub.f32 %v1424, %v1425
        %v1427 = vand.u32 %v1426, 4294901760
        %1428 = vmatmul.f32.gmra.mxu0 %v1427
        %v1429 = vpop.f32.mrf.mxu0
        %v1430 = vadd.f32 %v1261, %v1429
        %v1431 = vand.u32 %v350, 4294901760
        %v1432 = vsub.f32 %v350, %v1431
        %v1433 = vand.u32 %v1432, 4294901760
        %v1434 = vsub.f32 %v1432, %v1433
        %v1435 = vand.u32 %v1434, 4294901760
        %1436 = vmatmul.f32.gmra.mxu0 %v1435
        %v1437 = vpop.f32.mrf.mxu0
        %v1438 = vadd.f32 %v1265, %v1437
        %v1439 = vand.u32 %v351, 4294901760
        %v1440 = vsub.f32 %v351, %v1439
        %v1441 = vand.u32 %v1440, 4294901760
        %v1442 = vsub.f32 %v1440, %v1441
        %v1443 = vand.u32 %v1442, 4294901760
        %1444 = vmatmul.f32.gmra.mxu0 %v1443
        %v1445 = vpop.f32.mrf.mxu0
        %v1446 = vadd.f32 %v1269, %v1445
        %1447 = vdwg.mxu0
        %v1448 = vand.u32 %v367, 4294901760
        %v1449 = vsub.f32 %v367, %v1448
        %v1450 = vand.u32 %v1449, 4294901760
        %v1451 = vsub.f32 %v1449, %v1450
        %v1452 = vand.u32 %v1451, 4294901760
        %1453 = vmatpush.msra.mxu0 %v1452
        %v1454 = vand.u32 %v366, 4294901760
        %v1455 = vsub.f32 %v366, %v1454
        %v1456 = vand.u32 %v1455, 4294901760
        %v1457 = vsub.f32 %v1455, %v1456
        %v1458 = vand.u32 %v1457, 4294901760
        %1459 = vmatpush.msra.mxu0 %v1458
        %v1460 = vand.u32 %v365, 4294901760
        %v1461 = vsub.f32 %v365, %v1460
        %v1462 = vand.u32 %v1461, 4294901760
        %v1463 = vsub.f32 %v1461, %v1462
        %v1464 = vand.u32 %v1463, 4294901760
        %1465 = vmatpush.msra.mxu0 %v1464
        %v1466 = vand.u32 %v364, 4294901760
        %v1467 = vsub.f32 %v364, %v1466
        %v1468 = vand.u32 %v1467, 4294901760
        %v1469 = vsub.f32 %v1467, %v1468
        %v1470 = vand.u32 %v1469, 4294901760
        %1471 = vmatpush.msra.mxu0 %v1470
        %v1472 = vand.u32 %v363, 4294901760
        %v1473 = vsub.f32 %v363, %v1472
        %v1474 = vand.u32 %v1473, 4294901760
        %v1475 = vsub.f32 %v1473, %v1474
        %v1476 = vand.u32 %v1475, 4294901760
        %1477 = vmatpush.msra.mxu0 %v1476
        %v1478 = vand.u32 %v362, 4294901760
        %v1479 = vsub.f32 %v362, %v1478
        %v1480 = vand.u32 %v1479, 4294901760
        %v1481 = vsub.f32 %v1479, %v1480
        %v1482 = vand.u32 %v1481, 4294901760
        %1483 = vmatpush.msra.mxu0 %v1482
        %v1484 = vand.u32 %v361, 4294901760
        %v1485 = vsub.f32 %v361, %v1484
        %v1486 = vand.u32 %v1485, 4294901760
        %v1487 = vsub.f32 %v1485, %v1486
        %v1488 = vand.u32 %v1487, 4294901760
        %1489 = vmatpush.msra.mxu0 %v1488
        %v1490 = vand.u32 %v360, 4294901760
        %v1491 = vsub.f32 %v360, %v1490
        %v1492 = vand.u32 %v1491, 4294901760
        %v1493 = vsub.f32 %v1491, %v1492
        %v1494 = vand.u32 %v1493, 4294901760
        %1495 = vmatpush.msra.mxu0 %v1494
        %v1496 = vand.u32 %v359, 4294901760
        %v1497 = vsub.f32 %v359, %v1496
        %v1498 = vand.u32 %v1497, 4294901760
        %v1499 = vsub.f32 %v1497, %v1498
        %v1500 = vand.u32 %v1499, 4294901760
        %1501 = vmatpush.msra.mxu0 %v1500
        %v1502 = vand.u32 %v358, 4294901760
        %v1503 = vsub.f32 %v358, %v1502
        %v1504 = vand.u32 %v1503, 4294901760
        %v1505 = vsub.f32 %v1503, %v1504
        %v1506 = vand.u32 %v1505, 4294901760
        %1507 = vmatpush.msra.mxu0 %v1506
        %v1508 = vand.u32 %v357, 4294901760
        %v1509 = vsub.f32 %v357, %v1508
        %v1510 = vand.u32 %v1509, 4294901760
        %v1511 = vsub.f32 %v1509, %v1510
        %v1512 = vand.u32 %v1511, 4294901760
        %1513 = vmatpush.msra.mxu0 %v1512
        %v1514 = vand.u32 %v356, 4294901760
        %v1515 = vsub.f32 %v356, %v1514
        %v1516 = vand.u32 %v1515, 4294901760
        %v1517 = vsub.f32 %v1515, %v1516
        %v1518 = vand.u32 %v1517, 4294901760
        %1519 = vmatpush.msra.mxu0 %v1518
        %v1520 = vand.u32 %v355, 4294901760
        %v1521 = vsub.f32 %v355, %v1520
        %v1522 = vand.u32 %v1521, 4294901760
        %v1523 = vsub.f32 %v1521, %v1522
        %v1524 = vand.u32 %v1523, 4294901760
        %1525 = vmatpush.msra.mxu0 %v1524
        %v1526 = vand.u32 %v354, 4294901760
        %v1527 = vsub.f32 %v354, %v1526
        %v1528 = vand.u32 %v1527, 4294901760
        %v1529 = vsub.f32 %v1527, %v1528
        %v1530 = vand.u32 %v1529, 4294901760
        %1531 = vmatpush.msra.mxu0 %v1530
        %v1532 = vand.u32 %v353, 4294901760
        %v1533 = vsub.f32 %v353, %v1532
        %v1534 = vand.u32 %v1533, 4294901760
        %v1535 = vsub.f32 %v1533, %v1534
        %v1536 = vand.u32 %v1535, 4294901760
        %1537 = vmatpush.msra.mxu0 %v1536
        %v1538 = vand.u32 %v352, 4294901760
        %v1539 = vsub.f32 %v352, %v1538
        %v1540 = vand.u32 %v1539, 4294901760
        %v1541 = vsub.f32 %v1539, %v1540
        %v1542 = vand.u32 %v1541, 4294901760
        %1543 = vmatpush.msra.mxu0 %v1542
        %v1544 = vand.u32 %v334, 4294901760
        %1545 = vmatmul.f32.gmra.mxu0 %v1544
        %v1546 = vpop.f32.mrf.mxu0
        %v1547 = vadd.f32 %v1310, %v1546
        %v1548 = vand.u32 %v335, 4294901760
        %1549 = vmatmul.f32.gmra.mxu0 %v1548
        %v1550 = vpop.f32.mrf.mxu0
        %v1551 = vadd.f32 %v1318, %v1550
        %v1552 = vand.u32 %v336, 4294901760
        %1553 = vmatmul.f32.gmra.mxu0 %v1552
        %v1554 = vpop.f32.mrf.mxu0
        %v1555 = vadd.f32 %v1326, %v1554
        %v1556 = vand.u32 %v337, 4294901760
        %1557 = vmatmul.f32.gmra.mxu0 %v1556
        %v1558 = vpop.f32.mrf.mxu0
        %v1559 = vadd.f32 %v1334, %v1558
        %v1560 = vand.u32 %v338, 4294901760
        %1561 = vmatmul.f32.gmra.mxu0 %v1560
        %v1562 = vpop.f32.mrf.mxu0
        %v1563 = vadd.f32 %v1342, %v1562
        %v1564 = vand.u32 %v339, 4294901760
        %1565 = vmatmul.f32.gmra.mxu0 %v1564
        %v1566 = vpop.f32.mrf.mxu0
        %v1567 = vadd.f32 %v1350, %v1566
        %v1568 = vand.u32 %v340, 4294901760
        %1569 = vmatmul.f32.gmra.mxu0 %v1568
        %v1570 = vpop.f32.mrf.mxu0
        %v1571 = vadd.f32 %v1358, %v1570
        %v1572 = vand.u32 %v341, 4294901760
        %1573 = vmatmul.f32.gmra.mxu0 %v1572
        %v1574 = vpop.f32.mrf.mxu0
        %v1575 = vadd.f32 %v1366, %v1574
        %v1576 = vand.u32 %v342, 4294901760
        %1577 = vmatmul.f32.gmra.mxu0 %v1576
        %v1578 = vpop.f32.mrf.mxu0
        %v1579 = vadd.f32 %v1374, %v1578
        %v1580 = vand.u32 %v343, 4294901760
        %1581 = vmatmul.f32.gmra.mxu0 %v1580
        %v1582 = vpop.f32.mrf.mxu0
        %v1583 = vadd.f32 %v1382, %v1582
        %v1584 = vand.u32 %v344, 4294901760
        %1585 = vmatmul.f32.gmra.mxu0 %v1584
        %v1586 = vpop.f32.mrf.mxu0
        %v1587 = vadd.f32 %v1390, %v1586
        %v1588 = vand.u32 %v345, 4294901760
        %1589 = vmatmul.f32.gmra.mxu0 %v1588
        %v1590 = vpop.f32.mrf.mxu0
        %v1591 = vadd.f32 %v1398, %v1590
        %v1592 = vand.u32 %v346, 4294901760
        %1593 = vmatmul.f32.gmra.mxu0 %v1592
        %v1594 = vpop.f32.mrf.mxu0
        %v1595 = vadd.f32 %v1406, %v1594
        %v1596 = vand.u32 %v347, 4294901760
        %1597 = vmatmul.f32.gmra.mxu0 %v1596
        %v1598 = vpop.f32.mrf.mxu0
        %v1599 = vadd.f32 %v1414, %v1598
        %v1600 = vand.u32 %v348, 4294901760
        %1601 = vmatmul.f32.gmra.mxu0 %v1600
        %v1602 = vpop.f32.mrf.mxu0
        %v1603 = vadd.f32 %v1422, %v1602
        %v1604 = vand.u32 %v349, 4294901760
        %1605 = vmatmul.f32.gmra.mxu0 %v1604
        %v1606 = vpop.f32.mrf.mxu0
        %v1607 = vadd.f32 %v1430, %v1606
        %v1608 = vand.u32 %v350, 4294901760
        %1609 = vmatmul.f32.gmra.mxu0 %v1608
        %v1610 = vpop.f32.mrf.mxu0
        %v1611 = vadd.f32 %v1438, %v1610
        %v1612 = vand.u32 %v351, 4294901760
        %1613 = vmatmul.f32.gmra.mxu0 %v1612
        %v1614 = vpop.f32.mrf.mxu0
        %v1615 = vadd.f32 %v1446, %v1614
        %1616 = vdwg.mxu0
        %v1617 = vand.u32 %v367, 4294901760
        %v1618 = vsub.f32 %v367, %v1617
        %1619 = vmatpush.msra.mxu0 %v1618
        %v1620 = vand.u32 %v366, 4294901760
        %v1621 = vsub.f32 %v366, %v1620
        %1622 = vmatpush.msra.mxu0 %v1621
        %v1623 = vand.u32 %v365, 4294901760
        %v1624 = vsub.f32 %v365, %v1623
        %1625 = vmatpush.msra.mxu0 %v1624
        %v1626 = vand.u32 %v364, 4294901760
        %v1627 = vsub.f32 %v364, %v1626
        %1628 = vmatpush.msra.mxu0 %v1627
        %v1629 = vand.u32 %v363, 4294901760
        %v1630 = vsub.f32 %v363, %v1629
        %1631 = vmatpush.msra.mxu0 %v1630
        %v1632 = vand.u32 %v362, 4294901760
        %v1633 = vsub.f32 %v362, %v1632
        %1634 = vmatpush.msra.mxu0 %v1633
        %v1635 = vand.u32 %v361, 4294901760
        %v1636 = vsub.f32 %v361, %v1635
        %1637 = vmatpush.msra.mxu0 %v1636
        %v1638 = vand.u32 %v360, 4294901760
        %v1639 = vsub.f32 %v360, %v1638
        %1640 = vmatpush.msra.mxu0 %v1639
        %v1641 = vand.u32 %v359, 4294901760
        %v1642 = vsub.f32 %v359, %v1641
        %1643 = vmatpush.msra.mxu0 %v1642
        %v1644 = vand.u32 %v358, 4294901760
        %v1645 = vsub.f32 %v358, %v1644
        %1646 = vmatpush.msra.mxu0 %v1645
        %v1647 = vand.u32 %v357, 4294901760
        %v1648 = vsub.f32 %v357, %v1647
        %1649 = vmatpush.msra.mxu0 %v1648
        %v1650 = vand.u32 %v356, 4294901760
        %v1651 = vsub.f32 %v356, %v1650
        %1652 = vmatpush.msra.mxu0 %v1651
        %v1653 = vand.u32 %v355, 4294901760
        %v1654 = vsub.f32 %v355, %v1653
        %1655 = vmatpush.msra.mxu0 %v1654
        %v1656 = vand.u32 %v354, 4294901760
        %v1657 = vsub.f32 %v354, %v1656
        %1658 = vmatpush.msra.mxu0 %v1657
        %v1659 = vand.u32 %v353, 4294901760
        %v1660 = vsub.f32 %v353, %v1659
        %1661 = vmatpush.msra.mxu0 %v1660
        %v1662 = vand.u32 %v352, 4294901760
        %v1663 = vsub.f32 %v352, %v1662
        %1664 = vmatpush.msra.mxu0 %v1663
        %v1665 = vand.u32 %v334, 4294901760
        %v1666 = vsub.f32 %v334, %v1665
        %1667 = vmatmul.f32.gmra.mxu0 %v1666
        %v1668 = vpop.f32.mrf.mxu0
        %v1669 = vadd.f32 %v1547, %v1668
        %v1670 = vand.u32 %v335, 4294901760
        %v1671 = vsub.f32 %v335, %v1670
        %1672 = vmatmul.f32.gmra.mxu0 %v1671
        %v1673 = vpop.f32.mrf.mxu0
        %v1674 = vadd.f32 %v1551, %v1673
        %v1675 = vand.u32 %v336, 4294901760
        %v1676 = vsub.f32 %v336, %v1675
        %1677 = vmatmul.f32.gmra.mxu0 %v1676
        %v1678 = vpop.f32.mrf.mxu0
        %v1679 = vadd.f32 %v1555, %v1678
        %v1680 = vand.u32 %v337, 4294901760
        %v1681 = vsub.f32 %v337, %v1680
        %1682 = vmatmul.f32.gmra.mxu0 %v1681
        %v1683 = vpop.f32.mrf.mxu0
        %v1684 = vadd.f32 %v1559, %v1683
        %v1685 = vand.u32 %v338, 4294901760
        %v1686 = vsub.f32 %v338, %v1685
        %1687 = vmatmul.f32.gmra.mxu0 %v1686
        %v1688 = vpop.f32.mrf.mxu0
        %v1689 = vadd.f32 %v1563, %v1688
        %v1690 = vand.u32 %v339, 4294901760
        %v1691 = vsub.f32 %v339, %v1690
        %1692 = vmatmul.f32.gmra.mxu0 %v1691
        %v1693 = vpop.f32.mrf.mxu0
        %v1694 = vadd.f32 %v1567, %v1693
        %v1695 = vand.u32 %v340, 4294901760
        %v1696 = vsub.f32 %v340, %v1695
        %1697 = vmatmul.f32.gmra.mxu0 %v1696
        %v1698 = vpop.f32.mrf.mxu0
        %v1699 = vadd.f32 %v1571, %v1698
        %v1700 = vand.u32 %v341, 4294901760
        %v1701 = vsub.f32 %v341, %v1700
        %1702 = vmatmul.f32.gmra.mxu0 %v1701
        %v1703 = vpop.f32.mrf.mxu0
        %v1704 = vadd.f32 %v1575, %v1703
        %v1705 = vand.u32 %v342, 4294901760
        %v1706 = vsub.f32 %v342, %v1705
        %1707 = vmatmul.f32.gmra.mxu0 %v1706
        %v1708 = vpop.f32.mrf.mxu0
        %v1709 = vadd.f32 %v1579, %v1708
        %v1710 = vand.u32 %v343, 4294901760
        %v1711 = vsub.f32 %v343, %v1710
        %1712 = vmatmul.f32.gmra.mxu0 %v1711
        %v1713 = vpop.f32.mrf.mxu0
        %v1714 = vadd.f32 %v1583, %v1713
        %v1715 = vand.u32 %v344, 4294901760
        %v1716 = vsub.f32 %v344, %v1715
        %1717 = vmatmul.f32.gmra.mxu0 %v1716
        %v1718 = vpop.f32.mrf.mxu0
        %v1719 = vadd.f32 %v1587, %v1718
        %v1720 = vand.u32 %v345, 4294901760
        %v1721 = vsub.f32 %v345, %v1720
        %1722 = vmatmul.f32.gmra.mxu0 %v1721
        %v1723 = vpop.f32.mrf.mxu0
        %v1724 = vadd.f32 %v1591, %v1723
        %v1725 = vand.u32 %v346, 4294901760
        %v1726 = vsub.f32 %v346, %v1725
        %1727 = vmatmul.f32.gmra.mxu0 %v1726
        %v1728 = vpop.f32.mrf.mxu0
        %v1729 = vadd.f32 %v1595, %v1728
        %v1730 = vand.u32 %v347, 4294901760
        %v1731 = vsub.f32 %v347, %v1730
        %1732 = vmatmul.f32.gmra.mxu0 %v1731
        %v1733 = vpop.f32.mrf.mxu0
        %v1734 = vadd.f32 %v1599, %v1733
        %v1735 = vand.u32 %v348, 4294901760
        %v1736 = vsub.f32 %v348, %v1735
        %1737 = vmatmul.f32.gmra.mxu0 %v1736
        %v1738 = vpop.f32.mrf.mxu0
        %v1739 = vadd.f32 %v1603, %v1738
        %v1740 = vand.u32 %v349, 4294901760
        %v1741 = vsub.f32 %v349, %v1740
        %1742 = vmatmul.f32.gmra.mxu0 %v1741
        %v1743 = vpop.f32.mrf.mxu0
        %v1744 = vadd.f32 %v1607, %v1743
        %v1745 = vand.u32 %v350, 4294901760
        %v1746 = vsub.f32 %v350, %v1745
        %1747 = vmatmul.f32.gmra.mxu0 %v1746
        %v1748 = vpop.f32.mrf.mxu0
        %v1749 = vadd.f32 %v1611, %v1748
        %v1750 = vand.u32 %v351, 4294901760
        %v1751 = vsub.f32 %v351, %v1750
        %1752 = vmatmul.f32.gmra.mxu0 %v1751
        %v1753 = vpop.f32.mrf.mxu0
        %v1754 = vadd.f32 %v1615, %v1753
        %1755 = vdwg.mxu0
        %v1756 = vand.u32 %v367, 4294901760
        %1757 = vmatpush.msra.mxu0 %v1756
        %v1758 = vand.u32 %v366, 4294901760
        %1759 = vmatpush.msra.mxu0 %v1758
        %v1760 = vand.u32 %v365, 4294901760
        %1761 = vmatpush.msra.mxu0 %v1760
        %v1762 = vand.u32 %v364, 4294901760
        %1763 = vmatpush.msra.mxu0 %v1762
        %v1764 = vand.u32 %v363, 4294901760
        %1765 = vmatpush.msra.mxu0 %v1764
        %v1766 = vand.u32 %v362, 4294901760
        %1767 = vmatpush.msra.mxu0 %v1766
        %v1768 = vand.u32 %v361, 4294901760
        %1769 = vmatpush.msra.mxu0 %v1768
        %v1770 = vand.u32 %v360, 4294901760
        %1771 = vmatpush.msra.mxu0 %v1770
        %v1772 = vand.u32 %v359, 4294901760
        %1773 = vmatpush.msra.mxu0 %v1772
        %v1774 = vand.u32 %v358, 4294901760
        %1775 = vmatpush.msra.mxu0 %v1774
        %v1776 = vand.u32 %v357, 4294901760
        %1777 = vmatpush.msra.mxu0 %v1776
        %v1778 = vand.u32 %v356, 4294901760
        %1779 = vmatpush.msra.mxu0 %v1778
        %v1780 = vand.u32 %v355, 4294901760
        %1781 = vmatpush.msra.mxu0 %v1780
        %v1782 = vand.u32 %v354, 4294901760
        %1783 = vmatpush.msra.mxu0 %v1782
        %v1784 = vand.u32 %v353, 4294901760
        %1785 = vmatpush.msra.mxu0 %v1784
        %v1786 = vand.u32 %v352, 4294901760
        %1787 = vmatpush.msra.mxu0 %v1786
        %v1788 = vand.u32 %v334, 4294901760
        %v1789 = vsub.f32 %v334, %v1788
        %v1790 = vand.u32 %v1789, 4294901760
        %1791 = vmatmul.f32.gmra.mxu0 %v1790
        %v1792 = vpop.f32.mrf.mxu0
        %v1793 = vadd.f32 %v1669, %v1792
        %v1794 = vand.u32 %v335, 4294901760
        %v1795 = vsub.f32 %v335, %v1794
        %v1796 = vand.u32 %v1795, 4294901760
        %1797 = vmatmul.f32.gmra.mxu0 %v1796
        %v1798 = vpop.f32.mrf.mxu0
        %v1799 = vadd.f32 %v1674, %v1798
        %v1800 = vand.u32 %v336, 4294901760
        %v1801 = vsub.f32 %v336, %v1800
        %v1802 = vand.u32 %v1801, 4294901760
        %1803 = vmatmul.f32.gmra.mxu0 %v1802
        %v1804 = vpop.f32.mrf.mxu0
        %v1805 = vadd.f32 %v1679, %v1804
        %v1806 = vand.u32 %v337, 4294901760
        %v1807 = vsub.f32 %v337, %v1806
        %v1808 = vand.u32 %v1807, 4294901760
        %1809 = vmatmul.f32.gmra.mxu0 %v1808
        %v1810 = vpop.f32.mrf.mxu0
        %v1811 = vadd.f32 %v1684, %v1810
        %v1812 = vand.u32 %v338, 4294901760
        %v1813 = vsub.f32 %v338, %v1812
        %v1814 = vand.u32 %v1813, 4294901760
        %1815 = vmatmul.f32.gmra.mxu0 %v1814
        %v1816 = vpop.f32.mrf.mxu0
        %v1817 = vadd.f32 %v1689, %v1816
        %v1818 = vand.u32 %v339, 4294901760
        %v1819 = vsub.f32 %v339, %v1818
        %v1820 = vand.u32 %v1819, 4294901760
        %1821 = vmatmul.f32.gmra.mxu0 %v1820
        %v1822 = vpop.f32.mrf.mxu0
        %v1823 = vadd.f32 %v1694, %v1822
        %v1824 = vand.u32 %v340, 4294901760
        %v1825 = vsub.f32 %v340, %v1824
        %v1826 = vand.u32 %v1825, 4294901760
        %1827 = vmatmul.f32.gmra.mxu0 %v1826
        %v1828 = vpop.f32.mrf.mxu0
        %v1829 = vadd.f32 %v1699, %v1828
        %v1830 = vand.u32 %v341, 4294901760
        %v1831 = vsub.f32 %v341, %v1830
        %v1832 = vand.u32 %v1831, 4294901760
        %1833 = vmatmul.f32.gmra.mxu0 %v1832
        %v1834 = vpop.f32.mrf.mxu0
        %v1835 = vadd.f32 %v1704, %v1834
        %v1836 = vand.u32 %v342, 4294901760
        %v1837 = vsub.f32 %v342, %v1836
        %v1838 = vand.u32 %v1837, 4294901760
        %1839 = vmatmul.f32.gmra.mxu0 %v1838
        %v1840 = vpop.f32.mrf.mxu0
        %v1841 = vadd.f32 %v1709, %v1840
        %v1842 = vand.u32 %v343, 4294901760
        %v1843 = vsub.f32 %v343, %v1842
        %v1844 = vand.u32 %v1843, 4294901760
        %1845 = vmatmul.f32.gmra.mxu0 %v1844
        %v1846 = vpop.f32.mrf.mxu0
        %v1847 = vadd.f32 %v1714, %v1846
        %v1848 = vand.u32 %v344, 4294901760
        %v1849 = vsub.f32 %v344, %v1848
        %v1850 = vand.u32 %v1849, 4294901760
        %1851 = vmatmul.f32.gmra.mxu0 %v1850
        %v1852 = vpop.f32.mrf.mxu0
        %v1853 = vadd.f32 %v1719, %v1852
        %v1854 = vand.u32 %v345, 4294901760
        %v1855 = vsub.f32 %v345, %v1854
        %v1856 = vand.u32 %v1855, 4294901760
        %1857 = vmatmul.f32.gmra.mxu0 %v1856
        %v1858 = vpop.f32.mrf.mxu0
        %v1859 = vadd.f32 %v1724, %v1858
        %v1860 = vand.u32 %v346, 4294901760
        %v1861 = vsub.f32 %v346, %v1860
        %v1862 = vand.u32 %v1861, 4294901760
        %1863 = vmatmul.f32.gmra.mxu0 %v1862
        %v1864 = vpop.f32.mrf.mxu0
        %v1865 = vadd.f32 %v1729, %v1864
        %v1866 = vand.u32 %v347, 4294901760
        %v1867 = vsub.f32 %v347, %v1866
        %v1868 = vand.u32 %v1867, 4294901760
        %1869 = vmatmul.f32.gmra.mxu0 %v1868
        %v1870 = vpop.f32.mrf.mxu0
        %v1871 = vadd.f32 %v1734, %v1870
        %v1872 = vand.u32 %v348, 4294901760
        %v1873 = vsub.f32 %v348, %v1872
        %v1874 = vand.u32 %v1873, 4294901760
        %1875 = vmatmul.f32.gmra.mxu0 %v1874
        %v1876 = vpop.f32.mrf.mxu0
        %v1877 = vadd.f32 %v1739, %v1876
        %v1878 = vand.u32 %v349, 4294901760
        %v1879 = vsub.f32 %v349, %v1878
        %v1880 = vand.u32 %v1879, 4294901760
        %1881 = vmatmul.f32.gmra.mxu0 %v1880
        %v1882 = vpop.f32.mrf.mxu0
        %v1883 = vadd.f32 %v1744, %v1882
        %v1884 = vand.u32 %v350, 4294901760
        %v1885 = vsub.f32 %v350, %v1884
        %v1886 = vand.u32 %v1885, 4294901760
        %1887 = vmatmul.f32.gmra.mxu0 %v1886
        %v1888 = vpop.f32.mrf.mxu0
        %v1889 = vadd.f32 %v1749, %v1888
        %v1890 = vand.u32 %v351, 4294901760
        %v1891 = vsub.f32 %v351, %v1890
        %v1892 = vand.u32 %v1891, 4294901760
        %1893 = vmatmul.f32.gmra.mxu0 %v1892
        %v1894 = vpop.f32.mrf.mxu0
        %v1895 = vadd.f32 %v1754, %v1894
        %1896 = vdwg.mxu0
        %v1897 = vand.u32 %v367, 4294901760
        %v1898 = vsub.f32 %v367, %v1897
        %v1899 = vand.u32 %v1898, 4294901760
        %1900 = vmatpush.msra.mxu0 %v1899
        %v1901 = vand.u32 %v366, 4294901760
        %v1902 = vsub.f32 %v366, %v1901
        %v1903 = vand.u32 %v1902, 4294901760
        %1904 = vmatpush.msra.mxu0 %v1903
        %v1905 = vand.u32 %v365, 4294901760
        %v1906 = vsub.f32 %v365, %v1905
        %v1907 = vand.u32 %v1906, 4294901760
        %1908 = vmatpush.msra.mxu0 %v1907
        %v1909 = vand.u32 %v364, 4294901760
        %v1910 = vsub.f32 %v364, %v1909
        %v1911 = vand.u32 %v1910, 4294901760
        %1912 = vmatpush.msra.mxu0 %v1911
        %v1913 = vand.u32 %v363, 4294901760
        %v1914 = vsub.f32 %v363, %v1913
        %v1915 = vand.u32 %v1914, 4294901760
        %1916 = vmatpush.msra.mxu0 %v1915
        %v1917 = vand.u32 %v362, 4294901760
        %v1918 = vsub.f32 %v362, %v1917
        %v1919 = vand.u32 %v1918, 4294901760
        %1920 = vmatpush.msra.mxu0 %v1919
        %v1921 = vand.u32 %v361, 4294901760
        %v1922 = vsub.f32 %v361, %v1921
        %v1923 = vand.u32 %v1922, 4294901760
        %1924 = vmatpush.msra.mxu0 %v1923
        %v1925 = vand.u32 %v360, 4294901760
        %v1926 = vsub.f32 %v360, %v1925
        %v1927 = vand.u32 %v1926, 4294901760
        %1928 = vmatpush.msra.mxu0 %v1927
        %v1929 = vand.u32 %v359, 4294901760
        %v1930 = vsub.f32 %v359, %v1929
        %v1931 = vand.u32 %v1930, 4294901760
        %1932 = vmatpush.msra.mxu0 %v1931
        %v1933 = vand.u32 %v358, 4294901760
        %v1934 = vsub.f32 %v358, %v1933
        %v1935 = vand.u32 %v1934, 4294901760
        %1936 = vmatpush.msra.mxu0 %v1935
        %v1937 = vand.u32 %v357, 4294901760
        %v1938 = vsub.f32 %v357, %v1937
        %v1939 = vand.u32 %v1938, 4294901760
        %1940 = vmatpush.msra.mxu0 %v1939
        %v1941 = vand.u32 %v356, 4294901760
        %v1942 = vsub.f32 %v356, %v1941
        %v1943 = vand.u32 %v1942, 4294901760
        %1944 = vmatpush.msra.mxu0 %v1943
        %v1945 = vand.u32 %v355, 4294901760
        %v1946 = vsub.f32 %v355, %v1945
        %v1947 = vand.u32 %v1946, 4294901760
        %1948 = vmatpush.msra.mxu0 %v1947
        %v1949 = vand.u32 %v354, 4294901760
        %v1950 = vsub.f32 %v354, %v1949
        %v1951 = vand.u32 %v1950, 4294901760
        %1952 = vmatpush.msra.mxu0 %v1951
        %v1953 = vand.u32 %v353, 4294901760
        %v1954 = vsub.f32 %v353, %v1953
        %v1955 = vand.u32 %v1954, 4294901760
        %1956 = vmatpush.msra.mxu0 %v1955
        %v1957 = vand.u32 %v352, 4294901760
        %v1958 = vsub.f32 %v352, %v1957
        %v1959 = vand.u32 %v1958, 4294901760
        %1960 = vmatpush.msra.mxu0 %v1959
        %v1961 = vand.u32 %v334, 4294901760
        %1962 = vmatmul.f32.gmra.mxu0 %v1961
        %v1963 = vpop.f32.mrf.mxu0
        %v1964 = vadd.f32 %v1793, %v1963
        %v1965 = vand.u32 %v335, 4294901760
        %1966 = vmatmul.f32.gmra.mxu0 %v1965
        %v1967 = vpop.f32.mrf.mxu0
        %v1968 = vadd.f32 %v1799, %v1967
        %v1969 = vand.u32 %v336, 4294901760
        %1970 = vmatmul.f32.gmra.mxu0 %v1969
        %v1971 = vpop.f32.mrf.mxu0
        %v1972 = vadd.f32 %v1805, %v1971
        %v1973 = vand.u32 %v337, 4294901760
        %1974 = vmatmul.f32.gmra.mxu0 %v1973
        %v1975 = vpop.f32.mrf.mxu0
        %v1976 = vadd.f32 %v1811, %v1975
        %v1977 = vand.u32 %v338, 4294901760
        %1978 = vmatmul.f32.gmra.mxu0 %v1977
        %v1979 = vpop.f32.mrf.mxu0
        %v1980 = vadd.f32 %v1817, %v1979
        %v1981 = vand.u32 %v339, 4294901760
        %1982 = vmatmul.f32.gmra.mxu0 %v1981
        %v1983 = vpop.f32.mrf.mxu0
        %v1984 = vadd.f32 %v1823, %v1983
        %v1985 = vand.u32 %v340, 4294901760
        %1986 = vmatmul.f32.gmra.mxu0 %v1985
        %v1987 = vpop.f32.mrf.mxu0
        %v1988 = vadd.f32 %v1829, %v1987
        %v1989 = vand.u32 %v341, 4294901760
        %1990 = vmatmul.f32.gmra.mxu0 %v1989
        %v1991 = vpop.f32.mrf.mxu0
        %v1992 = vadd.f32 %v1835, %v1991
        %v1993 = vand.u32 %v342, 4294901760
        %1994 = vmatmul.f32.gmra.mxu0 %v1993
        %v1995 = vpop.f32.mrf.mxu0
        %v1996 = vadd.f32 %v1841, %v1995
        %v1997 = vand.u32 %v343, 4294901760
        %1998 = vmatmul.f32.gmra.mxu0 %v1997
        %v1999 = vpop.f32.mrf.mxu0
        %v2000 = vadd.f32 %v1847, %v1999
        %v2001 = vand.u32 %v344, 4294901760
        %2002 = vmatmul.f32.gmra.mxu0 %v2001
        %v2003 = vpop.f32.mrf.mxu0
        %v2004 = vadd.f32 %v1853, %v2003
        %v2005 = vand.u32 %v345, 4294901760
        %2006 = vmatmul.f32.gmra.mxu0 %v2005
        %v2007 = vpop.f32.mrf.mxu0
        %v2008 = vadd.f32 %v1859, %v2007
        %v2009 = vand.u32 %v346, 4294901760
        %2010 = vmatmul.f32.gmra.mxu0 %v2009
        %v2011 = vpop.f32.mrf.mxu0
        %v2012 = vadd.f32 %v1865, %v2011
        %v2013 = vand.u32 %v347, 4294901760
        %2014 = vmatmul.f32.gmra.mxu0 %v2013
        %v2015 = vpop.f32.mrf.mxu0
        %v2016 = vadd.f32 %v1871, %v2015
        %v2017 = vand.u32 %v348, 4294901760
        %2018 = vmatmul.f32.gmra.mxu0 %v2017
        %v2019 = vpop.f32.mrf.mxu0
        %v2020 = vadd.f32 %v1877, %v2019
        %v2021 = vand.u32 %v349, 4294901760
        %2022 = vmatmul.f32.gmra.mxu0 %v2021
        %v2023 = vpop.f32.mrf.mxu0
        %v2024 = vadd.f32 %v1883, %v2023
        %v2025 = vand.u32 %v350, 4294901760
        %2026 = vmatmul.f32.gmra.mxu0 %v2025
        %v2027 = vpop.f32.mrf.mxu0
        %v2028 = vadd.f32 %v1889, %v2027
        %v2029 = vand.u32 %v351, 4294901760
        %2030 = vmatmul.f32.gmra.mxu0 %v2029
        %v2031 = vpop.f32.mrf.mxu0
        %v2032 = vadd.f32 %v1895, %v2031
        %2033 = vdwg.mxu0
        %v2034 = vand.u32 %v367, 4294901760
        %2035 = vmatpush.msra.mxu0 %v2034
        %v2036 = vand.u32 %v366, 4294901760
        %2037 = vmatpush.msra.mxu0 %v2036
        %v2038 = vand.u32 %v365, 4294901760
        %2039 = vmatpush.msra.mxu0 %v2038
        %v2040 = vand.u32 %v364, 4294901760
        %2041 = vmatpush.msra.mxu0 %v2040
        %v2042 = vand.u32 %v363, 4294901760
        %2043 = vmatpush.msra.mxu0 %v2042
        %v2044 = vand.u32 %v362, 4294901760
        %2045 = vmatpush.msra.mxu0 %v2044
        %v2046 = vand.u32 %v361, 4294901760
        %2047 = vmatpush.msra.mxu0 %v2046
        %v2048 = vand.u32 %v360, 4294901760
        %2049 = vmatpush.msra.mxu0 %v2048
        %v2050 = vand.u32 %v359, 4294901760
        %2051 = vmatpush.msra.mxu0 %v2050
        %v2052 = vand.u32 %v358, 4294901760
        %2053 = vmatpush.msra.mxu0 %v2052
        %v2054 = vand.u32 %v357, 4294901760
        %2055 = vmatpush.msra.mxu0 %v2054
        %v2056 = vand.u32 %v356, 4294901760
        %2057 = vmatpush.msra.mxu0 %v2056
        %v2058 = vand.u32 %v355, 4294901760
        %2059 = vmatpush.msra.mxu0 %v2058
        %v2060 = vand.u32 %v354, 4294901760
        %2061 = vmatpush.msra.mxu0 %v2060
        %v2062 = vand.u32 %v353, 4294901760
        %2063 = vmatpush.msra.mxu0 %v2062
        %v2064 = vand.u32 %v352, 4294901760
        %2065 = vmatpush.msra.mxu0 %v2064
        %v2066 = vand.u32 %v334, 4294901760
        %2067 = vmatmul.f32.gmra.mxu0 %v2066
        %v2068 = vpop.f32.mrf.mxu0
        %v2069 = vadd.f32 %v1964, %v2068
        %v2070 = vand.u32 %v335, 4294901760
        %2071 = vmatmul.f32.gmra.mxu0 %v2070
        %v2072 = vpop.f32.mrf.mxu0
        %v2073 = vadd.f32 %v1968, %v2072
        %v2074 = vand.u32 %v336, 4294901760
        %2075 = vmatmul.f32.gmra.mxu0 %v2074
        %v2076 = vpop.f32.mrf.mxu0
        %v2077 = vadd.f32 %v1972, %v2076
        %v2078 = vand.u32 %v337, 4294901760
        %2079 = vmatmul.f32.gmra.mxu0 %v2078
        %v2080 = vpop.f32.mrf.mxu0
        %v2081 = vadd.f32 %v1976, %v2080
        %v2082 = vand.u32 %v338, 4294901760
        %2083 = vmatmul.f32.gmra.mxu0 %v2082
        %v2084 = vpop.f32.mrf.mxu0
        %v2085 = vadd.f32 %v1980, %v2084
        %v2086 = vand.u32 %v339, 4294901760
        %2087 = vmatmul.f32.gmra.mxu0 %v2086
        %v2088 = vpop.f32.mrf.mxu0
        %v2089 = vadd.f32 %v1984, %v2088
        %v2090 = vand.u32 %v340, 4294901760
        %2091 = vmatmul.f32.gmra.mxu0 %v2090
        %v2092 = vpop.f32.mrf.mxu0
        %v2093 = vadd.f32 %v1988, %v2092
        %v2094 = vand.u32 %v341, 4294901760
        %2095 = vmatmul.f32.gmra.mxu0 %v2094
        %v2096 = vpop.f32.mrf.mxu0
        %v2097 = vadd.f32 %v1992, %v2096
        %v2098 = vand.u32 %v342, 4294901760
        %2099 = vmatmul.f32.gmra.mxu0 %v2098
        %v2100 = vpop.f32.mrf.mxu0
        %v2101 = vadd.f32 %v1996, %v2100
        %v2102 = vand.u32 %v343, 4294901760
        %2103 = vmatmul.f32.gmra.mxu0 %v2102
        %v2104 = vpop.f32.mrf.mxu0
        %v2105 = vadd.f32 %v2000, %v2104
        %v2106 = vand.u32 %v344, 4294901760
        %2107 = vmatmul.f32.gmra.mxu0 %v2106
        %v2108 = vpop.f32.mrf.mxu0
        %v2109 = vadd.f32 %v2004, %v2108
        %v2110 = vand.u32 %v345, 4294901760
        %2111 = vmatmul.f32.gmra.mxu0 %v2110
        %v2112 = vpop.f32.mrf.mxu0
        %v2113 = vadd.f32 %v2008, %v2112
        %v2114 = vand.u32 %v346, 4294901760
        %2115 = vmatmul.f32.gmra.mxu0 %v2114
        %v2116 = vpop.f32.mrf.mxu0
        %v2117 = vadd.f32 %v2012, %v2116
        %v2118 = vand.u32 %v347, 4294901760
        %2119 = vmatmul.f32.gmra.mxu0 %v2118
        %v2120 = vpop.f32.mrf.mxu0
        %v2121 = vadd.f32 %v2016, %v2120
        %v2122 = vand.u32 %v348, 4294901760
        %2123 = vmatmul.f32.gmra.mxu0 %v2122
        %v2124 = vpop.f32.mrf.mxu0
        %v2125 = vadd.f32 %v2020, %v2124
        %v2126 = vand.u32 %v349, 4294901760
        %2127 = vmatmul.f32.gmra.mxu0 %v2126
        %v2128 = vpop.f32.mrf.mxu0
        %v2129 = vadd.f32 %v2024, %v2128
        %v2130 = vand.u32 %v350, 4294901760
        %2131 = vmatmul.f32.gmra.mxu0 %v2130
        %v2132 = vpop.f32.mrf.mxu0
        %v2133 = vadd.f32 %v2028, %v2132
        %v2134 = vand.u32 %v351, 4294901760
        %2135 = vmatmul.f32.gmra.mxu0 %v2134
        %v2136 = vpop.f32.mrf.mxu0
        %v2137 = vadd.f32 %v2032, %v2136
        %2138 = vdwg.mxu0
        %v2139 = vld [vmem:[%s333 + $0x2] sm:$0xff]
        %v2140 = vld [vmem:[%s333 + $0xa] sm:$0xff]
        %v2141 = vld [vmem:[%s333 + $0x12] sm:$0xff]
        %v2142 = vld [vmem:[%s333 + $0x1a] sm:$0xff]
        %v2143 = vld [vmem:[%s333 + $0x22] sm:$0xff]
        %v2144 = vld [vmem:[%s333 + $0x2a] sm:$0xff]
        %v2145 = vld [vmem:[%s333 + $0x32] sm:$0xff]
        %v2146 = vld [vmem:[%s333 + $0x3a] sm:$0xff]
        %v2147 = vld [vmem:[%s333 + $0x42] sm:$0xff]
        %v2148 = vld [vmem:[%s333 + $0x4a] sm:$0xff]
        %v2149 = vld [vmem:[%s333 + $0x52] sm:$0xff]
        %v2150 = vld [vmem:[%s333 + $0x5a] sm:$0xff]
        %v2151 = vld [vmem:[%s333 + $0x62] sm:$0xff]
        %v2152 = vld [vmem:[%s333 + $0x6a] sm:$0xff]
        %v2153 = vld [vmem:[%s333 + $0x72] sm:$0xff]
        %v2154 = vld [vmem:[%s333 + $0x7a] sm:$0xff]
        %v2155 = vld [vmem:[%s333 + $0x82] sm:$0xff]
        %v2156 = vld [vmem:[%s333 + $0x8a] sm:$0xff]
        %s2157 = scalar_lea.vmem %s1, 256
        %v2158 = vld [vmem:[%s2157] sm:$0xff]
        %v2159 = vld [vmem:[%s2157 + $0x8] sm:$0xff]
        %v2160 = vld [vmem:[%s2157 + $0x10] sm:$0xff]
        %v2161 = vld [vmem:[%s2157 + $0x18] sm:$0xff]
        %v2162 = vld [vmem:[%s2157 + $0x20] sm:$0xff]
        %v2163 = vld [vmem:[%s2157 + $0x28] sm:$0xff]
        %v2164 = vld [vmem:[%s2157 + $0x30] sm:$0xff]
        %v2165 = vld [vmem:[%s2157 + $0x38] sm:$0xff]
        %v2166 = vld [vmem:[%s2157 + $0x40] sm:$0xff]
        %v2167 = vld [vmem:[%s2157 + $0x48] sm:$0xff]
        %v2168 = vld [vmem:[%s2157 + $0x50] sm:$0xff]
        %v2169 = vld [vmem:[%s2157 + $0x58] sm:$0xff]
        %v2170 = vld [vmem:[%s2157 + $0x60] sm:$0xff]
        %v2171 = vld [vmem:[%s2157 + $0x68] sm:$0xff]
        %v2172 = vld [vmem:[%s2157 + $0x70] sm:$0xff]
        %v2173 = vld [vmem:[%s2157 + $0x78] sm:$0xff]
        %v2174 = vand.u32 %v2173, 4294901760
        %2175 = vmatpush.msra.mxu0 %v2174
        %v2176 = vand.u32 %v2172, 4294901760
        %2177 = vmatpush.msra.mxu0 %v2176
        %v2178 = vand.u32 %v2171, 4294901760
        %2179 = vmatpush.msra.mxu0 %v2178
        %v2180 = vand.u32 %v2170, 4294901760
        %2181 = vmatpush.msra.mxu0 %v2180
        %v2182 = vand.u32 %v2169, 4294901760
        %2183 = vmatpush.msra.mxu0 %v2182
        %v2184 = vand.u32 %v2168, 4294901760
        %2185 = vmatpush.msra.mxu0 %v2184
        %v2186 = vand.u32 %v2167, 4294901760
        %2187 = vmatpush.msra.mxu0 %v2186
        %v2188 = vand.u32 %v2166, 4294901760
        %2189 = vmatpush.msra.mxu0 %v2188
        %v2190 = vand.u32 %v2165, 4294901760
        %2191 = vmatpush.msra.mxu0 %v2190
        %v2192 = vand.u32 %v2164, 4294901760
        %2193 = vmatpush.msra.mxu0 %v2192
        %v2194 = vand.u32 %v2163, 4294901760
        %2195 = vmatpush.msra.mxu0 %v2194
        %v2196 = vand.u32 %v2162, 4294901760
        %2197 = vmatpush.msra.mxu0 %v2196
        %v2198 = vand.u32 %v2161, 4294901760
        %2199 = vmatpush.msra.mxu0 %v2198
        %v2200 = vand.u32 %v2160, 4294901760
        %2201 = vmatpush.msra.mxu0 %v2200
        %v2202 = vand.u32 %v2159, 4294901760
        %2203 = vmatpush.msra.mxu0 %v2202
        %v2204 = vand.u32 %v2158, 4294901760
        %2205 = vmatpush.msra.mxu0 %v2204
        %v2206 = vand.u32 %v2139, 4294901760
        %v2207 = vsub.f32 %v2139, %v2206
        %v2208 = vand.u32 %v2207, 4294901760
        %v2209 = vsub.f32 %v2207, %v2208
        %v2210 = vand.u32 %v2209, 4294901760
        %2211 = vmatmul.f32.gmra.mxu0 %v2210
        %v2212 = vpop.f32.mrf.mxu0
        %v2213 = vadd.f32 0.0, %v2212
        %v2214 = vand.u32 %v2140, 4294901760
        %v2215 = vsub.f32 %v2140, %v2214
        %v2216 = vand.u32 %v2215, 4294901760
        %v2217 = vsub.f32 %v2215, %v2216
        %v2218 = vand.u32 %v2217, 4294901760
        %2219 = vmatmul.f32.gmra.mxu0 %v2218
        %v2220 = vpop.f32.mrf.mxu0
        %v2221 = vadd.f32 0.0, %v2220
        %v2222 = vand.u32 %v2141, 4294901760
        %v2223 = vsub.f32 %v2141, %v2222
        %v2224 = vand.u32 %v2223, 4294901760
        %v2225 = vsub.f32 %v2223, %v2224
        %v2226 = vand.u32 %v2225, 4294901760
        %2227 = vmatmul.f32.gmra.mxu0 %v2226
        %v2228 = vpop.f32.mrf.mxu0
        %v2229 = vadd.f32 0.0, %v2228
        %v2230 = vand.u32 %v2142, 4294901760
        %v2231 = vsub.f32 %v2142, %v2230
        %v2232 = vand.u32 %v2231, 4294901760
        %v2233 = vsub.f32 %v2231, %v2232
        %v2234 = vand.u32 %v2233, 4294901760
        %2235 = vmatmul.f32.gmra.mxu0 %v2234
        %v2236 = vpop.f32.mrf.mxu0
        %v2237 = vadd.f32 0.0, %v2236
        %v2238 = vand.u32 %v2143, 4294901760
        %v2239 = vsub.f32 %v2143, %v2238
        %v2240 = vand.u32 %v2239, 4294901760
        %v2241 = vsub.f32 %v2239, %v2240
        %v2242 = vand.u32 %v2241, 4294901760
        %2243 = vmatmul.f32.gmra.mxu0 %v2242
        %v2244 = vpop.f32.mrf.mxu0
        %v2245 = vadd.f32 0.0, %v2244
        %v2246 = vand.u32 %v2144, 4294901760
        %v2247 = vsub.f32 %v2144, %v2246
        %v2248 = vand.u32 %v2247, 4294901760
        %v2249 = vsub.f32 %v2247, %v2248
        %v2250 = vand.u32 %v2249, 4294901760
        %2251 = vmatmul.f32.gmra.mxu0 %v2250
        %v2252 = vpop.f32.mrf.mxu0
        %v2253 = vadd.f32 0.0, %v2252
        %v2254 = vand.u32 %v2145, 4294901760
        %v2255 = vsub.f32 %v2145, %v2254
        %v2256 = vand.u32 %v2255, 4294901760
        %v2257 = vsub.f32 %v2255, %v2256
        %v2258 = vand.u32 %v2257, 4294901760
        %2259 = vmatmul.f32.gmra.mxu0 %v2258
        %v2260 = vpop.f32.mrf.mxu0
        %v2261 = vadd.f32 0.0, %v2260
        %v2262 = vand.u32 %v2146, 4294901760
        %v2263 = vsub.f32 %v2146, %v2262
        %v2264 = vand.u32 %v2263, 4294901760
        %v2265 = vsub.f32 %v2263, %v2264
        %v2266 = vand.u32 %v2265, 4294901760
        %2267 = vmatmul.f32.gmra.mxu0 %v2266
        %v2268 = vpop.f32.mrf.mxu0
        %v2269 = vadd.f32 0.0, %v2268
        %v2270 = vand.u32 %v2147, 4294901760
        %v2271 = vsub.f32 %v2147, %v2270
        %v2272 = vand.u32 %v2271, 4294901760
        %v2273 = vsub.f32 %v2271, %v2272
        %v2274 = vand.u32 %v2273, 4294901760
        %2275 = vmatmul.f32.gmra.mxu0 %v2274
        %v2276 = vpop.f32.mrf.mxu0
        %v2277 = vadd.f32 0.0, %v2276
        %v2278 = vand.u32 %v2148, 4294901760
        %v2279 = vsub.f32 %v2148, %v2278
        %v2280 = vand.u32 %v2279, 4294901760
        %v2281 = vsub.f32 %v2279, %v2280
        %v2282 = vand.u32 %v2281, 4294901760
        %2283 = vmatmul.f32.gmra.mxu0 %v2282
        %v2284 = vpop.f32.mrf.mxu0
        %v2285 = vadd.f32 0.0, %v2284
        %v2286 = vand.u32 %v2149, 4294901760
        %v2287 = vsub.f32 %v2149, %v2286
        %v2288 = vand.u32 %v2287, 4294901760
        %v2289 = vsub.f32 %v2287, %v2288
        %v2290 = vand.u32 %v2289, 4294901760
        %2291 = vmatmul.f32.gmra.mxu0 %v2290
        %v2292 = vpop.f32.mrf.mxu0
        %v2293 = vadd.f32 0.0, %v2292
        %v2294 = vand.u32 %v2150, 4294901760
        %v2295 = vsub.f32 %v2150, %v2294
        %v2296 = vand.u32 %v2295, 4294901760
        %v2297 = vsub.f32 %v2295, %v2296
        %v2298 = vand.u32 %v2297, 4294901760
        %2299 = vmatmul.f32.gmra.mxu0 %v2298
        %v2300 = vpop.f32.mrf.mxu0
        %v2301 = vadd.f32 0.0, %v2300
        %v2302 = vand.u32 %v2151, 4294901760
        %v2303 = vsub.f32 %v2151, %v2302
        %v2304 = vand.u32 %v2303, 4294901760
        %v2305 = vsub.f32 %v2303, %v2304
        %v2306 = vand.u32 %v2305, 4294901760
        %2307 = vmatmul.f32.gmra.mxu0 %v2306
        %v2308 = vpop.f32.mrf.mxu0
        %v2309 = vadd.f32 0.0, %v2308
        %v2310 = vand.u32 %v2152, 4294901760
        %v2311 = vsub.f32 %v2152, %v2310
        %v2312 = vand.u32 %v2311, 4294901760
        %v2313 = vsub.f32 %v2311, %v2312
        %v2314 = vand.u32 %v2313, 4294901760
        %2315 = vmatmul.f32.gmra.mxu0 %v2314
        %v2316 = vpop.f32.mrf.mxu0
        %v2317 = vadd.f32 0.0, %v2316
        %v2318 = vand.u32 %v2153, 4294901760
        %v2319 = vsub.f32 %v2153, %v2318
        %v2320 = vand.u32 %v2319, 4294901760
        %v2321 = vsub.f32 %v2319, %v2320
        %v2322 = vand.u32 %v2321, 4294901760
        %2323 = vmatmul.f32.gmra.mxu0 %v2322
        %v2324 = vpop.f32.mrf.mxu0
        %v2325 = vadd.f32 0.0, %v2324
        %v2326 = vand.u32 %v2154, 4294901760
        %v2327 = vsub.f32 %v2154, %v2326
        %v2328 = vand.u32 %v2327, 4294901760
        %v2329 = vsub.f32 %v2327, %v2328
        %v2330 = vand.u32 %v2329, 4294901760
        %2331 = vmatmul.f32.gmra.mxu0 %v2330
        %v2332 = vpop.f32.mrf.mxu0
        %v2333 = vadd.f32 0.0, %v2332
        %v2334 = vand.u32 %v2155, 4294901760
        %v2335 = vsub.f32 %v2155, %v2334
        %v2336 = vand.u32 %v2335, 4294901760
        %v2337 = vsub.f32 %v2335, %v2336
        %v2338 = vand.u32 %v2337, 4294901760
        %2339 = vmatmul.f32.gmra.mxu0 %v2338
        %v2340 = vpop.f32.mrf.mxu0
        %v2341 = vadd.f32 0.0, %v2340
        %v2342 = vand.u32 %v2156, 4294901760
        %v2343 = vsub.f32 %v2156, %v2342
        %v2344 = vand.u32 %v2343, 4294901760
        %v2345 = vsub.f32 %v2343, %v2344
        %v2346 = vand.u32 %v2345, 4294901760
        %2347 = vmatmul.f32.gmra.mxu0 %v2346
        %v2348 = vpop.f32.mrf.mxu0
        %v2349 = vadd.f32 0.0, %v2348
        %2350 = vdwg.mxu0
        %v2351 = vand.u32 %v2173, 4294901760
        %v2352 = vsub.f32 %v2173, %v2351
        %v2353 = vand.u32 %v2352, 4294901760
        %v2354 = vsub.f32 %v2352, %v2353
        %v2355 = vand.u32 %v2354, 4294901760
        %2356 = vmatpush.msra.mxu0 %v2355
        %v2357 = vand.u32 %v2172, 4294901760
        %v2358 = vsub.f32 %v2172, %v2357
        %v2359 = vand.u32 %v2358, 4294901760
        %v2360 = vsub.f32 %v2358, %v2359
        %v2361 = vand.u32 %v2360, 4294901760
        %2362 = vmatpush.msra.mxu0 %v2361
        %v2363 = vand.u32 %v2171, 4294901760
        %v2364 = vsub.f32 %v2171, %v2363
        %v2365 = vand.u32 %v2364, 4294901760
        %v2366 = vsub.f32 %v2364, %v2365
        %v2367 = vand.u32 %v2366, 4294901760
        %2368 = vmatpush.msra.mxu0 %v2367
        %v2369 = vand.u32 %v2170, 4294901760
        %v2370 = vsub.f32 %v2170, %v2369
        %v2371 = vand.u32 %v2370, 4294901760
        %v2372 = vsub.f32 %v2370, %v2371
        %v2373 = vand.u32 %v2372, 4294901760
        %2374 = vmatpush.msra.mxu0 %v2373
        %v2375 = vand.u32 %v2169, 4294901760
        %v2376 = vsub.f32 %v2169, %v2375
        %v2377 = vand.u32 %v2376, 4294901760
        %v2378 = vsub.f32 %v2376, %v2377
        %v2379 = vand.u32 %v2378, 4294901760
        %2380 = vmatpush.msra.mxu0 %v2379
        %v2381 = vand.u32 %v2168, 4294901760
        %v2382 = vsub.f32 %v2168, %v2381
        %v2383 = vand.u32 %v2382, 4294901760
        %v2384 = vsub.f32 %v2382, %v2383
        %v2385 = vand.u32 %v2384, 4294901760
        %2386 = vmatpush.msra.mxu0 %v2385
        %v2387 = vand.u32 %v2167, 4294901760
        %v2388 = vsub.f32 %v2167, %v2387
        %v2389 = vand.u32 %v2388, 4294901760
        %v2390 = vsub.f32 %v2388, %v2389
        %v2391 = vand.u32 %v2390, 4294901760
        %2392 = vmatpush.msra.mxu0 %v2391
        %v2393 = vand.u32 %v2166, 4294901760
        %v2394 = vsub.f32 %v2166, %v2393
        %v2395 = vand.u32 %v2394, 4294901760
        %v2396 = vsub.f32 %v2394, %v2395
        %v2397 = vand.u32 %v2396, 4294901760
        %2398 = vmatpush.msra.mxu0 %v2397
        %v2399 = vand.u32 %v2165, 4294901760
        %v2400 = vsub.f32 %v2165, %v2399
        %v2401 = vand.u32 %v2400, 4294901760
        %v2402 = vsub.f32 %v2400, %v2401
        %v2403 = vand.u32 %v2402, 4294901760
        %2404 = vmatpush.msra.mxu0 %v2403
        %v2405 = vand.u32 %v2164, 4294901760
        %v2406 = vsub.f32 %v2164, %v2405
        %v2407 = vand.u32 %v2406, 4294901760
        %v2408 = vsub.f32 %v2406, %v2407
        %v2409 = vand.u32 %v2408, 4294901760
        %2410 = vmatpush.msra.mxu0 %v2409
        %v2411 = vand.u32 %v2163, 4294901760
        %v2412 = vsub.f32 %v2163, %v2411
        %v2413 = vand.u32 %v2412, 4294901760
        %v2414 = vsub.f32 %v2412, %v2413
        %v2415 = vand.u32 %v2414, 4294901760
        %2416 = vmatpush.msra.mxu0 %v2415
        %v2417 = vand.u32 %v2162, 4294901760
        %v2418 = vsub.f32 %v2162, %v2417
        %v2419 = vand.u32 %v2418, 4294901760
        %v2420 = vsub.f32 %v2418, %v2419
        %v2421 = vand.u32 %v2420, 4294901760
        %2422 = vmatpush.msra.mxu0 %v2421
        %v2423 = vand.u32 %v2161, 4294901760
        %v2424 = vsub.f32 %v2161, %v2423
        %v2425 = vand.u32 %v2424, 4294901760
        %v2426 = vsub.f32 %v2424, %v2425
        %v2427 = vand.u32 %v2426, 4294901760
        %2428 = vmatpush.msra.mxu0 %v2427
        %v2429 = vand.u32 %v2160, 4294901760
        %v2430 = vsub.f32 %v2160, %v2429
        %v2431 = vand.u32 %v2430, 4294901760
        %v2432 = vsub.f32 %v2430, %v2431
        %v2433 = vand.u32 %v2432, 4294901760
        %2434 = vmatpush.msra.mxu0 %v2433
        %v2435 = vand.u32 %v2159, 4294901760
        %v2436 = vsub.f32 %v2159, %v2435
        %v2437 = vand.u32 %v2436, 4294901760
        %v2438 = vsub.f32 %v2436, %v2437
        %v2439 = vand.u32 %v2438, 4294901760
        %2440 = vmatpush.msra.mxu0 %v2439
        %v2441 = vand.u32 %v2158, 4294901760
        %v2442 = vsub.f32 %v2158, %v2441
        %v2443 = vand.u32 %v2442, 4294901760
        %v2444 = vsub.f32 %v2442, %v2443
        %v2445 = vand.u32 %v2444, 4294901760
        %2446 = vmatpush.msra.mxu0 %v2445
        %v2447 = vand.u32 %v2139, 4294901760
        %2448 = vmatmul.f32.gmra.mxu0 %v2447
        %v2449 = vpop.f32.mrf.mxu0
        %v2450 = vadd.f32 %v2213, %v2449
        %v2451 = vand.u32 %v2140, 4294901760
        %2452 = vmatmul.f32.gmra.mxu0 %v2451
        %v2453 = vpop.f32.mrf.mxu0
        %v2454 = vadd.f32 %v2221, %v2453
        %v2455 = vand.u32 %v2141, 4294901760
        %2456 = vmatmul.f32.gmra.mxu0 %v2455
        %v2457 = vpop.f32.mrf.mxu0
        %v2458 = vadd.f32 %v2229, %v2457
        %v2459 = vand.u32 %v2142, 4294901760
        %2460 = vmatmul.f32.gmra.mxu0 %v2459
        %v2461 = vpop.f32.mrf.mxu0
        %v2462 = vadd.f32 %v2237, %v2461
        %v2463 = vand.u32 %v2143, 4294901760
        %2464 = vmatmul.f32.gmra.mxu0 %v2463
        %v2465 = vpop.f32.mrf.mxu0
        %v2466 = vadd.f32 %v2245, %v2465
        %v2467 = vand.u32 %v2144, 4294901760
        %2468 = vmatmul.f32.gmra.mxu0 %v2467
        %v2469 = vpop.f32.mrf.mxu0
        %v2470 = vadd.f32 %v2253, %v2469
        %v2471 = vand.u32 %v2145, 4294901760
        %2472 = vmatmul.f32.gmra.mxu0 %v2471
        %v2473 = vpop.f32.mrf.mxu0
        %v2474 = vadd.f32 %v2261, %v2473
        %v2475 = vand.u32 %v2146, 4294901760
        %2476 = vmatmul.f32.gmra.mxu0 %v2475
        %v2477 = vpop.f32.mrf.mxu0
        %v2478 = vadd.f32 %v2269, %v2477
        %v2479 = vand.u32 %v2147, 4294901760
        %2480 = vmatmul.f32.gmra.mxu0 %v2479
        %v2481 = vpop.f32.mrf.mxu0
        %v2482 = vadd.f32 %v2277, %v2481
        %v2483 = vand.u32 %v2148, 4294901760
        %2484 = vmatmul.f32.gmra.mxu0 %v2483
        %v2485 = vpop.f32.mrf.mxu0
        %v2486 = vadd.f32 %v2285, %v2485
        %v2487 = vand.u32 %v2149, 4294901760
        %2488 = vmatmul.f32.gmra.mxu0 %v2487
        %v2489 = vpop.f32.mrf.mxu0
        %v2490 = vadd.f32 %v2293, %v2489
        %v2491 = vand.u32 %v2150, 4294901760
        %2492 = vmatmul.f32.gmra.mxu0 %v2491
        %v2493 = vpop.f32.mrf.mxu0
        %v2494 = vadd.f32 %v2301, %v2493
        %v2495 = vand.u32 %v2151, 4294901760
        %2496 = vmatmul.f32.gmra.mxu0 %v2495
        %v2497 = vpop.f32.mrf.mxu0
        %v2498 = vadd.f32 %v2309, %v2497
        %v2499 = vand.u32 %v2152, 4294901760
        %2500 = vmatmul.f32.gmra.mxu0 %v2499
        %v2501 = vpop.f32.mrf.mxu0
        %v2502 = vadd.f32 %v2317, %v2501
        %v2503 = vand.u32 %v2153, 4294901760
        %2504 = vmatmul.f32.gmra.mxu0 %v2503
        %v2505 = vpop.f32.mrf.mxu0
        %v2506 = vadd.f32 %v2325, %v2505
        %v2507 = vand.u32 %v2154, 4294901760
        %2508 = vmatmul.f32.gmra.mxu0 %v2507
        %v2509 = vpop.f32.mrf.mxu0
        %v2510 = vadd.f32 %v2333, %v2509
        %v2511 = vand.u32 %v2155, 4294901760
        %2512 = vmatmul.f32.gmra.mxu0 %v2511
        %v2513 = vpop.f32.mrf.mxu0
        %v2514 = vadd.f32 %v2341, %v2513
        %v2515 = vand.u32 %v2156, 4294901760
        %2516 = vmatmul.f32.gmra.mxu0 %v2515
        %v2517 = vpop.f32.mrf.mxu0
        %v2518 = vadd.f32 %v2349, %v2517
        %2519 = vdwg.mxu0
        %v2520 = vand.u32 %v2173, 4294901760
        %v2521 = vsub.f32 %v2173, %v2520
        %2522 = vmatpush.msra.mxu0 %v2521
        %v2523 = vand.u32 %v2172, 4294901760
        %v2524 = vsub.f32 %v2172, %v2523
        %2525 = vmatpush.msra.mxu0 %v2524
        %v2526 = vand.u32 %v2171, 4294901760
        %v2527 = vsub.f32 %v2171, %v2526
        %2528 = vmatpush.msra.mxu0 %v2527
        %v2529 = vand.u32 %v2170, 4294901760
        %v2530 = vsub.f32 %v2170, %v2529
        %2531 = vmatpush.msra.mxu0 %v2530
        %v2532 = vand.u32 %v2169, 4294901760
        %v2533 = vsub.f32 %v2169, %v2532
        %2534 = vmatpush.msra.mxu0 %v2533
        %v2535 = vand.u32 %v2168, 4294901760
        %v2536 = vsub.f32 %v2168, %v2535
        %2537 = vmatpush.msra.mxu0 %v2536
        %v2538 = vand.u32 %v2167, 4294901760
        %v2539 = vsub.f32 %v2167, %v2538
        %2540 = vmatpush.msra.mxu0 %v2539
        %v2541 = vand.u32 %v2166, 4294901760
        %v2542 = vsub.f32 %v2166, %v2541
        %2543 = vmatpush.msra.mxu0 %v2542
        %v2544 = vand.u32 %v2165, 4294901760
        %v2545 = vsub.f32 %v2165, %v2544
        %2546 = vmatpush.msra.mxu0 %v2545
        %v2547 = vand.u32 %v2164, 4294901760
        %v2548 = vsub.f32 %v2164, %v2547
        %2549 = vmatpush.msra.mxu0 %v2548
        %v2550 = vand.u32 %v2163, 4294901760
        %v2551 = vsub.f32 %v2163, %v2550
        %2552 = vmatpush.msra.mxu0 %v2551
        %v2553 = vand.u32 %v2162, 4294901760
        %v2554 = vsub.f32 %v2162, %v2553
        %2555 = vmatpush.msra.mxu0 %v2554
        %v2556 = vand.u32 %v2161, 4294901760
        %v2557 = vsub.f32 %v2161, %v2556
        %2558 = vmatpush.msra.mxu0 %v2557
        %v2559 = vand.u32 %v2160, 4294901760
        %v2560 = vsub.f32 %v2160, %v2559
        %2561 = vmatpush.msra.mxu0 %v2560
        %v2562 = vand.u32 %v2159, 4294901760
        %v2563 = vsub.f32 %v2159, %v2562
        %2564 = vmatpush.msra.mxu0 %v2563
        %v2565 = vand.u32 %v2158, 4294901760
        %v2566 = vsub.f32 %v2158, %v2565
        %2567 = vmatpush.msra.mxu0 %v2566
        %v2568 = vand.u32 %v2139, 4294901760
        %v2569 = vsub.f32 %v2139, %v2568
        %2570 = vmatmul.f32.gmra.mxu0 %v2569
        %v2571 = vpop.f32.mrf.mxu0
        %v2572 = vadd.f32 %v2450, %v2571
        %v2573 = vand.u32 %v2140, 4294901760
        %v2574 = vsub.f32 %v2140, %v2573
        %2575 = vmatmul.f32.gmra.mxu0 %v2574
        %v2576 = vpop.f32.mrf.mxu0
        %v2577 = vadd.f32 %v2454, %v2576
        %v2578 = vand.u32 %v2141, 4294901760
        %v2579 = vsub.f32 %v2141, %v2578
        %2580 = vmatmul.f32.gmra.mxu0 %v2579
        %v2581 = vpop.f32.mrf.mxu0
        %v2582 = vadd.f32 %v2458, %v2581
        %v2583 = vand.u32 %v2142, 4294901760
        %v2584 = vsub.f32 %v2142, %v2583
        %2585 = vmatmul.f32.gmra.mxu0 %v2584
        %v2586 = vpop.f32.mrf.mxu0
        %v2587 = vadd.f32 %v2462, %v2586
        %v2588 = vand.u32 %v2143, 4294901760
        %v2589 = vsub.f32 %v2143, %v2588
        %2590 = vmatmul.f32.gmra.mxu0 %v2589
        %v2591 = vpop.f32.mrf.mxu0
        %v2592 = vadd.f32 %v2466, %v2591
        %v2593 = vand.u32 %v2144, 4294901760
        %v2594 = vsub.f32 %v2144, %v2593
        %2595 = vmatmul.f32.gmra.mxu0 %v2594
        %v2596 = vpop.f32.mrf.mxu0
        %v2597 = vadd.f32 %v2470, %v2596
        %v2598 = vand.u32 %v2145, 4294901760
        %v2599 = vsub.f32 %v2145, %v2598
        %2600 = vmatmul.f32.gmra.mxu0 %v2599
        %v2601 = vpop.f32.mrf.mxu0
        %v2602 = vadd.f32 %v2474, %v2601
        %v2603 = vand.u32 %v2146, 4294901760
        %v2604 = vsub.f32 %v2146, %v2603
        %2605 = vmatmul.f32.gmra.mxu0 %v2604
        %v2606 = vpop.f32.mrf.mxu0
        %v2607 = vadd.f32 %v2478, %v2606
        %v2608 = vand.u32 %v2147, 4294901760
        %v2609 = vsub.f32 %v2147, %v2608
        %2610 = vmatmul.f32.gmra.mxu0 %v2609
        %v2611 = vpop.f32.mrf.mxu0
        %v2612 = vadd.f32 %v2482, %v2611
        %v2613 = vand.u32 %v2148, 4294901760
        %v2614 = vsub.f32 %v2148, %v2613
        %2615 = vmatmul.f32.gmra.mxu0 %v2614
        %v2616 = vpop.f32.mrf.mxu0
        %v2617 = vadd.f32 %v2486, %v2616
        %v2618 = vand.u32 %v2149, 4294901760
        %v2619 = vsub.f32 %v2149, %v2618
        %2620 = vmatmul.f32.gmra.mxu0 %v2619
        %v2621 = vpop.f32.mrf.mxu0
        %v2622 = vadd.f32 %v2490, %v2621
        %v2623 = vand.u32 %v2150, 4294901760
        %v2624 = vsub.f32 %v2150, %v2623
        %2625 = vmatmul.f32.gmra.mxu0 %v2624
        %v2626 = vpop.f32.mrf.mxu0
        %v2627 = vadd.f32 %v2494, %v2626
        %v2628 = vand.u32 %v2151, 4294901760
        %v2629 = vsub.f32 %v2151, %v2628
        %2630 = vmatmul.f32.gmra.mxu0 %v2629
        %v2631 = vpop.f32.mrf.mxu0
        %v2632 = vadd.f32 %v2498, %v2631
        %v2633 = vand.u32 %v2152, 4294901760
        %v2634 = vsub.f32 %v2152, %v2633
        %2635 = vmatmul.f32.gmra.mxu0 %v2634
        %v2636 = vpop.f32.mrf.mxu0
        %v2637 = vadd.f32 %v2502, %v2636
        %v2638 = vand.u32 %v2153, 4294901760
        %v2639 = vsub.f32 %v2153, %v2638
        %2640 = vmatmul.f32.gmra.mxu0 %v2639
        %v2641 = vpop.f32.mrf.mxu0
        %v2642 = vadd.f32 %v2506, %v2641
        %v2643 = vand.u32 %v2154, 4294901760
        %v2644 = vsub.f32 %v2154, %v2643
        %2645 = vmatmul.f32.gmra.mxu0 %v2644
        %v2646 = vpop.f32.mrf.mxu0
        %v2647 = vadd.f32 %v2510, %v2646
        %v2648 = vand.u32 %v2155, 4294901760
        %v2649 = vsub.f32 %v2155, %v2648
        %2650 = vmatmul.f32.gmra.mxu0 %v2649
        %v2651 = vpop.f32.mrf.mxu0
        %v2652 = vadd.f32 %v2514, %v2651
        %v2653 = vand.u32 %v2156, 4294901760
        %v2654 = vsub.f32 %v2156, %v2653
        %2655 = vmatmul.f32.gmra.mxu0 %v2654
        %v2656 = vpop.f32.mrf.mxu0
        %v2657 = vadd.f32 %v2518, %v2656
        %2658 = vdwg.mxu0
        %v2659 = vand.u32 %v2173, 4294901760
        %2660 = vmatpush.msra.mxu0 %v2659
        %v2661 = vand.u32 %v2172, 4294901760
        %2662 = vmatpush.msra.mxu0 %v2661
        %v2663 = vand.u32 %v2171, 4294901760
        %2664 = vmatpush.msra.mxu0 %v2663
        %v2665 = vand.u32 %v2170, 4294901760
        %2666 = vmatpush.msra.mxu0 %v2665
        %v2667 = vand.u32 %v2169, 4294901760
        %2668 = vmatpush.msra.mxu0 %v2667
        %v2669 = vand.u32 %v2168, 4294901760
        %2670 = vmatpush.msra.mxu0 %v2669
        %v2671 = vand.u32 %v2167, 4294901760
        %2672 = vmatpush.msra.mxu0 %v2671
        %v2673 = vand.u32 %v2166, 4294901760
        %2674 = vmatpush.msra.mxu0 %v2673
        %v2675 = vand.u32 %v2165, 4294901760
        %2676 = vmatpush.msra.mxu0 %v2675
        %v2677 = vand.u32 %v2164, 4294901760
        %2678 = vmatpush.msra.mxu0 %v2677
        %v2679 = vand.u32 %v2163, 4294901760
        %2680 = vmatpush.msra.mxu0 %v2679
        %v2681 = vand.u32 %v2162, 4294901760
        %2682 = vmatpush.msra.mxu0 %v2681
        %v2683 = vand.u32 %v2161, 4294901760
        %2684 = vmatpush.msra.mxu0 %v2683
        %v2685 = vand.u32 %v2160, 4294901760
        %2686 = vmatpush.msra.mxu0 %v2685
        %v2687 = vand.u32 %v2159, 4294901760
        %2688 = vmatpush.msra.mxu0 %v2687
        %v2689 = vand.u32 %v2158, 4294901760
        %2690 = vmatpush.msra.mxu0 %v2689
        %v2691 = vand.u32 %v2139, 4294901760
        %v2692 = vsub.f32 %v2139, %v2691
        %v2693 = vand.u32 %v2692, 4294901760
        %2694 = vmatmul.f32.gmra.mxu0 %v2693
        %v2695 = vpop.f32.mrf.mxu0
        %v2696 = vadd.f32 %v2572, %v2695
        %v2697 = vand.u32 %v2140, 4294901760
        %v2698 = vsub.f32 %v2140, %v2697
        %v2699 = vand.u32 %v2698, 4294901760
        %2700 = vmatmul.f32.gmra.mxu0 %v2699
        %v2701 = vpop.f32.mrf.mxu0
        %v2702 = vadd.f32 %v2577, %v2701
        %v2703 = vand.u32 %v2141, 4294901760
        %v2704 = vsub.f32 %v2141, %v2703
        %v2705 = vand.u32 %v2704, 4294901760
        %2706 = vmatmul.f32.gmra.mxu0 %v2705
        %v2707 = vpop.f32.mrf.mxu0
        %v2708 = vadd.f32 %v2582, %v2707
        %v2709 = vand.u32 %v2142, 4294901760
        %v2710 = vsub.f32 %v2142, %v2709
        %v2711 = vand.u32 %v2710, 4294901760
        %2712 = vmatmul.f32.gmra.mxu0 %v2711
        %v2713 = vpop.f32.mrf.mxu0
        %v2714 = vadd.f32 %v2587, %v2713
        %v2715 = vand.u32 %v2143, 4294901760
        %v2716 = vsub.f32 %v2143, %v2715
        %v2717 = vand.u32 %v2716, 4294901760
        %2718 = vmatmul.f32.gmra.mxu0 %v2717
        %v2719 = vpop.f32.mrf.mxu0
        %v2720 = vadd.f32 %v2592, %v2719
        %v2721 = vand.u32 %v2144, 4294901760
        %v2722 = vsub.f32 %v2144, %v2721
        %v2723 = vand.u32 %v2722, 4294901760
        %2724 = vmatmul.f32.gmra.mxu0 %v2723
        %v2725 = vpop.f32.mrf.mxu0
        %v2726 = vadd.f32 %v2597, %v2725
        %v2727 = vand.u32 %v2145, 4294901760
        %v2728 = vsub.f32 %v2145, %v2727
        %v2729 = vand.u32 %v2728, 4294901760
        %2730 = vmatmul.f32.gmra.mxu0 %v2729
        %v2731 = vpop.f32.mrf.mxu0
        %v2732 = vadd.f32 %v2602, %v2731
        %v2733 = vand.u32 %v2146, 4294901760
        %v2734 = vsub.f32 %v2146, %v2733
        %v2735 = vand.u32 %v2734, 4294901760
        %2736 = vmatmul.f32.gmra.mxu0 %v2735
        %v2737 = vpop.f32.mrf.mxu0
        %v2738 = vadd.f32 %v2607, %v2737
        %v2739 = vand.u32 %v2147, 4294901760
        %v2740 = vsub.f32 %v2147, %v2739
        %v2741 = vand.u32 %v2740, 4294901760
        %2742 = vmatmul.f32.gmra.mxu0 %v2741
        %v2743 = vpop.f32.mrf.mxu0
        %v2744 = vadd.f32 %v2612, %v2743
        %v2745 = vand.u32 %v2148, 4294901760
        %v2746 = vsub.f32 %v2148, %v2745
        %v2747 = vand.u32 %v2746, 4294901760
        %2748 = vmatmul.f32.gmra.mxu0 %v2747
        %v2749 = vpop.f32.mrf.mxu0
        %v2750 = vadd.f32 %v2617, %v2749
        %v2751 = vand.u32 %v2149, 4294901760
        %v2752 = vsub.f32 %v2149, %v2751
        %v2753 = vand.u32 %v2752, 4294901760
        %2754 = vmatmul.f32.gmra.mxu0 %v2753
        %v2755 = vpop.f32.mrf.mxu0
        %v2756 = vadd.f32 %v2622, %v2755
        %v2757 = vand.u32 %v2150, 4294901760
        %v2758 = vsub.f32 %v2150, %v2757
        %v2759 = vand.u32 %v2758, 4294901760
        %2760 = vmatmul.f32.gmra.mxu0 %v2759
        %v2761 = vpop.f32.mrf.mxu0
        %v2762 = vadd.f32 %v2627, %v2761
        %v2763 = vand.u32 %v2151, 4294901760
        %v2764 = vsub.f32 %v2151, %v2763
        %v2765 = vand.u32 %v2764, 4294901760
        %2766 = vmatmul.f32.gmra.mxu0 %v2765
        %v2767 = vpop.f32.mrf.mxu0
        %v2768 = vadd.f32 %v2632, %v2767
        %v2769 = vand.u32 %v2152, 4294901760
        %v2770 = vsub.f32 %v2152, %v2769
        %v2771 = vand.u32 %v2770, 4294901760
        %2772 = vmatmul.f32.gmra.mxu0 %v2771
        %v2773 = vpop.f32.mrf.mxu0
        %v2774 = vadd.f32 %v2637, %v2773
        %v2775 = vand.u32 %v2153, 4294901760
        %v2776 = vsub.f32 %v2153, %v2775
        %v2777 = vand.u32 %v2776, 4294901760
        %2778 = vmatmul.f32.gmra.mxu0 %v2777
        %v2779 = vpop.f32.mrf.mxu0
        %v2780 = vadd.f32 %v2642, %v2779
        %v2781 = vand.u32 %v2154, 4294901760
        %v2782 = vsub.f32 %v2154, %v2781
        %v2783 = vand.u32 %v2782, 4294901760
        %2784 = vmatmul.f32.gmra.mxu0 %v2783
        %v2785 = vpop.f32.mrf.mxu0
        %v2786 = vadd.f32 %v2647, %v2785
        %v2787 = vand.u32 %v2155, 4294901760
        %v2788 = vsub.f32 %v2155, %v2787
        %v2789 = vand.u32 %v2788, 4294901760
        %2790 = vmatmul.f32.gmra.mxu0 %v2789
        %v2791 = vpop.f32.mrf.mxu0
        %v2792 = vadd.f32 %v2652, %v2791
        %v2793 = vand.u32 %v2156, 4294901760
        %v2794 = vsub.f32 %v2156, %v2793
        %v2795 = vand.u32 %v2794, 4294901760
        %2796 = vmatmul.f32.gmra.mxu0 %v2795
        %v2797 = vpop.f32.mrf.mxu0
        %v2798 = vadd.f32 %v2657, %v2797
        %2799 = vdwg.mxu0
        %v2800 = vand.u32 %v2173, 4294901760
        %v2801 = vsub.f32 %v2173, %v2800
        %v2802 = vand.u32 %v2801, 4294901760
        %2803 = vmatpush.msra.mxu0 %v2802
        %v2804 = vand.u32 %v2172, 4294901760
        %v2805 = vsub.f32 %v2172, %v2804
        %v2806 = vand.u32 %v2805, 4294901760
        %2807 = vmatpush.msra.mxu0 %v2806
        %v2808 = vand.u32 %v2171, 4294901760
        %v2809 = vsub.f32 %v2171, %v2808
        %v2810 = vand.u32 %v2809, 4294901760
        %2811 = vmatpush.msra.mxu0 %v2810
        %v2812 = vand.u32 %v2170, 4294901760
        %v2813 = vsub.f32 %v2170, %v2812
        %v2814 = vand.u32 %v2813, 4294901760
        %2815 = vmatpush.msra.mxu0 %v2814
        %v2816 = vand.u32 %v2169, 4294901760
        %v2817 = vsub.f32 %v2169, %v2816
        %v2818 = vand.u32 %v2817, 4294901760
        %2819 = vmatpush.msra.mxu0 %v2818
        %v2820 = vand.u32 %v2168, 4294901760
        %v2821 = vsub.f32 %v2168, %v2820
        %v2822 = vand.u32 %v2821, 4294901760
        %2823 = vmatpush.msra.mxu0 %v2822
        %v2824 = vand.u32 %v2167, 4294901760
        %v2825 = vsub.f32 %v2167, %v2824
        %v2826 = vand.u32 %v2825, 4294901760
        %2827 = vmatpush.msra.mxu0 %v2826
        %v2828 = vand.u32 %v2166, 4294901760
        %v2829 = vsub.f32 %v2166, %v2828
        %v2830 = vand.u32 %v2829, 4294901760
        %2831 = vmatpush.msra.mxu0 %v2830
        %v2832 = vand.u32 %v2165, 4294901760
        %v2833 = vsub.f32 %v2165, %v2832
        %v2834 = vand.u32 %v2833, 4294901760
        %2835 = vmatpush.msra.mxu0 %v2834
        %v2836 = vand.u32 %v2164, 4294901760
        %v2837 = vsub.f32 %v2164, %v2836
        %v2838 = vand.u32 %v2837, 4294901760
        %2839 = vmatpush.msra.mxu0 %v2838
        %v2840 = vand.u32 %v2163, 4294901760
        %v2841 = vsub.f32 %v2163, %v2840
        %v2842 = vand.u32 %v2841, 4294901760
        %2843 = vmatpush.msra.mxu0 %v2842
        %v2844 = vand.u32 %v2162, 4294901760
        %v2845 = vsub.f32 %v2162, %v2844
        %v2846 = vand.u32 %v2845, 4294901760
        %2847 = vmatpush.msra.mxu0 %v2846
        %v2848 = vand.u32 %v2161, 4294901760
        %v2849 = vsub.f32 %v2161, %v2848
        %v2850 = vand.u32 %v2849, 4294901760
        %2851 = vmatpush.msra.mxu0 %v2850
        %v2852 = vand.u32 %v2160, 4294901760
        %v2853 = vsub.f32 %v2160, %v2852
        %v2854 = vand.u32 %v2853, 4294901760
        %2855 = vmatpush.msra.mxu0 %v2854
        %v2856 = vand.u32 %v2159, 4294901760
        %v2857 = vsub.f32 %v2159, %v2856
        %v2858 = vand.u32 %v2857, 4294901760
        %2859 = vmatpush.msra.mxu0 %v2858
        %v2860 = vand.u32 %v2158, 4294901760
        %v2861 = vsub.f32 %v2158, %v2860
        %v2862 = vand.u32 %v2861, 4294901760
        %2863 = vmatpush.msra.mxu0 %v2862
        %v2864 = vand.u32 %v2139, 4294901760
        %2865 = vmatmul.f32.gmra.mxu0 %v2864
        %v2866 = vpop.f32.mrf.mxu0
        %v2867 = vadd.f32 %v2696, %v2866
        %v2868 = vand.u32 %v2140, 4294901760
        %2869 = vmatmul.f32.gmra.mxu0 %v2868
        %v2870 = vpop.f32.mrf.mxu0
        %v2871 = vadd.f32 %v2702, %v2870
        %v2872 = vand.u32 %v2141, 4294901760
        %2873 = vmatmul.f32.gmra.mxu0 %v2872
        %v2874 = vpop.f32.mrf.mxu0
        %v2875 = vadd.f32 %v2708, %v2874
        %v2876 = vand.u32 %v2142, 4294901760
        %2877 = vmatmul.f32.gmra.mxu0 %v2876
        %v2878 = vpop.f32.mrf.mxu0
        %v2879 = vadd.f32 %v2714, %v2878
        %v2880 = vand.u32 %v2143, 4294901760
        %2881 = vmatmul.f32.gmra.mxu0 %v2880
        %v2882 = vpop.f32.mrf.mxu0
        %v2883 = vadd.f32 %v2720, %v2882
        %v2884 = vand.u32 %v2144, 4294901760
        %2885 = vmatmul.f32.gmra.mxu0 %v2884
        %v2886 = vpop.f32.mrf.mxu0
        %v2887 = vadd.f32 %v2726, %v2886
        %v2888 = vand.u32 %v2145, 4294901760
        %2889 = vmatmul.f32.gmra.mxu0 %v2888
        %v2890 = vpop.f32.mrf.mxu0
        %v2891 = vadd.f32 %v2732, %v2890
        %v2892 = vand.u32 %v2146, 4294901760
        %2893 = vmatmul.f32.gmra.mxu0 %v2892
        %v2894 = vpop.f32.mrf.mxu0
        %v2895 = vadd.f32 %v2738, %v2894
        %v2896 = vand.u32 %v2147, 4294901760
        %2897 = vmatmul.f32.gmra.mxu0 %v2896
        %v2898 = vpop.f32.mrf.mxu0
        %v2899 = vadd.f32 %v2744, %v2898
        %v2900 = vand.u32 %v2148, 4294901760
        %2901 = vmatmul.f32.gmra.mxu0 %v2900
        %v2902 = vpop.f32.mrf.mxu0
        %v2903 = vadd.f32 %v2750, %v2902
        %v2904 = vand.u32 %v2149, 4294901760
        %2905 = vmatmul.f32.gmra.mxu0 %v2904
        %v2906 = vpop.f32.mrf.mxu0
        %v2907 = vadd.f32 %v2756, %v2906
        %v2908 = vand.u32 %v2150, 4294901760
        %2909 = vmatmul.f32.gmra.mxu0 %v2908
        %v2910 = vpop.f32.mrf.mxu0
        %v2911 = vadd.f32 %v2762, %v2910
        %v2912 = vand.u32 %v2151, 4294901760
        %2913 = vmatmul.f32.gmra.mxu0 %v2912
        %v2914 = vpop.f32.mrf.mxu0
        %v2915 = vadd.f32 %v2768, %v2914
        %v2916 = vand.u32 %v2152, 4294901760
        %2917 = vmatmul.f32.gmra.mxu0 %v2916
        %v2918 = vpop.f32.mrf.mxu0
        %v2919 = vadd.f32 %v2774, %v2918
        %v2920 = vand.u32 %v2153, 4294901760
        %2921 = vmatmul.f32.gmra.mxu0 %v2920
        %v2922 = vpop.f32.mrf.mxu0
        %v2923 = vadd.f32 %v2780, %v2922
        %v2924 = vand.u32 %v2154, 4294901760
        %2925 = vmatmul.f32.gmra.mxu0 %v2924
        %v2926 = vpop.f32.mrf.mxu0
        %v2927 = vadd.f32 %v2786, %v2926
        %v2928 = vand.u32 %v2155, 4294901760
        %2929 = vmatmul.f32.gmra.mxu0 %v2928
        %v2930 = vpop.f32.mrf.mxu0
        %v2931 = vadd.f32 %v2792, %v2930
        %v2932 = vand.u32 %v2156, 4294901760
        %2933 = vmatmul.f32.gmra.mxu0 %v2932
        %v2934 = vpop.f32.mrf.mxu0
        %v2935 = vadd.f32 %v2798, %v2934
        %2936 = vdwg.mxu0
        %v2937 = vand.u32 %v2173, 4294901760
        %2938 = vmatpush.msra.mxu0 %v2937
        %v2939 = vand.u32 %v2172, 4294901760
        %2940 = vmatpush.msra.mxu0 %v2939
        %v2941 = vand.u32 %v2171, 4294901760
        %2942 = vmatpush.msra.mxu0 %v2941
        %v2943 = vand.u32 %v2170, 4294901760
        %2944 = vmatpush.msra.mxu0 %v2943
        %v2945 = vand.u32 %v2169, 4294901760
        %2946 = vmatpush.msra.mxu0 %v2945
        %v2947 = vand.u32 %v2168, 4294901760
        %2948 = vmatpush.msra.mxu0 %v2947
        %v2949 = vand.u32 %v2167, 4294901760
        %2950 = vmatpush.msra.mxu0 %v2949
        %v2951 = vand.u32 %v2166, 4294901760
        %2952 = vmatpush.msra.mxu0 %v2951
        %v2953 = vand.u32 %v2165, 4294901760
        %2954 = vmatpush.msra.mxu0 %v2953
        %v2955 = vand.u32 %v2164, 4294901760
        %2956 = vmatpush.msra.mxu0 %v2955
        %v2957 = vand.u32 %v2163, 4294901760
        %2958 = vmatpush.msra.mxu0 %v2957
        %v2959 = vand.u32 %v2162, 4294901760
        %2960 = vmatpush.msra.mxu0 %v2959
        %v2961 = vand.u32 %v2161, 4294901760
        %2962 = vmatpush.msra.mxu0 %v2961
        %v2963 = vand.u32 %v2160, 4294901760
        %2964 = vmatpush.msra.mxu0 %v2963
        %v2965 = vand.u32 %v2159, 4294901760
        %2966 = vmatpush.msra.mxu0 %v2965
        %v2967 = vand.u32 %v2158, 4294901760
        %2968 = vmatpush.msra.mxu0 %v2967
        %v2969 = vand.u32 %v2139, 4294901760
        %2970 = vmatmul.f32.gmra.mxu0 %v2969
        %v2971 = vpop.f32.mrf.mxu0
        %v2972 = vadd.f32 %v2867, %v2971
        %v2973 = vand.u32 %v2140, 4294901760
        %2974 = vmatmul.f32.gmra.mxu0 %v2973
        %v2975 = vpop.f32.mrf.mxu0
        %v2976 = vadd.f32 %v2871, %v2975
        %v2977 = vand.u32 %v2141, 4294901760
        %2978 = vmatmul.f32.gmra.mxu0 %v2977
        %v2979 = vpop.f32.mrf.mxu0
        %v2980 = vadd.f32 %v2875, %v2979
        %v2981 = vand.u32 %v2142, 4294901760
        %2982 = vmatmul.f32.gmra.mxu0 %v2981
        %v2983 = vpop.f32.mrf.mxu0
        %v2984 = vadd.f32 %v2879, %v2983
        %v2985 = vand.u32 %v2143, 4294901760
        %2986 = vmatmul.f32.gmra.mxu0 %v2985
        %v2987 = vpop.f32.mrf.mxu0
        %v2988 = vadd.f32 %v2883, %v2987
        %v2989 = vand.u32 %v2144, 4294901760
        %2990 = vmatmul.f32.gmra.mxu0 %v2989
        %v2991 = vpop.f32.mrf.mxu0
        %v2992 = vadd.f32 %v2887, %v2991
        %v2993 = vand.u32 %v2145, 4294901760
        %2994 = vmatmul.f32.gmra.mxu0 %v2993
        %v2995 = vpop.f32.mrf.mxu0
        %v2996 = vadd.f32 %v2891, %v2995
        %v2997 = vand.u32 %v2146, 4294901760
        %2998 = vmatmul.f32.gmra.mxu0 %v2997
        %v2999 = vpop.f32.mrf.mxu0
        %v3000 = vadd.f32 %v2895, %v2999
        %v3001 = vand.u32 %v2147, 4294901760
        %3002 = vmatmul.f32.gmra.mxu0 %v3001
        %v3003 = vpop.f32.mrf.mxu0
        %v3004 = vadd.f32 %v2899, %v3003
        %v3005 = vand.u32 %v2148, 4294901760
        %3006 = vmatmul.f32.gmra.mxu0 %v3005
        %v3007 = vpop.f32.mrf.mxu0
        %v3008 = vadd.f32 %v2903, %v3007
        %v3009 = vand.u32 %v2149, 4294901760
        %3010 = vmatmul.f32.gmra.mxu0 %v3009
        %v3011 = vpop.f32.mrf.mxu0
        %v3012 = vadd.f32 %v2907, %v3011
        %v3013 = vand.u32 %v2150, 4294901760
        %3014 = vmatmul.f32.gmra.mxu0 %v3013
        %v3015 = vpop.f32.mrf.mxu0
        %v3016 = vadd.f32 %v2911, %v3015
        %v3017 = vand.u32 %v2151, 4294901760
        %3018 = vmatmul.f32.gmra.mxu0 %v3017
        %v3019 = vpop.f32.mrf.mxu0
        %v3020 = vadd.f32 %v2915, %v3019
        %v3021 = vand.u32 %v2152, 4294901760
        %3022 = vmatmul.f32.gmra.mxu0 %v3021
        %v3023 = vpop.f32.mrf.mxu0
        %v3024 = vadd.f32 %v2919, %v3023
        %v3025 = vand.u32 %v2153, 4294901760
        %3026 = vmatmul.f32.gmra.mxu0 %v3025
        %v3027 = vpop.f32.mrf.mxu0
        %v3028 = vadd.f32 %v2923, %v3027
        %v3029 = vand.u32 %v2154, 4294901760
        %3030 = vmatmul.f32.gmra.mxu0 %v3029
        %v3031 = vpop.f32.mrf.mxu0
        %v3032 = vadd.f32 %v2927, %v3031
        %v3033 = vand.u32 %v2155, 4294901760
        %3034 = vmatmul.f32.gmra.mxu0 %v3033
        %v3035 = vpop.f32.mrf.mxu0
        %v3036 = vadd.f32 %v2931, %v3035
        %v3037 = vand.u32 %v2156, 4294901760
        %3038 = vmatmul.f32.gmra.mxu0 %v3037
        %v3039 = vpop.f32.mrf.mxu0
        %v3040 = vadd.f32 %v2935, %v3039
        %3041 = vdwg.mxu0
        %v3042 = vadd.f32 %v2069, %v2972
        %v3043 = vadd.f32 %v2073, %v2976
        %v3044 = vadd.f32 %v2077, %v2980
        %v3045 = vadd.f32 %v2081, %v2984
        %v3046 = vadd.f32 %v2085, %v2988
        %v3047 = vadd.f32 %v2089, %v2992
        %v3048 = vadd.f32 %v2093, %v2996
        %v3049 = vadd.f32 %v2097, %v3000
        %v3050 = vadd.f32 %v2101, %v3004
        %v3051 = vadd.f32 %v2105, %v3008
        %v3052 = vadd.f32 %v2109, %v3012
        %v3053 = vadd.f32 %v2113, %v3016
        %v3054 = vadd.f32 %v2117, %v3020
        %v3055 = vadd.f32 %v2121, %v3024
        %v3056 = vadd.f32 %v2125, %v3028
        %v3057 = vadd.f32 %v2129, %v3032
        %v3058 = vadd.f32 %v2133, %v3036
        %v3059 = vadd.f32 %v2137, %v3040
        %v3060 = vld [vmem:[%s333 + $0x12] sm:$0xff]
        %v3061 = vld [vmem:[%s333 + $0x1a] sm:$0xff]
        %v3062 = vld [vmem:[%s333 + $0x22] sm:$0xff]
        %v3063 = vld [vmem:[%s333 + $0x2a] sm:$0xff]
        %v3064 = vld [vmem:[%s333 + $0x32] sm:$0xff]
        %v3065 = vld [vmem:[%s333 + $0x3a] sm:$0xff]
        %v3066 = vld [vmem:[%s333 + $0x42] sm:$0xff]
        %v3067 = vld [vmem:[%s333 + $0x4a] sm:$0xff]
        %v3068 = vld [vmem:[%s333 + $0x52] sm:$0xff]
        %v3069 = vld [vmem:[%s333 + $0x5a] sm:$0xff]
        %v3070 = vld [vmem:[%s333 + $0x62] sm:$0xff]
        %v3071 = vld [vmem:[%s333 + $0x6a] sm:$0xff]
        %v3072 = vld [vmem:[%s333 + $0x72] sm:$0xff]
        %v3073 = vld [vmem:[%s333 + $0x7a] sm:$0xff]
        %v3074 = vld [vmem:[%s333 + $0x82] sm:$0xff]
        %v3075 = vld [vmem:[%s333 + $0x8a] sm:$0xff]
        %v3076 = vld [vmem:[%s333 + $0x92] sm:$0xff]
        %v3077 = vld [vmem:[%s333 + $0x9a] sm:$0xff]
        %s3078 = scalar_lea.vmem %s1, 384
        %v3079 = vld [vmem:[%s3078] sm:$0xff]
        %v3080 = vld [vmem:[%s3078 + $0x8] sm:$0xff]
        %v3081 = vld [vmem:[%s3078 + $0x10] sm:$0xff]
        %v3082 = vld [vmem:[%s3078 + $0x18] sm:$0xff]
        %v3083 = vld [vmem:[%s3078 + $0x20] sm:$0xff]
        %v3084 = vld [vmem:[%s3078 + $0x28] sm:$0xff]
        %v3085 = vld [vmem:[%s3078 + $0x30] sm:$0xff]
        %v3086 = vld [vmem:[%s3078 + $0x38] sm:$0xff]
        %v3087 = vld [vmem:[%s3078 + $0x40] sm:$0xff]
        %v3088 = vld [vmem:[%s3078 + $0x48] sm:$0xff]
        %v3089 = vld [vmem:[%s3078 + $0x50] sm:$0xff]
        %v3090 = vld [vmem:[%s3078 + $0x58] sm:$0xff]
        %v3091 = vld [vmem:[%s3078 + $0x60] sm:$0xff]
        %v3092 = vld [vmem:[%s3078 + $0x68] sm:$0xff]
        %v3093 = vld [vmem:[%s3078 + $0x70] sm:$0xff]
        %v3094 = vld [vmem:[%s3078 + $0x78] sm:$0xff]
        %v3095 = vand.u32 %v3094, 4294901760
        %3096 = vmatpush.msra.mxu0 %v3095
        %v3097 = vand.u32 %v3093, 4294901760
        %3098 = vmatpush.msra.mxu0 %v3097
        %v3099 = vand.u32 %v3092, 4294901760
        %3100 = vmatpush.msra.mxu0 %v3099
        %v3101 = vand.u32 %v3091, 4294901760
        %3102 = vmatpush.msra.mxu0 %v3101
        %v3103 = vand.u32 %v3090, 4294901760
        %3104 = vmatpush.msra.mxu0 %v3103
        %v3105 = vand.u32 %v3089, 4294901760
        %3106 = vmatpush.msra.mxu0 %v3105
        %v3107 = vand.u32 %v3088, 4294901760
        %3108 = vmatpush.msra.mxu0 %v3107
        %v3109 = vand.u32 %v3087, 4294901760
        %3110 = vmatpush.msra.mxu0 %v3109
        %v3111 = vand.u32 %v3086, 4294901760
        %3112 = vmatpush.msra.mxu0 %v3111
        %v3113 = vand.u32 %v3085, 4294901760
        %3114 = vmatpush.msra.mxu0 %v3113
        %v3115 = vand.u32 %v3084, 4294901760
        %3116 = vmatpush.msra.mxu0 %v3115
        %v3117 = vand.u32 %v3083, 4294901760
        %3118 = vmatpush.msra.mxu0 %v3117
        %v3119 = vand.u32 %v3082, 4294901760
        %3120 = vmatpush.msra.mxu0 %v3119
        %v3121 = vand.u32 %v3081, 4294901760
        %3122 = vmatpush.msra.mxu0 %v3121
        %v3123 = vand.u32 %v3080, 4294901760
        %3124 = vmatpush.msra.mxu0 %v3123
        %v3125 = vand.u32 %v3079, 4294901760
        %3126 = vmatpush.msra.mxu0 %v3125
        %v3127 = vand.u32 %v3060, 4294901760
        %v3128 = vsub.f32 %v3060, %v3127
        %v3129 = vand.u32 %v3128, 4294901760
        %v3130 = vsub.f32 %v3128, %v3129
        %v3131 = vand.u32 %v3130, 4294901760
        %3132 = vmatmul.f32.gmra.mxu0 %v3131
        %v3133 = vpop.f32.mrf.mxu0
        %v3134 = vadd.f32 0.0, %v3133
        %v3135 = vand.u32 %v3061, 4294901760
        %v3136 = vsub.f32 %v3061, %v3135
        %v3137 = vand.u32 %v3136, 4294901760
        %v3138 = vsub.f32 %v3136, %v3137
        %v3139 = vand.u32 %v3138, 4294901760
        %3140 = vmatmul.f32.gmra.mxu0 %v3139
        %v3141 = vpop.f32.mrf.mxu0
        %v3142 = vadd.f32 0.0, %v3141
        %v3143 = vand.u32 %v3062, 4294901760
        %v3144 = vsub.f32 %v3062, %v3143
        %v3145 = vand.u32 %v3144, 4294901760
        %v3146 = vsub.f32 %v3144, %v3145
        %v3147 = vand.u32 %v3146, 4294901760
        %3148 = vmatmul.f32.gmra.mxu0 %v3147
        %v3149 = vpop.f32.mrf.mxu0
        %v3150 = vadd.f32 0.0, %v3149
        %v3151 = vand.u32 %v3063, 4294901760
        %v3152 = vsub.f32 %v3063, %v3151
        %v3153 = vand.u32 %v3152, 4294901760
        %v3154 = vsub.f32 %v3152, %v3153
        %v3155 = vand.u32 %v3154, 4294901760
        %3156 = vmatmul.f32.gmra.mxu0 %v3155
        %v3157 = vpop.f32.mrf.mxu0
        %v3158 = vadd.f32 0.0, %v3157
        %v3159 = vand.u32 %v3064, 4294901760
        %v3160 = vsub.f32 %v3064, %v3159
        %v3161 = vand.u32 %v3160, 4294901760
        %v3162 = vsub.f32 %v3160, %v3161
        %v3163 = vand.u32 %v3162, 4294901760
        %3164 = vmatmul.f32.gmra.mxu0 %v3163
        %v3165 = vpop.f32.mrf.mxu0
        %v3166 = vadd.f32 0.0, %v3165
        %v3167 = vand.u32 %v3065, 4294901760
        %v3168 = vsub.f32 %v3065, %v3167
        %v3169 = vand.u32 %v3168, 4294901760
        %v3170 = vsub.f32 %v3168, %v3169
        %v3171 = vand.u32 %v3170, 4294901760
        %3172 = vmatmul.f32.gmra.mxu0 %v3171
        %v3173 = vpop.f32.mrf.mxu0
        %v3174 = vadd.f32 0.0, %v3173
        %v3175 = vand.u32 %v3066, 4294901760
        %v3176 = vsub.f32 %v3066, %v3175
        %v3177 = vand.u32 %v3176, 4294901760
        %v3178 = vsub.f32 %v3176, %v3177
        %v3179 = vand.u32 %v3178, 4294901760
        %3180 = vmatmul.f32.gmra.mxu0 %v3179
        %v3181 = vpop.f32.mrf.mxu0
        %v3182 = vadd.f32 0.0, %v3181
        %v3183 = vand.u32 %v3067, 4294901760
        %v3184 = vsub.f32 %v3067, %v3183
        %v3185 = vand.u32 %v3184, 4294901760
        %v3186 = vsub.f32 %v3184, %v3185
        %v3187 = vand.u32 %v3186, 4294901760
        %3188 = vmatmul.f32.gmra.mxu0 %v3187
        %v3189 = vpop.f32.mrf.mxu0
        %v3190 = vadd.f32 0.0, %v3189
        %v3191 = vand.u32 %v3068, 4294901760
        %v3192 = vsub.f32 %v3068, %v3191
        %v3193 = vand.u32 %v3192, 4294901760
        %v3194 = vsub.f32 %v3192, %v3193
        %v3195 = vand.u32 %v3194, 4294901760
        %3196 = vmatmul.f32.gmra.mxu0 %v3195
        %v3197 = vpop.f32.mrf.mxu0
        %v3198 = vadd.f32 0.0, %v3197
        %v3199 = vand.u32 %v3069, 4294901760
        %v3200 = vsub.f32 %v3069, %v3199
        %v3201 = vand.u32 %v3200, 4294901760
        %v3202 = vsub.f32 %v3200, %v3201
        %v3203 = vand.u32 %v3202, 4294901760
        %3204 = vmatmul.f32.gmra.mxu0 %v3203
        %v3205 = vpop.f32.mrf.mxu0
        %v3206 = vadd.f32 0.0, %v3205
        %v3207 = vand.u32 %v3070, 4294901760
        %v3208 = vsub.f32 %v3070, %v3207
        %v3209 = vand.u32 %v3208, 4294901760
        %v3210 = vsub.f32 %v3208, %v3209
        %v3211 = vand.u32 %v3210, 4294901760
        %3212 = vmatmul.f32.gmra.mxu0 %v3211
        %v3213 = vpop.f32.mrf.mxu0
        %v3214 = vadd.f32 0.0, %v3213
        %v3215 = vand.u32 %v3071, 4294901760
        %v3216 = vsub.f32 %v3071, %v3215
        %v3217 = vand.u32 %v3216, 4294901760
        %v3218 = vsub.f32 %v3216, %v3217
        %v3219 = vand.u32 %v3218, 4294901760
        %3220 = vmatmul.f32.gmra.mxu0 %v3219
        %v3221 = vpop.f32.mrf.mxu0
        %v3222 = vadd.f32 0.0, %v3221
        %v3223 = vand.u32 %v3072, 4294901760
        %v3224 = vsub.f32 %v3072, %v3223
        %v3225 = vand.u32 %v3224, 4294901760
        %v3226 = vsub.f32 %v3224, %v3225
        %v3227 = vand.u32 %v3226, 4294901760
        %3228 = vmatmul.f32.gmra.mxu0 %v3227
        %v3229 = vpop.f32.mrf.mxu0
        %v3230 = vadd.f32 0.0, %v3229
        %v3231 = vand.u32 %v3073, 4294901760
        %v3232 = vsub.f32 %v3073, %v3231
        %v3233 = vand.u32 %v3232, 4294901760
        %v3234 = vsub.f32 %v3232, %v3233
        %v3235 = vand.u32 %v3234, 4294901760
        %3236 = vmatmul.f32.gmra.mxu0 %v3235
        %v3237 = vpop.f32.mrf.mxu0
        %v3238 = vadd.f32 0.0, %v3237
        %v3239 = vand.u32 %v3074, 4294901760
        %v3240 = vsub.f32 %v3074, %v3239
        %v3241 = vand.u32 %v3240, 4294901760
        %v3242 = vsub.f32 %v3240, %v3241
        %v3243 = vand.u32 %v3242, 4294901760
        %3244 = vmatmul.f32.gmra.mxu0 %v3243
        %v3245 = vpop.f32.mrf.mxu0
        %v3246 = vadd.f32 0.0, %v3245
        %v3247 = vand.u32 %v3075, 4294901760
        %v3248 = vsub.f32 %v3075, %v3247
        %v3249 = vand.u32 %v3248, 4294901760
        %v3250 = vsub.f32 %v3248, %v3249
        %v3251 = vand.u32 %v3250, 4294901760
        %3252 = vmatmul.f32.gmra.mxu0 %v3251
        %v3253 = vpop.f32.mrf.mxu0
        %v3254 = vadd.f32 0.0, %v3253
        %v3255 = vand.u32 %v3076, 4294901760
        %v3256 = vsub.f32 %v3076, %v3255
        %v3257 = vand.u32 %v3256, 4294901760
        %v3258 = vsub.f32 %v3256, %v3257
        %v3259 = vand.u32 %v3258, 4294901760
        %3260 = vmatmul.f32.gmra.mxu0 %v3259
        %v3261 = vpop.f32.mrf.mxu0
        %v3262 = vadd.f32 0.0, %v3261
        %v3263 = vand.u32 %v3077, 4294901760
        %v3264 = vsub.f32 %v3077, %v3263
        %v3265 = vand.u32 %v3264, 4294901760
        %v3266 = vsub.f32 %v3264, %v3265
        %v3267 = vand.u32 %v3266, 4294901760
        %3268 = vmatmul.f32.gmra.mxu0 %v3267
        %v3269 = vpop.f32.mrf.mxu0
        %v3270 = vadd.f32 0.0, %v3269
        %3271 = vdwg.mxu0
        %v3272 = vand.u32 %v3094, 4294901760
        %v3273 = vsub.f32 %v3094, %v3272
        %v3274 = vand.u32 %v3273, 4294901760
        %v3275 = vsub.f32 %v3273, %v3274
        %v3276 = vand.u32 %v3275, 4294901760
        %3277 = vmatpush.msra.mxu0 %v3276
        %v3278 = vand.u32 %v3093, 4294901760
        %v3279 = vsub.f32 %v3093, %v3278
        %v3280 = vand.u32 %v3279, 4294901760
        %v3281 = vsub.f32 %v3279, %v3280
        %v3282 = vand.u32 %v3281, 4294901760
        %3283 = vmatpush.msra.mxu0 %v3282
        %v3284 = vand.u32 %v3092, 4294901760
        %v3285 = vsub.f32 %v3092, %v3284
        %v3286 = vand.u32 %v3285, 4294901760
        %v3287 = vsub.f32 %v3285, %v3286
        %v3288 = vand.u32 %v3287, 4294901760
        %3289 = vmatpush.msra.mxu0 %v3288
        %v3290 = vand.u32 %v3091, 4294901760
        %v3291 = vsub.f32 %v3091, %v3290
        %v3292 = vand.u32 %v3291, 4294901760
        %v3293 = vsub.f32 %v3291, %v3292
        %v3294 = vand.u32 %v3293, 4294901760
        %3295 = vmatpush.msra.mxu0 %v3294
        %v3296 = vand.u32 %v3090, 4294901760
        %v3297 = vsub.f32 %v3090, %v3296
        %v3298 = vand.u32 %v3297, 4294901760
        %v3299 = vsub.f32 %v3297, %v3298
        %v3300 = vand.u32 %v3299, 4294901760
        %3301 = vmatpush.msra.mxu0 %v3300
        %v3302 = vand.u32 %v3089, 4294901760
        %v3303 = vsub.f32 %v3089, %v3302
        %v3304 = vand.u32 %v3303, 4294901760
        %v3305 = vsub.f32 %v3303, %v3304
        %v3306 = vand.u32 %v3305, 4294901760
        %3307 = vmatpush.msra.mxu0 %v3306
        %v3308 = vand.u32 %v3088, 4294901760
        %v3309 = vsub.f32 %v3088, %v3308
        %v3310 = vand.u32 %v3309, 4294901760
        %v3311 = vsub.f32 %v3309, %v3310
        %v3312 = vand.u32 %v3311, 4294901760
        %3313 = vmatpush.msra.mxu0 %v3312
        %v3314 = vand.u32 %v3087, 4294901760
        %v3315 = vsub.f32 %v3087, %v3314
        %v3316 = vand.u32 %v3315, 4294901760
        %v3317 = vsub.f32 %v3315, %v3316
        %v3318 = vand.u32 %v3317, 4294901760
        %3319 = vmatpush.msra.mxu0 %v3318
        %v3320 = vand.u32 %v3086, 4294901760
        %v3321 = vsub.f32 %v3086, %v3320
        %v3322 = vand.u32 %v3321, 4294901760
        %v3323 = vsub.f32 %v3321, %v3322
        %v3324 = vand.u32 %v3323, 4294901760
        %3325 = vmatpush.msra.mxu0 %v3324
        %v3326 = vand.u32 %v3085, 4294901760
        %v3327 = vsub.f32 %v3085, %v3326
        %v3328 = vand.u32 %v3327, 4294901760
        %v3329 = vsub.f32 %v3327, %v3328
        %v3330 = vand.u32 %v3329, 4294901760
        %3331 = vmatpush.msra.mxu0 %v3330
        %v3332 = vand.u32 %v3084, 4294901760
        %v3333 = vsub.f32 %v3084, %v3332
        %v3334 = vand.u32 %v3333, 4294901760
        %v3335 = vsub.f32 %v3333, %v3334
        %v3336 = vand.u32 %v3335, 4294901760
        %3337 = vmatpush.msra.mxu0 %v3336
        %v3338 = vand.u32 %v3083, 4294901760
        %v3339 = vsub.f32 %v3083, %v3338
        %v3340 = vand.u32 %v3339, 4294901760
        %v3341 = vsub.f32 %v3339, %v3340
        %v3342 = vand.u32 %v3341, 4294901760
        %3343 = vmatpush.msra.mxu0 %v3342
        %v3344 = vand.u32 %v3082, 4294901760
        %v3345 = vsub.f32 %v3082, %v3344
        %v3346 = vand.u32 %v3345, 4294901760
        %v3347 = vsub.f32 %v3345, %v3346
        %v3348 = vand.u32 %v3347, 4294901760
        %3349 = vmatpush.msra.mxu0 %v3348
        %v3350 = vand.u32 %v3081, 4294901760
        %v3351 = vsub.f32 %v3081, %v3350
        %v3352 = vand.u32 %v3351, 4294901760
        %v3353 = vsub.f32 %v3351, %v3352
        %v3354 = vand.u32 %v3353, 4294901760
        %3355 = vmatpush.msra.mxu0 %v3354
        %v3356 = vand.u32 %v3080, 4294901760
        %v3357 = vsub.f32 %v3080, %v3356
        %v3358 = vand.u32 %v3357, 4294901760
        %v3359 = vsub.f32 %v3357, %v3358
        %v3360 = vand.u32 %v3359, 4294901760
        %3361 = vmatpush.msra.mxu0 %v3360
        %v3362 = vand.u32 %v3079, 4294901760
        %v3363 = vsub.f32 %v3079, %v3362
        %v3364 = vand.u32 %v3363, 4294901760
        %v3365 = vsub.f32 %v3363, %v3364
        %v3366 = vand.u32 %v3365, 4294901760
        %3367 = vmatpush.msra.mxu0 %v3366
        %v3368 = vand.u32 %v3060, 4294901760
        %3369 = vmatmul.f32.gmra.mxu0 %v3368
        %v3370 = vpop.f32.mrf.mxu0
        %v3371 = vadd.f32 %v3134, %v3370
        %v3372 = vand.u32 %v3061, 4294901760
        %3373 = vmatmul.f32.gmra.mxu0 %v3372
        %v3374 = vpop.f32.mrf.mxu0
        %v3375 = vadd.f32 %v3142, %v3374
        %v3376 = vand.u32 %v3062, 4294901760
        %3377 = vmatmul.f32.gmra.mxu0 %v3376
        %v3378 = vpop.f32.mrf.mxu0
        %v3379 = vadd.f32 %v3150, %v3378
        %v3380 = vand.u32 %v3063, 4294901760
        %3381 = vmatmul.f32.gmra.mxu0 %v3380
        %v3382 = vpop.f32.mrf.mxu0
        %v3383 = vadd.f32 %v3158, %v3382
        %v3384 = vand.u32 %v3064, 4294901760
        %3385 = vmatmul.f32.gmra.mxu0 %v3384
        %v3386 = vpop.f32.mrf.mxu0
        %v3387 = vadd.f32 %v3166, %v3386
        %v3388 = vand.u32 %v3065, 4294901760
        %3389 = vmatmul.f32.gmra.mxu0 %v3388
        %v3390 = vpop.f32.mrf.mxu0
        %v3391 = vadd.f32 %v3174, %v3390
        %v3392 = vand.u32 %v3066, 4294901760
        %3393 = vmatmul.f32.gmra.mxu0 %v3392
        %v3394 = vpop.f32.mrf.mxu0
        %v3395 = vadd.f32 %v3182, %v3394
        %v3396 = vand.u32 %v3067, 4294901760
        %3397 = vmatmul.f32.gmra.mxu0 %v3396
        %v3398 = vpop.f32.mrf.mxu0
        %v3399 = vadd.f32 %v3190, %v3398
        %v3400 = vand.u32 %v3068, 4294901760
        %3401 = vmatmul.f32.gmra.mxu0 %v3400
        %v3402 = vpop.f32.mrf.mxu0
        %v3403 = vadd.f32 %v3198, %v3402
        %v3404 = vand.u32 %v3069, 4294901760
        %3405 = vmatmul.f32.gmra.mxu0 %v3404
        %v3406 = vpop.f32.mrf.mxu0
        %v3407 = vadd.f32 %v3206, %v3406
        %v3408 = vand.u32 %v3070, 4294901760
        %3409 = vmatmul.f32.gmra.mxu0 %v3408
        %v3410 = vpop.f32.mrf.mxu0
        %v3411 = vadd.f32 %v3214, %v3410
        %v3412 = vand.u32 %v3071, 4294901760
        %3413 = vmatmul.f32.gmra.mxu0 %v3412
        %v3414 = vpop.f32.mrf.mxu0
        %v3415 = vadd.f32 %v3222, %v3414
        %v3416 = vand.u32 %v3072, 4294901760
        %3417 = vmatmul.f32.gmra.mxu0 %v3416
        %v3418 = vpop.f32.mrf.mxu0
        %v3419 = vadd.f32 %v3230, %v3418
        %v3420 = vand.u32 %v3073, 4294901760
        %3421 = vmatmul.f32.gmra.mxu0 %v3420
        %v3422 = vpop.f32.mrf.mxu0
        %v3423 = vadd.f32 %v3238, %v3422
        %v3424 = vand.u32 %v3074, 4294901760
        %3425 = vmatmul.f32.gmra.mxu0 %v3424
        %v3426 = vpop.f32.mrf.mxu0
        %v3427 = vadd.f32 %v3246, %v3426
        %v3428 = vand.u32 %v3075, 4294901760
        %3429 = vmatmul.f32.gmra.mxu0 %v3428
        %v3430 = vpop.f32.mrf.mxu0
        %v3431 = vadd.f32 %v3254, %v3430
        %v3432 = vand.u32 %v3076, 4294901760
        %3433 = vmatmul.f32.gmra.mxu0 %v3432
        %v3434 = vpop.f32.mrf.mxu0
        %v3435 = vadd.f32 %v3262, %v3434
        %v3436 = vand.u32 %v3077, 4294901760
        %3437 = vmatmul.f32.gmra.mxu0 %v3436
        %v3438 = vpop.f32.mrf.mxu0
        %v3439 = vadd.f32 %v3270, %v3438
        %3440 = vdwg.mxu0
        %v3441 = vand.u32 %v3094, 4294901760
        %v3442 = vsub.f32 %v3094, %v3441
        %3443 = vmatpush.msra.mxu0 %v3442
        %v3444 = vand.u32 %v3093, 4294901760
        %v3445 = vsub.f32 %v3093, %v3444
        %3446 = vmatpush.msra.mxu0 %v3445
        %v3447 = vand.u32 %v3092, 4294901760
        %v3448 = vsub.f32 %v3092, %v3447
        %3449 = vmatpush.msra.mxu0 %v3448
        %v3450 = vand.u32 %v3091, 4294901760
        %v3451 = vsub.f32 %v3091, %v3450
        %3452 = vmatpush.msra.mxu0 %v3451
        %v3453 = vand.u32 %v3090, 4294901760
        %v3454 = vsub.f32 %v3090, %v3453
        %3455 = vmatpush.msra.mxu0 %v3454
        %v3456 = vand.u32 %v3089, 4294901760
        %v3457 = vsub.f32 %v3089, %v3456
        %3458 = vmatpush.msra.mxu0 %v3457
        %v3459 = vand.u32 %v3088, 4294901760
        %v3460 = vsub.f32 %v3088, %v3459
        %3461 = vmatpush.msra.mxu0 %v3460
        %v3462 = vand.u32 %v3087, 4294901760
        %v3463 = vsub.f32 %v3087, %v3462
        %3464 = vmatpush.msra.mxu0 %v3463
        %v3465 = vand.u32 %v3086, 4294901760
        %v3466 = vsub.f32 %v3086, %v3465
        %3467 = vmatpush.msra.mxu0 %v3466
        %v3468 = vand.u32 %v3085, 4294901760
        %v3469 = vsub.f32 %v3085, %v3468
        %3470 = vmatpush.msra.mxu0 %v3469
        %v3471 = vand.u32 %v3084, 4294901760
        %v3472 = vsub.f32 %v3084, %v3471
        %3473 = vmatpush.msra.mxu0 %v3472
        %v3474 = vand.u32 %v3083, 4294901760
        %v3475 = vsub.f32 %v3083, %v3474
        %3476 = vmatpush.msra.mxu0 %v3475
        %v3477 = vand.u32 %v3082, 4294901760
        %v3478 = vsub.f32 %v3082, %v3477
        %3479 = vmatpush.msra.mxu0 %v3478
        %v3480 = vand.u32 %v3081, 4294901760
        %v3481 = vsub.f32 %v3081, %v3480
        %3482 = vmatpush.msra.mxu0 %v3481
        %v3483 = vand.u32 %v3080, 4294901760
        %v3484 = vsub.f32 %v3080, %v3483
        %3485 = vmatpush.msra.mxu0 %v3484
        %v3486 = vand.u32 %v3079, 4294901760
        %v3487 = vsub.f32 %v3079, %v3486
        %3488 = vmatpush.msra.mxu0 %v3487
        %v3489 = vand.u32 %v3060, 4294901760
        %v3490 = vsub.f32 %v3060, %v3489
        %3491 = vmatmul.f32.gmra.mxu0 %v3490
        %v3492 = vpop.f32.mrf.mxu0
        %v3493 = vadd.f32 %v3371, %v3492
        %v3494 = vand.u32 %v3061, 4294901760
        %v3495 = vsub.f32 %v3061, %v3494
        %3496 = vmatmul.f32.gmra.mxu0 %v3495
        %v3497 = vpop.f32.mrf.mxu0
        %v3498 = vadd.f32 %v3375, %v3497
        %v3499 = vand.u32 %v3062, 4294901760
        %v3500 = vsub.f32 %v3062, %v3499
        %3501 = vmatmul.f32.gmra.mxu0 %v3500
        %v3502 = vpop.f32.mrf.mxu0
        %v3503 = vadd.f32 %v3379, %v3502
        %v3504 = vand.u32 %v3063, 4294901760
        %v3505 = vsub.f32 %v3063, %v3504
        %3506 = vmatmul.f32.gmra.mxu0 %v3505
        %v3507 = vpop.f32.mrf.mxu0
        %v3508 = vadd.f32 %v3383, %v3507
        %v3509 = vand.u32 %v3064, 4294901760
        %v3510 = vsub.f32 %v3064, %v3509
        %3511 = vmatmul.f32.gmra.mxu0 %v3510
        %v3512 = vpop.f32.mrf.mxu0
        %v3513 = vadd.f32 %v3387, %v3512
        %v3514 = vand.u32 %v3065, 4294901760
        %v3515 = vsub.f32 %v3065, %v3514
        %3516 = vmatmul.f32.gmra.mxu0 %v3515
        %v3517 = vpop.f32.mrf.mxu0
        %v3518 = vadd.f32 %v3391, %v3517
        %v3519 = vand.u32 %v3066, 4294901760
        %v3520 = vsub.f32 %v3066, %v3519
        %3521 = vmatmul.f32.gmra.mxu0 %v3520
        %v3522 = vpop.f32.mrf.mxu0
        %v3523 = vadd.f32 %v3395, %v3522
        %v3524 = vand.u32 %v3067, 4294901760
        %v3525 = vsub.f32 %v3067, %v3524
        %3526 = vmatmul.f32.gmra.mxu0 %v3525
        %v3527 = vpop.f32.mrf.mxu0
        %v3528 = vadd.f32 %v3399, %v3527
        %v3529 = vand.u32 %v3068, 4294901760
        %v3530 = vsub.f32 %v3068, %v3529
        %3531 = vmatmul.f32.gmra.mxu0 %v3530
        %v3532 = vpop.f32.mrf.mxu0
        %v3533 = vadd.f32 %v3403, %v3532
        %v3534 = vand.u32 %v3069, 4294901760
        %v3535 = vsub.f32 %v3069, %v3534
        %3536 = vmatmul.f32.gmra.mxu0 %v3535
        %v3537 = vpop.f32.mrf.mxu0
        %v3538 = vadd.f32 %v3407, %v3537
        %v3539 = vand.u32 %v3070, 4294901760
        %v3540 = vsub.f32 %v3070, %v3539
        %3541 = vmatmul.f32.gmra.mxu0 %v3540
        %v3542 = vpop.f32.mrf.mxu0
        %v3543 = vadd.f32 %v3411, %v3542
        %v3544 = vand.u32 %v3071, 4294901760
        %v3545 = vsub.f32 %v3071, %v3544
        %3546 = vmatmul.f32.gmra.mxu0 %v3545
        %v3547 = vpop.f32.mrf.mxu0
        %v3548 = vadd.f32 %v3415, %v3547
        %v3549 = vand.u32 %v3072, 4294901760
        %v3550 = vsub.f32 %v3072, %v3549
        %3551 = vmatmul.f32.gmra.mxu0 %v3550
        %v3552 = vpop.f32.mrf.mxu0
        %v3553 = vadd.f32 %v3419, %v3552
        %v3554 = vand.u32 %v3073, 4294901760
        %v3555 = vsub.f32 %v3073, %v3554
        %3556 = vmatmul.f32.gmra.mxu0 %v3555
        %v3557 = vpop.f32.mrf.mxu0
        %v3558 = vadd.f32 %v3423, %v3557
        %v3559 = vand.u32 %v3074, 4294901760
        %v3560 = vsub.f32 %v3074, %v3559
        %3561 = vmatmul.f32.gmra.mxu0 %v3560
        %v3562 = vpop.f32.mrf.mxu0
        %v3563 = vadd.f32 %v3427, %v3562
        %v3564 = vand.u32 %v3075, 4294901760
        %v3565 = vsub.f32 %v3075, %v3564
        %3566 = vmatmul.f32.gmra.mxu0 %v3565
        %v3567 = vpop.f32.mrf.mxu0
        %v3568 = vadd.f32 %v3431, %v3567
        %v3569 = vand.u32 %v3076, 4294901760
        %v3570 = vsub.f32 %v3076, %v3569
        %3571 = vmatmul.f32.gmra.mxu0 %v3570
        %v3572 = vpop.f32.mrf.mxu0
        %v3573 = vadd.f32 %v3435, %v3572
        %v3574 = vand.u32 %v3077, 4294901760
        %v3575 = vsub.f32 %v3077, %v3574
        %3576 = vmatmul.f32.gmra.mxu0 %v3575
        %v3577 = vpop.f32.mrf.mxu0
        %v3578 = vadd.f32 %v3439, %v3577
        %3579 = vdwg.mxu0
        %v3580 = vand.u32 %v3094, 4294901760
        %3581 = vmatpush.msra.mxu0 %v3580
        %v3582 = vand.u32 %v3093, 4294901760
        %3583 = vmatpush.msra.mxu0 %v3582
        %v3584 = vand.u32 %v3092, 4294901760
        %3585 = vmatpush.msra.mxu0 %v3584
        %v3586 = vand.u32 %v3091, 4294901760
        %3587 = vmatpush.msra.mxu0 %v3586
        %v3588 = vand.u32 %v3090, 4294901760
        %3589 = vmatpush.msra.mxu0 %v3588
        %v3590 = vand.u32 %v3089, 4294901760
        %3591 = vmatpush.msra.mxu0 %v3590
        %v3592 = vand.u32 %v3088, 4294901760
        %3593 = vmatpush.msra.mxu0 %v3592
        %v3594 = vand.u32 %v3087, 4294901760
        %3595 = vmatpush.msra.mxu0 %v3594
        %v3596 = vand.u32 %v3086, 4294901760
        %3597 = vmatpush.msra.mxu0 %v3596
        %v3598 = vand.u32 %v3085, 4294901760
        %3599 = vmatpush.msra.mxu0 %v3598
        %v3600 = vand.u32 %v3084, 4294901760
        %3601 = vmatpush.msra.mxu0 %v3600
        %v3602 = vand.u32 %v3083, 4294901760
        %3603 = vmatpush.msra.mxu0 %v3602
        %v3604 = vand.u32 %v3082, 4294901760
        %3605 = vmatpush.msra.mxu0 %v3604
        %v3606 = vand.u32 %v3081, 4294901760
        %3607 = vmatpush.msra.mxu0 %v3606
        %v3608 = vand.u32 %v3080, 4294901760
        %3609 = vmatpush.msra.mxu0 %v3608
        %v3610 = vand.u32 %v3079, 4294901760
        %3611 = vmatpush.msra.mxu0 %v3610
        %v3612 = vand.u32 %v3060, 4294901760
        %v3613 = vsub.f32 %v3060, %v3612
        %v3614 = vand.u32 %v3613, 4294901760
        %3615 = vmatmul.f32.gmra.mxu0 %v3614
        %v3616 = vpop.f32.mrf.mxu0
        %v3617 = vadd.f32 %v3493, %v3616
        %v3618 = vand.u32 %v3061, 4294901760
        %v3619 = vsub.f32 %v3061, %v3618
        %v3620 = vand.u32 %v3619, 4294901760
        %3621 = vmatmul.f32.gmra.mxu0 %v3620
        %v3622 = vpop.f32.mrf.mxu0
        %v3623 = vadd.f32 %v3498, %v3622
        %v3624 = vand.u32 %v3062, 4294901760
        %v3625 = vsub.f32 %v3062, %v3624
        %v3626 = vand.u32 %v3625, 4294901760
        %3627 = vmatmul.f32.gmra.mxu0 %v3626
        %v3628 = vpop.f32.mrf.mxu0
        %v3629 = vadd.f32 %v3503, %v3628
        %v3630 = vand.u32 %v3063, 4294901760
        %v3631 = vsub.f32 %v3063, %v3630
        %v3632 = vand.u32 %v3631, 4294901760
        %3633 = vmatmul.f32.gmra.mxu0 %v3632
        %v3634 = vpop.f32.mrf.mxu0
        %v3635 = vadd.f32 %v3508, %v3634
        %v3636 = vand.u32 %v3064, 4294901760
        %v3637 = vsub.f32 %v3064, %v3636
        %v3638 = vand.u32 %v3637, 4294901760
        %3639 = vmatmul.f32.gmra.mxu0 %v3638
        %v3640 = vpop.f32.mrf.mxu0
        %v3641 = vadd.f32 %v3513, %v3640
        %v3642 = vand.u32 %v3065, 4294901760
        %v3643 = vsub.f32 %v3065, %v3642
        %v3644 = vand.u32 %v3643, 4294901760
        %3645 = vmatmul.f32.gmra.mxu0 %v3644
        %v3646 = vpop.f32.mrf.mxu0
        %v3647 = vadd.f32 %v3518, %v3646
        %v3648 = vand.u32 %v3066, 4294901760
        %v3649 = vsub.f32 %v3066, %v3648
        %v3650 = vand.u32 %v3649, 4294901760
        %3651 = vmatmul.f32.gmra.mxu0 %v3650
        %v3652 = vpop.f32.mrf.mxu0
        %v3653 = vadd.f32 %v3523, %v3652
        %v3654 = vand.u32 %v3067, 4294901760
        %v3655 = vsub.f32 %v3067, %v3654
        %v3656 = vand.u32 %v3655, 4294901760
        %3657 = vmatmul.f32.gmra.mxu0 %v3656
        %v3658 = vpop.f32.mrf.mxu0
        %v3659 = vadd.f32 %v3528, %v3658
        %v3660 = vand.u32 %v3068, 4294901760
        %v3661 = vsub.f32 %v3068, %v3660
        %v3662 = vand.u32 %v3661, 4294901760
        %3663 = vmatmul.f32.gmra.mxu0 %v3662
        %v3664 = vpop.f32.mrf.mxu0
        %v3665 = vadd.f32 %v3533, %v3664
        %v3666 = vand.u32 %v3069, 4294901760
        %v3667 = vsub.f32 %v3069, %v3666
        %v3668 = vand.u32 %v3667, 4294901760
        %3669 = vmatmul.f32.gmra.mxu0 %v3668
        %v3670 = vpop.f32.mrf.mxu0
        %v3671 = vadd.f32 %v3538, %v3670
        %v3672 = vand.u32 %v3070, 4294901760
        %v3673 = vsub.f32 %v3070, %v3672
        %v3674 = vand.u32 %v3673, 4294901760
        %3675 = vmatmul.f32.gmra.mxu0 %v3674
        %v3676 = vpop.f32.mrf.mxu0
        %v3677 = vadd.f32 %v3543, %v3676
        %v3678 = vand.u32 %v3071, 4294901760
        %v3679 = vsub.f32 %v3071, %v3678
        %v3680 = vand.u32 %v3679, 4294901760
        %3681 = vmatmul.f32.gmra.mxu0 %v3680
        %v3682 = vpop.f32.mrf.mxu0
        %v3683 = vadd.f32 %v3548, %v3682
        %v3684 = vand.u32 %v3072, 4294901760
        %v3685 = vsub.f32 %v3072, %v3684
        %v3686 = vand.u32 %v3685, 4294901760
        %3687 = vmatmul.f32.gmra.mxu0 %v3686
        %v3688 = vpop.f32.mrf.mxu0
        %v3689 = vadd.f32 %v3553, %v3688
        %v3690 = vand.u32 %v3073, 4294901760
        %v3691 = vsub.f32 %v3073, %v3690
        %v3692 = vand.u32 %v3691, 4294901760
        %3693 = vmatmul.f32.gmra.mxu0 %v3692
        %v3694 = vpop.f32.mrf.mxu0
        %v3695 = vadd.f32 %v3558, %v3694
        %v3696 = vand.u32 %v3074, 4294901760
        %v3697 = vsub.f32 %v3074, %v3696
        %v3698 = vand.u32 %v3697, 4294901760
        %3699 = vmatmul.f32.gmra.mxu0 %v3698
        %v3700 = vpop.f32.mrf.mxu0
        %v3701 = vadd.f32 %v3563, %v3700
        %v3702 = vand.u32 %v3075, 4294901760
        %v3703 = vsub.f32 %v3075, %v3702
        %v3704 = vand.u32 %v3703, 4294901760
        %3705 = vmatmul.f32.gmra.mxu0 %v3704
        %v3706 = vpop.f32.mrf.mxu0
        %v3707 = vadd.f32 %v3568, %v3706
        %v3708 = vand.u32 %v3076, 4294901760
        %v3709 = vsub.f32 %v3076, %v3708
        %v3710 = vand.u32 %v3709, 4294901760
        %3711 = vmatmul.f32.gmra.mxu0 %v3710
        %v3712 = vpop.f32.mrf.mxu0
        %v3713 = vadd.f32 %v3573, %v3712
        %v3714 = vand.u32 %v3077, 4294901760
        %v3715 = vsub.f32 %v3077, %v3714
        %v3716 = vand.u32 %v3715, 4294901760
        %3717 = vmatmul.f32.gmra.mxu0 %v3716
        %v3718 = vpop.f32.mrf.mxu0
        %v3719 = vadd.f32 %v3578, %v3718
        %3720 = vdwg.mxu0
        %v3721 = vand.u32 %v3094, 4294901760
        %v3722 = vsub.f32 %v3094, %v3721
        %v3723 = vand.u32 %v3722, 4294901760
        %3724 = vmatpush.msra.mxu0 %v3723
        %v3725 = vand.u32 %v3093, 4294901760
        %v3726 = vsub.f32 %v3093, %v3725
        %v3727 = vand.u32 %v3726, 4294901760
        %3728 = vmatpush.msra.mxu0 %v3727
        %v3729 = vand.u32 %v3092, 4294901760
        %v3730 = vsub.f32 %v3092, %v3729
        %v3731 = vand.u32 %v3730, 4294901760
        %3732 = vmatpush.msra.mxu0 %v3731
        %v3733 = vand.u32 %v3091, 4294901760
        %v3734 = vsub.f32 %v3091, %v3733
        %v3735 = vand.u32 %v3734, 4294901760
        %3736 = vmatpush.msra.mxu0 %v3735
        %v3737 = vand.u32 %v3090, 4294901760
        %v3738 = vsub.f32 %v3090, %v3737
        %v3739 = vand.u32 %v3738, 4294901760
        %3740 = vmatpush.msra.mxu0 %v3739
        %v3741 = vand.u32 %v3089, 4294901760
        %v3742 = vsub.f32 %v3089, %v3741
        %v3743 = vand.u32 %v3742, 4294901760
        %3744 = vmatpush.msra.mxu0 %v3743
        %v3745 = vand.u32 %v3088, 4294901760
        %v3746 = vsub.f32 %v3088, %v3745
        %v3747 = vand.u32 %v3746, 4294901760
        %3748 = vmatpush.msra.mxu0 %v3747
        %v3749 = vand.u32 %v3087, 4294901760
        %v3750 = vsub.f32 %v3087, %v3749
        %v3751 = vand.u32 %v3750, 4294901760
        %3752 = vmatpush.msra.mxu0 %v3751
        %v3753 = vand.u32 %v3086, 4294901760
        %v3754 = vsub.f32 %v3086, %v3753
        %v3755 = vand.u32 %v3754, 4294901760
        %3756 = vmatpush.msra.mxu0 %v3755
        %v3757 = vand.u32 %v3085, 4294901760
        %v3758 = vsub.f32 %v3085, %v3757
        %v3759 = vand.u32 %v3758, 4294901760
        %3760 = vmatpush.msra.mxu0 %v3759
        %v3761 = vand.u32 %v3084, 4294901760
        %v3762 = vsub.f32 %v3084, %v3761
        %v3763 = vand.u32 %v3762, 4294901760
        %3764 = vmatpush.msra.mxu0 %v3763
        %v3765 = vand.u32 %v3083, 4294901760
        %v3766 = vsub.f32 %v3083, %v3765
        %v3767 = vand.u32 %v3766, 4294901760
        %3768 = vmatpush.msra.mxu0 %v3767
        %v3769 = vand.u32 %v3082, 4294901760
        %v3770 = vsub.f32 %v3082, %v3769
        %v3771 = vand.u32 %v3770, 4294901760
        %3772 = vmatpush.msra.mxu0 %v3771
        %v3773 = vand.u32 %v3081, 4294901760
        %v3774 = vsub.f32 %v3081, %v3773
        %v3775 = vand.u32 %v3774, 4294901760
        %3776 = vmatpush.msra.mxu0 %v3775
        %v3777 = vand.u32 %v3080, 4294901760
        %v3778 = vsub.f32 %v3080, %v3777
        %v3779 = vand.u32 %v3778, 4294901760
        %3780 = vmatpush.msra.mxu0 %v3779
        %v3781 = vand.u32 %v3079, 4294901760
        %v3782 = vsub.f32 %v3079, %v3781
        %v3783 = vand.u32 %v3782, 4294901760
        %3784 = vmatpush.msra.mxu0 %v3783
        %v3785 = vand.u32 %v3060, 4294901760
        %3786 = vmatmul.f32.gmra.mxu0 %v3785
        %v3787 = vpop.f32.mrf.mxu0
        %v3788 = vadd.f32 %v3617, %v3787
        %v3789 = vand.u32 %v3061, 4294901760
        %3790 = vmatmul.f32.gmra.mxu0 %v3789
        %v3791 = vpop.f32.mrf.mxu0
        %v3792 = vadd.f32 %v3623, %v3791
        %v3793 = vand.u32 %v3062, 4294901760
        %3794 = vmatmul.f32.gmra.mxu0 %v3793
        %v3795 = vpop.f32.mrf.mxu0
        %v3796 = vadd.f32 %v3629, %v3795
        %v3797 = vand.u32 %v3063, 4294901760
        %3798 = vmatmul.f32.gmra.mxu0 %v3797
        %v3799 = vpop.f32.mrf.mxu0
        %v3800 = vadd.f32 %v3635, %v3799
        %v3801 = vand.u32 %v3064, 4294901760
        %3802 = vmatmul.f32.gmra.mxu0 %v3801
        %v3803 = vpop.f32.mrf.mxu0
        %v3804 = vadd.f32 %v3641, %v3803
        %v3805 = vand.u32 %v3065, 4294901760
        %3806 = vmatmul.f32.gmra.mxu0 %v3805
        %v3807 = vpop.f32.mrf.mxu0
        %v3808 = vadd.f32 %v3647, %v3807
        %v3809 = vand.u32 %v3066, 4294901760
        %3810 = vmatmul.f32.gmra.mxu0 %v3809
        %v3811 = vpop.f32.mrf.mxu0
        %v3812 = vadd.f32 %v3653, %v3811
        %v3813 = vand.u32 %v3067, 4294901760
        %3814 = vmatmul.f32.gmra.mxu0 %v3813
        %v3815 = vpop.f32.mrf.mxu0
        %v3816 = vadd.f32 %v3659, %v3815
        %v3817 = vand.u32 %v3068, 4294901760
        %3818 = vmatmul.f32.gmra.mxu0 %v3817
        %v3819 = vpop.f32.mrf.mxu0
        %v3820 = vadd.f32 %v3665, %v3819
        %v3821 = vand.u32 %v3069, 4294901760
        %3822 = vmatmul.f32.gmra.mxu0 %v3821
        %v3823 = vpop.f32.mrf.mxu0
        %v3824 = vadd.f32 %v3671, %v3823
        %v3825 = vand.u32 %v3070, 4294901760
        %3826 = vmatmul.f32.gmra.mxu0 %v3825
        %v3827 = vpop.f32.mrf.mxu0
        %v3828 = vadd.f32 %v3677, %v3827
        %v3829 = vand.u32 %v3071, 4294901760
        %3830 = vmatmul.f32.gmra.mxu0 %v3829
        %v3831 = vpop.f32.mrf.mxu0
        %v3832 = vadd.f32 %v3683, %v3831
        %v3833 = vand.u32 %v3072, 4294901760
        %3834 = vmatmul.f32.gmra.mxu0 %v3833
        %v3835 = vpop.f32.mrf.mxu0
        %v3836 = vadd.f32 %v3689, %v3835
        %v3837 = vand.u32 %v3073, 4294901760
        %3838 = vmatmul.f32.gmra.mxu0 %v3837
        %v3839 = vpop.f32.mrf.mxu0
        %v3840 = vadd.f32 %v3695, %v3839
        %v3841 = vand.u32 %v3074, 4294901760
        %3842 = vmatmul.f32.gmra.mxu0 %v3841
        %v3843 = vpop.f32.mrf.mxu0
        %v3844 = vadd.f32 %v3701, %v3843
        %v3845 = vand.u32 %v3075, 4294901760
        %3846 = vmatmul.f32.gmra.mxu0 %v3845
        %v3847 = vpop.f32.mrf.mxu0
        %v3848 = vadd.f32 %v3707, %v3847
        %v3849 = vand.u32 %v3076, 4294901760
        %3850 = vmatmul.f32.gmra.mxu0 %v3849
        %v3851 = vpop.f32.mrf.mxu0
        %v3852 = vadd.f32 %v3713, %v3851
        %v3853 = vand.u32 %v3077, 4294901760
        %3854 = vmatmul.f32.gmra.mxu0 %v3853
        %v3855 = vpop.f32.mrf.mxu0
        %v3856 = vadd.f32 %v3719, %v3855
        %3857 = vdwg.mxu0
        %v3858 = vand.u32 %v3094, 4294901760
        %3859 = vmatpush.msra.mxu0 %v3858
        %v3860 = vand.u32 %v3093, 4294901760
        %3861 = vmatpush.msra.mxu0 %v3860
        %v3862 = vand.u32 %v3092, 4294901760
        %3863 = vmatpush.msra.mxu0 %v3862
        %v3864 = vand.u32 %v3091, 4294901760
        %3865 = vmatpush.msra.mxu0 %v3864
        %v3866 = vand.u32 %v3090, 4294901760
        %3867 = vmatpush.msra.mxu0 %v3866
        %v3868 = vand.u32 %v3089, 4294901760
        %3869 = vmatpush.msra.mxu0 %v3868
        %v3870 = vand.u32 %v3088, 4294901760
        %3871 = vmatpush.msra.mxu0 %v3870
        %v3872 = vand.u32 %v3087, 4294901760
        %3873 = vmatpush.msra.mxu0 %v3872
        %v3874 = vand.u32 %v3086, 4294901760
        %3875 = vmatpush.msra.mxu0 %v3874
        %v3876 = vand.u32 %v3085, 4294901760
        %3877 = vmatpush.msra.mxu0 %v3876
        %v3878 = vand.u32 %v3084, 4294901760
        %3879 = vmatpush.msra.mxu0 %v3878
        %v3880 = vand.u32 %v3083, 4294901760
        %3881 = vmatpush.msra.mxu0 %v3880
        %v3882 = vand.u32 %v3082, 4294901760
        %3883 = vmatpush.msra.mxu0 %v3882
        %v3884 = vand.u32 %v3081, 4294901760
        %3885 = vmatpush.msra.mxu0 %v3884
        %v3886 = vand.u32 %v3080, 4294901760
        %3887 = vmatpush.msra.mxu0 %v3886
        %v3888 = vand.u32 %v3079, 4294901760
        %3889 = vmatpush.msra.mxu0 %v3888
        %v3890 = vand.u32 %v3060, 4294901760
        %3891 = vmatmul.f32.gmra.mxu0 %v3890
        %v3892 = vpop.f32.mrf.mxu0
        %v3893 = vadd.f32 %v3788, %v3892
        %v3894 = vand.u32 %v3061, 4294901760
        %3895 = vmatmul.f32.gmra.mxu0 %v3894
        %v3896 = vpop.f32.mrf.mxu0
        %v3897 = vadd.f32 %v3792, %v3896
        %v3898 = vand.u32 %v3062, 4294901760
        %3899 = vmatmul.f32.gmra.mxu0 %v3898
        %v3900 = vpop.f32.mrf.mxu0
        %v3901 = vadd.f32 %v3796, %v3900
        %v3902 = vand.u32 %v3063, 4294901760
        %3903 = vmatmul.f32.gmra.mxu0 %v3902
        %v3904 = vpop.f32.mrf.mxu0
        %v3905 = vadd.f32 %v3800, %v3904
        %v3906 = vand.u32 %v3064, 4294901760
        %3907 = vmatmul.f32.gmra.mxu0 %v3906
        %v3908 = vpop.f32.mrf.mxu0
        %v3909 = vadd.f32 %v3804, %v3908
        %v3910 = vand.u32 %v3065, 4294901760
        %3911 = vmatmul.f32.gmra.mxu0 %v3910
        %v3912 = vpop.f32.mrf.mxu0
        %v3913 = vadd.f32 %v3808, %v3912
        %v3914 = vand.u32 %v3066, 4294901760
        %3915 = vmatmul.f32.gmra.mxu0 %v3914
        %v3916 = vpop.f32.mrf.mxu0
        %v3917 = vadd.f32 %v3812, %v3916
        %v3918 = vand.u32 %v3067, 4294901760
        %3919 = vmatmul.f32.gmra.mxu0 %v3918
        %v3920 = vpop.f32.mrf.mxu0
        %v3921 = vadd.f32 %v3816, %v3920
        %v3922 = vand.u32 %v3068, 4294901760
        %3923 = vmatmul.f32.gmra.mxu0 %v3922
        %v3924 = vpop.f32.mrf.mxu0
        %v3925 = vadd.f32 %v3820, %v3924
        %v3926 = vand.u32 %v3069, 4294901760
        %3927 = vmatmul.f32.gmra.mxu0 %v3926
        %v3928 = vpop.f32.mrf.mxu0
        %v3929 = vadd.f32 %v3824, %v3928
        %v3930 = vand.u32 %v3070, 4294901760
        %3931 = vmatmul.f32.gmra.mxu0 %v3930
        %v3932 = vpop.f32.mrf.mxu0
        %v3933 = vadd.f32 %v3828, %v3932
        %v3934 = vand.u32 %v3071, 4294901760
        %3935 = vmatmul.f32.gmra.mxu0 %v3934
        %v3936 = vpop.f32.mrf.mxu0
        %v3937 = vadd.f32 %v3832, %v3936
        %v3938 = vand.u32 %v3072, 4294901760
        %3939 = vmatmul.f32.gmra.mxu0 %v3938
        %v3940 = vpop.f32.mrf.mxu0
        %v3941 = vadd.f32 %v3836, %v3940
        %v3942 = vand.u32 %v3073, 4294901760
        %3943 = vmatmul.f32.gmra.mxu0 %v3942
        %v3944 = vpop.f32.mrf.mxu0
        %v3945 = vadd.f32 %v3840, %v3944
        %v3946 = vand.u32 %v3074, 4294901760
        %3947 = vmatmul.f32.gmra.mxu0 %v3946
        %v3948 = vpop.f32.mrf.mxu0
        %v3949 = vadd.f32 %v3844, %v3948
        %v3950 = vand.u32 %v3075, 4294901760
        %3951 = vmatmul.f32.gmra.mxu0 %v3950
        %v3952 = vpop.f32.mrf.mxu0
        %v3953 = vadd.f32 %v3848, %v3952
        %v3954 = vand.u32 %v3076, 4294901760
        %3955 = vmatmul.f32.gmra.mxu0 %v3954
        %v3956 = vpop.f32.mrf.mxu0
        %v3957 = vadd.f32 %v3852, %v3956
        %v3958 = vand.u32 %v3077, 4294901760
        %3959 = vmatmul.f32.gmra.mxu0 %v3958
        %v3960 = vpop.f32.mrf.mxu0
        %v3961 = vadd.f32 %v3856, %v3960
        %3962 = vdwg.mxu0
        %v3963 = vadd.f32 %v3042, %v3893
        %v3964 = vadd.f32 %v3043, %v3897
        %v3965 = vadd.f32 %v3044, %v3901
        %v3966 = vadd.f32 %v3045, %v3905
        %v3967 = vadd.f32 %v3046, %v3909
        %v3968 = vadd.f32 %v3047, %v3913
        %v3969 = vadd.f32 %v3048, %v3917
        %v3970 = vadd.f32 %v3049, %v3921
        %v3971 = vadd.f32 %v3050, %v3925
        %v3972 = vadd.f32 %v3051, %v3929
        %v3973 = vadd.f32 %v3052, %v3933
        %v3974 = vadd.f32 %v3053, %v3937
        %v3975 = vadd.f32 %v3054, %v3941
        %v3976 = vadd.f32 %v3055, %v3945
        %v3977 = vadd.f32 %v3056, %v3949
        %v3978 = vadd.f32 %v3057, %v3953
        %v3979 = vadd.f32 %v3058, %v3957
        %v3980 = vadd.f32 %v3059, %v3961
        %v3981 = vld [vmem:[%s333 + $0x13] sm:$0xff]
        %v3982 = vld [vmem:[%s333 + $0x1b] sm:$0xff]
        %v3983 = vld [vmem:[%s333 + $0x23] sm:$0xff]
        %v3984 = vld [vmem:[%s333 + $0x2b] sm:$0xff]
        %v3985 = vld [vmem:[%s333 + $0x33] sm:$0xff]
        %v3986 = vld [vmem:[%s333 + $0x3b] sm:$0xff]
        %v3987 = vld [vmem:[%s333 + $0x43] sm:$0xff]
        %v3988 = vld [vmem:[%s333 + $0x4b] sm:$0xff]
        %v3989 = vld [vmem:[%s333 + $0x53] sm:$0xff]
        %v3990 = vld [vmem:[%s333 + $0x5b] sm:$0xff]
        %v3991 = vld [vmem:[%s333 + $0x63] sm:$0xff]
        %v3992 = vld [vmem:[%s333 + $0x6b] sm:$0xff]
        %v3993 = vld [vmem:[%s333 + $0x73] sm:$0xff]
        %v3994 = vld [vmem:[%s333 + $0x7b] sm:$0xff]
        %v3995 = vld [vmem:[%s333 + $0x83] sm:$0xff]
        %v3996 = vld [vmem:[%s333 + $0x8b] sm:$0xff]
        %v3997 = vld [vmem:[%s333 + $0x93] sm:$0xff]
        %v3998 = vld [vmem:[%s333 + $0x9b] sm:$0xff]
        %s3999 = scalar_lea.vmem %s1, 512
        %v4000 = vld [vmem:[%s3999] sm:$0xff]
        %v4001 = vld [vmem:[%s3999 + $0x8] sm:$0xff]
        %v4002 = vld [vmem:[%s3999 + $0x10] sm:$0xff]
        %v4003 = vld [vmem:[%s3999 + $0x18] sm:$0xff]
        %v4004 = vld [vmem:[%s3999 + $0x20] sm:$0xff]
        %v4005 = vld [vmem:[%s3999 + $0x28] sm:$0xff]
        %v4006 = vld [vmem:[%s3999 + $0x30] sm:$0xff]
        %v4007 = vld [vmem:[%s3999 + $0x38] sm:$0xff]
        %v4008 = vld [vmem:[%s3999 + $0x40] sm:$0xff]
        %v4009 = vld [vmem:[%s3999 + $0x48] sm:$0xff]
        %v4010 = vld [vmem:[%s3999 + $0x50] sm:$0xff]
        %v4011 = vld [vmem:[%s3999 + $0x58] sm:$0xff]
        %v4012 = vld [vmem:[%s3999 + $0x60] sm:$0xff]
        %v4013 = vld [vmem:[%s3999 + $0x68] sm:$0xff]
        %v4014 = vld [vmem:[%s3999 + $0x70] sm:$0xff]
        %v4015 = vld [vmem:[%s3999 + $0x78] sm:$0xff]
        %v4016 = vand.u32 %v4015, 4294901760
        %4017 = vmatpush.msra.mxu0 %v4016
        %v4018 = vand.u32 %v4014, 4294901760
        %4019 = vmatpush.msra.mxu0 %v4018
        %v4020 = vand.u32 %v4013, 4294901760
        %4021 = vmatpush.msra.mxu0 %v4020
        %v4022 = vand.u32 %v4012, 4294901760
        %4023 = vmatpush.msra.mxu0 %v4022
        %v4024 = vand.u32 %v4011, 4294901760
        %4025 = vmatpush.msra.mxu0 %v4024
        %v4026 = vand.u32 %v4010, 4294901760
        %4027 = vmatpush.msra.mxu0 %v4026
        %v4028 = vand.u32 %v4009, 4294901760
        %4029 = vmatpush.msra.mxu0 %v4028
        %v4030 = vand.u32 %v4008, 4294901760
        %4031 = vmatpush.msra.mxu0 %v4030
        %v4032 = vand.u32 %v4007, 4294901760
        %4033 = vmatpush.msra.mxu0 %v4032
        %v4034 = vand.u32 %v4006, 4294901760
        %4035 = vmatpush.msra.mxu0 %v4034
        %v4036 = vand.u32 %v4005, 4294901760
        %4037 = vmatpush.msra.mxu0 %v4036
        %v4038 = vand.u32 %v4004, 4294901760
        %4039 = vmatpush.msra.mxu0 %v4038
        %v4040 = vand.u32 %v4003, 4294901760
        %4041 = vmatpush.msra.mxu0 %v4040
        %v4042 = vand.u32 %v4002, 4294901760
        %4043 = vmatpush.msra.mxu0 %v4042
        %v4044 = vand.u32 %v4001, 4294901760
        %4045 = vmatpush.msra.mxu0 %v4044
        %v4046 = vand.u32 %v4000, 4294901760
        %4047 = vmatpush.msra.mxu0 %v4046
        %v4048 = vand.u32 %v3981, 4294901760
        %v4049 = vsub.f32 %v3981, %v4048
        %v4050 = vand.u32 %v4049, 4294901760
        %v4051 = vsub.f32 %v4049, %v4050
        %v4052 = vand.u32 %v4051, 4294901760
        %4053 = vmatmul.f32.gmra.mxu0 %v4052
        %v4054 = vpop.f32.mrf.mxu0
        %v4055 = vadd.f32 0.0, %v4054
        %v4056 = vand.u32 %v3982, 4294901760
        %v4057 = vsub.f32 %v3982, %v4056
        %v4058 = vand.u32 %v4057, 4294901760
        %v4059 = vsub.f32 %v4057, %v4058
        %v4060 = vand.u32 %v4059, 4294901760
        %4061 = vmatmul.f32.gmra.mxu0 %v4060
        %v4062 = vpop.f32.mrf.mxu0
        %v4063 = vadd.f32 0.0, %v4062
        %v4064 = vand.u32 %v3983, 4294901760
        %v4065 = vsub.f32 %v3983, %v4064
        %v4066 = vand.u32 %v4065, 4294901760
        %v4067 = vsub.f32 %v4065, %v4066
        %v4068 = vand.u32 %v4067, 4294901760
        %4069 = vmatmul.f32.gmra.mxu0 %v4068
        %v4070 = vpop.f32.mrf.mxu0
        %v4071 = vadd.f32 0.0, %v4070
        %v4072 = vand.u32 %v3984, 4294901760
        %v4073 = vsub.f32 %v3984, %v4072
        %v4074 = vand.u32 %v4073, 4294901760
        %v4075 = vsub.f32 %v4073, %v4074
        %v4076 = vand.u32 %v4075, 4294901760
        %4077 = vmatmul.f32.gmra.mxu0 %v4076
        %v4078 = vpop.f32.mrf.mxu0
        %v4079 = vadd.f32 0.0, %v4078
        %v4080 = vand.u32 %v3985, 4294901760
        %v4081 = vsub.f32 %v3985, %v4080
        %v4082 = vand.u32 %v4081, 4294901760
        %v4083 = vsub.f32 %v4081, %v4082
        %v4084 = vand.u32 %v4083, 4294901760
        %4085 = vmatmul.f32.gmra.mxu0 %v4084
        %v4086 = vpop.f32.mrf.mxu0
        %v4087 = vadd.f32 0.0, %v4086
        %v4088 = vand.u32 %v3986, 4294901760
        %v4089 = vsub.f32 %v3986, %v4088
        %v4090 = vand.u32 %v4089, 4294901760
        %v4091 = vsub.f32 %v4089, %v4090
        %v4092 = vand.u32 %v4091, 4294901760
        %4093 = vmatmul.f32.gmra.mxu0 %v4092
        %v4094 = vpop.f32.mrf.mxu0
        %v4095 = vadd.f32 0.0, %v4094
        %v4096 = vand.u32 %v3987, 4294901760
        %v4097 = vsub.f32 %v3987, %v4096
        %v4098 = vand.u32 %v4097, 4294901760
        %v4099 = vsub.f32 %v4097, %v4098
        %v4100 = vand.u32 %v4099, 4294901760
        %4101 = vmatmul.f32.gmra.mxu0 %v4100
        %v4102 = vpop.f32.mrf.mxu0
        %v4103 = vadd.f32 0.0, %v4102
        %v4104 = vand.u32 %v3988, 4294901760
        %v4105 = vsub.f32 %v3988, %v4104
        %v4106 = vand.u32 %v4105, 4294901760
        %v4107 = vsub.f32 %v4105, %v4106
        %v4108 = vand.u32 %v4107, 4294901760
        %4109 = vmatmul.f32.gmra.mxu0 %v4108
        %v4110 = vpop.f32.mrf.mxu0
        %v4111 = vadd.f32 0.0, %v4110
        %v4112 = vand.u32 %v3989, 4294901760
        %v4113 = vsub.f32 %v3989, %v4112
        %v4114 = vand.u32 %v4113, 4294901760
        %v4115 = vsub.f32 %v4113, %v4114
        %v4116 = vand.u32 %v4115, 4294901760
        %4117 = vmatmul.f32.gmra.mxu0 %v4116
        %v4118 = vpop.f32.mrf.mxu0
        %v4119 = vadd.f32 0.0, %v4118
        %v4120 = vand.u32 %v3990, 4294901760
        %v4121 = vsub.f32 %v3990, %v4120
        %v4122 = vand.u32 %v4121, 4294901760
        %v4123 = vsub.f32 %v4121, %v4122
        %v4124 = vand.u32 %v4123, 4294901760
        %4125 = vmatmul.f32.gmra.mxu0 %v4124
        %v4126 = vpop.f32.mrf.mxu0
        %v4127 = vadd.f32 0.0, %v4126
        %v4128 = vand.u32 %v3991, 4294901760
        %v4129 = vsub.f32 %v3991, %v4128
        %v4130 = vand.u32 %v4129, 4294901760
        %v4131 = vsub.f32 %v4129, %v4130
        %v4132 = vand.u32 %v4131, 4294901760
        %4133 = vmatmul.f32.gmra.mxu0 %v4132
        %v4134 = vpop.f32.mrf.mxu0
        %v4135 = vadd.f32 0.0, %v4134
        %v4136 = vand.u32 %v3992, 4294901760
        %v4137 = vsub.f32 %v3992, %v4136
        %v4138 = vand.u32 %v4137, 4294901760
        %v4139 = vsub.f32 %v4137, %v4138
        %v4140 = vand.u32 %v4139, 4294901760
        %4141 = vmatmul.f32.gmra.mxu0 %v4140
        %v4142 = vpop.f32.mrf.mxu0
        %v4143 = vadd.f32 0.0, %v4142
        %v4144 = vand.u32 %v3993, 4294901760
        %v4145 = vsub.f32 %v3993, %v4144
        %v4146 = vand.u32 %v4145, 4294901760
        %v4147 = vsub.f32 %v4145, %v4146
        %v4148 = vand.u32 %v4147, 4294901760
        %4149 = vmatmul.f32.gmra.mxu0 %v4148
        %v4150 = vpop.f32.mrf.mxu0
        %v4151 = vadd.f32 0.0, %v4150
        %v4152 = vand.u32 %v3994, 4294901760
        %v4153 = vsub.f32 %v3994, %v4152
        %v4154 = vand.u32 %v4153, 4294901760
        %v4155 = vsub.f32 %v4153, %v4154
        %v4156 = vand.u32 %v4155, 4294901760
        %4157 = vmatmul.f32.gmra.mxu0 %v4156
        %v4158 = vpop.f32.mrf.mxu0
        %v4159 = vadd.f32 0.0, %v4158
        %v4160 = vand.u32 %v3995, 4294901760
        %v4161 = vsub.f32 %v3995, %v4160
        %v4162 = vand.u32 %v4161, 4294901760
        %v4163 = vsub.f32 %v4161, %v4162
        %v4164 = vand.u32 %v4163, 4294901760
        %4165 = vmatmul.f32.gmra.mxu0 %v4164
        %v4166 = vpop.f32.mrf.mxu0
        %v4167 = vadd.f32 0.0, %v4166
        %v4168 = vand.u32 %v3996, 4294901760
        %v4169 = vsub.f32 %v3996, %v4168
        %v4170 = vand.u32 %v4169, 4294901760
        %v4171 = vsub.f32 %v4169, %v4170
        %v4172 = vand.u32 %v4171, 4294901760
        %4173 = vmatmul.f32.gmra.mxu0 %v4172
        %v4174 = vpop.f32.mrf.mxu0
        %v4175 = vadd.f32 0.0, %v4174
        %v4176 = vand.u32 %v3997, 4294901760
        %v4177 = vsub.f32 %v3997, %v4176
        %v4178 = vand.u32 %v4177, 4294901760
        %v4179 = vsub.f32 %v4177, %v4178
        %v4180 = vand.u32 %v4179, 4294901760
        %4181 = vmatmul.f32.gmra.mxu0 %v4180
        %v4182 = vpop.f32.mrf.mxu0
        %v4183 = vadd.f32 0.0, %v4182
        %v4184 = vand.u32 %v3998, 4294901760
        %v4185 = vsub.f32 %v3998, %v4184
        %v4186 = vand.u32 %v4185, 4294901760
        %v4187 = vsub.f32 %v4185, %v4186
        %v4188 = vand.u32 %v4187, 4294901760
        %4189 = vmatmul.f32.gmra.mxu0 %v4188
        %v4190 = vpop.f32.mrf.mxu0
        %v4191 = vadd.f32 0.0, %v4190
        %4192 = vdwg.mxu0
        %v4193 = vand.u32 %v4015, 4294901760
        %v4194 = vsub.f32 %v4015, %v4193
        %v4195 = vand.u32 %v4194, 4294901760
        %v4196 = vsub.f32 %v4194, %v4195
        %v4197 = vand.u32 %v4196, 4294901760
        %4198 = vmatpush.msra.mxu0 %v4197
        %v4199 = vand.u32 %v4014, 4294901760
        %v4200 = vsub.f32 %v4014, %v4199
        %v4201 = vand.u32 %v4200, 4294901760
        %v4202 = vsub.f32 %v4200, %v4201
        %v4203 = vand.u32 %v4202, 4294901760
        %4204 = vmatpush.msra.mxu0 %v4203
        %v4205 = vand.u32 %v4013, 4294901760
        %v4206 = vsub.f32 %v4013, %v4205
        %v4207 = vand.u32 %v4206, 4294901760
        %v4208 = vsub.f32 %v4206, %v4207
        %v4209 = vand.u32 %v4208, 4294901760
        %4210 = vmatpush.msra.mxu0 %v4209
        %v4211 = vand.u32 %v4012, 4294901760
        %v4212 = vsub.f32 %v4012, %v4211
        %v4213 = vand.u32 %v4212, 4294901760
        %v4214 = vsub.f32 %v4212, %v4213
        %v4215 = vand.u32 %v4214, 4294901760
        %4216 = vmatpush.msra.mxu0 %v4215
        %v4217 = vand.u32 %v4011, 4294901760
        %v4218 = vsub.f32 %v4011, %v4217
        %v4219 = vand.u32 %v4218, 4294901760
        %v4220 = vsub.f32 %v4218, %v4219
        %v4221 = vand.u32 %v4220, 4294901760
        %4222 = vmatpush.msra.mxu0 %v4221
        %v4223 = vand.u32 %v4010, 4294901760
        %v4224 = vsub.f32 %v4010, %v4223
        %v4225 = vand.u32 %v4224, 4294901760
        %v4226 = vsub.f32 %v4224, %v4225
        %v4227 = vand.u32 %v4226, 4294901760
        %4228 = vmatpush.msra.mxu0 %v4227
        %v4229 = vand.u32 %v4009, 4294901760
        %v4230 = vsub.f32 %v4009, %v4229
        %v4231 = vand.u32 %v4230, 4294901760
        %v4232 = vsub.f32 %v4230, %v4231
        %v4233 = vand.u32 %v4232, 4294901760
        %4234 = vmatpush.msra.mxu0 %v4233
        %v4235 = vand.u32 %v4008, 4294901760
        %v4236 = vsub.f32 %v4008, %v4235
        %v4237 = vand.u32 %v4236, 4294901760
        %v4238 = vsub.f32 %v4236, %v4237
        %v4239 = vand.u32 %v4238, 4294901760
        %4240 = vmatpush.msra.mxu0 %v4239
        %v4241 = vand.u32 %v4007, 4294901760
        %v4242 = vsub.f32 %v4007, %v4241
        %v4243 = vand.u32 %v4242, 4294901760
        %v4244 = vsub.f32 %v4242, %v4243
        %v4245 = vand.u32 %v4244, 4294901760
        %4246 = vmatpush.msra.mxu0 %v4245
        %v4247 = vand.u32 %v4006, 4294901760
        %v4248 = vsub.f32 %v4006, %v4247
        %v4249 = vand.u32 %v4248, 4294901760
        %v4250 = vsub.f32 %v4248, %v4249
        %v4251 = vand.u32 %v4250, 4294901760
        %4252 = vmatpush.msra.mxu0 %v4251
        %v4253 = vand.u32 %v4005, 4294901760
        %v4254 = vsub.f32 %v4005, %v4253
        %v4255 = vand.u32 %v4254, 4294901760
        %v4256 = vsub.f32 %v4254, %v4255
        %v4257 = vand.u32 %v4256, 4294901760
        %4258 = vmatpush.msra.mxu0 %v4257
        %v4259 = vand.u32 %v4004, 4294901760
        %v4260 = vsub.f32 %v4004, %v4259
        %v4261 = vand.u32 %v4260, 4294901760
        %v4262 = vsub.f32 %v4260, %v4261
        %v4263 = vand.u32 %v4262, 4294901760
        %4264 = vmatpush.msra.mxu0 %v4263
        %v4265 = vand.u32 %v4003, 4294901760
        %v4266 = vsub.f32 %v4003, %v4265
        %v4267 = vand.u32 %v4266, 4294901760
        %v4268 = vsub.f32 %v4266, %v4267
        %v4269 = vand.u32 %v4268, 4294901760
        %4270 = vmatpush.msra.mxu0 %v4269
        %v4271 = vand.u32 %v4002, 4294901760
        %v4272 = vsub.f32 %v4002, %v4271
        %v4273 = vand.u32 %v4272, 4294901760
        %v4274 = vsub.f32 %v4272, %v4273
        %v4275 = vand.u32 %v4274, 4294901760
        %4276 = vmatpush.msra.mxu0 %v4275
        %v4277 = vand.u32 %v4001, 4294901760
        %v4278 = vsub.f32 %v4001, %v4277
        %v4279 = vand.u32 %v4278, 4294901760
        %v4280 = vsub.f32 %v4278, %v4279
        %v4281 = vand.u32 %v4280, 4294901760
        %4282 = vmatpush.msra.mxu0 %v4281
        %v4283 = vand.u32 %v4000, 4294901760
        %v4284 = vsub.f32 %v4000, %v4283
        %v4285 = vand.u32 %v4284, 4294901760
        %v4286 = vsub.f32 %v4284, %v4285
        %v4287 = vand.u32 %v4286, 4294901760
        %4288 = vmatpush.msra.mxu0 %v4287
        %v4289 = vand.u32 %v3981, 4294901760
        %4290 = vmatmul.f32.gmra.mxu0 %v4289
        %v4291 = vpop.f32.mrf.mxu0
        %v4292 = vadd.f32 %v4055, %v4291
        %v4293 = vand.u32 %v3982, 4294901760
        %4294 = vmatmul.f32.gmra.mxu0 %v4293
        %v4295 = vpop.f32.mrf.mxu0
        %v4296 = vadd.f32 %v4063, %v4295
        %v4297 = vand.u32 %v3983, 4294901760
        %4298 = vmatmul.f32.gmra.mxu0 %v4297
        %v4299 = vpop.f32.mrf.mxu0
        %v4300 = vadd.f32 %v4071, %v4299
        %v4301 = vand.u32 %v3984, 4294901760
        %4302 = vmatmul.f32.gmra.mxu0 %v4301
        %v4303 = vpop.f32.mrf.mxu0
        %v4304 = vadd.f32 %v4079, %v4303
        %v4305 = vand.u32 %v3985, 4294901760
        %4306 = vmatmul.f32.gmra.mxu0 %v4305
        %v4307 = vpop.f32.mrf.mxu0
        %v4308 = vadd.f32 %v4087, %v4307
        %v4309 = vand.u32 %v3986, 4294901760
        %4310 = vmatmul.f32.gmra.mxu0 %v4309
        %v4311 = vpop.f32.mrf.mxu0
        %v4312 = vadd.f32 %v4095, %v4311
        %v4313 = vand.u32 %v3987, 4294901760
        %4314 = vmatmul.f32.gmra.mxu0 %v4313
        %v4315 = vpop.f32.mrf.mxu0
        %v4316 = vadd.f32 %v4103, %v4315
        %v4317 = vand.u32 %v3988, 4294901760
        %4318 = vmatmul.f32.gmra.mxu0 %v4317
        %v4319 = vpop.f32.mrf.mxu0
        %v4320 = vadd.f32 %v4111, %v4319
        %v4321 = vand.u32 %v3989, 4294901760
        %4322 = vmatmul.f32.gmra.mxu0 %v4321
        %v4323 = vpop.f32.mrf.mxu0
        %v4324 = vadd.f32 %v4119, %v4323
        %v4325 = vand.u32 %v3990, 4294901760
        %4326 = vmatmul.f32.gmra.mxu0 %v4325
        %v4327 = vpop.f32.mrf.mxu0
        %v4328 = vadd.f32 %v4127, %v4327
        %v4329 = vand.u32 %v3991, 4294901760
        %4330 = vmatmul.f32.gmra.mxu0 %v4329
        %v4331 = vpop.f32.mrf.mxu0
        %v4332 = vadd.f32 %v4135, %v4331
        %v4333 = vand.u32 %v3992, 4294901760
        %4334 = vmatmul.f32.gmra.mxu0 %v4333
        %v4335 = vpop.f32.mrf.mxu0
        %v4336 = vadd.f32 %v4143, %v4335
        %v4337 = vand.u32 %v3993, 4294901760
        %4338 = vmatmul.f32.gmra.mxu0 %v4337
        %v4339 = vpop.f32.mrf.mxu0
        %v4340 = vadd.f32 %v4151, %v4339
        %v4341 = vand.u32 %v3994, 4294901760
        %4342 = vmatmul.f32.gmra.mxu0 %v4341
        %v4343 = vpop.f32.mrf.mxu0
        %v4344 = vadd.f32 %v4159, %v4343
        %v4345 = vand.u32 %v3995, 4294901760
        %4346 = vmatmul.f32.gmra.mxu0 %v4345
        %v4347 = vpop.f32.mrf.mxu0
        %v4348 = vadd.f32 %v4167, %v4347
        %v4349 = vand.u32 %v3996, 4294901760
        %4350 = vmatmul.f32.gmra.mxu0 %v4349
        %v4351 = vpop.f32.mrf.mxu0
        %v4352 = vadd.f32 %v4175, %v4351
        %v4353 = vand.u32 %v3997, 4294901760
        %4354 = vmatmul.f32.gmra.mxu0 %v4353
        %v4355 = vpop.f32.mrf.mxu0
        %v4356 = vadd.f32 %v4183, %v4355
        %v4357 = vand.u32 %v3998, 4294901760
        %4358 = vmatmul.f32.gmra.mxu0 %v4357
        %v4359 = vpop.f32.mrf.mxu0
        %v4360 = vadd.f32 %v4191, %v4359
        %4361 = vdwg.mxu0
        %v4362 = vand.u32 %v4015, 4294901760
        %v4363 = vsub.f32 %v4015, %v4362
        %4364 = vmatpush.msra.mxu0 %v4363
        %v4365 = vand.u32 %v4014, 4294901760
        %v4366 = vsub.f32 %v4014, %v4365
        %4367 = vmatpush.msra.mxu0 %v4366
        %v4368 = vand.u32 %v4013, 4294901760
        %v4369 = vsub.f32 %v4013, %v4368
        %4370 = vmatpush.msra.mxu0 %v4369
        %v4371 = vand.u32 %v4012, 4294901760
        %v4372 = vsub.f32 %v4012, %v4371
        %4373 = vmatpush.msra.mxu0 %v4372
        %v4374 = vand.u32 %v4011, 4294901760
        %v4375 = vsub.f32 %v4011, %v4374
        %4376 = vmatpush.msra.mxu0 %v4375
        %v4377 = vand.u32 %v4010, 4294901760
        %v4378 = vsub.f32 %v4010, %v4377
        %4379 = vmatpush.msra.mxu0 %v4378
        %v4380 = vand.u32 %v4009, 4294901760
        %v4381 = vsub.f32 %v4009, %v4380
        %4382 = vmatpush.msra.mxu0 %v4381
        %v4383 = vand.u32 %v4008, 4294901760
        %v4384 = vsub.f32 %v4008, %v4383
        %4385 = vmatpush.msra.mxu0 %v4384
        %v4386 = vand.u32 %v4007, 4294901760
        %v4387 = vsub.f32 %v4007, %v4386
        %4388 = vmatpush.msra.mxu0 %v4387
        %v4389 = vand.u32 %v4006, 4294901760
        %v4390 = vsub.f32 %v4006, %v4389
        %4391 = vmatpush.msra.mxu0 %v4390
        %v4392 = vand.u32 %v4005, 4294901760
        %v4393 = vsub.f32 %v4005, %v4392
        %4394 = vmatpush.msra.mxu0 %v4393
        %v4395 = vand.u32 %v4004, 4294901760
        %v4396 = vsub.f32 %v4004, %v4395
        %4397 = vmatpush.msra.mxu0 %v4396
        %v4398 = vand.u32 %v4003, 4294901760
        %v4399 = vsub.f32 %v4003, %v4398
        %4400 = vmatpush.msra.mxu0 %v4399
        %v4401 = vand.u32 %v4002, 4294901760
        %v4402 = vsub.f32 %v4002, %v4401
        %4403 = vmatpush.msra.mxu0 %v4402
        %v4404 = vand.u32 %v4001, 4294901760
        %v4405 = vsub.f32 %v4001, %v4404
        %4406 = vmatpush.msra.mxu0 %v4405
        %v4407 = vand.u32 %v4000, 4294901760
        %v4408 = vsub.f32 %v4000, %v4407
        %4409 = vmatpush.msra.mxu0 %v4408
        %v4410 = vand.u32 %v3981, 4294901760
        %v4411 = vsub.f32 %v3981, %v4410
        %4412 = vmatmul.f32.gmra.mxu0 %v4411
        %v4413 = vpop.f32.mrf.mxu0
        %v4414 = vadd.f32 %v4292, %v4413
        %v4415 = vand.u32 %v3982, 4294901760
        %v4416 = vsub.f32 %v3982, %v4415
        %4417 = vmatmul.f32.gmra.mxu0 %v4416
        %v4418 = vpop.f32.mrf.mxu0
        %v4419 = vadd.f32 %v4296, %v4418
        %v4420 = vand.u32 %v3983, 4294901760
        %v4421 = vsub.f32 %v3983, %v4420
        %4422 = vmatmul.f32.gmra.mxu0 %v4421
        %v4423 = vpop.f32.mrf.mxu0
        %v4424 = vadd.f32 %v4300, %v4423
        %v4425 = vand.u32 %v3984, 4294901760
        %v4426 = vsub.f32 %v3984, %v4425
        %4427 = vmatmul.f32.gmra.mxu0 %v4426
        %v4428 = vpop.f32.mrf.mxu0
        %v4429 = vadd.f32 %v4304, %v4428
        %v4430 = vand.u32 %v3985, 4294901760
        %v4431 = vsub.f32 %v3985, %v4430
        %4432 = vmatmul.f32.gmra.mxu0 %v4431
        %v4433 = vpop.f32.mrf.mxu0
        %v4434 = vadd.f32 %v4308, %v4433
        %v4435 = vand.u32 %v3986, 4294901760
        %v4436 = vsub.f32 %v3986, %v4435
        %4437 = vmatmul.f32.gmra.mxu0 %v4436
        %v4438 = vpop.f32.mrf.mxu0
        %v4439 = vadd.f32 %v4312, %v4438
        %v4440 = vand.u32 %v3987, 4294901760
        %v4441 = vsub.f32 %v3987, %v4440
        %4442 = vmatmul.f32.gmra.mxu0 %v4441
        %v4443 = vpop.f32.mrf.mxu0
        %v4444 = vadd.f32 %v4316, %v4443
        %v4445 = vand.u32 %v3988, 4294901760
        %v4446 = vsub.f32 %v3988, %v4445
        %4447 = vmatmul.f32.gmra.mxu0 %v4446
        %v4448 = vpop.f32.mrf.mxu0
        %v4449 = vadd.f32 %v4320, %v4448
        %v4450 = vand.u32 %v3989, 4294901760
        %v4451 = vsub.f32 %v3989, %v4450
        %4452 = vmatmul.f32.gmra.mxu0 %v4451
        %v4453 = vpop.f32.mrf.mxu0
        %v4454 = vadd.f32 %v4324, %v4453
        %v4455 = vand.u32 %v3990, 4294901760
        %v4456 = vsub.f32 %v3990, %v4455
        %4457 = vmatmul.f32.gmra.mxu0 %v4456
        %v4458 = vpop.f32.mrf.mxu0
        %v4459 = vadd.f32 %v4328, %v4458
        %v4460 = vand.u32 %v3991, 4294901760
        %v4461 = vsub.f32 %v3991, %v4460
        %4462 = vmatmul.f32.gmra.mxu0 %v4461
        %v4463 = vpop.f32.mrf.mxu0
        %v4464 = vadd.f32 %v4332, %v4463
        %v4465 = vand.u32 %v3992, 4294901760
        %v4466 = vsub.f32 %v3992, %v4465
        %4467 = vmatmul.f32.gmra.mxu0 %v4466
        %v4468 = vpop.f32.mrf.mxu0
        %v4469 = vadd.f32 %v4336, %v4468
        %v4470 = vand.u32 %v3993, 4294901760
        %v4471 = vsub.f32 %v3993, %v4470
        %4472 = vmatmul.f32.gmra.mxu0 %v4471
        %v4473 = vpop.f32.mrf.mxu0
        %v4474 = vadd.f32 %v4340, %v4473
        %v4475 = vand.u32 %v3994, 4294901760
        %v4476 = vsub.f32 %v3994, %v4475
        %4477 = vmatmul.f32.gmra.mxu0 %v4476
        %v4478 = vpop.f32.mrf.mxu0
        %v4479 = vadd.f32 %v4344, %v4478
        %v4480 = vand.u32 %v3995, 4294901760
        %v4481 = vsub.f32 %v3995, %v4480
        %4482 = vmatmul.f32.gmra.mxu0 %v4481
        %v4483 = vpop.f32.mrf.mxu0
        %v4484 = vadd.f32 %v4348, %v4483
        %v4485 = vand.u32 %v3996, 4294901760
        %v4486 = vsub.f32 %v3996, %v4485
        %4487 = vmatmul.f32.gmra.mxu0 %v4486
        %v4488 = vpop.f32.mrf.mxu0
        %v4489 = vadd.f32 %v4352, %v4488
        %v4490 = vand.u32 %v3997, 4294901760
        %v4491 = vsub.f32 %v3997, %v4490
        %4492 = vmatmul.f32.gmra.mxu0 %v4491
        %v4493 = vpop.f32.mrf.mxu0
        %v4494 = vadd.f32 %v4356, %v4493
        %v4495 = vand.u32 %v3998, 4294901760
        %v4496 = vsub.f32 %v3998, %v4495
        %4497 = vmatmul.f32.gmra.mxu0 %v4496
        %v4498 = vpop.f32.mrf.mxu0
        %v4499 = vadd.f32 %v4360, %v4498
        %4500 = vdwg.mxu0
        %v4501 = vand.u32 %v4015, 4294901760
        %4502 = vmatpush.msra.mxu0 %v4501
        %v4503 = vand.u32 %v4014, 4294901760
        %4504 = vmatpush.msra.mxu0 %v4503
        %v4505 = vand.u32 %v4013, 4294901760
        %4506 = vmatpush.msra.mxu0 %v4505
        %v4507 = vand.u32 %v4012, 4294901760
        %4508 = vmatpush.msra.mxu0 %v4507
        %v4509 = vand.u32 %v4011, 4294901760
        %4510 = vmatpush.msra.mxu0 %v4509
        %v4511 = vand.u32 %v4010, 4294901760
        %4512 = vmatpush.msra.mxu0 %v4511
        %v4513 = vand.u32 %v4009, 4294901760
        %4514 = vmatpush.msra.mxu0 %v4513
        %v4515 = vand.u32 %v4008, 4294901760
        %4516 = vmatpush.msra.mxu0 %v4515
        %v4517 = vand.u32 %v4007, 4294901760
        %4518 = vmatpush.msra.mxu0 %v4517
        %v4519 = vand.u32 %v4006, 4294901760
        %4520 = vmatpush.msra.mxu0 %v4519
        %v4521 = vand.u32 %v4005, 4294901760
        %4522 = vmatpush.msra.mxu0 %v4521
        %v4523 = vand.u32 %v4004, 4294901760
        %4524 = vmatpush.msra.mxu0 %v4523
        %v4525 = vand.u32 %v4003, 4294901760
        %4526 = vmatpush.msra.mxu0 %v4525
        %v4527 = vand.u32 %v4002, 4294901760
        %4528 = vmatpush.msra.mxu0 %v4527
        %v4529 = vand.u32 %v4001, 4294901760
        %4530 = vmatpush.msra.mxu0 %v4529
        %v4531 = vand.u32 %v4000, 4294901760
        %4532 = vmatpush.msra.mxu0 %v4531
        %v4533 = vand.u32 %v3981, 4294901760
        %v4534 = vsub.f32 %v3981, %v4533
        %v4535 = vand.u32 %v4534, 4294901760
        %4536 = vmatmul.f32.gmra.mxu0 %v4535
        %v4537 = vpop.f32.mrf.mxu0
        %v4538 = vadd.f32 %v4414, %v4537
        %v4539 = vand.u32 %v3982, 4294901760
        %v4540 = vsub.f32 %v3982, %v4539
        %v4541 = vand.u32 %v4540, 4294901760
        %4542 = vmatmul.f32.gmra.mxu0 %v4541
        %v4543 = vpop.f32.mrf.mxu0
        %v4544 = vadd.f32 %v4419, %v4543
        %v4545 = vand.u32 %v3983, 4294901760
        %v4546 = vsub.f32 %v3983, %v4545
        %v4547 = vand.u32 %v4546, 4294901760
        %4548 = vmatmul.f32.gmra.mxu0 %v4547
        %v4549 = vpop.f32.mrf.mxu0
        %v4550 = vadd.f32 %v4424, %v4549
        %v4551 = vand.u32 %v3984, 4294901760
        %v4552 = vsub.f32 %v3984, %v4551
        %v4553 = vand.u32 %v4552, 4294901760
        %4554 = vmatmul.f32.gmra.mxu0 %v4553
        %v4555 = vpop.f32.mrf.mxu0
        %v4556 = vadd.f32 %v4429, %v4555
        %v4557 = vand.u32 %v3985, 4294901760
        %v4558 = vsub.f32 %v3985, %v4557
        %v4559 = vand.u32 %v4558, 4294901760
        %4560 = vmatmul.f32.gmra.mxu0 %v4559
        %v4561 = vpop.f32.mrf.mxu0
        %v4562 = vadd.f32 %v4434, %v4561
        %v4563 = vand.u32 %v3986, 4294901760
        %v4564 = vsub.f32 %v3986, %v4563
        %v4565 = vand.u32 %v4564, 4294901760
        %4566 = vmatmul.f32.gmra.mxu0 %v4565
        %v4567 = vpop.f32.mrf.mxu0
        %v4568 = vadd.f32 %v4439, %v4567
        %v4569 = vand.u32 %v3987, 4294901760
        %v4570 = vsub.f32 %v3987, %v4569
        %v4571 = vand.u32 %v4570, 4294901760
        %4572 = vmatmul.f32.gmra.mxu0 %v4571
        %v4573 = vpop.f32.mrf.mxu0
        %v4574 = vadd.f32 %v4444, %v4573
        %v4575 = vand.u32 %v3988, 4294901760
        %v4576 = vsub.f32 %v3988, %v4575
        %v4577 = vand.u32 %v4576, 4294901760
        %4578 = vmatmul.f32.gmra.mxu0 %v4577
        %v4579 = vpop.f32.mrf.mxu0
        %v4580 = vadd.f32 %v4449, %v4579
        %v4581 = vand.u32 %v3989, 4294901760
        %v4582 = vsub.f32 %v3989, %v4581
        %v4583 = vand.u32 %v4582, 4294901760
        %4584 = vmatmul.f32.gmra.mxu0 %v4583
        %v4585 = vpop.f32.mrf.mxu0
        %v4586 = vadd.f32 %v4454, %v4585
        %v4587 = vand.u32 %v3990, 4294901760
        %v4588 = vsub.f32 %v3990, %v4587
        %v4589 = vand.u32 %v4588, 4294901760
        %4590 = vmatmul.f32.gmra.mxu0 %v4589
        %v4591 = vpop.f32.mrf.mxu0
        %v4592 = vadd.f32 %v4459, %v4591
        %v4593 = vand.u32 %v3991, 4294901760
        %v4594 = vsub.f32 %v3991, %v4593
        %v4595 = vand.u32 %v4594, 4294901760
        %4596 = vmatmul.f32.gmra.mxu0 %v4595
        %v4597 = vpop.f32.mrf.mxu0
        %v4598 = vadd.f32 %v4464, %v4597
        %v4599 = vand.u32 %v3992, 4294901760
        %v4600 = vsub.f32 %v3992, %v4599
        %v4601 = vand.u32 %v4600, 4294901760
        %4602 = vmatmul.f32.gmra.mxu0 %v4601
        %v4603 = vpop.f32.mrf.mxu0
        %v4604 = vadd.f32 %v4469, %v4603
        %v4605 = vand.u32 %v3993, 4294901760
        %v4606 = vsub.f32 %v3993, %v4605
        %v4607 = vand.u32 %v4606, 4294901760
        %4608 = vmatmul.f32.gmra.mxu0 %v4607
        %v4609 = vpop.f32.mrf.mxu0
        %v4610 = vadd.f32 %v4474, %v4609
        %v4611 = vand.u32 %v3994, 4294901760
        %v4612 = vsub.f32 %v3994, %v4611
        %v4613 = vand.u32 %v4612, 4294901760
        %4614 = vmatmul.f32.gmra.mxu0 %v4613
        %v4615 = vpop.f32.mrf.mxu0
        %v4616 = vadd.f32 %v4479, %v4615
        %v4617 = vand.u32 %v3995, 4294901760
        %v4618 = vsub.f32 %v3995, %v4617
        %v4619 = vand.u32 %v4618, 4294901760
        %4620 = vmatmul.f32.gmra.mxu0 %v4619
        %v4621 = vpop.f32.mrf.mxu0
        %v4622 = vadd.f32 %v4484, %v4621
        %v4623 = vand.u32 %v3996, 4294901760
        %v4624 = vsub.f32 %v3996, %v4623
        %v4625 = vand.u32 %v4624, 4294901760
        %4626 = vmatmul.f32.gmra.mxu0 %v4625
        %v4627 = vpop.f32.mrf.mxu0
        %v4628 = vadd.f32 %v4489, %v4627
        %v4629 = vand.u32 %v3997, 4294901760
        %v4630 = vsub.f32 %v3997, %v4629
        %v4631 = vand.u32 %v4630, 4294901760
        %4632 = vmatmul.f32.gmra.mxu0 %v4631
        %v4633 = vpop.f32.mrf.mxu0
        %v4634 = vadd.f32 %v4494, %v4633
        %v4635 = vand.u32 %v3998, 4294901760
        %v4636 = vsub.f32 %v3998, %v4635
        %v4637 = vand.u32 %v4636, 4294901760
        %4638 = vmatmul.f32.gmra.mxu0 %v4637
        %v4639 = vpop.f32.mrf.mxu0
        %v4640 = vadd.f32 %v4499, %v4639
        %4641 = vdwg.mxu0
        %v4642 = vand.u32 %v4015, 4294901760
        %v4643 = vsub.f32 %v4015, %v4642
        %v4644 = vand.u32 %v4643, 4294901760
        %4645 = vmatpush.msra.mxu0 %v4644
        %v4646 = vand.u32 %v4014, 4294901760
        %v4647 = vsub.f32 %v4014, %v4646
        %v4648 = vand.u32 %v4647, 4294901760
        %4649 = vmatpush.msra.mxu0 %v4648
        %v4650 = vand.u32 %v4013, 4294901760
        %v4651 = vsub.f32 %v4013, %v4650
        %v4652 = vand.u32 %v4651, 4294901760
        %4653 = vmatpush.msra.mxu0 %v4652
        %v4654 = vand.u32 %v4012, 4294901760
        %v4655 = vsub.f32 %v4012, %v4654
        %v4656 = vand.u32 %v4655, 4294901760
        %4657 = vmatpush.msra.mxu0 %v4656
        %v4658 = vand.u32 %v4011, 4294901760
        %v4659 = vsub.f32 %v4011, %v4658
        %v4660 = vand.u32 %v4659, 4294901760
        %4661 = vmatpush.msra.mxu0 %v4660
        %v4662 = vand.u32 %v4010, 4294901760
        %v4663 = vsub.f32 %v4010, %v4662
        %v4664 = vand.u32 %v4663, 4294901760
        %4665 = vmatpush.msra.mxu0 %v4664
        %v4666 = vand.u32 %v4009, 4294901760
        %v4667 = vsub.f32 %v4009, %v4666
        %v4668 = vand.u32 %v4667, 4294901760
        %4669 = vmatpush.msra.mxu0 %v4668
        %v4670 = vand.u32 %v4008, 4294901760
        %v4671 = vsub.f32 %v4008, %v4670
        %v4672 = vand.u32 %v4671, 4294901760
        %4673 = vmatpush.msra.mxu0 %v4672
        %v4674 = vand.u32 %v4007, 4294901760
        %v4675 = vsub.f32 %v4007, %v4674
        %v4676 = vand.u32 %v4675, 4294901760
        %4677 = vmatpush.msra.mxu0 %v4676
        %v4678 = vand.u32 %v4006, 4294901760
        %v4679 = vsub.f32 %v4006, %v4678
        %v4680 = vand.u32 %v4679, 4294901760
        %4681 = vmatpush.msra.mxu0 %v4680
        %v4682 = vand.u32 %v4005, 4294901760
        %v4683 = vsub.f32 %v4005, %v4682
        %v4684 = vand.u32 %v4683, 4294901760
        %4685 = vmatpush.msra.mxu0 %v4684
        %v4686 = vand.u32 %v4004, 4294901760
        %v4687 = vsub.f32 %v4004, %v4686
        %v4688 = vand.u32 %v4687, 4294901760
        %4689 = vmatpush.msra.mxu0 %v4688
        %v4690 = vand.u32 %v4003, 4294901760
        %v4691 = vsub.f32 %v4003, %v4690
        %v4692 = vand.u32 %v4691, 4294901760
        %4693 = vmatpush.msra.mxu0 %v4692
        %v4694 = vand.u32 %v4002, 4294901760
        %v4695 = vsub.f32 %v4002, %v4694
        %v4696 = vand.u32 %v4695, 4294901760
        %4697 = vmatpush.msra.mxu0 %v4696
        %v4698 = vand.u32 %v4001, 4294901760
        %v4699 = vsub.f32 %v4001, %v4698
        %v4700 = vand.u32 %v4699, 4294901760
        %4701 = vmatpush.msra.mxu0 %v4700
        %v4702 = vand.u32 %v4000, 4294901760
        %v4703 = vsub.f32 %v4000, %v4702
        %v4704 = vand.u32 %v4703, 4294901760
        %4705 = vmatpush.msra.mxu0 %v4704
        %v4706 = vand.u32 %v3981, 4294901760
        %4707 = vmatmul.f32.gmra.mxu0 %v4706
        %v4708 = vpop.f32.mrf.mxu0
        %v4709 = vadd.f32 %v4538, %v4708
        %v4710 = vand.u32 %v3982, 4294901760
        %4711 = vmatmul.f32.gmra.mxu0 %v4710
        %v4712 = vpop.f32.mrf.mxu0
        %v4713 = vadd.f32 %v4544, %v4712
        %v4714 = vand.u32 %v3983, 4294901760
        %4715 = vmatmul.f32.gmra.mxu0 %v4714
        %v4716 = vpop.f32.mrf.mxu0
        %v4717 = vadd.f32 %v4550, %v4716
        %v4718 = vand.u32 %v3984, 4294901760
        %4719 = vmatmul.f32.gmra.mxu0 %v4718
        %v4720 = vpop.f32.mrf.mxu0
        %v4721 = vadd.f32 %v4556, %v4720
        %v4722 = vand.u32 %v3985, 4294901760
        %4723 = vmatmul.f32.gmra.mxu0 %v4722
        %v4724 = vpop.f32.mrf.mxu0
        %v4725 = vadd.f32 %v4562, %v4724
        %v4726 = vand.u32 %v3986, 4294901760
        %4727 = vmatmul.f32.gmra.mxu0 %v4726
        %v4728 = vpop.f32.mrf.mxu0
        %v4729 = vadd.f32 %v4568, %v4728
        %v4730 = vand.u32 %v3987, 4294901760
        %4731 = vmatmul.f32.gmra.mxu0 %v4730
        %v4732 = vpop.f32.mrf.mxu0
        %v4733 = vadd.f32 %v4574, %v4732
        %v4734 = vand.u32 %v3988, 4294901760
        %4735 = vmatmul.f32.gmra.mxu0 %v4734
        %v4736 = vpop.f32.mrf.mxu0
        %v4737 = vadd.f32 %v4580, %v4736
        %v4738 = vand.u32 %v3989, 4294901760
        %4739 = vmatmul.f32.gmra.mxu0 %v4738
        %v4740 = vpop.f32.mrf.mxu0
        %v4741 = vadd.f32 %v4586, %v4740
        %v4742 = vand.u32 %v3990, 4294901760
        %4743 = vmatmul.f32.gmra.mxu0 %v4742
        %v4744 = vpop.f32.mrf.mxu0
        %v4745 = vadd.f32 %v4592, %v4744
        %v4746 = vand.u32 %v3991, 4294901760
        %4747 = vmatmul.f32.gmra.mxu0 %v4746
        %v4748 = vpop.f32.mrf.mxu0
        %v4749 = vadd.f32 %v4598, %v4748
        %v4750 = vand.u32 %v3992, 4294901760
        %4751 = vmatmul.f32.gmra.mxu0 %v4750
        %v4752 = vpop.f32.mrf.mxu0
        %v4753 = vadd.f32 %v4604, %v4752
        %v4754 = vand.u32 %v3993, 4294901760
        %4755 = vmatmul.f32.gmra.mxu0 %v4754
        %v4756 = vpop.f32.mrf.mxu0
        %v4757 = vadd.f32 %v4610, %v4756
        %v4758 = vand.u32 %v3994, 4294901760
        %4759 = vmatmul.f32.gmra.mxu0 %v4758
        %v4760 = vpop.f32.mrf.mxu0
        %v4761 = vadd.f32 %v4616, %v4760
        %v4762 = vand.u32 %v3995, 4294901760
        %4763 = vmatmul.f32.gmra.mxu0 %v4762
        %v4764 = vpop.f32.mrf.mxu0
        %v4765 = vadd.f32 %v4622, %v4764
        %v4766 = vand.u32 %v3996, 4294901760
        %4767 = vmatmul.f32.gmra.mxu0 %v4766
        %v4768 = vpop.f32.mrf.mxu0
        %v4769 = vadd.f32 %v4628, %v4768
        %v4770 = vand.u32 %v3997, 4294901760
        %4771 = vmatmul.f32.gmra.mxu0 %v4770
        %v4772 = vpop.f32.mrf.mxu0
        %v4773 = vadd.f32 %v4634, %v4772
        %v4774 = vand.u32 %v3998, 4294901760
        %4775 = vmatmul.f32.gmra.mxu0 %v4774
        %v4776 = vpop.f32.mrf.mxu0
        %v4777 = vadd.f32 %v4640, %v4776
        %4778 = vdwg.mxu0
        %v4779 = vand.u32 %v4015, 4294901760
        %4780 = vmatpush.msra.mxu0 %v4779
        %v4781 = vand.u32 %v4014, 4294901760
        %4782 = vmatpush.msra.mxu0 %v4781
        %v4783 = vand.u32 %v4013, 4294901760
        %4784 = vmatpush.msra.mxu0 %v4783
        %v4785 = vand.u32 %v4012, 4294901760
        %4786 = vmatpush.msra.mxu0 %v4785
        %v4787 = vand.u32 %v4011, 4294901760
        %4788 = vmatpush.msra.mxu0 %v4787
        %v4789 = vand.u32 %v4010, 4294901760
        %4790 = vmatpush.msra.mxu0 %v4789
        %v4791 = vand.u32 %v4009, 4294901760
        %4792 = vmatpush.msra.mxu0 %v4791
        %v4793 = vand.u32 %v4008, 4294901760
        %4794 = vmatpush.msra.mxu0 %v4793
        %v4795 = vand.u32 %v4007, 4294901760
        %4796 = vmatpush.msra.mxu0 %v4795
        %v4797 = vand.u32 %v4006, 4294901760
        %4798 = vmatpush.msra.mxu0 %v4797
        %v4799 = vand.u32 %v4005, 4294901760
        %4800 = vmatpush.msra.mxu0 %v4799
        %v4801 = vand.u32 %v4004, 4294901760
        %4802 = vmatpush.msra.mxu0 %v4801
        %v4803 = vand.u32 %v4003, 4294901760
        %4804 = vmatpush.msra.mxu0 %v4803
        %v4805 = vand.u32 %v4002, 4294901760
        %4806 = vmatpush.msra.mxu0 %v4805
        %v4807 = vand.u32 %v4001, 4294901760
        %4808 = vmatpush.msra.mxu0 %v4807
        %v4809 = vand.u32 %v4000, 4294901760
        %4810 = vmatpush.msra.mxu0 %v4809
        %v4811 = vand.u32 %v3981, 4294901760
        %4812 = vmatmul.f32.gmra.mxu0 %v4811
        %v4813 = vpop.f32.mrf.mxu0
        %v4814 = vadd.f32 %v4709, %v4813
        %v4815 = vand.u32 %v3982, 4294901760
        %4816 = vmatmul.f32.gmra.mxu0 %v4815
        %v4817 = vpop.f32.mrf.mxu0
        %v4818 = vadd.f32 %v4713, %v4817
        %v4819 = vand.u32 %v3983, 4294901760
        %4820 = vmatmul.f32.gmra.mxu0 %v4819
        %v4821 = vpop.f32.mrf.mxu0
        %v4822 = vadd.f32 %v4717, %v4821
        %v4823 = vand.u32 %v3984, 4294901760
        %4824 = vmatmul.f32.gmra.mxu0 %v4823
        %v4825 = vpop.f32.mrf.mxu0
        %v4826 = vadd.f32 %v4721, %v4825
        %v4827 = vand.u32 %v3985, 4294901760
        %4828 = vmatmul.f32.gmra.mxu0 %v4827
        %v4829 = vpop.f32.mrf.mxu0
        %v4830 = vadd.f32 %v4725, %v4829
        %v4831 = vand.u32 %v3986, 4294901760
        %4832 = vmatmul.f32.gmra.mxu0 %v4831
        %v4833 = vpop.f32.mrf.mxu0
        %v4834 = vadd.f32 %v4729, %v4833
        %v4835 = vand.u32 %v3987, 4294901760
        %4836 = vmatmul.f32.gmra.mxu0 %v4835
        %v4837 = vpop.f32.mrf.mxu0
        %v4838 = vadd.f32 %v4733, %v4837
        %v4839 = vand.u32 %v3988, 4294901760
        %4840 = vmatmul.f32.gmra.mxu0 %v4839
        %v4841 = vpop.f32.mrf.mxu0
        %v4842 = vadd.f32 %v4737, %v4841
        %v4843 = vand.u32 %v3989, 4294901760
        %4844 = vmatmul.f32.gmra.mxu0 %v4843
        %v4845 = vpop.f32.mrf.mxu0
        %v4846 = vadd.f32 %v4741, %v4845
        %v4847 = vand.u32 %v3990, 4294901760
        %4848 = vmatmul.f32.gmra.mxu0 %v4847
        %v4849 = vpop.f32.mrf.mxu0
        %v4850 = vadd.f32 %v4745, %v4849
        %v4851 = vand.u32 %v3991, 4294901760
        %4852 = vmatmul.f32.gmra.mxu0 %v4851
        %v4853 = vpop.f32.mrf.mxu0
        %v4854 = vadd.f32 %v4749, %v4853
        %v4855 = vand.u32 %v3992, 4294901760
        %4856 = vmatmul.f32.gmra.mxu0 %v4855
        %v4857 = vpop.f32.mrf.mxu0
        %v4858 = vadd.f32 %v4753, %v4857
        %v4859 = vand.u32 %v3993, 4294901760
        %4860 = vmatmul.f32.gmra.mxu0 %v4859
        %v4861 = vpop.f32.mrf.mxu0
        %v4862 = vadd.f32 %v4757, %v4861
        %v4863 = vand.u32 %v3994, 4294901760
        %4864 = vmatmul.f32.gmra.mxu0 %v4863
        %v4865 = vpop.f32.mrf.mxu0
        %v4866 = vadd.f32 %v4761, %v4865
        %v4867 = vand.u32 %v3995, 4294901760
        %4868 = vmatmul.f32.gmra.mxu0 %v4867
        %v4869 = vpop.f32.mrf.mxu0
        %v4870 = vadd.f32 %v4765, %v4869
        %v4871 = vand.u32 %v3996, 4294901760
        %4872 = vmatmul.f32.gmra.mxu0 %v4871
        %v4873 = vpop.f32.mrf.mxu0
        %v4874 = vadd.f32 %v4769, %v4873
        %v4875 = vand.u32 %v3997, 4294901760
        %4876 = vmatmul.f32.gmra.mxu0 %v4875
        %v4877 = vpop.f32.mrf.mxu0
        %v4878 = vadd.f32 %v4773, %v4877
        %v4879 = vand.u32 %v3998, 4294901760
        %4880 = vmatmul.f32.gmra.mxu0 %v4879
        %v4881 = vpop.f32.mrf.mxu0
        %v4882 = vadd.f32 %v4777, %v4881
        %4883 = vdwg.mxu0
        %v4884 = vadd.f32 %v3963, %v4814
        %v4885 = vadd.f32 %v3964, %v4818
        %v4886 = vadd.f32 %v3965, %v4822
        %v4887 = vadd.f32 %v3966, %v4826
        %v4888 = vadd.f32 %v3967, %v4830
        %v4889 = vadd.f32 %v3968, %v4834
        %v4890 = vadd.f32 %v3969, %v4838
        %v4891 = vadd.f32 %v3970, %v4842
        %v4892 = vadd.f32 %v3971, %v4846
        %v4893 = vadd.f32 %v3972, %v4850
        %v4894 = vadd.f32 %v3973, %v4854
        %v4895 = vadd.f32 %v3974, %v4858
        %v4896 = vadd.f32 %v3975, %v4862
        %v4897 = vadd.f32 %v3976, %v4866
        %v4898 = vadd.f32 %v3977, %v4870
        %v4899 = vadd.f32 %v3978, %v4874
        %v4900 = vadd.f32 %v3979, %v4878
        %v4901 = vadd.f32 %v3980, %v4882
        %v4902 = vld [vmem:[%s333 + $0x14] sm:$0xff]
        %v4903 = vld [vmem:[%s333 + $0x1c] sm:$0xff]
        %v4904 = vld [vmem:[%s333 + $0x24] sm:$0xff]
        %v4905 = vld [vmem:[%s333 + $0x2c] sm:$0xff]
        %v4906 = vld [vmem:[%s333 + $0x34] sm:$0xff]
        %v4907 = vld [vmem:[%s333 + $0x3c] sm:$0xff]
        %v4908 = vld [vmem:[%s333 + $0x44] sm:$0xff]
        %v4909 = vld [vmem:[%s333 + $0x4c] sm:$0xff]
        %v4910 = vld [vmem:[%s333 + $0x54] sm:$0xff]
        %v4911 = vld [vmem:[%s333 + $0x5c] sm:$0xff]
        %v4912 = vld [vmem:[%s333 + $0x64] sm:$0xff]
        %v4913 = vld [vmem:[%s333 + $0x6c] sm:$0xff]
        %v4914 = vld [vmem:[%s333 + $0x74] sm:$0xff]
        %v4915 = vld [vmem:[%s333 + $0x7c] sm:$0xff]
        %v4916 = vld [vmem:[%s333 + $0x84] sm:$0xff]
        %v4917 = vld [vmem:[%s333 + $0x8c] sm:$0xff]
        %v4918 = vld [vmem:[%s333 + $0x94] sm:$0xff]
        %v4919 = vld [vmem:[%s333 + $0x9c] sm:$0xff]
        %s4920 = scalar_lea.vmem %s1, 640
        %v4921 = vld [vmem:[%s4920] sm:$0xff]
        %v4922 = vld [vmem:[%s4920 + $0x8] sm:$0xff]
        %v4923 = vld [vmem:[%s4920 + $0x10] sm:$0xff]
        %v4924 = vld [vmem:[%s4920 + $0x18] sm:$0xff]
        %v4925 = vld [vmem:[%s4920 + $0x20] sm:$0xff]
        %v4926 = vld [vmem:[%s4920 + $0x28] sm:$0xff]
        %v4927 = vld [vmem:[%s4920 + $0x30] sm:$0xff]
        %v4928 = vld [vmem:[%s4920 + $0x38] sm:$0xff]
        %v4929 = vld [vmem:[%s4920 + $0x40] sm:$0xff]
        %v4930 = vld [vmem:[%s4920 + $0x48] sm:$0xff]
        %v4931 = vld [vmem:[%s4920 + $0x50] sm:$0xff]
        %v4932 = vld [vmem:[%s4920 + $0x58] sm:$0xff]
        %v4933 = vld [vmem:[%s4920 + $0x60] sm:$0xff]
        %v4934 = vld [vmem:[%s4920 + $0x68] sm:$0xff]
        %v4935 = vld [vmem:[%s4920 + $0x70] sm:$0xff]
        %v4936 = vld [vmem:[%s4920 + $0x78] sm:$0xff]
        %v4937 = vand.u32 %v4936, 4294901760
        %4938 = vmatpush.msra.mxu0 %v4937
        %v4939 = vand.u32 %v4935, 4294901760
        %4940 = vmatpush.msra.mxu0 %v4939
        %v4941 = vand.u32 %v4934, 4294901760
        %4942 = vmatpush.msra.mxu0 %v4941
        %v4943 = vand.u32 %v4933, 4294901760
        %4944 = vmatpush.msra.mxu0 %v4943
        %v4945 = vand.u32 %v4932, 4294901760
        %4946 = vmatpush.msra.mxu0 %v4945
        %v4947 = vand.u32 %v4931, 4294901760
        %4948 = vmatpush.msra.mxu0 %v4947
        %v4949 = vand.u32 %v4930, 4294901760
        %4950 = vmatpush.msra.mxu0 %v4949
        %v4951 = vand.u32 %v4929, 4294901760
        %4952 = vmatpush.msra.mxu0 %v4951
        %v4953 = vand.u32 %v4928, 4294901760
        %4954 = vmatpush.msra.mxu0 %v4953
        %v4955 = vand.u32 %v4927, 4294901760
        %4956 = vmatpush.msra.mxu0 %v4955
        %v4957 = vand.u32 %v4926, 4294901760
        %4958 = vmatpush.msra.mxu0 %v4957
        %v4959 = vand.u32 %v4925, 4294901760
        %4960 = vmatpush.msra.mxu0 %v4959
        %v4961 = vand.u32 %v4924, 4294901760
        %4962 = vmatpush.msra.mxu0 %v4961
        %v4963 = vand.u32 %v4923, 4294901760
        %4964 = vmatpush.msra.mxu0 %v4963
        %v4965 = vand.u32 %v4922, 4294901760
        %4966 = vmatpush.msra.mxu0 %v4965
        %v4967 = vand.u32 %v4921, 4294901760
        %4968 = vmatpush.msra.mxu0 %v4967
        %v4969 = vand.u32 %v4902, 4294901760
        %v4970 = vsub.f32 %v4902, %v4969
        %v4971 = vand.u32 %v4970, 4294901760
        %v4972 = vsub.f32 %v4970, %v4971
        %v4973 = vand.u32 %v4972, 4294901760
        %4974 = vmatmul.f32.gmra.mxu0 %v4973
        %v4975 = vpop.f32.mrf.mxu0
        %v4976 = vadd.f32 0.0, %v4975
        %v4977 = vand.u32 %v4903, 4294901760
        %v4978 = vsub.f32 %v4903, %v4977
        %v4979 = vand.u32 %v4978, 4294901760
        %v4980 = vsub.f32 %v4978, %v4979
        %v4981 = vand.u32 %v4980, 4294901760
        %4982 = vmatmul.f32.gmra.mxu0 %v4981
        %v4983 = vpop.f32.mrf.mxu0
        %v4984 = vadd.f32 0.0, %v4983
        %v4985 = vand.u32 %v4904, 4294901760
        %v4986 = vsub.f32 %v4904, %v4985
        %v4987 = vand.u32 %v4986, 4294901760
        %v4988 = vsub.f32 %v4986, %v4987
        %v4989 = vand.u32 %v4988, 4294901760
        %4990 = vmatmul.f32.gmra.mxu0 %v4989
        %v4991 = vpop.f32.mrf.mxu0
        %v4992 = vadd.f32 0.0, %v4991
        %v4993 = vand.u32 %v4905, 4294901760
        %v4994 = vsub.f32 %v4905, %v4993
        %v4995 = vand.u32 %v4994, 4294901760
        %v4996 = vsub.f32 %v4994, %v4995
        %v4997 = vand.u32 %v4996, 4294901760
        %4998 = vmatmul.f32.gmra.mxu0 %v4997
        %v4999 = vpop.f32.mrf.mxu0
        %v5000 = vadd.f32 0.0, %v4999
        %v5001 = vand.u32 %v4906, 4294901760
        %v5002 = vsub.f32 %v4906, %v5001
        %v5003 = vand.u32 %v5002, 4294901760
        %v5004 = vsub.f32 %v5002, %v5003
        %v5005 = vand.u32 %v5004, 4294901760
        %5006 = vmatmul.f32.gmra.mxu0 %v5005
        %v5007 = vpop.f32.mrf.mxu0
        %v5008 = vadd.f32 0.0, %v5007
        %v5009 = vand.u32 %v4907, 4294901760
        %v5010 = vsub.f32 %v4907, %v5009
        %v5011 = vand.u32 %v5010, 4294901760
        %v5012 = vsub.f32 %v5010, %v5011
        %v5013 = vand.u32 %v5012, 4294901760
        %5014 = vmatmul.f32.gmra.mxu0 %v5013
        %v5015 = vpop.f32.mrf.mxu0
        %v5016 = vadd.f32 0.0, %v5015
        %v5017 = vand.u32 %v4908, 4294901760
        %v5018 = vsub.f32 %v4908, %v5017
        %v5019 = vand.u32 %v5018, 4294901760
        %v5020 = vsub.f32 %v5018, %v5019
        %v5021 = vand.u32 %v5020, 4294901760
        %5022 = vmatmul.f32.gmra.mxu0 %v5021
        %v5023 = vpop.f32.mrf.mxu0
        %v5024 = vadd.f32 0.0, %v5023
        %v5025 = vand.u32 %v4909, 4294901760
        %v5026 = vsub.f32 %v4909, %v5025
        %v5027 = vand.u32 %v5026, 4294901760
        %v5028 = vsub.f32 %v5026, %v5027
        %v5029 = vand.u32 %v5028, 4294901760
        %5030 = vmatmul.f32.gmra.mxu0 %v5029
        %v5031 = vpop.f32.mrf.mxu0
        %v5032 = vadd.f32 0.0, %v5031
        %v5033 = vand.u32 %v4910, 4294901760
        %v5034 = vsub.f32 %v4910, %v5033
        %v5035 = vand.u32 %v5034, 4294901760
        %v5036 = vsub.f32 %v5034, %v5035
        %v5037 = vand.u32 %v5036, 4294901760
        %5038 = vmatmul.f32.gmra.mxu0 %v5037
        %v5039 = vpop.f32.mrf.mxu0
        %v5040 = vadd.f32 0.0, %v5039
        %v5041 = vand.u32 %v4911, 4294901760
        %v5042 = vsub.f32 %v4911, %v5041
        %v5043 = vand.u32 %v5042, 4294901760
        %v5044 = vsub.f32 %v5042, %v5043
        %v5045 = vand.u32 %v5044, 4294901760
        %5046 = vmatmul.f32.gmra.mxu0 %v5045
        %v5047 = vpop.f32.mrf.mxu0
        %v5048 = vadd.f32 0.0, %v5047
        %v5049 = vand.u32 %v4912, 4294901760
        %v5050 = vsub.f32 %v4912, %v5049
        %v5051 = vand.u32 %v5050, 4294901760
        %v5052 = vsub.f32 %v5050, %v5051
        %v5053 = vand.u32 %v5052, 4294901760
        %5054 = vmatmul.f32.gmra.mxu0 %v5053
        %v5055 = vpop.f32.mrf.mxu0
        %v5056 = vadd.f32 0.0, %v5055
        %v5057 = vand.u32 %v4913, 4294901760
        %v5058 = vsub.f32 %v4913, %v5057
        %v5059 = vand.u32 %v5058, 4294901760
        %v5060 = vsub.f32 %v5058, %v5059
        %v5061 = vand.u32 %v5060, 4294901760
        %5062 = vmatmul.f32.gmra.mxu0 %v5061
        %v5063 = vpop.f32.mrf.mxu0
        %v5064 = vadd.f32 0.0, %v5063
        %v5065 = vand.u32 %v4914, 4294901760
        %v5066 = vsub.f32 %v4914, %v5065
        %v5067 = vand.u32 %v5066, 4294901760
        %v5068 = vsub.f32 %v5066, %v5067
        %v5069 = vand.u32 %v5068, 4294901760
        %5070 = vmatmul.f32.gmra.mxu0 %v5069
        %v5071 = vpop.f32.mrf.mxu0
        %v5072 = vadd.f32 0.0, %v5071
        %v5073 = vand.u32 %v4915, 4294901760
        %v5074 = vsub.f32 %v4915, %v5073
        %v5075 = vand.u32 %v5074, 4294901760
        %v5076 = vsub.f32 %v5074, %v5075
        %v5077 = vand.u32 %v5076, 4294901760
        %5078 = vmatmul.f32.gmra.mxu0 %v5077
        %v5079 = vpop.f32.mrf.mxu0
        %v5080 = vadd.f32 0.0, %v5079
        %v5081 = vand.u32 %v4916, 4294901760
        %v5082 = vsub.f32 %v4916, %v5081
        %v5083 = vand.u32 %v5082, 4294901760
        %v5084 = vsub.f32 %v5082, %v5083
        %v5085 = vand.u32 %v5084, 4294901760
        %5086 = vmatmul.f32.gmra.mxu0 %v5085
        %v5087 = vpop.f32.mrf.mxu0
        %v5088 = vadd.f32 0.0, %v5087
        %v5089 = vand.u32 %v4917, 4294901760
        %v5090 = vsub.f32 %v4917, %v5089
        %v5091 = vand.u32 %v5090, 4294901760
        %v5092 = vsub.f32 %v5090, %v5091
        %v5093 = vand.u32 %v5092, 4294901760
        %5094 = vmatmul.f32.gmra.mxu0 %v5093
        %v5095 = vpop.f32.mrf.mxu0
        %v5096 = vadd.f32 0.0, %v5095
        %v5097 = vand.u32 %v4918, 4294901760
        %v5098 = vsub.f32 %v4918, %v5097
        %v5099 = vand.u32 %v5098, 4294901760
        %v5100 = vsub.f32 %v5098, %v5099
        %v5101 = vand.u32 %v5100, 4294901760
        %5102 = vmatmul.f32.gmra.mxu0 %v5101
        %v5103 = vpop.f32.mrf.mxu0
        %v5104 = vadd.f32 0.0, %v5103
        %v5105 = vand.u32 %v4919, 4294901760
        %v5106 = vsub.f32 %v4919, %v5105
        %v5107 = vand.u32 %v5106, 4294901760
        %v5108 = vsub.f32 %v5106, %v5107
        %v5109 = vand.u32 %v5108, 4294901760
        %5110 = vmatmul.f32.gmra.mxu0 %v5109
        %v5111 = vpop.f32.mrf.mxu0
        %v5112 = vadd.f32 0.0, %v5111
        %5113 = vdwg.mxu0
        %v5114 = vand.u32 %v4936, 4294901760
        %v5115 = vsub.f32 %v4936, %v5114
        %v5116 = vand.u32 %v5115, 4294901760
        %v5117 = vsub.f32 %v5115, %v5116
        %v5118 = vand.u32 %v5117, 4294901760
        %5119 = vmatpush.msra.mxu0 %v5118
        %v5120 = vand.u32 %v4935, 4294901760
        %v5121 = vsub.f32 %v4935, %v5120
        %v5122 = vand.u32 %v5121, 4294901760
        %v5123 = vsub.f32 %v5121, %v5122
        %v5124 = vand.u32 %v5123, 4294901760
        %5125 = vmatpush.msra.mxu0 %v5124
        %v5126 = vand.u32 %v4934, 4294901760
        %v5127 = vsub.f32 %v4934, %v5126
        %v5128 = vand.u32 %v5127, 4294901760
        %v5129 = vsub.f32 %v5127, %v5128
        %v5130 = vand.u32 %v5129, 4294901760
        %5131 = vmatpush.msra.mxu0 %v5130
        %v5132 = vand.u32 %v4933, 4294901760
        %v5133 = vsub.f32 %v4933, %v5132
        %v5134 = vand.u32 %v5133, 4294901760
        %v5135 = vsub.f32 %v5133, %v5134
        %v5136 = vand.u32 %v5135, 4294901760
        %5137 = vmatpush.msra.mxu0 %v5136
        %v5138 = vand.u32 %v4932, 4294901760
        %v5139 = vsub.f32 %v4932, %v5138
        %v5140 = vand.u32 %v5139, 4294901760
        %v5141 = vsub.f32 %v5139, %v5140
        %v5142 = vand.u32 %v5141, 4294901760
        %5143 = vmatpush.msra.mxu0 %v5142
        %v5144 = vand.u32 %v4931, 4294901760
        %v5145 = vsub.f32 %v4931, %v5144
        %v5146 = vand.u32 %v5145, 4294901760
        %v5147 = vsub.f32 %v5145, %v5146
        %v5148 = vand.u32 %v5147, 4294901760
        %5149 = vmatpush.msra.mxu0 %v5148
        %v5150 = vand.u32 %v4930, 4294901760
        %v5151 = vsub.f32 %v4930, %v5150
        %v5152 = vand.u32 %v5151, 4294901760
        %v5153 = vsub.f32 %v5151, %v5152
        %v5154 = vand.u32 %v5153, 4294901760
        %5155 = vmatpush.msra.mxu0 %v5154
        %v5156 = vand.u32 %v4929, 4294901760
        %v5157 = vsub.f32 %v4929, %v5156
        %v5158 = vand.u32 %v5157, 4294901760
        %v5159 = vsub.f32 %v5157, %v5158
        %v5160 = vand.u32 %v5159, 4294901760
        %5161 = vmatpush.msra.mxu0 %v5160
        %v5162 = vand.u32 %v4928, 4294901760
        %v5163 = vsub.f32 %v4928, %v5162
        %v5164 = vand.u32 %v5163, 4294901760
        %v5165 = vsub.f32 %v5163, %v5164
        %v5166 = vand.u32 %v5165, 4294901760
        %5167 = vmatpush.msra.mxu0 %v5166
        %v5168 = vand.u32 %v4927, 4294901760
        %v5169 = vsub.f32 %v4927, %v5168
        %v5170 = vand.u32 %v5169, 4294901760
        %v5171 = vsub.f32 %v5169, %v5170
        %v5172 = vand.u32 %v5171, 4294901760
        %5173 = vmatpush.msra.mxu0 %v5172
        %v5174 = vand.u32 %v4926, 4294901760
        %v5175 = vsub.f32 %v4926, %v5174
        %v5176 = vand.u32 %v5175, 4294901760
        %v5177 = vsub.f32 %v5175, %v5176
        %v5178 = vand.u32 %v5177, 4294901760
        %5179 = vmatpush.msra.mxu0 %v5178
        %v5180 = vand.u32 %v4925, 4294901760
        %v5181 = vsub.f32 %v4925, %v5180
        %v5182 = vand.u32 %v5181, 4294901760
        %v5183 = vsub.f32 %v5181, %v5182
        %v5184 = vand.u32 %v5183, 4294901760
        %5185 = vmatpush.msra.mxu0 %v5184
        %v5186 = vand.u32 %v4924, 4294901760
        %v5187 = vsub.f32 %v4924, %v5186
        %v5188 = vand.u32 %v5187, 4294901760
        %v5189 = vsub.f32 %v5187, %v5188
        %v5190 = vand.u32 %v5189, 4294901760
        %5191 = vmatpush.msra.mxu0 %v5190
        %v5192 = vand.u32 %v4923, 4294901760
        %v5193 = vsub.f32 %v4923, %v5192
        %v5194 = vand.u32 %v5193, 4294901760
        %v5195 = vsub.f32 %v5193, %v5194
        %v5196 = vand.u32 %v5195, 4294901760
        %5197 = vmatpush.msra.mxu0 %v5196
        %v5198 = vand.u32 %v4922, 4294901760
        %v5199 = vsub.f32 %v4922, %v5198
        %v5200 = vand.u32 %v5199, 4294901760
        %v5201 = vsub.f32 %v5199, %v5200
        %v5202 = vand.u32 %v5201, 4294901760
        %5203 = vmatpush.msra.mxu0 %v5202
        %v5204 = vand.u32 %v4921, 4294901760
        %v5205 = vsub.f32 %v4921, %v5204
        %v5206 = vand.u32 %v5205, 4294901760
        %v5207 = vsub.f32 %v5205, %v5206
        %v5208 = vand.u32 %v5207, 4294901760
        %5209 = vmatpush.msra.mxu0 %v5208
        %v5210 = vand.u32 %v4902, 4294901760
        %5211 = vmatmul.f32.gmra.mxu0 %v5210
        %v5212 = vpop.f32.mrf.mxu0
        %v5213 = vadd.f32 %v4976, %v5212
        %v5214 = vand.u32 %v4903, 4294901760
        %5215 = vmatmul.f32.gmra.mxu0 %v5214
        %v5216 = vpop.f32.mrf.mxu0
        %v5217 = vadd.f32 %v4984, %v5216
        %v5218 = vand.u32 %v4904, 4294901760
        %5219 = vmatmul.f32.gmra.mxu0 %v5218
        %v5220 = vpop.f32.mrf.mxu0
        %v5221 = vadd.f32 %v4992, %v5220
        %v5222 = vand.u32 %v4905, 4294901760
        %5223 = vmatmul.f32.gmra.mxu0 %v5222
        %v5224 = vpop.f32.mrf.mxu0
        %v5225 = vadd.f32 %v5000, %v5224
        %v5226 = vand.u32 %v4906, 4294901760
        %5227 = vmatmul.f32.gmra.mxu0 %v5226
        %v5228 = vpop.f32.mrf.mxu0
        %v5229 = vadd.f32 %v5008, %v5228
        %v5230 = vand.u32 %v4907, 4294901760
        %5231 = vmatmul.f32.gmra.mxu0 %v5230
        %v5232 = vpop.f32.mrf.mxu0
        %v5233 = vadd.f32 %v5016, %v5232
        %v5234 = vand.u32 %v4908, 4294901760
        %5235 = vmatmul.f32.gmra.mxu0 %v5234
        %v5236 = vpop.f32.mrf.mxu0
        %v5237 = vadd.f32 %v5024, %v5236
        %v5238 = vand.u32 %v4909, 4294901760
        %5239 = vmatmul.f32.gmra.mxu0 %v5238
        %v5240 = vpop.f32.mrf.mxu0
        %v5241 = vadd.f32 %v5032, %v5240
        %v5242 = vand.u32 %v4910, 4294901760
        %5243 = vmatmul.f32.gmra.mxu0 %v5242
        %v5244 = vpop.f32.mrf.mxu0
        %v5245 = vadd.f32 %v5040, %v5244
        %v5246 = vand.u32 %v4911, 4294901760
        %5247 = vmatmul.f32.gmra.mxu0 %v5246
        %v5248 = vpop.f32.mrf.mxu0
        %v5249 = vadd.f32 %v5048, %v5248
        %v5250 = vand.u32 %v4912, 4294901760
        %5251 = vmatmul.f32.gmra.mxu0 %v5250
        %v5252 = vpop.f32.mrf.mxu0
        %v5253 = vadd.f32 %v5056, %v5252
        %v5254 = vand.u32 %v4913, 4294901760
        %5255 = vmatmul.f32.gmra.mxu0 %v5254
        %v5256 = vpop.f32.mrf.mxu0
        %v5257 = vadd.f32 %v5064, %v5256
        %v5258 = vand.u32 %v4914, 4294901760
        %5259 = vmatmul.f32.gmra.mxu0 %v5258
        %v5260 = vpop.f32.mrf.mxu0
        %v5261 = vadd.f32 %v5072, %v5260
        %v5262 = vand.u32 %v4915, 4294901760
        %5263 = vmatmul.f32.gmra.mxu0 %v5262
        %v5264 = vpop.f32.mrf.mxu0
        %v5265 = vadd.f32 %v5080, %v5264
        %v5266 = vand.u32 %v4916, 4294901760
        %5267 = vmatmul.f32.gmra.mxu0 %v5266
        %v5268 = vpop.f32.mrf.mxu0
        %v5269 = vadd.f32 %v5088, %v5268
        %v5270 = vand.u32 %v4917, 4294901760
        %5271 = vmatmul.f32.gmra.mxu0 %v5270
        %v5272 = vpop.f32.mrf.mxu0
        %v5273 = vadd.f32 %v5096, %v5272
        %v5274 = vand.u32 %v4918, 4294901760
        %5275 = vmatmul.f32.gmra.mxu0 %v5274
        %v5276 = vpop.f32.mrf.mxu0
        %v5277 = vadd.f32 %v5104, %v5276
        %v5278 = vand.u32 %v4919, 4294901760
        %5279 = vmatmul.f32.gmra.mxu0 %v5278
        %v5280 = vpop.f32.mrf.mxu0
        %v5281 = vadd.f32 %v5112, %v5280
        %5282 = vdwg.mxu0
        %v5283 = vand.u32 %v4936, 4294901760
        %v5284 = vsub.f32 %v4936, %v5283
        %5285 = vmatpush.msra.mxu0 %v5284
        %v5286 = vand.u32 %v4935, 4294901760
        %v5287 = vsub.f32 %v4935, %v5286
        %5288 = vmatpush.msra.mxu0 %v5287
        %v5289 = vand.u32 %v4934, 4294901760
        %v5290 = vsub.f32 %v4934, %v5289
        %5291 = vmatpush.msra.mxu0 %v5290
        %v5292 = vand.u32 %v4933, 4294901760
        %v5293 = vsub.f32 %v4933, %v5292
        %5294 = vmatpush.msra.mxu0 %v5293
        %v5295 = vand.u32 %v4932, 4294901760
        %v5296 = vsub.f32 %v4932, %v5295
        %5297 = vmatpush.msra.mxu0 %v5296
        %v5298 = vand.u32 %v4931, 4294901760
        %v5299 = vsub.f32 %v4931, %v5298
        %5300 = vmatpush.msra.mxu0 %v5299
        %v5301 = vand.u32 %v4930, 4294901760
        %v5302 = vsub.f32 %v4930, %v5301
        %5303 = vmatpush.msra.mxu0 %v5302
        %v5304 = vand.u32 %v4929, 4294901760
        %v5305 = vsub.f32 %v4929, %v5304
        %5306 = vmatpush.msra.mxu0 %v5305
        %v5307 = vand.u32 %v4928, 4294901760
        %v5308 = vsub.f32 %v4928, %v5307
        %5309 = vmatpush.msra.mxu0 %v5308
        %v5310 = vand.u32 %v4927, 4294901760
        %v5311 = vsub.f32 %v4927, %v5310
        %5312 = vmatpush.msra.mxu0 %v5311
        %v5313 = vand.u32 %v4926, 4294901760
        %v5314 = vsub.f32 %v4926, %v5313
        %5315 = vmatpush.msra.mxu0 %v5314
        %v5316 = vand.u32 %v4925, 4294901760
        %v5317 = vsub.f32 %v4925, %v5316
        %5318 = vmatpush.msra.mxu0 %v5317
        %v5319 = vand.u32 %v4924, 4294901760
        %v5320 = vsub.f32 %v4924, %v5319
        %5321 = vmatpush.msra.mxu0 %v5320
        %v5322 = vand.u32 %v4923, 4294901760
        %v5323 = vsub.f32 %v4923, %v5322
        %5324 = vmatpush.msra.mxu0 %v5323
        %v5325 = vand.u32 %v4922, 4294901760
        %v5326 = vsub.f32 %v4922, %v5325
        %5327 = vmatpush.msra.mxu0 %v5326
        %v5328 = vand.u32 %v4921, 4294901760
        %v5329 = vsub.f32 %v4921, %v5328
        %5330 = vmatpush.msra.mxu0 %v5329
        %v5331 = vand.u32 %v4902, 4294901760
        %v5332 = vsub.f32 %v4902, %v5331
        %5333 = vmatmul.f32.gmra.mxu0 %v5332
        %v5334 = vpop.f32.mrf.mxu0
        %v5335 = vadd.f32 %v5213, %v5334
        %v5336 = vand.u32 %v4903, 4294901760
        %v5337 = vsub.f32 %v4903, %v5336
        %5338 = vmatmul.f32.gmra.mxu0 %v5337
        %v5339 = vpop.f32.mrf.mxu0
        %v5340 = vadd.f32 %v5217, %v5339
        %v5341 = vand.u32 %v4904, 4294901760
        %v5342 = vsub.f32 %v4904, %v5341
        %5343 = vmatmul.f32.gmra.mxu0 %v5342
        %v5344 = vpop.f32.mrf.mxu0
        %v5345 = vadd.f32 %v5221, %v5344
        %v5346 = vand.u32 %v4905, 4294901760
        %v5347 = vsub.f32 %v4905, %v5346
        %5348 = vmatmul.f32.gmra.mxu0 %v5347
        %v5349 = vpop.f32.mrf.mxu0
        %v5350 = vadd.f32 %v5225, %v5349
        %v5351 = vand.u32 %v4906, 4294901760
        %v5352 = vsub.f32 %v4906, %v5351
        %5353 = vmatmul.f32.gmra.mxu0 %v5352
        %v5354 = vpop.f32.mrf.mxu0
        %v5355 = vadd.f32 %v5229, %v5354
        %v5356 = vand.u32 %v4907, 4294901760
        %v5357 = vsub.f32 %v4907, %v5356
        %5358 = vmatmul.f32.gmra.mxu0 %v5357
        %v5359 = vpop.f32.mrf.mxu0
        %v5360 = vadd.f32 %v5233, %v5359
        %v5361 = vand.u32 %v4908, 4294901760
        %v5362 = vsub.f32 %v4908, %v5361
        %5363 = vmatmul.f32.gmra.mxu0 %v5362
        %v5364 = vpop.f32.mrf.mxu0
        %v5365 = vadd.f32 %v5237, %v5364
        %v5366 = vand.u32 %v4909, 4294901760
        %v5367 = vsub.f32 %v4909, %v5366
        %5368 = vmatmul.f32.gmra.mxu0 %v5367
        %v5369 = vpop.f32.mrf.mxu0
        %v5370 = vadd.f32 %v5241, %v5369
        %v5371 = vand.u32 %v4910, 4294901760
        %v5372 = vsub.f32 %v4910, %v5371
        %5373 = vmatmul.f32.gmra.mxu0 %v5372
        %v5374 = vpop.f32.mrf.mxu0
        %v5375 = vadd.f32 %v5245, %v5374
        %v5376 = vand.u32 %v4911, 4294901760
        %v5377 = vsub.f32 %v4911, %v5376
        %5378 = vmatmul.f32.gmra.mxu0 %v5377
        %v5379 = vpop.f32.mrf.mxu0
        %v5380 = vadd.f32 %v5249, %v5379
        %v5381 = vand.u32 %v4912, 4294901760
        %v5382 = vsub.f32 %v4912, %v5381
        %5383 = vmatmul.f32.gmra.mxu0 %v5382
        %v5384 = vpop.f32.mrf.mxu0
        %v5385 = vadd.f32 %v5253, %v5384
        %v5386 = vand.u32 %v4913, 4294901760
        %v5387 = vsub.f32 %v4913, %v5386
        %5388 = vmatmul.f32.gmra.mxu0 %v5387
        %v5389 = vpop.f32.mrf.mxu0
        %v5390 = vadd.f32 %v5257, %v5389
        %v5391 = vand.u32 %v4914, 4294901760
        %v5392 = vsub.f32 %v4914, %v5391
        %5393 = vmatmul.f32.gmra.mxu0 %v5392
        %v5394 = vpop.f32.mrf.mxu0
        %v5395 = vadd.f32 %v5261, %v5394
        %v5396 = vand.u32 %v4915, 4294901760
        %v5397 = vsub.f32 %v4915, %v5396
        %5398 = vmatmul.f32.gmra.mxu0 %v5397
        %v5399 = vpop.f32.mrf.mxu0
        %v5400 = vadd.f32 %v5265, %v5399
        %v5401 = vand.u32 %v4916, 4294901760
        %v5402 = vsub.f32 %v4916, %v5401
        %5403 = vmatmul.f32.gmra.mxu0 %v5402
        %v5404 = vpop.f32.mrf.mxu0
        %v5405 = vadd.f32 %v5269, %v5404
        %v5406 = vand.u32 %v4917, 4294901760
        %v5407 = vsub.f32 %v4917, %v5406
        %5408 = vmatmul.f32.gmra.mxu0 %v5407
        %v5409 = vpop.f32.mrf.mxu0
        %v5410 = vadd.f32 %v5273, %v5409
        %v5411 = vand.u32 %v4918, 4294901760
        %v5412 = vsub.f32 %v4918, %v5411
        %5413 = vmatmul.f32.gmra.mxu0 %v5412
        %v5414 = vpop.f32.mrf.mxu0
        %v5415 = vadd.f32 %v5277, %v5414
        %v5416 = vand.u32 %v4919, 4294901760
        %v5417 = vsub.f32 %v4919, %v5416
        %5418 = vmatmul.f32.gmra.mxu0 %v5417
        %v5419 = vpop.f32.mrf.mxu0
        %v5420 = vadd.f32 %v5281, %v5419
        %5421 = vdwg.mxu0
        %v5422 = vand.u32 %v4936, 4294901760
        %5423 = vmatpush.msra.mxu0 %v5422
        %v5424 = vand.u32 %v4935, 4294901760
        %5425 = vmatpush.msra.mxu0 %v5424
        %v5426 = vand.u32 %v4934, 4294901760
        %5427 = vmatpush.msra.mxu0 %v5426
        %v5428 = vand.u32 %v4933, 4294901760
        %5429 = vmatpush.msra.mxu0 %v5428
        %v5430 = vand.u32 %v4932, 4294901760
        %5431 = vmatpush.msra.mxu0 %v5430
        %v5432 = vand.u32 %v4931, 4294901760
        %5433 = vmatpush.msra.mxu0 %v5432
        %v5434 = vand.u32 %v4930, 4294901760
        %5435 = vmatpush.msra.mxu0 %v5434
        %v5436 = vand.u32 %v4929, 4294901760
        %5437 = vmatpush.msra.mxu0 %v5436
        %v5438 = vand.u32 %v4928, 4294901760
        %5439 = vmatpush.msra.mxu0 %v5438
        %v5440 = vand.u32 %v4927, 4294901760
        %5441 = vmatpush.msra.mxu0 %v5440
        %v5442 = vand.u32 %v4926, 4294901760
        %5443 = vmatpush.msra.mxu0 %v5442
        %v5444 = vand.u32 %v4925, 4294901760
        %5445 = vmatpush.msra.mxu0 %v5444
        %v5446 = vand.u32 %v4924, 4294901760
        %5447 = vmatpush.msra.mxu0 %v5446
        %v5448 = vand.u32 %v4923, 4294901760
        %5449 = vmatpush.msra.mxu0 %v5448
        %v5450 = vand.u32 %v4922, 4294901760
        %5451 = vmatpush.msra.mxu0 %v5450
        %v5452 = vand.u32 %v4921, 4294901760
        %5453 = vmatpush.msra.mxu0 %v5452
        %v5454 = vand.u32 %v4902, 4294901760
        %v5455 = vsub.f32 %v4902, %v5454
        %v5456 = vand.u32 %v5455, 4294901760
        %5457 = vmatmul.f32.gmra.mxu0 %v5456
        %v5458 = vpop.f32.mrf.mxu0
        %v5459 = vadd.f32 %v5335, %v5458
        %v5460 = vand.u32 %v4903, 4294901760
        %v5461 = vsub.f32 %v4903, %v5460
        %v5462 = vand.u32 %v5461, 4294901760
        %5463 = vmatmul.f32.gmra.mxu0 %v5462
        %v5464 = vpop.f32.mrf.mxu0
        %v5465 = vadd.f32 %v5340, %v5464
        %v5466 = vand.u32 %v4904, 4294901760
        %v5467 = vsub.f32 %v4904, %v5466
        %v5468 = vand.u32 %v5467, 4294901760
        %5469 = vmatmul.f32.gmra.mxu0 %v5468
        %v5470 = vpop.f32.mrf.mxu0
        %v5471 = vadd.f32 %v5345, %v5470
        %v5472 = vand.u32 %v4905, 4294901760
        %v5473 = vsub.f32 %v4905, %v5472
        %v5474 = vand.u32 %v5473, 4294901760
        %5475 = vmatmul.f32.gmra.mxu0 %v5474
        %v5476 = vpop.f32.mrf.mxu0
        %v5477 = vadd.f32 %v5350, %v5476
        %v5478 = vand.u32 %v4906, 4294901760
        %v5479 = vsub.f32 %v4906, %v5478
        %v5480 = vand.u32 %v5479, 4294901760
        %5481 = vmatmul.f32.gmra.mxu0 %v5480
        %v5482 = vpop.f32.mrf.mxu0
        %v5483 = vadd.f32 %v5355, %v5482
        %v5484 = vand.u32 %v4907, 4294901760
        %v5485 = vsub.f32 %v4907, %v5484
        %v5486 = vand.u32 %v5485, 4294901760
        %5487 = vmatmul.f32.gmra.mxu0 %v5486
        %v5488 = vpop.f32.mrf.mxu0
        %v5489 = vadd.f32 %v5360, %v5488
        %v5490 = vand.u32 %v4908, 4294901760
        %v5491 = vsub.f32 %v4908, %v5490
        %v5492 = vand.u32 %v5491, 4294901760
        %5493 = vmatmul.f32.gmra.mxu0 %v5492
        %v5494 = vpop.f32.mrf.mxu0
        %v5495 = vadd.f32 %v5365, %v5494
        %v5496 = vand.u32 %v4909, 4294901760
        %v5497 = vsub.f32 %v4909, %v5496
        %v5498 = vand.u32 %v5497, 4294901760
        %5499 = vmatmul.f32.gmra.mxu0 %v5498
        %v5500 = vpop.f32.mrf.mxu0
        %v5501 = vadd.f32 %v5370, %v5500
        %v5502 = vand.u32 %v4910, 4294901760
        %v5503 = vsub.f32 %v4910, %v5502
        %v5504 = vand.u32 %v5503, 4294901760
        %5505 = vmatmul.f32.gmra.mxu0 %v5504
        %v5506 = vpop.f32.mrf.mxu0
        %v5507 = vadd.f32 %v5375, %v5506
        %v5508 = vand.u32 %v4911, 4294901760
        %v5509 = vsub.f32 %v4911, %v5508
        %v5510 = vand.u32 %v5509, 4294901760
        %5511 = vmatmul.f32.gmra.mxu0 %v5510
        %v5512 = vpop.f32.mrf.mxu0
        %v5513 = vadd.f32 %v5380, %v5512
        %v5514 = vand.u32 %v4912, 4294901760
        %v5515 = vsub.f32 %v4912, %v5514
        %v5516 = vand.u32 %v5515, 4294901760
        %5517 = vmatmul.f32.gmra.mxu0 %v5516
        %v5518 = vpop.f32.mrf.mxu0
        %v5519 = vadd.f32 %v5385, %v5518
        %v5520 = vand.u32 %v4913, 4294901760
        %v5521 = vsub.f32 %v4913, %v5520
        %v5522 = vand.u32 %v5521, 4294901760
        %5523 = vmatmul.f32.gmra.mxu0 %v5522
        %v5524 = vpop.f32.mrf.mxu0
        %v5525 = vadd.f32 %v5390, %v5524
        %v5526 = vand.u32 %v4914, 4294901760
        %v5527 = vsub.f32 %v4914, %v5526
        %v5528 = vand.u32 %v5527, 4294901760
        %5529 = vmatmul.f32.gmra.mxu0 %v5528
        %v5530 = vpop.f32.mrf.mxu0
        %v5531 = vadd.f32 %v5395, %v5530
        %v5532 = vand.u32 %v4915, 4294901760
        %v5533 = vsub.f32 %v4915, %v5532
        %v5534 = vand.u32 %v5533, 4294901760
        %5535 = vmatmul.f32.gmra.mxu0 %v5534
        %v5536 = vpop.f32.mrf.mxu0
        %v5537 = vadd.f32 %v5400, %v5536
        %v5538 = vand.u32 %v4916, 4294901760
        %v5539 = vsub.f32 %v4916, %v5538
        %v5540 = vand.u32 %v5539, 4294901760
        %5541 = vmatmul.f32.gmra.mxu0 %v5540
        %v5542 = vpop.f32.mrf.mxu0
        %v5543 = vadd.f32 %v5405, %v5542
        %v5544 = vand.u32 %v4917, 4294901760
        %v5545 = vsub.f32 %v4917, %v5544
        %v5546 = vand.u32 %v5545, 4294901760
        %5547 = vmatmul.f32.gmra.mxu0 %v5546
        %v5548 = vpop.f32.mrf.mxu0
        %v5549 = vadd.f32 %v5410, %v5548
        %v5550 = vand.u32 %v4918, 4294901760
        %v5551 = vsub.f32 %v4918, %v5550
        %v5552 = vand.u32 %v5551, 4294901760
        %5553 = vmatmul.f32.gmra.mxu0 %v5552
        %v5554 = vpop.f32.mrf.mxu0
        %v5555 = vadd.f32 %v5415, %v5554
        %v5556 = vand.u32 %v4919, 4294901760
        %v5557 = vsub.f32 %v4919, %v5556
        %v5558 = vand.u32 %v5557, 4294901760
        %5559 = vmatmul.f32.gmra.mxu0 %v5558
        %v5560 = vpop.f32.mrf.mxu0
        %v5561 = vadd.f32 %v5420, %v5560
        %5562 = vdwg.mxu0
        %v5563 = vand.u32 %v4936, 4294901760
        %v5564 = vsub.f32 %v4936, %v5563
        %v5565 = vand.u32 %v5564, 4294901760
        %5566 = vmatpush.msra.mxu0 %v5565
        %v5567 = vand.u32 %v4935, 4294901760
        %v5568 = vsub.f32 %v4935, %v5567
        %v5569 = vand.u32 %v5568, 4294901760
        %5570 = vmatpush.msra.mxu0 %v5569
        %v5571 = vand.u32 %v4934, 4294901760
        %v5572 = vsub.f32 %v4934, %v5571
        %v5573 = vand.u32 %v5572, 4294901760
        %5574 = vmatpush.msra.mxu0 %v5573
        %v5575 = vand.u32 %v4933, 4294901760
        %v5576 = vsub.f32 %v4933, %v5575
        %v5577 = vand.u32 %v5576, 4294901760
        %5578 = vmatpush.msra.mxu0 %v5577
        %v5579 = vand.u32 %v4932, 4294901760
        %v5580 = vsub.f32 %v4932, %v5579
        %v5581 = vand.u32 %v5580, 4294901760
        %5582 = vmatpush.msra.mxu0 %v5581
        %v5583 = vand.u32 %v4931, 4294901760
        %v5584 = vsub.f32 %v4931, %v5583
        %v5585 = vand.u32 %v5584, 4294901760
        %5586 = vmatpush.msra.mxu0 %v5585
        %v5587 = vand.u32 %v4930, 4294901760
        %v5588 = vsub.f32 %v4930, %v5587
        %v5589 = vand.u32 %v5588, 4294901760
        %5590 = vmatpush.msra.mxu0 %v5589
        %v5591 = vand.u32 %v4929, 4294901760
        %v5592 = vsub.f32 %v4929, %v5591
        %v5593 = vand.u32 %v5592, 4294901760
        %5594 = vmatpush.msra.mxu0 %v5593
        %v5595 = vand.u32 %v4928, 4294901760
        %v5596 = vsub.f32 %v4928, %v5595
        %v5597 = vand.u32 %v5596, 4294901760
        %5598 = vmatpush.msra.mxu0 %v5597
        %v5599 = vand.u32 %v4927, 4294901760
        %v5600 = vsub.f32 %v4927, %v5599
        %v5601 = vand.u32 %v5600, 4294901760
        %5602 = vmatpush.msra.mxu0 %v5601
        %v5603 = vand.u32 %v4926, 4294901760
        %v5604 = vsub.f32 %v4926, %v5603
        %v5605 = vand.u32 %v5604, 4294901760
        %5606 = vmatpush.msra.mxu0 %v5605
        %v5607 = vand.u32 %v4925, 4294901760
        %v5608 = vsub.f32 %v4925, %v5607
        %v5609 = vand.u32 %v5608, 4294901760
        %5610 = vmatpush.msra.mxu0 %v5609
        %v5611 = vand.u32 %v4924, 4294901760
        %v5612 = vsub.f32 %v4924, %v5611
        %v5613 = vand.u32 %v5612, 4294901760
        %5614 = vmatpush.msra.mxu0 %v5613
        %v5615 = vand.u32 %v4923, 4294901760
        %v5616 = vsub.f32 %v4923, %v5615
        %v5617 = vand.u32 %v5616, 4294901760
        %5618 = vmatpush.msra.mxu0 %v5617
        %v5619 = vand.u32 %v4922, 4294901760
        %v5620 = vsub.f32 %v4922, %v5619
        %v5621 = vand.u32 %v5620, 4294901760
        %5622 = vmatpush.msra.mxu0 %v5621
        %v5623 = vand.u32 %v4921, 4294901760
        %v5624 = vsub.f32 %v4921, %v5623
        %v5625 = vand.u32 %v5624, 4294901760
        %5626 = vmatpush.msra.mxu0 %v5625
        %v5627 = vand.u32 %v4902, 4294901760
        %5628 = vmatmul.f32.gmra.mxu0 %v5627
        %v5629 = vpop.f32.mrf.mxu0
        %v5630 = vadd.f32 %v5459, %v5629
        %v5631 = vand.u32 %v4903, 4294901760
        %5632 = vmatmul.f32.gmra.mxu0 %v5631
        %v5633 = vpop.f32.mrf.mxu0
        %v5634 = vadd.f32 %v5465, %v5633
        %v5635 = vand.u32 %v4904, 4294901760
        %5636 = vmatmul.f32.gmra.mxu0 %v5635
        %v5637 = vpop.f32.mrf.mxu0
        %v5638 = vadd.f32 %v5471, %v5637
        %v5639 = vand.u32 %v4905, 4294901760
        %5640 = vmatmul.f32.gmra.mxu0 %v5639
        %v5641 = vpop.f32.mrf.mxu0
        %v5642 = vadd.f32 %v5477, %v5641
        %v5643 = vand.u32 %v4906, 4294901760
        %5644 = vmatmul.f32.gmra.mxu0 %v5643
        %v5645 = vpop.f32.mrf.mxu0
        %v5646 = vadd.f32 %v5483, %v5645
        %v5647 = vand.u32 %v4907, 4294901760
        %5648 = vmatmul.f32.gmra.mxu0 %v5647
        %v5649 = vpop.f32.mrf.mxu0
        %v5650 = vadd.f32 %v5489, %v5649
        %v5651 = vand.u32 %v4908, 4294901760
        %5652 = vmatmul.f32.gmra.mxu0 %v5651
        %v5653 = vpop.f32.mrf.mxu0
        %v5654 = vadd.f32 %v5495, %v5653
        %v5655 = vand.u32 %v4909, 4294901760
        %5656 = vmatmul.f32.gmra.mxu0 %v5655
        %v5657 = vpop.f32.mrf.mxu0
        %v5658 = vadd.f32 %v5501, %v5657
        %v5659 = vand.u32 %v4910, 4294901760
        %5660 = vmatmul.f32.gmra.mxu0 %v5659
        %v5661 = vpop.f32.mrf.mxu0
        %v5662 = vadd.f32 %v5507, %v5661
        %v5663 = vand.u32 %v4911, 4294901760
        %5664 = vmatmul.f32.gmra.mxu0 %v5663
        %v5665 = vpop.f32.mrf.mxu0
        %v5666 = vadd.f32 %v5513, %v5665
        %v5667 = vand.u32 %v4912, 4294901760
        %5668 = vmatmul.f32.gmra.mxu0 %v5667
        %v5669 = vpop.f32.mrf.mxu0
        %v5670 = vadd.f32 %v5519, %v5669
        %v5671 = vand.u32 %v4913, 4294901760
        %5672 = vmatmul.f32.gmra.mxu0 %v5671
        %v5673 = vpop.f32.mrf.mxu0
        %v5674 = vadd.f32 %v5525, %v5673
        %v5675 = vand.u32 %v4914, 4294901760
        %5676 = vmatmul.f32.gmra.mxu0 %v5675
        %v5677 = vpop.f32.mrf.mxu0
        %v5678 = vadd.f32 %v5531, %v5677
        %v5679 = vand.u32 %v4915, 4294901760
        %5680 = vmatmul.f32.gmra.mxu0 %v5679
        %v5681 = vpop.f32.mrf.mxu0
        %v5682 = vadd.f32 %v5537, %v5681
        %v5683 = vand.u32 %v4916, 4294901760
        %5684 = vmatmul.f32.gmra.mxu0 %v5683
        %v5685 = vpop.f32.mrf.mxu0
        %v5686 = vadd.f32 %v5543, %v5685
        %v5687 = vand.u32 %v4917, 4294901760
        %5688 = vmatmul.f32.gmra.mxu0 %v5687
        %v5689 = vpop.f32.mrf.mxu0
        %v5690 = vadd.f32 %v5549, %v5689
        %v5691 = vand.u32 %v4918, 4294901760
        %5692 = vmatmul.f32.gmra.mxu0 %v5691
        %v5693 = vpop.f32.mrf.mxu0
        %v5694 = vadd.f32 %v5555, %v5693
        %v5695 = vand.u32 %v4919, 4294901760
        %5696 = vmatmul.f32.gmra.mxu0 %v5695
        %v5697 = vpop.f32.mrf.mxu0
        %v5698 = vadd.f32 %v5561, %v5697
        %5699 = vdwg.mxu0
        %v5700 = vand.u32 %v4936, 4294901760
        %5701 = vmatpush.msra.mxu0 %v5700
        %v5702 = vand.u32 %v4935, 4294901760
        %5703 = vmatpush.msra.mxu0 %v5702
        %v5704 = vand.u32 %v4934, 4294901760
        %5705 = vmatpush.msra.mxu0 %v5704
        %v5706 = vand.u32 %v4933, 4294901760
        %5707 = vmatpush.msra.mxu0 %v5706
        %v5708 = vand.u32 %v4932, 4294901760
        %5709 = vmatpush.msra.mxu0 %v5708
        %v5710 = vand.u32 %v4931, 4294901760
        %5711 = vmatpush.msra.mxu0 %v5710
        %v5712 = vand.u32 %v4930, 4294901760
        %5713 = vmatpush.msra.mxu0 %v5712
        %v5714 = vand.u32 %v4929, 4294901760
        %5715 = vmatpush.msra.mxu0 %v5714
        %v5716 = vand.u32 %v4928, 4294901760
        %5717 = vmatpush.msra.mxu0 %v5716
        %v5718 = vand.u32 %v4927, 4294901760
        %5719 = vmatpush.msra.mxu0 %v5718
        %v5720 = vand.u32 %v4926, 4294901760
        %5721 = vmatpush.msra.mxu0 %v5720
        %v5722 = vand.u32 %v4925, 4294901760
        %5723 = vmatpush.msra.mxu0 %v5722
        %v5724 = vand.u32 %v4924, 4294901760
        %5725 = vmatpush.msra.mxu0 %v5724
        %v5726 = vand.u32 %v4923, 4294901760
        %5727 = vmatpush.msra.mxu0 %v5726
        %v5728 = vand.u32 %v4922, 4294901760
        %5729 = vmatpush.msra.mxu0 %v5728
        %v5730 = vand.u32 %v4921, 4294901760
        %5731 = vmatpush.msra.mxu0 %v5730
        %v5732 = vand.u32 %v4902, 4294901760
        %5733 = vmatmul.f32.gmra.mxu0 %v5732
        %v5734 = vpop.f32.mrf.mxu0
        %v5735 = vadd.f32 %v5630, %v5734
        %v5736 = vand.u32 %v4903, 4294901760
        %5737 = vmatmul.f32.gmra.mxu0 %v5736
        %v5738 = vpop.f32.mrf.mxu0
        %v5739 = vadd.f32 %v5634, %v5738
        %v5740 = vand.u32 %v4904, 4294901760
        %5741 = vmatmul.f32.gmra.mxu0 %v5740
        %v5742 = vpop.f32.mrf.mxu0
        %v5743 = vadd.f32 %v5638, %v5742
        %v5744 = vand.u32 %v4905, 4294901760
        %5745 = vmatmul.f32.gmra.mxu0 %v5744
        %v5746 = vpop.f32.mrf.mxu0
        %v5747 = vadd.f32 %v5642, %v5746
        %v5748 = vand.u32 %v4906, 4294901760
        %5749 = vmatmul.f32.gmra.mxu0 %v5748
        %v5750 = vpop.f32.mrf.mxu0
        %v5751 = vadd.f32 %v5646, %v5750
        %v5752 = vand.u32 %v4907, 4294901760
        %5753 = vmatmul.f32.gmra.mxu0 %v5752
        %v5754 = vpop.f32.mrf.mxu0
        %v5755 = vadd.f32 %v5650, %v5754
        %v5756 = vand.u32 %v4908, 4294901760
        %5757 = vmatmul.f32.gmra.mxu0 %v5756
        %v5758 = vpop.f32.mrf.mxu0
        %v5759 = vadd.f32 %v5654, %v5758
        %v5760 = vand.u32 %v4909, 4294901760
        %5761 = vmatmul.f32.gmra.mxu0 %v5760
        %v5762 = vpop.f32.mrf.mxu0
        %v5763 = vadd.f32 %v5658, %v5762
        %v5764 = vand.u32 %v4910, 4294901760
        %5765 = vmatmul.f32.gmra.mxu0 %v5764
        %v5766 = vpop.f32.mrf.mxu0
        %v5767 = vadd.f32 %v5662, %v5766
        %v5768 = vand.u32 %v4911, 4294901760
        %5769 = vmatmul.f32.gmra.mxu0 %v5768
        %v5770 = vpop.f32.mrf.mxu0
        %v5771 = vadd.f32 %v5666, %v5770
        %v5772 = vand.u32 %v4912, 4294901760
        %5773 = vmatmul.f32.gmra.mxu0 %v5772
        %v5774 = vpop.f32.mrf.mxu0
        %v5775 = vadd.f32 %v5670, %v5774
        %v5776 = vand.u32 %v4913, 4294901760
        %5777 = vmatmul.f32.gmra.mxu0 %v5776
        %v5778 = vpop.f32.mrf.mxu0
        %v5779 = vadd.f32 %v5674, %v5778
        %v5780 = vand.u32 %v4914, 4294901760
        %5781 = vmatmul.f32.gmra.mxu0 %v5780
        %v5782 = vpop.f32.mrf.mxu0
        %v5783 = vadd.f32 %v5678, %v5782
        %v5784 = vand.u32 %v4915, 4294901760
        %5785 = vmatmul.f32.gmra.mxu0 %v5784
        %v5786 = vpop.f32.mrf.mxu0
        %v5787 = vadd.f32 %v5682, %v5786
        %v5788 = vand.u32 %v4916, 4294901760
        %5789 = vmatmul.f32.gmra.mxu0 %v5788
        %v5790 = vpop.f32.mrf.mxu0
        %v5791 = vadd.f32 %v5686, %v5790
        %v5792 = vand.u32 %v4917, 4294901760
        %5793 = vmatmul.f32.gmra.mxu0 %v5792
        %v5794 = vpop.f32.mrf.mxu0
        %v5795 = vadd.f32 %v5690, %v5794
        %v5796 = vand.u32 %v4918, 4294901760
        %5797 = vmatmul.f32.gmra.mxu0 %v5796
        %v5798 = vpop.f32.mrf.mxu0
        %v5799 = vadd.f32 %v5694, %v5798
        %v5800 = vand.u32 %v4919, 4294901760
        %5801 = vmatmul.f32.gmra.mxu0 %v5800
        %v5802 = vpop.f32.mrf.mxu0
        %v5803 = vadd.f32 %v5698, %v5802
        %5804 = vdwg.mxu0
        %v5805 = vadd.f32 %v4884, %v5735
        %v5806 = vadd.f32 %v4885, %v5739
        %v5807 = vadd.f32 %v4886, %v5743
        %v5808 = vadd.f32 %v4887, %v5747
        %v5809 = vadd.f32 %v4888, %v5751
        %v5810 = vadd.f32 %v4889, %v5755
        %v5811 = vadd.f32 %v4890, %v5759
        %v5812 = vadd.f32 %v4891, %v5763
        %v5813 = vadd.f32 %v4892, %v5767
        %v5814 = vadd.f32 %v4893, %v5771
        %v5815 = vadd.f32 %v4894, %v5775
        %v5816 = vadd.f32 %v4895, %v5779
        %v5817 = vadd.f32 %v4896, %v5783
        %v5818 = vadd.f32 %v4897, %v5787
        %v5819 = vadd.f32 %v4898, %v5791
        %v5820 = vadd.f32 %v4899, %v5795
        %v5821 = vadd.f32 %v4900, %v5799
        %v5822 = vadd.f32 %v4901, %v5803
        %v5823 = vld [vmem:[%s333 + $0x24] sm:$0xff]
        %v5824 = vld [vmem:[%s333 + $0x2c] sm:$0xff]
        %v5825 = vld [vmem:[%s333 + $0x34] sm:$0xff]
        %v5826 = vld [vmem:[%s333 + $0x3c] sm:$0xff]
        %v5827 = vld [vmem:[%s333 + $0x44] sm:$0xff]
        %v5828 = vld [vmem:[%s333 + $0x4c] sm:$0xff]
        %v5829 = vld [vmem:[%s333 + $0x54] sm:$0xff]
        %v5830 = vld [vmem:[%s333 + $0x5c] sm:$0xff]
        %v5831 = vld [vmem:[%s333 + $0x64] sm:$0xff]
        %v5832 = vld [vmem:[%s333 + $0x6c] sm:$0xff]
        %v5833 = vld [vmem:[%s333 + $0x74] sm:$0xff]
        %v5834 = vld [vmem:[%s333 + $0x7c] sm:$0xff]
        %v5835 = vld [vmem:[%s333 + $0x84] sm:$0xff]
        %v5836 = vld [vmem:[%s333 + $0x8c] sm:$0xff]
        %v5837 = vld [vmem:[%s333 + $0x94] sm:$0xff]
        %v5838 = vld [vmem:[%s333 + $0x9c] sm:$0xff]
        %v5839 = vld [vmem:[%s333 + $0xa4] sm:$0xff]
        %v5840 = vld [vmem:[%s333 + $0xac] sm:$0xff]
        %s5841 = scalar_lea.vmem %s1, 768
        %v5842 = vld [vmem:[%s5841] sm:$0xff]
        %v5843 = vld [vmem:[%s5841 + $0x8] sm:$0xff]
        %v5844 = vld [vmem:[%s5841 + $0x10] sm:$0xff]
        %v5845 = vld [vmem:[%s5841 + $0x18] sm:$0xff]
        %v5846 = vld [vmem:[%s5841 + $0x20] sm:$0xff]
        %v5847 = vld [vmem:[%s5841 + $0x28] sm:$0xff]
        %v5848 = vld [vmem:[%s5841 + $0x30] sm:$0xff]
        %v5849 = vld [vmem:[%s5841 + $0x38] sm:$0xff]
        %v5850 = vld [vmem:[%s5841 + $0x40] sm:$0xff]
        %v5851 = vld [vmem:[%s5841 + $0x48] sm:$0xff]
        %v5852 = vld [vmem:[%s5841 + $0x50] sm:$0xff]
        %v5853 = vld [vmem:[%s5841 + $0x58] sm:$0xff]
        %v5854 = vld [vmem:[%s5841 + $0x60] sm:$0xff]
        %v5855 = vld [vmem:[%s5841 + $0x68] sm:$0xff]
        %v5856 = vld [vmem:[%s5841 + $0x70] sm:$0xff]
        %v5857 = vld [vmem:[%s5841 + $0x78] sm:$0xff]
        %v5858 = vand.u32 %v5857, 4294901760
        %5859 = vmatpush.msra.mxu0 %v5858
        %v5860 = vand.u32 %v5856, 4294901760
        %5861 = vmatpush.msra.mxu0 %v5860
        %v5862 = vand.u32 %v5855, 4294901760
        %5863 = vmatpush.msra.mxu0 %v5862
        %v5864 = vand.u32 %v5854, 4294901760
        %5865 = vmatpush.msra.mxu0 %v5864
        %v5866 = vand.u32 %v5853, 4294901760
        %5867 = vmatpush.msra.mxu0 %v5866
        %v5868 = vand.u32 %v5852, 4294901760
        %5869 = vmatpush.msra.mxu0 %v5868
        %v5870 = vand.u32 %v5851, 4294901760
        %5871 = vmatpush.msra.mxu0 %v5870
        %v5872 = vand.u32 %v5850, 4294901760
        %5873 = vmatpush.msra.mxu0 %v5872
        %v5874 = vand.u32 %v5849, 4294901760
        %5875 = vmatpush.msra.mxu0 %v5874
        %v5876 = vand.u32 %v5848, 4294901760
        %5877 = vmatpush.msra.mxu0 %v5876
        %v5878 = vand.u32 %v5847, 4294901760
        %5879 = vmatpush.msra.mxu0 %v5878
        %v5880 = vand.u32 %v5846, 4294901760
        %5881 = vmatpush.msra.mxu0 %v5880
        %v5882 = vand.u32 %v5845, 4294901760
        %5883 = vmatpush.msra.mxu0 %v5882
        %v5884 = vand.u32 %v5844, 4294901760
        %5885 = vmatpush.msra.mxu0 %v5884
        %v5886 = vand.u32 %v5843, 4294901760
        %5887 = vmatpush.msra.mxu0 %v5886
        %v5888 = vand.u32 %v5842, 4294901760
        %5889 = vmatpush.msra.mxu0 %v5888
        %v5890 = vand.u32 %v5823, 4294901760
        %v5891 = vsub.f32 %v5823, %v5890
        %v5892 = vand.u32 %v5891, 4294901760
        %v5893 = vsub.f32 %v5891, %v5892
        %v5894 = vand.u32 %v5893, 4294901760
        %5895 = vmatmul.f32.gmra.mxu0 %v5894
        %v5896 = vpop.f32.mrf.mxu0
        %v5897 = vadd.f32 0.0, %v5896
        %v5898 = vand.u32 %v5824, 4294901760
        %v5899 = vsub.f32 %v5824, %v5898
        %v5900 = vand.u32 %v5899, 4294901760
        %v5901 = vsub.f32 %v5899, %v5900
        %v5902 = vand.u32 %v5901, 4294901760
        %5903 = vmatmul.f32.gmra.mxu0 %v5902
        %v5904 = vpop.f32.mrf.mxu0
        %v5905 = vadd.f32 0.0, %v5904
        %v5906 = vand.u32 %v5825, 4294901760
        %v5907 = vsub.f32 %v5825, %v5906
        %v5908 = vand.u32 %v5907, 4294901760
        %v5909 = vsub.f32 %v5907, %v5908
        %v5910 = vand.u32 %v5909, 4294901760
        %5911 = vmatmul.f32.gmra.mxu0 %v5910
        %v5912 = vpop.f32.mrf.mxu0
        %v5913 = vadd.f32 0.0, %v5912
        %v5914 = vand.u32 %v5826, 4294901760
        %v5915 = vsub.f32 %v5826, %v5914
        %v5916 = vand.u32 %v5915, 4294901760
        %v5917 = vsub.f32 %v5915, %v5916
        %v5918 = vand.u32 %v5917, 4294901760
        %5919 = vmatmul.f32.gmra.mxu0 %v5918
        %v5920 = vpop.f32.mrf.mxu0
        %v5921 = vadd.f32 0.0, %v5920
        %v5922 = vand.u32 %v5827, 4294901760
        %v5923 = vsub.f32 %v5827, %v5922
        %v5924 = vand.u32 %v5923, 4294901760
        %v5925 = vsub.f32 %v5923, %v5924
        %v5926 = vand.u32 %v5925, 4294901760
        %5927 = vmatmul.f32.gmra.mxu0 %v5926
        %v5928 = vpop.f32.mrf.mxu0
        %v5929 = vadd.f32 0.0, %v5928
        %v5930 = vand.u32 %v5828, 4294901760
        %v5931 = vsub.f32 %v5828, %v5930
        %v5932 = vand.u32 %v5931, 4294901760
        %v5933 = vsub.f32 %v5931, %v5932
        %v5934 = vand.u32 %v5933, 4294901760
        %5935 = vmatmul.f32.gmra.mxu0 %v5934
        %v5936 = vpop.f32.mrf.mxu0
        %v5937 = vadd.f32 0.0, %v5936
        %v5938 = vand.u32 %v5829, 4294901760
        %v5939 = vsub.f32 %v5829, %v5938
        %v5940 = vand.u32 %v5939, 4294901760
        %v5941 = vsub.f32 %v5939, %v5940
        %v5942 = vand.u32 %v5941, 4294901760
        %5943 = vmatmul.f32.gmra.mxu0 %v5942
        %v5944 = vpop.f32.mrf.mxu0
        %v5945 = vadd.f32 0.0, %v5944
        %v5946 = vand.u32 %v5830, 4294901760
        %v5947 = vsub.f32 %v5830, %v5946
        %v5948 = vand.u32 %v5947, 4294901760
        %v5949 = vsub.f32 %v5947, %v5948
        %v5950 = vand.u32 %v5949, 4294901760
        %5951 = vmatmul.f32.gmra.mxu0 %v5950
        %v5952 = vpop.f32.mrf.mxu0
        %v5953 = vadd.f32 0.0, %v5952
        %v5954 = vand.u32 %v5831, 4294901760
        %v5955 = vsub.f32 %v5831, %v5954
        %v5956 = vand.u32 %v5955, 4294901760
        %v5957 = vsub.f32 %v5955, %v5956
        %v5958 = vand.u32 %v5957, 4294901760
        %5959 = vmatmul.f32.gmra.mxu0 %v5958
        %v5960 = vpop.f32.mrf.mxu0
        %v5961 = vadd.f32 0.0, %v5960
        %v5962 = vand.u32 %v5832, 4294901760
        %v5963 = vsub.f32 %v5832, %v5962
        %v5964 = vand.u32 %v5963, 4294901760
        %v5965 = vsub.f32 %v5963, %v5964
        %v5966 = vand.u32 %v5965, 4294901760
        %5967 = vmatmul.f32.gmra.mxu0 %v5966
        %v5968 = vpop.f32.mrf.mxu0
        %v5969 = vadd.f32 0.0, %v5968
        %v5970 = vand.u32 %v5833, 4294901760
        %v5971 = vsub.f32 %v5833, %v5970
        %v5972 = vand.u32 %v5971, 4294901760
        %v5973 = vsub.f32 %v5971, %v5972
        %v5974 = vand.u32 %v5973, 4294901760
        %5975 = vmatmul.f32.gmra.mxu0 %v5974
        %v5976 = vpop.f32.mrf.mxu0
        %v5977 = vadd.f32 0.0, %v5976
        %v5978 = vand.u32 %v5834, 4294901760
        %v5979 = vsub.f32 %v5834, %v5978
        %v5980 = vand.u32 %v5979, 4294901760
        %v5981 = vsub.f32 %v5979, %v5980
        %v5982 = vand.u32 %v5981, 4294901760
        %5983 = vmatmul.f32.gmra.mxu0 %v5982
        %v5984 = vpop.f32.mrf.mxu0
        %v5985 = vadd.f32 0.0, %v5984
        %v5986 = vand.u32 %v5835, 4294901760
        %v5987 = vsub.f32 %v5835, %v5986
        %v5988 = vand.u32 %v5987, 4294901760
        %v5989 = vsub.f32 %v5987, %v5988
        %v5990 = vand.u32 %v5989, 4294901760
        %5991 = vmatmul.f32.gmra.mxu0 %v5990
        %v5992 = vpop.f32.mrf.mxu0
        %v5993 = vadd.f32 0.0, %v5992
        %v5994 = vand.u32 %v5836, 4294901760
        %v5995 = vsub.f32 %v5836, %v5994
        %v5996 = vand.u32 %v5995, 4294901760
        %v5997 = vsub.f32 %v5995, %v5996
        %v5998 = vand.u32 %v5997, 4294901760
        %5999 = vmatmul.f32.gmra.mxu0 %v5998
        %v6000 = vpop.f32.mrf.mxu0
        %v6001 = vadd.f32 0.0, %v6000
        %v6002 = vand.u32 %v5837, 4294901760
        %v6003 = vsub.f32 %v5837, %v6002
        %v6004 = vand.u32 %v6003, 4294901760
        %v6005 = vsub.f32 %v6003, %v6004
        %v6006 = vand.u32 %v6005, 4294901760
        %6007 = vmatmul.f32.gmra.mxu0 %v6006
        %v6008 = vpop.f32.mrf.mxu0
        %v6009 = vadd.f32 0.0, %v6008
        %v6010 = vand.u32 %v5838, 4294901760
        %v6011 = vsub.f32 %v5838, %v6010
        %v6012 = vand.u32 %v6011, 4294901760
        %v6013 = vsub.f32 %v6011, %v6012
        %v6014 = vand.u32 %v6013, 4294901760
        %6015 = vmatmul.f32.gmra.mxu0 %v6014
        %v6016 = vpop.f32.mrf.mxu0
        %v6017 = vadd.f32 0.0, %v6016
        %v6018 = vand.u32 %v5839, 4294901760
        %v6019 = vsub.f32 %v5839, %v6018
        %v6020 = vand.u32 %v6019, 4294901760
        %v6021 = vsub.f32 %v6019, %v6020
        %v6022 = vand.u32 %v6021, 4294901760
        %6023 = vmatmul.f32.gmra.mxu0 %v6022
        %v6024 = vpop.f32.mrf.mxu0
        %v6025 = vadd.f32 0.0, %v6024
        %v6026 = vand.u32 %v5840, 4294901760
        %v6027 = vsub.f32 %v5840, %v6026
        %v6028 = vand.u32 %v6027, 4294901760
        %v6029 = vsub.f32 %v6027, %v6028
        %v6030 = vand.u32 %v6029, 4294901760
        %6031 = vmatmul.f32.gmra.mxu0 %v6030
        %v6032 = vpop.f32.mrf.mxu0
        %v6033 = vadd.f32 0.0, %v6032
        %6034 = vdwg.mxu0
        %v6035 = vand.u32 %v5857, 4294901760
        %v6036 = vsub.f32 %v5857, %v6035
        %v6037 = vand.u32 %v6036, 4294901760
        %v6038 = vsub.f32 %v6036, %v6037
        %v6039 = vand.u32 %v6038, 4294901760
        %6040 = vmatpush.msra.mxu0 %v6039
        %v6041 = vand.u32 %v5856, 4294901760
        %v6042 = vsub.f32 %v5856, %v6041
        %v6043 = vand.u32 %v6042, 4294901760
        %v6044 = vsub.f32 %v6042, %v6043
        %v6045 = vand.u32 %v6044, 4294901760
        %6046 = vmatpush.msra.mxu0 %v6045
        %v6047 = vand.u32 %v5855, 4294901760
        %v6048 = vsub.f32 %v5855, %v6047
        %v6049 = vand.u32 %v6048, 4294901760
        %v6050 = vsub.f32 %v6048, %v6049
        %v6051 = vand.u32 %v6050, 4294901760
        %6052 = vmatpush.msra.mxu0 %v6051
        %v6053 = vand.u32 %v5854, 4294901760
        %v6054 = vsub.f32 %v5854, %v6053
        %v6055 = vand.u32 %v6054, 4294901760
        %v6056 = vsub.f32 %v6054, %v6055
        %v6057 = vand.u32 %v6056, 4294901760
        %6058 = vmatpush.msra.mxu0 %v6057
        %v6059 = vand.u32 %v5853, 4294901760
        %v6060 = vsub.f32 %v5853, %v6059
        %v6061 = vand.u32 %v6060, 4294901760
        %v6062 = vsub.f32 %v6060, %v6061
        %v6063 = vand.u32 %v6062, 4294901760
        %6064 = vmatpush.msra.mxu0 %v6063
        %v6065 = vand.u32 %v5852, 4294901760
        %v6066 = vsub.f32 %v5852, %v6065
        %v6067 = vand.u32 %v6066, 4294901760
        %v6068 = vsub.f32 %v6066, %v6067
        %v6069 = vand.u32 %v6068, 4294901760
        %6070 = vmatpush.msra.mxu0 %v6069
        %v6071 = vand.u32 %v5851, 4294901760
        %v6072 = vsub.f32 %v5851, %v6071
        %v6073 = vand.u32 %v6072, 4294901760
        %v6074 = vsub.f32 %v6072, %v6073
        %v6075 = vand.u32 %v6074, 4294901760
        %6076 = vmatpush.msra.mxu0 %v6075
        %v6077 = vand.u32 %v5850, 4294901760
        %v6078 = vsub.f32 %v5850, %v6077
        %v6079 = vand.u32 %v6078, 4294901760
        %v6080 = vsub.f32 %v6078, %v6079
        %v6081 = vand.u32 %v6080, 4294901760
        %6082 = vmatpush.msra.mxu0 %v6081
        %v6083 = vand.u32 %v5849, 4294901760
        %v6084 = vsub.f32 %v5849, %v6083
        %v6085 = vand.u32 %v6084, 4294901760
        %v6086 = vsub.f32 %v6084, %v6085
        %v6087 = vand.u32 %v6086, 4294901760
        %6088 = vmatpush.msra.mxu0 %v6087
        %v6089 = vand.u32 %v5848, 4294901760
        %v6090 = vsub.f32 %v5848, %v6089
        %v6091 = vand.u32 %v6090, 4294901760
        %v6092 = vsub.f32 %v6090, %v6091
        %v6093 = vand.u32 %v6092, 4294901760
        %6094 = vmatpush.msra.mxu0 %v6093
        %v6095 = vand.u32 %v5847, 4294901760
        %v6096 = vsub.f32 %v5847, %v6095
        %v6097 = vand.u32 %v6096, 4294901760
        %v6098 = vsub.f32 %v6096, %v6097
        %v6099 = vand.u32 %v6098, 4294901760
        %6100 = vmatpush.msra.mxu0 %v6099
        %v6101 = vand.u32 %v5846, 4294901760
        %v6102 = vsub.f32 %v5846, %v6101
        %v6103 = vand.u32 %v6102, 4294901760
        %v6104 = vsub.f32 %v6102, %v6103
        %v6105 = vand.u32 %v6104, 4294901760
        %6106 = vmatpush.msra.mxu0 %v6105
        %v6107 = vand.u32 %v5845, 4294901760
        %v6108 = vsub.f32 %v5845, %v6107
        %v6109 = vand.u32 %v6108, 4294901760
        %v6110 = vsub.f32 %v6108, %v6109
        %v6111 = vand.u32 %v6110, 4294901760
        %6112 = vmatpush.msra.mxu0 %v6111
        %v6113 = vand.u32 %v5844, 4294901760
        %v6114 = vsub.f32 %v5844, %v6113
        %v6115 = vand.u32 %v6114, 4294901760
        %v6116 = vsub.f32 %v6114, %v6115
        %v6117 = vand.u32 %v6116, 4294901760
        %6118 = vmatpush.msra.mxu0 %v6117
        %v6119 = vand.u32 %v5843, 4294901760
        %v6120 = vsub.f32 %v5843, %v6119
        %v6121 = vand.u32 %v6120, 4294901760
        %v6122 = vsub.f32 %v6120, %v6121
        %v6123 = vand.u32 %v6122, 4294901760
        %6124 = vmatpush.msra.mxu0 %v6123
        %v6125 = vand.u32 %v5842, 4294901760
        %v6126 = vsub.f32 %v5842, %v6125
        %v6127 = vand.u32 %v6126, 4294901760
        %v6128 = vsub.f32 %v6126, %v6127
        %v6129 = vand.u32 %v6128, 4294901760
        %6130 = vmatpush.msra.mxu0 %v6129
        %v6131 = vand.u32 %v5823, 4294901760
        %6132 = vmatmul.f32.gmra.mxu0 %v6131
        %v6133 = vpop.f32.mrf.mxu0
        %v6134 = vadd.f32 %v5897, %v6133
        %v6135 = vand.u32 %v5824, 4294901760
        %6136 = vmatmul.f32.gmra.mxu0 %v6135
        %v6137 = vpop.f32.mrf.mxu0
        %v6138 = vadd.f32 %v5905, %v6137
        %v6139 = vand.u32 %v5825, 4294901760
        %6140 = vmatmul.f32.gmra.mxu0 %v6139
        %v6141 = vpop.f32.mrf.mxu0
        %v6142 = vadd.f32 %v5913, %v6141
        %v6143 = vand.u32 %v5826, 4294901760
        %6144 = vmatmul.f32.gmra.mxu0 %v6143
        %v6145 = vpop.f32.mrf.mxu0
        %v6146 = vadd.f32 %v5921, %v6145
        %v6147 = vand.u32 %v5827, 4294901760
        %6148 = vmatmul.f32.gmra.mxu0 %v6147
        %v6149 = vpop.f32.mrf.mxu0
        %v6150 = vadd.f32 %v5929, %v6149
        %v6151 = vand.u32 %v5828, 4294901760
        %6152 = vmatmul.f32.gmra.mxu0 %v6151
        %v6153 = vpop.f32.mrf.mxu0
        %v6154 = vadd.f32 %v5937, %v6153
        %v6155 = vand.u32 %v5829, 4294901760
        %6156 = vmatmul.f32.gmra.mxu0 %v6155
        %v6157 = vpop.f32.mrf.mxu0
        %v6158 = vadd.f32 %v5945, %v6157
        %v6159 = vand.u32 %v5830, 4294901760
        %6160 = vmatmul.f32.gmra.mxu0 %v6159
        %v6161 = vpop.f32.mrf.mxu0
        %v6162 = vadd.f32 %v5953, %v6161
        %v6163 = vand.u32 %v5831, 4294901760
        %6164 = vmatmul.f32.gmra.mxu0 %v6163
        %v6165 = vpop.f32.mrf.mxu0
        %v6166 = vadd.f32 %v5961, %v6165
        %v6167 = vand.u32 %v5832, 4294901760
        %6168 = vmatmul.f32.gmra.mxu0 %v6167
        %v6169 = vpop.f32.mrf.mxu0
        %v6170 = vadd.f32 %v5969, %v6169
        %v6171 = vand.u32 %v5833, 4294901760
        %6172 = vmatmul.f32.gmra.mxu0 %v6171
        %v6173 = vpop.f32.mrf.mxu0
        %v6174 = vadd.f32 %v5977, %v6173
        %v6175 = vand.u32 %v5834, 4294901760
        %6176 = vmatmul.f32.gmra.mxu0 %v6175
        %v6177 = vpop.f32.mrf.mxu0
        %v6178 = vadd.f32 %v5985, %v6177
        %v6179 = vand.u32 %v5835, 4294901760
        %6180 = vmatmul.f32.gmra.mxu0 %v6179
        %v6181 = vpop.f32.mrf.mxu0
        %v6182 = vadd.f32 %v5993, %v6181
        %v6183 = vand.u32 %v5836, 4294901760
        %6184 = vmatmul.f32.gmra.mxu0 %v6183
        %v6185 = vpop.f32.mrf.mxu0
        %v6186 = vadd.f32 %v6001, %v6185
        %v6187 = vand.u32 %v5837, 4294901760
        %6188 = vmatmul.f32.gmra.mxu0 %v6187
        %v6189 = vpop.f32.mrf.mxu0
        %v6190 = vadd.f32 %v6009, %v6189
        %v6191 = vand.u32 %v5838, 4294901760
        %6192 = vmatmul.f32.gmra.mxu0 %v6191
        %v6193 = vpop.f32.mrf.mxu0
        %v6194 = vadd.f32 %v6017, %v6193
        %v6195 = vand.u32 %v5839, 4294901760
        %6196 = vmatmul.f32.gmra.mxu0 %v6195
        %v6197 = vpop.f32.mrf.mxu0
        %v6198 = vadd.f32 %v6025, %v6197
        %v6199 = vand.u32 %v5840, 4294901760
        %6200 = vmatmul.f32.gmra.mxu0 %v6199
        %v6201 = vpop.f32.mrf.mxu0
        %v6202 = vadd.f32 %v6033, %v6201
        %6203 = vdwg.mxu0
        %v6204 = vand.u32 %v5857, 4294901760
        %v6205 = vsub.f32 %v5857, %v6204
        %6206 = vmatpush.msra.mxu0 %v6205
        %v6207 = vand.u32 %v5856, 4294901760
        %v6208 = vsub.f32 %v5856, %v6207
        %6209 = vmatpush.msra.mxu0 %v6208
        %v6210 = vand.u32 %v5855, 4294901760
        %v6211 = vsub.f32 %v5855, %v6210
        %6212 = vmatpush.msra.mxu0 %v6211
        %v6213 = vand.u32 %v5854, 4294901760
        %v6214 = vsub.f32 %v5854, %v6213
        %6215 = vmatpush.msra.mxu0 %v6214
        %v6216 = vand.u32 %v5853, 4294901760
        %v6217 = vsub.f32 %v5853, %v6216
        %6218 = vmatpush.msra.mxu0 %v6217
        %v6219 = vand.u32 %v5852, 4294901760
        %v6220 = vsub.f32 %v5852, %v6219
        %6221 = vmatpush.msra.mxu0 %v6220
        %v6222 = vand.u32 %v5851, 4294901760
        %v6223 = vsub.f32 %v5851, %v6222
        %6224 = vmatpush.msra.mxu0 %v6223
        %v6225 = vand.u32 %v5850, 4294901760
        %v6226 = vsub.f32 %v5850, %v6225
        %6227 = vmatpush.msra.mxu0 %v6226
        %v6228 = vand.u32 %v5849, 4294901760
        %v6229 = vsub.f32 %v5849, %v6228
        %6230 = vmatpush.msra.mxu0 %v6229
        %v6231 = vand.u32 %v5848, 4294901760
        %v6232 = vsub.f32 %v5848, %v6231
        %6233 = vmatpush.msra.mxu0 %v6232
        %v6234 = vand.u32 %v5847, 4294901760
        %v6235 = vsub.f32 %v5847, %v6234
        %6236 = vmatpush.msra.mxu0 %v6235
        %v6237 = vand.u32 %v5846, 4294901760
        %v6238 = vsub.f32 %v5846, %v6237
        %6239 = vmatpush.msra.mxu0 %v6238
        %v6240 = vand.u32 %v5845, 4294901760
        %v6241 = vsub.f32 %v5845, %v6240
        %6242 = vmatpush.msra.mxu0 %v6241
        %v6243 = vand.u32 %v5844, 4294901760
        %v6244 = vsub.f32 %v5844, %v6243
        %6245 = vmatpush.msra.mxu0 %v6244
        %v6246 = vand.u32 %v5843, 4294901760
        %v6247 = vsub.f32 %v5843, %v6246
        %6248 = vmatpush.msra.mxu0 %v6247
        %v6249 = vand.u32 %v5842, 4294901760
        %v6250 = vsub.f32 %v5842, %v6249
        %6251 = vmatpush.msra.mxu0 %v6250
        %v6252 = vand.u32 %v5823, 4294901760
        %v6253 = vsub.f32 %v5823, %v6252
        %6254 = vmatmul.f32.gmra.mxu0 %v6253
        %v6255 = vpop.f32.mrf.mxu0
        %v6256 = vadd.f32 %v6134, %v6255
        %v6257 = vand.u32 %v5824, 4294901760
        %v6258 = vsub.f32 %v5824, %v6257
        %6259 = vmatmul.f32.gmra.mxu0 %v6258
        %v6260 = vpop.f32.mrf.mxu0
        %v6261 = vadd.f32 %v6138, %v6260
        %v6262 = vand.u32 %v5825, 4294901760
        %v6263 = vsub.f32 %v5825, %v6262
        %6264 = vmatmul.f32.gmra.mxu0 %v6263
        %v6265 = vpop.f32.mrf.mxu0
        %v6266 = vadd.f32 %v6142, %v6265
        %v6267 = vand.u32 %v5826, 4294901760
        %v6268 = vsub.f32 %v5826, %v6267
        %6269 = vmatmul.f32.gmra.mxu0 %v6268
        %v6270 = vpop.f32.mrf.mxu0
        %v6271 = vadd.f32 %v6146, %v6270
        %v6272 = vand.u32 %v5827, 4294901760
        %v6273 = vsub.f32 %v5827, %v6272
        %6274 = vmatmul.f32.gmra.mxu0 %v6273
        %v6275 = vpop.f32.mrf.mxu0
        %v6276 = vadd.f32 %v6150, %v6275
        %v6277 = vand.u32 %v5828, 4294901760
        %v6278 = vsub.f32 %v5828, %v6277
        %6279 = vmatmul.f32.gmra.mxu0 %v6278
        %v6280 = vpop.f32.mrf.mxu0
        %v6281 = vadd.f32 %v6154, %v6280
        %v6282 = vand.u32 %v5829, 4294901760
        %v6283 = vsub.f32 %v5829, %v6282
        %6284 = vmatmul.f32.gmra.mxu0 %v6283
        %v6285 = vpop.f32.mrf.mxu0
        %v6286 = vadd.f32 %v6158, %v6285
        %v6287 = vand.u32 %v5830, 4294901760
        %v6288 = vsub.f32 %v5830, %v6287
        %6289 = vmatmul.f32.gmra.mxu0 %v6288
        %v6290 = vpop.f32.mrf.mxu0
        %v6291 = vadd.f32 %v6162, %v6290
        %v6292 = vand.u32 %v5831, 4294901760
        %v6293 = vsub.f32 %v5831, %v6292
        %6294 = vmatmul.f32.gmra.mxu0 %v6293
        %v6295 = vpop.f32.mrf.mxu0
        %v6296 = vadd.f32 %v6166, %v6295
        %v6297 = vand.u32 %v5832, 4294901760
        %v6298 = vsub.f32 %v5832, %v6297
        %6299 = vmatmul.f32.gmra.mxu0 %v6298
        %v6300 = vpop.f32.mrf.mxu0
        %v6301 = vadd.f32 %v6170, %v6300
        %v6302 = vand.u32 %v5833, 4294901760
        %v6303 = vsub.f32 %v5833, %v6302
        %6304 = vmatmul.f32.gmra.mxu0 %v6303
        %v6305 = vpop.f32.mrf.mxu0
        %v6306 = vadd.f32 %v6174, %v6305
        %v6307 = vand.u32 %v5834, 4294901760
        %v6308 = vsub.f32 %v5834, %v6307
        %6309 = vmatmul.f32.gmra.mxu0 %v6308
        %v6310 = vpop.f32.mrf.mxu0
        %v6311 = vadd.f32 %v6178, %v6310
        %v6312 = vand.u32 %v5835, 4294901760
        %v6313 = vsub.f32 %v5835, %v6312
        %6314 = vmatmul.f32.gmra.mxu0 %v6313
        %v6315 = vpop.f32.mrf.mxu0
        %v6316 = vadd.f32 %v6182, %v6315
        %v6317 = vand.u32 %v5836, 4294901760
        %v6318 = vsub.f32 %v5836, %v6317
        %6319 = vmatmul.f32.gmra.mxu0 %v6318
        %v6320 = vpop.f32.mrf.mxu0
        %v6321 = vadd.f32 %v6186, %v6320
        %v6322 = vand.u32 %v5837, 4294901760
        %v6323 = vsub.f32 %v5837, %v6322
        %6324 = vmatmul.f32.gmra.mxu0 %v6323
        %v6325 = vpop.f32.mrf.mxu0
        %v6326 = vadd.f32 %v6190, %v6325
        %v6327 = vand.u32 %v5838, 4294901760
        %v6328 = vsub.f32 %v5838, %v6327
        %6329 = vmatmul.f32.gmra.mxu0 %v6328
        %v6330 = vpop.f32.mrf.mxu0
        %v6331 = vadd.f32 %v6194, %v6330
        %v6332 = vand.u32 %v5839, 4294901760
        %v6333 = vsub.f32 %v5839, %v6332
        %6334 = vmatmul.f32.gmra.mxu0 %v6333
        %v6335 = vpop.f32.mrf.mxu0
        %v6336 = vadd.f32 %v6198, %v6335
        %v6337 = vand.u32 %v5840, 4294901760
        %v6338 = vsub.f32 %v5840, %v6337
        %6339 = vmatmul.f32.gmra.mxu0 %v6338
        %v6340 = vpop.f32.mrf.mxu0
        %v6341 = vadd.f32 %v6202, %v6340
        %6342 = vdwg.mxu0
        %v6343 = vand.u32 %v5857, 4294901760
        %6344 = vmatpush.msra.mxu0 %v6343
        %v6345 = vand.u32 %v5856, 4294901760
        %6346 = vmatpush.msra.mxu0 %v6345
        %v6347 = vand.u32 %v5855, 4294901760
        %6348 = vmatpush.msra.mxu0 %v6347
        %v6349 = vand.u32 %v5854, 4294901760
        %6350 = vmatpush.msra.mxu0 %v6349
        %v6351 = vand.u32 %v5853, 4294901760
        %6352 = vmatpush.msra.mxu0 %v6351
        %v6353 = vand.u32 %v5852, 4294901760
        %6354 = vmatpush.msra.mxu0 %v6353
        %v6355 = vand.u32 %v5851, 4294901760
        %6356 = vmatpush.msra.mxu0 %v6355
        %v6357 = vand.u32 %v5850, 4294901760
        %6358 = vmatpush.msra.mxu0 %v6357
        %v6359 = vand.u32 %v5849, 4294901760
        %6360 = vmatpush.msra.mxu0 %v6359
        %v6361 = vand.u32 %v5848, 4294901760
        %6362 = vmatpush.msra.mxu0 %v6361
        %v6363 = vand.u32 %v5847, 4294901760
        %6364 = vmatpush.msra.mxu0 %v6363
        %v6365 = vand.u32 %v5846, 4294901760
        %6366 = vmatpush.msra.mxu0 %v6365
        %v6367 = vand.u32 %v5845, 4294901760
        %6368 = vmatpush.msra.mxu0 %v6367
        %v6369 = vand.u32 %v5844, 4294901760
        %6370 = vmatpush.msra.mxu0 %v6369
        %v6371 = vand.u32 %v5843, 4294901760
        %6372 = vmatpush.msra.mxu0 %v6371
        %v6373 = vand.u32 %v5842, 4294901760
        %6374 = vmatpush.msra.mxu0 %v6373
        %v6375 = vand.u32 %v5823, 4294901760
        %v6376 = vsub.f32 %v5823, %v6375
        %v6377 = vand.u32 %v6376, 4294901760
        %6378 = vmatmul.f32.gmra.mxu0 %v6377
        %v6379 = vpop.f32.mrf.mxu0
        %v6380 = vadd.f32 %v6256, %v6379
        %v6381 = vand.u32 %v5824, 4294901760
        %v6382 = vsub.f32 %v5824, %v6381
        %v6383 = vand.u32 %v6382, 4294901760
        %6384 = vmatmul.f32.gmra.mxu0 %v6383
        %v6385 = vpop.f32.mrf.mxu0
        %v6386 = vadd.f32 %v6261, %v6385
        %v6387 = vand.u32 %v5825, 4294901760
        %v6388 = vsub.f32 %v5825, %v6387
        %v6389 = vand.u32 %v6388, 4294901760
        %6390 = vmatmul.f32.gmra.mxu0 %v6389
        %v6391 = vpop.f32.mrf.mxu0
        %v6392 = vadd.f32 %v6266, %v6391
        %v6393 = vand.u32 %v5826, 4294901760
        %v6394 = vsub.f32 %v5826, %v6393
        %v6395 = vand.u32 %v6394, 4294901760
        %6396 = vmatmul.f32.gmra.mxu0 %v6395
        %v6397 = vpop.f32.mrf.mxu0
        %v6398 = vadd.f32 %v6271, %v6397
        %v6399 = vand.u32 %v5827, 4294901760
        %v6400 = vsub.f32 %v5827, %v6399
        %v6401 = vand.u32 %v6400, 4294901760
        %6402 = vmatmul.f32.gmra.mxu0 %v6401
        %v6403 = vpop.f32.mrf.mxu0
        %v6404 = vadd.f32 %v6276, %v6403
        %v6405 = vand.u32 %v5828, 4294901760
        %v6406 = vsub.f32 %v5828, %v6405
        %v6407 = vand.u32 %v6406, 4294901760
        %6408 = vmatmul.f32.gmra.mxu0 %v6407
        %v6409 = vpop.f32.mrf.mxu0
        %v6410 = vadd.f32 %v6281, %v6409
        %v6411 = vand.u32 %v5829, 4294901760
        %v6412 = vsub.f32 %v5829, %v6411
        %v6413 = vand.u32 %v6412, 4294901760
        %6414 = vmatmul.f32.gmra.mxu0 %v6413
        %v6415 = vpop.f32.mrf.mxu0
        %v6416 = vadd.f32 %v6286, %v6415
        %v6417 = vand.u32 %v5830, 4294901760
        %v6418 = vsub.f32 %v5830, %v6417
        %v6419 = vand.u32 %v6418, 4294901760
        %6420 = vmatmul.f32.gmra.mxu0 %v6419
        %v6421 = vpop.f32.mrf.mxu0
        %v6422 = vadd.f32 %v6291, %v6421
        %v6423 = vand.u32 %v5831, 4294901760
        %v6424 = vsub.f32 %v5831, %v6423
        %v6425 = vand.u32 %v6424, 4294901760
        %6426 = vmatmul.f32.gmra.mxu0 %v6425
        %v6427 = vpop.f32.mrf.mxu0
        %v6428 = vadd.f32 %v6296, %v6427
        %v6429 = vand.u32 %v5832, 4294901760
        %v6430 = vsub.f32 %v5832, %v6429
        %v6431 = vand.u32 %v6430, 4294901760
        %6432 = vmatmul.f32.gmra.mxu0 %v6431
        %v6433 = vpop.f32.mrf.mxu0
        %v6434 = vadd.f32 %v6301, %v6433
        %v6435 = vand.u32 %v5833, 4294901760
        %v6436 = vsub.f32 %v5833, %v6435
        %v6437 = vand.u32 %v6436, 4294901760
        %6438 = vmatmul.f32.gmra.mxu0 %v6437
        %v6439 = vpop.f32.mrf.mxu0
        %v6440 = vadd.f32 %v6306, %v6439
        %v6441 = vand.u32 %v5834, 4294901760
        %v6442 = vsub.f32 %v5834, %v6441
        %v6443 = vand.u32 %v6442, 4294901760
        %6444 = vmatmul.f32.gmra.mxu0 %v6443
        %v6445 = vpop.f32.mrf.mxu0
        %v6446 = vadd.f32 %v6311, %v6445
        %v6447 = vand.u32 %v5835, 4294901760
        %v6448 = vsub.f32 %v5835, %v6447
        %v6449 = vand.u32 %v6448, 4294901760
        %6450 = vmatmul.f32.gmra.mxu0 %v6449
        %v6451 = vpop.f32.mrf.mxu0
        %v6452 = vadd.f32 %v6316, %v6451
        %v6453 = vand.u32 %v5836, 4294901760
        %v6454 = vsub.f32 %v5836, %v6453
        %v6455 = vand.u32 %v6454, 4294901760
        %6456 = vmatmul.f32.gmra.mxu0 %v6455
        %v6457 = vpop.f32.mrf.mxu0
        %v6458 = vadd.f32 %v6321, %v6457
        %v6459 = vand.u32 %v5837, 4294901760
        %v6460 = vsub.f32 %v5837, %v6459
        %v6461 = vand.u32 %v6460, 4294901760
        %6462 = vmatmul.f32.gmra.mxu0 %v6461
        %v6463 = vpop.f32.mrf.mxu0
        %v6464 = vadd.f32 %v6326, %v6463
        %v6465 = vand.u32 %v5838, 4294901760
        %v6466 = vsub.f32 %v5838, %v6465
        %v6467 = vand.u32 %v6466, 4294901760
        %6468 = vmatmul.f32.gmra.mxu0 %v6467
        %v6469 = vpop.f32.mrf.mxu0
        %v6470 = vadd.f32 %v6331, %v6469
        %v6471 = vand.u32 %v5839, 4294901760
        %v6472 = vsub.f32 %v5839, %v6471
        %v6473 = vand.u32 %v6472, 4294901760
        %6474 = vmatmul.f32.gmra.mxu0 %v6473
        %v6475 = vpop.f32.mrf.mxu0
        %v6476 = vadd.f32 %v6336, %v6475
        %v6477 = vand.u32 %v5840, 4294901760
        %v6478 = vsub.f32 %v5840, %v6477
        %v6479 = vand.u32 %v6478, 4294901760
        %6480 = vmatmul.f32.gmra.mxu0 %v6479
        %v6481 = vpop.f32.mrf.mxu0
        %v6482 = vadd.f32 %v6341, %v6481
        %6483 = vdwg.mxu0
        %v6484 = vand.u32 %v5857, 4294901760
        %v6485 = vsub.f32 %v5857, %v6484
        %v6486 = vand.u32 %v6485, 4294901760
        %6487 = vmatpush.msra.mxu0 %v6486
        %v6488 = vand.u32 %v5856, 4294901760
        %v6489 = vsub.f32 %v5856, %v6488
        %v6490 = vand.u32 %v6489, 4294901760
        %6491 = vmatpush.msra.mxu0 %v6490
        %v6492 = vand.u32 %v5855, 4294901760
        %v6493 = vsub.f32 %v5855, %v6492
        %v6494 = vand.u32 %v6493, 4294901760
        %6495 = vmatpush.msra.mxu0 %v6494
        %v6496 = vand.u32 %v5854, 4294901760
        %v6497 = vsub.f32 %v5854, %v6496
        %v6498 = vand.u32 %v6497, 4294901760
        %6499 = vmatpush.msra.mxu0 %v6498
        %v6500 = vand.u32 %v5853, 4294901760
        %v6501 = vsub.f32 %v5853, %v6500
        %v6502 = vand.u32 %v6501, 4294901760
        %6503 = vmatpush.msra.mxu0 %v6502
        %v6504 = vand.u32 %v5852, 4294901760
        %v6505 = vsub.f32 %v5852, %v6504
        %v6506 = vand.u32 %v6505, 4294901760
        %6507 = vmatpush.msra.mxu0 %v6506
        %v6508 = vand.u32 %v5851, 4294901760
        %v6509 = vsub.f32 %v5851, %v6508
        %v6510 = vand.u32 %v6509, 4294901760
        %6511 = vmatpush.msra.mxu0 %v6510
        %v6512 = vand.u32 %v5850, 4294901760
        %v6513 = vsub.f32 %v5850, %v6512
        %v6514 = vand.u32 %v6513, 4294901760
        %6515 = vmatpush.msra.mxu0 %v6514
        %v6516 = vand.u32 %v5849, 4294901760
        %v6517 = vsub.f32 %v5849, %v6516
        %v6518 = vand.u32 %v6517, 4294901760
        %6519 = vmatpush.msra.mxu0 %v6518
        %v6520 = vand.u32 %v5848, 4294901760
        %v6521 = vsub.f32 %v5848, %v6520
        %v6522 = vand.u32 %v6521, 4294901760
        %6523 = vmatpush.msra.mxu0 %v6522
        %v6524 = vand.u32 %v5847, 4294901760
        %v6525 = vsub.f32 %v5847, %v6524
        %v6526 = vand.u32 %v6525, 4294901760
        %6527 = vmatpush.msra.mxu0 %v6526
        %v6528 = vand.u32 %v5846, 4294901760
        %v6529 = vsub.f32 %v5846, %v6528
        %v6530 = vand.u32 %v6529, 4294901760
        %6531 = vmatpush.msra.mxu0 %v6530
        %v6532 = vand.u32 %v5845, 4294901760
        %v6533 = vsub.f32 %v5845, %v6532
        %v6534 = vand.u32 %v6533, 4294901760
        %6535 = vmatpush.msra.mxu0 %v6534
        %v6536 = vand.u32 %v5844, 4294901760
        %v6537 = vsub.f32 %v5844, %v6536
        %v6538 = vand.u32 %v6537, 4294901760
        %6539 = vmatpush.msra.mxu0 %v6538
        %v6540 = vand.u32 %v5843, 4294901760
        %v6541 = vsub.f32 %v5843, %v6540
        %v6542 = vand.u32 %v6541, 4294901760
        %6543 = vmatpush.msra.mxu0 %v6542
        %v6544 = vand.u32 %v5842, 4294901760
        %v6545 = vsub.f32 %v5842, %v6544
        %v6546 = vand.u32 %v6545, 4294901760
        %6547 = vmatpush.msra.mxu0 %v6546
        %v6548 = vand.u32 %v5823, 4294901760
        %6549 = vmatmul.f32.gmra.mxu0 %v6548
        %v6550 = vpop.f32.mrf.mxu0
        %v6551 = vadd.f32 %v6380, %v6550
        %v6552 = vand.u32 %v5824, 4294901760
        %6553 = vmatmul.f32.gmra.mxu0 %v6552
        %v6554 = vpop.f32.mrf.mxu0
        %v6555 = vadd.f32 %v6386, %v6554
        %v6556 = vand.u32 %v5825, 4294901760
        %6557 = vmatmul.f32.gmra.mxu0 %v6556
        %v6558 = vpop.f32.mrf.mxu0
        %v6559 = vadd.f32 %v6392, %v6558
        %v6560 = vand.u32 %v5826, 4294901760
        %6561 = vmatmul.f32.gmra.mxu0 %v6560
        %v6562 = vpop.f32.mrf.mxu0
        %v6563 = vadd.f32 %v6398, %v6562
        %v6564 = vand.u32 %v5827, 4294901760
        %6565 = vmatmul.f32.gmra.mxu0 %v6564
        %v6566 = vpop.f32.mrf.mxu0
        %v6567 = vadd.f32 %v6404, %v6566
        %v6568 = vand.u32 %v5828, 4294901760
        %6569 = vmatmul.f32.gmra.mxu0 %v6568
        %v6570 = vpop.f32.mrf.mxu0
        %v6571 = vadd.f32 %v6410, %v6570
        %v6572 = vand.u32 %v5829, 4294901760
        %6573 = vmatmul.f32.gmra.mxu0 %v6572
        %v6574 = vpop.f32.mrf.mxu0
        %v6575 = vadd.f32 %v6416, %v6574
        %v6576 = vand.u32 %v5830, 4294901760
        %6577 = vmatmul.f32.gmra.mxu0 %v6576
        %v6578 = vpop.f32.mrf.mxu0
        %v6579 = vadd.f32 %v6422, %v6578
        %v6580 = vand.u32 %v5831, 4294901760
        %6581 = vmatmul.f32.gmra.mxu0 %v6580
        %v6582 = vpop.f32.mrf.mxu0
        %v6583 = vadd.f32 %v6428, %v6582
        %v6584 = vand.u32 %v5832, 4294901760
        %6585 = vmatmul.f32.gmra.mxu0 %v6584
        %v6586 = vpop.f32.mrf.mxu0
        %v6587 = vadd.f32 %v6434, %v6586
        %v6588 = vand.u32 %v5833, 4294901760
        %6589 = vmatmul.f32.gmra.mxu0 %v6588
        %v6590 = vpop.f32.mrf.mxu0
        %v6591 = vadd.f32 %v6440, %v6590
        %v6592 = vand.u32 %v5834, 4294901760
        %6593 = vmatmul.f32.gmra.mxu0 %v6592
        %v6594 = vpop.f32.mrf.mxu0
        %v6595 = vadd.f32 %v6446, %v6594
        %v6596 = vand.u32 %v5835, 4294901760
        %6597 = vmatmul.f32.gmra.mxu0 %v6596
        %v6598 = vpop.f32.mrf.mxu0
        %v6599 = vadd.f32 %v6452, %v6598
        %v6600 = vand.u32 %v5836, 4294901760
        %6601 = vmatmul.f32.gmra.mxu0 %v6600
        %v6602 = vpop.f32.mrf.mxu0
        %v6603 = vadd.f32 %v6458, %v6602
        %v6604 = vand.u32 %v5837, 4294901760
        %6605 = vmatmul.f32.gmra.mxu0 %v6604
        %v6606 = vpop.f32.mrf.mxu0
        %v6607 = vadd.f32 %v6464, %v6606
        %v6608 = vand.u32 %v5838, 4294901760
        %6609 = vmatmul.f32.gmra.mxu0 %v6608
        %v6610 = vpop.f32.mrf.mxu0
        %v6611 = vadd.f32 %v6470, %v6610
        %v6612 = vand.u32 %v5839, 4294901760
        %6613 = vmatmul.f32.gmra.mxu0 %v6612
        %v6614 = vpop.f32.mrf.mxu0
        %v6615 = vadd.f32 %v6476, %v6614
        %v6616 = vand.u32 %v5840, 4294901760
        %6617 = vmatmul.f32.gmra.mxu0 %v6616
        %v6618 = vpop.f32.mrf.mxu0
        %v6619 = vadd.f32 %v6482, %v6618
        %6620 = vdwg.mxu0
        %v6621 = vand.u32 %v5857, 4294901760
        %6622 = vmatpush.msra.mxu0 %v6621
        %v6623 = vand.u32 %v5856, 4294901760
        %6624 = vmatpush.msra.mxu0 %v6623
        %v6625 = vand.u32 %v5855, 4294901760
        %6626 = vmatpush.msra.mxu0 %v6625
        %v6627 = vand.u32 %v5854, 4294901760
        %6628 = vmatpush.msra.mxu0 %v6627
        %v6629 = vand.u32 %v5853, 4294901760
        %6630 = vmatpush.msra.mxu0 %v6629
        %v6631 = vand.u32 %v5852, 4294901760
        %6632 = vmatpush.msra.mxu0 %v6631
        %v6633 = vand.u32 %v5851, 4294901760
        %6634 = vmatpush.msra.mxu0 %v6633
        %v6635 = vand.u32 %v5850, 4294901760
        %6636 = vmatpush.msra.mxu0 %v6635
        %v6637 = vand.u32 %v5849, 4294901760
        %6638 = vmatpush.msra.mxu0 %v6637
        %v6639 = vand.u32 %v5848, 4294901760
        %6640 = vmatpush.msra.mxu0 %v6639
        %v6641 = vand.u32 %v5847, 4294901760
        %6642 = vmatpush.msra.mxu0 %v6641
        %v6643 = vand.u32 %v5846, 4294901760
        %6644 = vmatpush.msra.mxu0 %v6643
        %v6645 = vand.u32 %v5845, 4294901760
        %6646 = vmatpush.msra.mxu0 %v6645
        %v6647 = vand.u32 %v5844, 4294901760
        %6648 = vmatpush.msra.mxu0 %v6647
        %v6649 = vand.u32 %v5843, 4294901760
        %6650 = vmatpush.msra.mxu0 %v6649
        %v6651 = vand.u32 %v5842, 4294901760
        %6652 = vmatpush.msra.mxu0 %v6651
        %v6653 = vand.u32 %v5823, 4294901760
        %6654 = vmatmul.f32.gmra.mxu0 %v6653
        %v6655 = vpop.f32.mrf.mxu0
        %v6656 = vadd.f32 %v6551, %v6655
        %v6657 = vand.u32 %v5824, 4294901760
        %6658 = vmatmul.f32.gmra.mxu0 %v6657
        %v6659 = vpop.f32.mrf.mxu0
        %v6660 = vadd.f32 %v6555, %v6659
        %v6661 = vand.u32 %v5825, 4294901760
        %6662 = vmatmul.f32.gmra.mxu0 %v6661
        %v6663 = vpop.f32.mrf.mxu0
        %v6664 = vadd.f32 %v6559, %v6663
        %v6665 = vand.u32 %v5826, 4294901760
        %6666 = vmatmul.f32.gmra.mxu0 %v6665
        %v6667 = vpop.f32.mrf.mxu0
        %v6668 = vadd.f32 %v6563, %v6667
        %v6669 = vand.u32 %v5827, 4294901760
        %6670 = vmatmul.f32.gmra.mxu0 %v6669
        %v6671 = vpop.f32.mrf.mxu0
        %v6672 = vadd.f32 %v6567, %v6671
        %v6673 = vand.u32 %v5828, 4294901760
        %6674 = vmatmul.f32.gmra.mxu0 %v6673
        %v6675 = vpop.f32.mrf.mxu0
        %v6676 = vadd.f32 %v6571, %v6675
        %v6677 = vand.u32 %v5829, 4294901760
        %6678 = vmatmul.f32.gmra.mxu0 %v6677
        %v6679 = vpop.f32.mrf.mxu0
        %v6680 = vadd.f32 %v6575, %v6679
        %v6681 = vand.u32 %v5830, 4294901760
        %6682 = vmatmul.f32.gmra.mxu0 %v6681
        %v6683 = vpop.f32.mrf.mxu0
        %v6684 = vadd.f32 %v6579, %v6683
        %v6685 = vand.u32 %v5831, 4294901760
        %6686 = vmatmul.f32.gmra.mxu0 %v6685
        %v6687 = vpop.f32.mrf.mxu0
        %v6688 = vadd.f32 %v6583, %v6687
        %v6689 = vand.u32 %v5832, 4294901760
        %6690 = vmatmul.f32.gmra.mxu0 %v6689
        %v6691 = vpop.f32.mrf.mxu0
        %v6692 = vadd.f32 %v6587, %v6691
        %v6693 = vand.u32 %v5833, 4294901760
        %6694 = vmatmul.f32.gmra.mxu0 %v6693
        %v6695 = vpop.f32.mrf.mxu0
        %v6696 = vadd.f32 %v6591, %v6695
        %v6697 = vand.u32 %v5834, 4294901760
        %6698 = vmatmul.f32.gmra.mxu0 %v6697
        %v6699 = vpop.f32.mrf.mxu0
        %v6700 = vadd.f32 %v6595, %v6699
        %v6701 = vand.u32 %v5835, 4294901760
        %6702 = vmatmul.f32.gmra.mxu0 %v6701
        %v6703 = vpop.f32.mrf.mxu0
        %v6704 = vadd.f32 %v6599, %v6703
        %v6705 = vand.u32 %v5836, 4294901760
        %6706 = vmatmul.f32.gmra.mxu0 %v6705
        %v6707 = vpop.f32.mrf.mxu0
        %v6708 = vadd.f32 %v6603, %v6707
        %v6709 = vand.u32 %v5837, 4294901760
        %6710 = vmatmul.f32.gmra.mxu0 %v6709
        %v6711 = vpop.f32.mrf.mxu0
        %v6712 = vadd.f32 %v6607, %v6711
        %v6713 = vand.u32 %v5838, 4294901760
        %6714 = vmatmul.f32.gmra.mxu0 %v6713
        %v6715 = vpop.f32.mrf.mxu0
        %v6716 = vadd.f32 %v6611, %v6715
        %v6717 = vand.u32 %v5839, 4294901760
        %6718 = vmatmul.f32.gmra.mxu0 %v6717
        %v6719 = vpop.f32.mrf.mxu0
        %v6720 = vadd.f32 %v6615, %v6719
        %v6721 = vand.u32 %v5840, 4294901760
        %6722 = vmatmul.f32.gmra.mxu0 %v6721
        %v6723 = vpop.f32.mrf.mxu0
        %v6724 = vadd.f32 %v6619, %v6723
        %6725 = vdwg.mxu0
        %v6726 = vadd.f32 %v5805, %v6656
        %v6727 = vadd.f32 %v5806, %v6660
        %v6728 = vadd.f32 %v5807, %v6664
        %v6729 = vadd.f32 %v5808, %v6668
        %v6730 = vadd.f32 %v5809, %v6672
        %v6731 = vadd.f32 %v5810, %v6676
        %v6732 = vadd.f32 %v5811, %v6680
        %v6733 = vadd.f32 %v5812, %v6684
        %v6734 = vadd.f32 %v5813, %v6688
        %v6735 = vadd.f32 %v5814, %v6692
        %v6736 = vadd.f32 %v5815, %v6696
        %v6737 = vadd.f32 %v5816, %v6700
        %v6738 = vadd.f32 %v5817, %v6704
        %v6739 = vadd.f32 %v5818, %v6708
        %v6740 = vadd.f32 %v5819, %v6712
        %v6741 = vadd.f32 %v5820, %v6716
        %v6742 = vadd.f32 %v5821, %v6720
        %v6743 = vadd.f32 %v5822, %v6724
        %v6744 = vld [vmem:[%s333 + $0x25] sm:$0xff]
        %v6745 = vld [vmem:[%s333 + $0x2d] sm:$0xff]
        %v6746 = vld [vmem:[%s333 + $0x35] sm:$0xff]
        %v6747 = vld [vmem:[%s333 + $0x3d] sm:$0xff]
        %v6748 = vld [vmem:[%s333 + $0x45] sm:$0xff]
        %v6749 = vld [vmem:[%s333 + $0x4d] sm:$0xff]
        %v6750 = vld [vmem:[%s333 + $0x55] sm:$0xff]
        %v6751 = vld [vmem:[%s333 + $0x5d] sm:$0xff]
        %v6752 = vld [vmem:[%s333 + $0x65] sm:$0xff]
        %v6753 = vld [vmem:[%s333 + $0x6d] sm:$0xff]
        %v6754 = vld [vmem:[%s333 + $0x75] sm:$0xff]
        %v6755 = vld [vmem:[%s333 + $0x7d] sm:$0xff]
        %v6756 = vld [vmem:[%s333 + $0x85] sm:$0xff]
        %v6757 = vld [vmem:[%s333 + $0x8d] sm:$0xff]
        %v6758 = vld [vmem:[%s333 + $0x95] sm:$0xff]
        %v6759 = vld [vmem:[%s333 + $0x9d] sm:$0xff]
        %v6760 = vld [vmem:[%s333 + $0xa5] sm:$0xff]
        %v6761 = vld [vmem:[%s333 + $0xad] sm:$0xff]
        %s6762 = scalar_lea.vmem %s1, 896
        %v6763 = vld [vmem:[%s6762] sm:$0xff]
        %v6764 = vld [vmem:[%s6762 + $0x8] sm:$0xff]
        %v6765 = vld [vmem:[%s6762 + $0x10] sm:$0xff]
        %v6766 = vld [vmem:[%s6762 + $0x18] sm:$0xff]
        %v6767 = vld [vmem:[%s6762 + $0x20] sm:$0xff]
        %v6768 = vld [vmem:[%s6762 + $0x28] sm:$0xff]
        %v6769 = vld [vmem:[%s6762 + $0x30] sm:$0xff]
        %v6770 = vld [vmem:[%s6762 + $0x38] sm:$0xff]
        %v6771 = vld [vmem:[%s6762 + $0x40] sm:$0xff]
        %v6772 = vld [vmem:[%s6762 + $0x48] sm:$0xff]
        %v6773 = vld [vmem:[%s6762 + $0x50] sm:$0xff]
        %v6774 = vld [vmem:[%s6762 + $0x58] sm:$0xff]
        %v6775 = vld [vmem:[%s6762 + $0x60] sm:$0xff]
        %v6776 = vld [vmem:[%s6762 + $0x68] sm:$0xff]
        %v6777 = vld [vmem:[%s6762 + $0x70] sm:$0xff]
        %v6778 = vld [vmem:[%s6762 + $0x78] sm:$0xff]
        %v6779 = vand.u32 %v6778, 4294901760
        %6780 = vmatpush.msra.mxu0 %v6779
        %v6781 = vand.u32 %v6777, 4294901760
        %6782 = vmatpush.msra.mxu0 %v6781
        %v6783 = vand.u32 %v6776, 4294901760
        %6784 = vmatpush.msra.mxu0 %v6783
        %v6785 = vand.u32 %v6775, 4294901760
        %6786 = vmatpush.msra.mxu0 %v6785
        %v6787 = vand.u32 %v6774, 4294901760
        %6788 = vmatpush.msra.mxu0 %v6787
        %v6789 = vand.u32 %v6773, 4294901760
        %6790 = vmatpush.msra.mxu0 %v6789
        %v6791 = vand.u32 %v6772, 4294901760
        %6792 = vmatpush.msra.mxu0 %v6791
        %v6793 = vand.u32 %v6771, 4294901760
        %6794 = vmatpush.msra.mxu0 %v6793
        %v6795 = vand.u32 %v6770, 4294901760
        %6796 = vmatpush.msra.mxu0 %v6795
        %v6797 = vand.u32 %v6769, 4294901760
        %6798 = vmatpush.msra.mxu0 %v6797
        %v6799 = vand.u32 %v6768, 4294901760
        %6800 = vmatpush.msra.mxu0 %v6799
        %v6801 = vand.u32 %v6767, 4294901760
        %6802 = vmatpush.msra.mxu0 %v6801
        %v6803 = vand.u32 %v6766, 4294901760
        %6804 = vmatpush.msra.mxu0 %v6803
        %v6805 = vand.u32 %v6765, 4294901760
        %6806 = vmatpush.msra.mxu0 %v6805
        %v6807 = vand.u32 %v6764, 4294901760
        %6808 = vmatpush.msra.mxu0 %v6807
        %v6809 = vand.u32 %v6763, 4294901760
        %6810 = vmatpush.msra.mxu0 %v6809
        %v6811 = vand.u32 %v6744, 4294901760
        %v6812 = vsub.f32 %v6744, %v6811
        %v6813 = vand.u32 %v6812, 4294901760
        %v6814 = vsub.f32 %v6812, %v6813
        %v6815 = vand.u32 %v6814, 4294901760
        %6816 = vmatmul.f32.gmra.mxu0 %v6815
        %v6817 = vpop.f32.mrf.mxu0
        %v6818 = vadd.f32 0.0, %v6817
        %v6819 = vand.u32 %v6745, 4294901760
        %v6820 = vsub.f32 %v6745, %v6819
        %v6821 = vand.u32 %v6820, 4294901760
        %v6822 = vsub.f32 %v6820, %v6821
        %v6823 = vand.u32 %v6822, 4294901760
        %6824 = vmatmul.f32.gmra.mxu0 %v6823
        %v6825 = vpop.f32.mrf.mxu0
        %v6826 = vadd.f32 0.0, %v6825
        %v6827 = vand.u32 %v6746, 4294901760
        %v6828 = vsub.f32 %v6746, %v6827
        %v6829 = vand.u32 %v6828, 4294901760
        %v6830 = vsub.f32 %v6828, %v6829
        %v6831 = vand.u32 %v6830, 4294901760
        %6832 = vmatmul.f32.gmra.mxu0 %v6831
        %v6833 = vpop.f32.mrf.mxu0
        %v6834 = vadd.f32 0.0, %v6833
        %v6835 = vand.u32 %v6747, 4294901760
        %v6836 = vsub.f32 %v6747, %v6835
        %v6837 = vand.u32 %v6836, 4294901760
        %v6838 = vsub.f32 %v6836, %v6837
        %v6839 = vand.u32 %v6838, 4294901760
        %6840 = vmatmul.f32.gmra.mxu0 %v6839
        %v6841 = vpop.f32.mrf.mxu0
        %v6842 = vadd.f32 0.0, %v6841
        %v6843 = vand.u32 %v6748, 4294901760
        %v6844 = vsub.f32 %v6748, %v6843
        %v6845 = vand.u32 %v6844, 4294901760
        %v6846 = vsub.f32 %v6844, %v6845
        %v6847 = vand.u32 %v6846, 4294901760
        %6848 = vmatmul.f32.gmra.mxu0 %v6847
        %v6849 = vpop.f32.mrf.mxu0
        %v6850 = vadd.f32 0.0, %v6849
        %v6851 = vand.u32 %v6749, 4294901760
        %v6852 = vsub.f32 %v6749, %v6851
        %v6853 = vand.u32 %v6852, 4294901760
        %v6854 = vsub.f32 %v6852, %v6853
        %v6855 = vand.u32 %v6854, 4294901760
        %6856 = vmatmul.f32.gmra.mxu0 %v6855
        %v6857 = vpop.f32.mrf.mxu0
        %v6858 = vadd.f32 0.0, %v6857
        %v6859 = vand.u32 %v6750, 4294901760
        %v6860 = vsub.f32 %v6750, %v6859
        %v6861 = vand.u32 %v6860, 4294901760
        %v6862 = vsub.f32 %v6860, %v6861
        %v6863 = vand.u32 %v6862, 4294901760
        %6864 = vmatmul.f32.gmra.mxu0 %v6863
        %v6865 = vpop.f32.mrf.mxu0
        %v6866 = vadd.f32 0.0, %v6865
        %v6867 = vand.u32 %v6751, 4294901760
        %v6868 = vsub.f32 %v6751, %v6867
        %v6869 = vand.u32 %v6868, 4294901760
        %v6870 = vsub.f32 %v6868, %v6869
        %v6871 = vand.u32 %v6870, 4294901760
        %6872 = vmatmul.f32.gmra.mxu0 %v6871
        %v6873 = vpop.f32.mrf.mxu0
        %v6874 = vadd.f32 0.0, %v6873
        %v6875 = vand.u32 %v6752, 4294901760
        %v6876 = vsub.f32 %v6752, %v6875
        %v6877 = vand.u32 %v6876, 4294901760
        %v6878 = vsub.f32 %v6876, %v6877
        %v6879 = vand.u32 %v6878, 4294901760
        %6880 = vmatmul.f32.gmra.mxu0 %v6879
        %v6881 = vpop.f32.mrf.mxu0
        %v6882 = vadd.f32 0.0, %v6881
        %v6883 = vand.u32 %v6753, 4294901760
        %v6884 = vsub.f32 %v6753, %v6883
        %v6885 = vand.u32 %v6884, 4294901760
        %v6886 = vsub.f32 %v6884, %v6885
        %v6887 = vand.u32 %v6886, 4294901760
        %6888 = vmatmul.f32.gmra.mxu0 %v6887
        %v6889 = vpop.f32.mrf.mxu0
        %v6890 = vadd.f32 0.0, %v6889
        %v6891 = vand.u32 %v6754, 4294901760
        %v6892 = vsub.f32 %v6754, %v6891
        %v6893 = vand.u32 %v6892, 4294901760
        %v6894 = vsub.f32 %v6892, %v6893
        %v6895 = vand.u32 %v6894, 4294901760
        %6896 = vmatmul.f32.gmra.mxu0 %v6895
        %v6897 = vpop.f32.mrf.mxu0
        %v6898 = vadd.f32 0.0, %v6897
        %v6899 = vand.u32 %v6755, 4294901760
        %v6900 = vsub.f32 %v6755, %v6899
        %v6901 = vand.u32 %v6900, 4294901760
        %v6902 = vsub.f32 %v6900, %v6901
        %v6903 = vand.u32 %v6902, 4294901760
        %6904 = vmatmul.f32.gmra.mxu0 %v6903
        %v6905 = vpop.f32.mrf.mxu0
        %v6906 = vadd.f32 0.0, %v6905
        %v6907 = vand.u32 %v6756, 4294901760
        %v6908 = vsub.f32 %v6756, %v6907
        %v6909 = vand.u32 %v6908, 4294901760
        %v6910 = vsub.f32 %v6908, %v6909
        %v6911 = vand.u32 %v6910, 4294901760
        %6912 = vmatmul.f32.gmra.mxu0 %v6911
        %v6913 = vpop.f32.mrf.mxu0
        %v6914 = vadd.f32 0.0, %v6913
        %v6915 = vand.u32 %v6757, 4294901760
        %v6916 = vsub.f32 %v6757, %v6915
        %v6917 = vand.u32 %v6916, 4294901760
        %v6918 = vsub.f32 %v6916, %v6917
        %v6919 = vand.u32 %v6918, 4294901760
        %6920 = vmatmul.f32.gmra.mxu0 %v6919
        %v6921 = vpop.f32.mrf.mxu0
        %v6922 = vadd.f32 0.0, %v6921
        %v6923 = vand.u32 %v6758, 4294901760
        %v6924 = vsub.f32 %v6758, %v6923
        %v6925 = vand.u32 %v6924, 4294901760
        %v6926 = vsub.f32 %v6924, %v6925
        %v6927 = vand.u32 %v6926, 4294901760
        %6928 = vmatmul.f32.gmra.mxu0 %v6927
        %v6929 = vpop.f32.mrf.mxu0
        %v6930 = vadd.f32 0.0, %v6929
        %v6931 = vand.u32 %v6759, 4294901760
        %v6932 = vsub.f32 %v6759, %v6931
        %v6933 = vand.u32 %v6932, 4294901760
        %v6934 = vsub.f32 %v6932, %v6933
        %v6935 = vand.u32 %v6934, 4294901760
        %6936 = vmatmul.f32.gmra.mxu0 %v6935
        %v6937 = vpop.f32.mrf.mxu0
        %v6938 = vadd.f32 0.0, %v6937
        %v6939 = vand.u32 %v6760, 4294901760
        %v6940 = vsub.f32 %v6760, %v6939
        %v6941 = vand.u32 %v6940, 4294901760
        %v6942 = vsub.f32 %v6940, %v6941
        %v6943 = vand.u32 %v6942, 4294901760
        %6944 = vmatmul.f32.gmra.mxu0 %v6943
        %v6945 = vpop.f32.mrf.mxu0
        %v6946 = vadd.f32 0.0, %v6945
        %v6947 = vand.u32 %v6761, 4294901760
        %v6948 = vsub.f32 %v6761, %v6947
        %v6949 = vand.u32 %v6948, 4294901760
        %v6950 = vsub.f32 %v6948, %v6949
        %v6951 = vand.u32 %v6950, 4294901760
        %6952 = vmatmul.f32.gmra.mxu0 %v6951
        %v6953 = vpop.f32.mrf.mxu0
        %v6954 = vadd.f32 0.0, %v6953
        %6955 = vdwg.mxu0
        %v6956 = vand.u32 %v6778, 4294901760
        %v6957 = vsub.f32 %v6778, %v6956
        %v6958 = vand.u32 %v6957, 4294901760
        %v6959 = vsub.f32 %v6957, %v6958
        %v6960 = vand.u32 %v6959, 4294901760
        %6961 = vmatpush.msra.mxu0 %v6960
        %v6962 = vand.u32 %v6777, 4294901760
        %v6963 = vsub.f32 %v6777, %v6962
        %v6964 = vand.u32 %v6963, 4294901760
        %v6965 = vsub.f32 %v6963, %v6964
        %v6966 = vand.u32 %v6965, 4294901760
        %6967 = vmatpush.msra.mxu0 %v6966
        %v6968 = vand.u32 %v6776, 4294901760
        %v6969 = vsub.f32 %v6776, %v6968
        %v6970 = vand.u32 %v6969, 4294901760
        %v6971 = vsub.f32 %v6969, %v6970
        %v6972 = vand.u32 %v6971, 4294901760
        %6973 = vmatpush.msra.mxu0 %v6972
        %v6974 = vand.u32 %v6775, 4294901760
        %v6975 = vsub.f32 %v6775, %v6974
        %v6976 = vand.u32 %v6975, 4294901760
        %v6977 = vsub.f32 %v6975, %v6976
        %v6978 = vand.u32 %v6977, 4294901760
        %6979 = vmatpush.msra.mxu0 %v6978
        %v6980 = vand.u32 %v6774, 4294901760
        %v6981 = vsub.f32 %v6774, %v6980
        %v6982 = vand.u32 %v6981, 4294901760
        %v6983 = vsub.f32 %v6981, %v6982
        %v6984 = vand.u32 %v6983, 4294901760
        %6985 = vmatpush.msra.mxu0 %v6984
        %v6986 = vand.u32 %v6773, 4294901760
        %v6987 = vsub.f32 %v6773, %v6986
        %v6988 = vand.u32 %v6987, 4294901760
        %v6989 = vsub.f32 %v6987, %v6988
        %v6990 = vand.u32 %v6989, 4294901760
        %6991 = vmatpush.msra.mxu0 %v6990
        %v6992 = vand.u32 %v6772, 4294901760
        %v6993 = vsub.f32 %v6772, %v6992
        %v6994 = vand.u32 %v6993, 4294901760
        %v6995 = vsub.f32 %v6993, %v6994
        %v6996 = vand.u32 %v6995, 4294901760
        %6997 = vmatpush.msra.mxu0 %v6996
        %v6998 = vand.u32 %v6771, 4294901760
        %v6999 = vsub.f32 %v6771, %v6998
        %v7000 = vand.u32 %v6999, 4294901760
        %v7001 = vsub.f32 %v6999, %v7000
        %v7002 = vand.u32 %v7001, 4294901760
        %7003 = vmatpush.msra.mxu0 %v7002
        %v7004 = vand.u32 %v6770, 4294901760
        %v7005 = vsub.f32 %v6770, %v7004
        %v7006 = vand.u32 %v7005, 4294901760
        %v7007 = vsub.f32 %v7005, %v7006
        %v7008 = vand.u32 %v7007, 4294901760
        %7009 = vmatpush.msra.mxu0 %v7008
        %v7010 = vand.u32 %v6769, 4294901760
        %v7011 = vsub.f32 %v6769, %v7010
        %v7012 = vand.u32 %v7011, 4294901760
        %v7013 = vsub.f32 %v7011, %v7012
        %v7014 = vand.u32 %v7013, 4294901760
        %7015 = vmatpush.msra.mxu0 %v7014
        %v7016 = vand.u32 %v6768, 4294901760
        %v7017 = vsub.f32 %v6768, %v7016
        %v7018 = vand.u32 %v7017, 4294901760
        %v7019 = vsub.f32 %v7017, %v7018
        %v7020 = vand.u32 %v7019, 4294901760
        %7021 = vmatpush.msra.mxu0 %v7020
        %v7022 = vand.u32 %v6767, 4294901760
        %v7023 = vsub.f32 %v6767, %v7022
        %v7024 = vand.u32 %v7023, 4294901760
        %v7025 = vsub.f32 %v7023, %v7024
        %v7026 = vand.u32 %v7025, 4294901760
        %7027 = vmatpush.msra.mxu0 %v7026
        %v7028 = vand.u32 %v6766, 4294901760
        %v7029 = vsub.f32 %v6766, %v7028
        %v7030 = vand.u32 %v7029, 4294901760
        %v7031 = vsub.f32 %v7029, %v7030
        %v7032 = vand.u32 %v7031, 4294901760
        %7033 = vmatpush.msra.mxu0 %v7032
        %v7034 = vand.u32 %v6765, 4294901760
        %v7035 = vsub.f32 %v6765, %v7034
        %v7036 = vand.u32 %v7035, 4294901760
        %v7037 = vsub.f32 %v7035, %v7036
        %v7038 = vand.u32 %v7037, 4294901760
        %7039 = vmatpush.msra.mxu0 %v7038
        %v7040 = vand.u32 %v6764, 4294901760
        %v7041 = vsub.f32 %v6764, %v7040
        %v7042 = vand.u32 %v7041, 4294901760
        %v7043 = vsub.f32 %v7041, %v7042
        %v7044 = vand.u32 %v7043, 4294901760
        %7045 = vmatpush.msra.mxu0 %v7044
        %v7046 = vand.u32 %v6763, 4294901760
        %v7047 = vsub.f32 %v6763, %v7046
        %v7048 = vand.u32 %v7047, 4294901760
        %v7049 = vsub.f32 %v7047, %v7048
        %v7050 = vand.u32 %v7049, 4294901760
        %7051 = vmatpush.msra.mxu0 %v7050
        %v7052 = vand.u32 %v6744, 4294901760
        %7053 = vmatmul.f32.gmra.mxu0 %v7052
        %v7054 = vpop.f32.mrf.mxu0
        %v7055 = vadd.f32 %v6818, %v7054
        %v7056 = vand.u32 %v6745, 4294901760
        %7057 = vmatmul.f32.gmra.mxu0 %v7056
        %v7058 = vpop.f32.mrf.mxu0
        %v7059 = vadd.f32 %v6826, %v7058
        %v7060 = vand.u32 %v6746, 4294901760
        %7061 = vmatmul.f32.gmra.mxu0 %v7060
        %v7062 = vpop.f32.mrf.mxu0
        %v7063 = vadd.f32 %v6834, %v7062
        %v7064 = vand.u32 %v6747, 4294901760
        %7065 = vmatmul.f32.gmra.mxu0 %v7064
        %v7066 = vpop.f32.mrf.mxu0
        %v7067 = vadd.f32 %v6842, %v7066
        %v7068 = vand.u32 %v6748, 4294901760
        %7069 = vmatmul.f32.gmra.mxu0 %v7068
        %v7070 = vpop.f32.mrf.mxu0
        %v7071 = vadd.f32 %v6850, %v7070
        %v7072 = vand.u32 %v6749, 4294901760
        %7073 = vmatmul.f32.gmra.mxu0 %v7072
        %v7074 = vpop.f32.mrf.mxu0
        %v7075 = vadd.f32 %v6858, %v7074
        %v7076 = vand.u32 %v6750, 4294901760
        %7077 = vmatmul.f32.gmra.mxu0 %v7076
        %v7078 = vpop.f32.mrf.mxu0
        %v7079 = vadd.f32 %v6866, %v7078
        %v7080 = vand.u32 %v6751, 4294901760
        %7081 = vmatmul.f32.gmra.mxu0 %v7080
        %v7082 = vpop.f32.mrf.mxu0
        %v7083 = vadd.f32 %v6874, %v7082
        %v7084 = vand.u32 %v6752, 4294901760
        %7085 = vmatmul.f32.gmra.mxu0 %v7084
        %v7086 = vpop.f32.mrf.mxu0
        %v7087 = vadd.f32 %v6882, %v7086
        %v7088 = vand.u32 %v6753, 4294901760
        %7089 = vmatmul.f32.gmra.mxu0 %v7088
        %v7090 = vpop.f32.mrf.mxu0
        %v7091 = vadd.f32 %v6890, %v7090
        %v7092 = vand.u32 %v6754, 4294901760
        %7093 = vmatmul.f32.gmra.mxu0 %v7092
        %v7094 = vpop.f32.mrf.mxu0
        %v7095 = vadd.f32 %v6898, %v7094
        %v7096 = vand.u32 %v6755, 4294901760
        %7097 = vmatmul.f32.gmra.mxu0 %v7096
        %v7098 = vpop.f32.mrf.mxu0
        %v7099 = vadd.f32 %v6906, %v7098
        %v7100 = vand.u32 %v6756, 4294901760
        %7101 = vmatmul.f32.gmra.mxu0 %v7100
        %v7102 = vpop.f32.mrf.mxu0
        %v7103 = vadd.f32 %v6914, %v7102
        %v7104 = vand.u32 %v6757, 4294901760
        %7105 = vmatmul.f32.gmra.mxu0 %v7104
        %v7106 = vpop.f32.mrf.mxu0
        %v7107 = vadd.f32 %v6922, %v7106
        %v7108 = vand.u32 %v6758, 4294901760
        %7109 = vmatmul.f32.gmra.mxu0 %v7108
        %v7110 = vpop.f32.mrf.mxu0
        %v7111 = vadd.f32 %v6930, %v7110
        %v7112 = vand.u32 %v6759, 4294901760
        %7113 = vmatmul.f32.gmra.mxu0 %v7112
        %v7114 = vpop.f32.mrf.mxu0
        %v7115 = vadd.f32 %v6938, %v7114
        %v7116 = vand.u32 %v6760, 4294901760
        %7117 = vmatmul.f32.gmra.mxu0 %v7116
        %v7118 = vpop.f32.mrf.mxu0
        %v7119 = vadd.f32 %v6946, %v7118
        %v7120 = vand.u32 %v6761, 4294901760
        %7121 = vmatmul.f32.gmra.mxu0 %v7120
        %v7122 = vpop.f32.mrf.mxu0
        %v7123 = vadd.f32 %v6954, %v7122
        %7124 = vdwg.mxu0
        %v7125 = vand.u32 %v6778, 4294901760
        %v7126 = vsub.f32 %v6778, %v7125
        %7127 = vmatpush.msra.mxu0 %v7126
        %v7128 = vand.u32 %v6777, 4294901760
        %v7129 = vsub.f32 %v6777, %v7128
        %7130 = vmatpush.msra.mxu0 %v7129
        %v7131 = vand.u32 %v6776, 4294901760
        %v7132 = vsub.f32 %v6776, %v7131
        %7133 = vmatpush.msra.mxu0 %v7132
        %v7134 = vand.u32 %v6775, 4294901760
        %v7135 = vsub.f32 %v6775, %v7134
        %7136 = vmatpush.msra.mxu0 %v7135
        %v7137 = vand.u32 %v6774, 4294901760
        %v7138 = vsub.f32 %v6774, %v7137
        %7139 = vmatpush.msra.mxu0 %v7138
        %v7140 = vand.u32 %v6773, 4294901760
        %v7141 = vsub.f32 %v6773, %v7140
        %7142 = vmatpush.msra.mxu0 %v7141
        %v7143 = vand.u32 %v6772, 4294901760
        %v7144 = vsub.f32 %v6772, %v7143
        %7145 = vmatpush.msra.mxu0 %v7144
        %v7146 = vand.u32 %v6771, 4294901760
        %v7147 = vsub.f32 %v6771, %v7146
        %7148 = vmatpush.msra.mxu0 %v7147
        %v7149 = vand.u32 %v6770, 4294901760
        %v7150 = vsub.f32 %v6770, %v7149
        %7151 = vmatpush.msra.mxu0 %v7150
        %v7152 = vand.u32 %v6769, 4294901760
        %v7153 = vsub.f32 %v6769, %v7152
        %7154 = vmatpush.msra.mxu0 %v7153
        %v7155 = vand.u32 %v6768, 4294901760
        %v7156 = vsub.f32 %v6768, %v7155
        %7157 = vmatpush.msra.mxu0 %v7156
        %v7158 = vand.u32 %v6767, 4294901760
        %v7159 = vsub.f32 %v6767, %v7158
        %7160 = vmatpush.msra.mxu0 %v7159
        %v7161 = vand.u32 %v6766, 4294901760
        %v7162 = vsub.f32 %v6766, %v7161
        %7163 = vmatpush.msra.mxu0 %v7162
        %v7164 = vand.u32 %v6765, 4294901760
        %v7165 = vsub.f32 %v6765, %v7164
        %7166 = vmatpush.msra.mxu0 %v7165
        %v7167 = vand.u32 %v6764, 4294901760
        %v7168 = vsub.f32 %v6764, %v7167
        %7169 = vmatpush.msra.mxu0 %v7168
        %v7170 = vand.u32 %v6763, 4294901760
        %v7171 = vsub.f32 %v6763, %v7170
        %7172 = vmatpush.msra.mxu0 %v7171
        %v7173 = vand.u32 %v6744, 4294901760
        %v7174 = vsub.f32 %v6744, %v7173
        %7175 = vmatmul.f32.gmra.mxu0 %v7174
        %v7176 = vpop.f32.mrf.mxu0
        %v7177 = vadd.f32 %v7055, %v7176
        %v7178 = vand.u32 %v6745, 4294901760
        %v7179 = vsub.f32 %v6745, %v7178
        %7180 = vmatmul.f32.gmra.mxu0 %v7179
        %v7181 = vpop.f32.mrf.mxu0
        %v7182 = vadd.f32 %v7059, %v7181
        %v7183 = vand.u32 %v6746, 4294901760
        %v7184 = vsub.f32 %v6746, %v7183
        %7185 = vmatmul.f32.gmra.mxu0 %v7184
        %v7186 = vpop.f32.mrf.mxu0
        %v7187 = vadd.f32 %v7063, %v7186
        %v7188 = vand.u32 %v6747, 4294901760
        %v7189 = vsub.f32 %v6747, %v7188
        %7190 = vmatmul.f32.gmra.mxu0 %v7189
        %v7191 = vpop.f32.mrf.mxu0
        %v7192 = vadd.f32 %v7067, %v7191
        %v7193 = vand.u32 %v6748, 4294901760
        %v7194 = vsub.f32 %v6748, %v7193
        %7195 = vmatmul.f32.gmra.mxu0 %v7194
        %v7196 = vpop.f32.mrf.mxu0
        %v7197 = vadd.f32 %v7071, %v7196
        %v7198 = vand.u32 %v6749, 4294901760
        %v7199 = vsub.f32 %v6749, %v7198
        %7200 = vmatmul.f32.gmra.mxu0 %v7199
        %v7201 = vpop.f32.mrf.mxu0
        %v7202 = vadd.f32 %v7075, %v7201
        %v7203 = vand.u32 %v6750, 4294901760
        %v7204 = vsub.f32 %v6750, %v7203
        %7205 = vmatmul.f32.gmra.mxu0 %v7204
        %v7206 = vpop.f32.mrf.mxu0
        %v7207 = vadd.f32 %v7079, %v7206
        %v7208 = vand.u32 %v6751, 4294901760
        %v7209 = vsub.f32 %v6751, %v7208
        %7210 = vmatmul.f32.gmra.mxu0 %v7209
        %v7211 = vpop.f32.mrf.mxu0
        %v7212 = vadd.f32 %v7083, %v7211
        %v7213 = vand.u32 %v6752, 4294901760
        %v7214 = vsub.f32 %v6752, %v7213
        %7215 = vmatmul.f32.gmra.mxu0 %v7214
        %v7216 = vpop.f32.mrf.mxu0
        %v7217 = vadd.f32 %v7087, %v7216
        %v7218 = vand.u32 %v6753, 4294901760
        %v7219 = vsub.f32 %v6753, %v7218
        %7220 = vmatmul.f32.gmra.mxu0 %v7219
        %v7221 = vpop.f32.mrf.mxu0
        %v7222 = vadd.f32 %v7091, %v7221
        %v7223 = vand.u32 %v6754, 4294901760
        %v7224 = vsub.f32 %v6754, %v7223
        %7225 = vmatmul.f32.gmra.mxu0 %v7224
        %v7226 = vpop.f32.mrf.mxu0
        %v7227 = vadd.f32 %v7095, %v7226
        %v7228 = vand.u32 %v6755, 4294901760
        %v7229 = vsub.f32 %v6755, %v7228
        %7230 = vmatmul.f32.gmra.mxu0 %v7229
        %v7231 = vpop.f32.mrf.mxu0
        %v7232 = vadd.f32 %v7099, %v7231
        %v7233 = vand.u32 %v6756, 4294901760
        %v7234 = vsub.f32 %v6756, %v7233
        %7235 = vmatmul.f32.gmra.mxu0 %v7234
        %v7236 = vpop.f32.mrf.mxu0
        %v7237 = vadd.f32 %v7103, %v7236
        %v7238 = vand.u32 %v6757, 4294901760
        %v7239 = vsub.f32 %v6757, %v7238
        %7240 = vmatmul.f32.gmra.mxu0 %v7239
        %v7241 = vpop.f32.mrf.mxu0
        %v7242 = vadd.f32 %v7107, %v7241
        %v7243 = vand.u32 %v6758, 4294901760
        %v7244 = vsub.f32 %v6758, %v7243
        %7245 = vmatmul.f32.gmra.mxu0 %v7244
        %v7246 = vpop.f32.mrf.mxu0
        %v7247 = vadd.f32 %v7111, %v7246
        %v7248 = vand.u32 %v6759, 4294901760
        %v7249 = vsub.f32 %v6759, %v7248
        %7250 = vmatmul.f32.gmra.mxu0 %v7249
        %v7251 = vpop.f32.mrf.mxu0
        %v7252 = vadd.f32 %v7115, %v7251
        %v7253 = vand.u32 %v6760, 4294901760
        %v7254 = vsub.f32 %v6760, %v7253
        %7255 = vmatmul.f32.gmra.mxu0 %v7254
        %v7256 = vpop.f32.mrf.mxu0
        %v7257 = vadd.f32 %v7119, %v7256
        %v7258 = vand.u32 %v6761, 4294901760
        %v7259 = vsub.f32 %v6761, %v7258
        %7260 = vmatmul.f32.gmra.mxu0 %v7259
        %v7261 = vpop.f32.mrf.mxu0
        %v7262 = vadd.f32 %v7123, %v7261
        %7263 = vdwg.mxu0
        %v7264 = vand.u32 %v6778, 4294901760
        %7265 = vmatpush.msra.mxu0 %v7264
        %v7266 = vand.u32 %v6777, 4294901760
        %7267 = vmatpush.msra.mxu0 %v7266
        %v7268 = vand.u32 %v6776, 4294901760
        %7269 = vmatpush.msra.mxu0 %v7268
        %v7270 = vand.u32 %v6775, 4294901760
        %7271 = vmatpush.msra.mxu0 %v7270
        %v7272 = vand.u32 %v6774, 4294901760
        %7273 = vmatpush.msra.mxu0 %v7272
        %v7274 = vand.u32 %v6773, 4294901760
        %7275 = vmatpush.msra.mxu0 %v7274
        %v7276 = vand.u32 %v6772, 4294901760
        %7277 = vmatpush.msra.mxu0 %v7276
        %v7278 = vand.u32 %v6771, 4294901760
        %7279 = vmatpush.msra.mxu0 %v7278
        %v7280 = vand.u32 %v6770, 4294901760
        %7281 = vmatpush.msra.mxu0 %v7280
        %v7282 = vand.u32 %v6769, 4294901760
        %7283 = vmatpush.msra.mxu0 %v7282
        %v7284 = vand.u32 %v6768, 4294901760
        %7285 = vmatpush.msra.mxu0 %v7284
        %v7286 = vand.u32 %v6767, 4294901760
        %7287 = vmatpush.msra.mxu0 %v7286
        %v7288 = vand.u32 %v6766, 4294901760
        %7289 = vmatpush.msra.mxu0 %v7288
        %v7290 = vand.u32 %v6765, 4294901760
        %7291 = vmatpush.msra.mxu0 %v7290
        %v7292 = vand.u32 %v6764, 4294901760
        %7293 = vmatpush.msra.mxu0 %v7292
        %v7294 = vand.u32 %v6763, 4294901760
        %7295 = vmatpush.msra.mxu0 %v7294
        %v7296 = vand.u32 %v6744, 4294901760
        %v7297 = vsub.f32 %v6744, %v7296
        %v7298 = vand.u32 %v7297, 4294901760
        %7299 = vmatmul.f32.gmra.mxu0 %v7298
        %v7300 = vpop.f32.mrf.mxu0
        %v7301 = vadd.f32 %v7177, %v7300
        %v7302 = vand.u32 %v6745, 4294901760
        %v7303 = vsub.f32 %v6745, %v7302
        %v7304 = vand.u32 %v7303, 4294901760
        %7305 = vmatmul.f32.gmra.mxu0 %v7304
        %v7306 = vpop.f32.mrf.mxu0
        %v7307 = vadd.f32 %v7182, %v7306
        %v7308 = vand.u32 %v6746, 4294901760
        %v7309 = vsub.f32 %v6746, %v7308
        %v7310 = vand.u32 %v7309, 4294901760
        %7311 = vmatmul.f32.gmra.mxu0 %v7310
        %v7312 = vpop.f32.mrf.mxu0
        %v7313 = vadd.f32 %v7187, %v7312
        %v7314 = vand.u32 %v6747, 4294901760
        %v7315 = vsub.f32 %v6747, %v7314
        %v7316 = vand.u32 %v7315, 4294901760
        %7317 = vmatmul.f32.gmra.mxu0 %v7316
        %v7318 = vpop.f32.mrf.mxu0
        %v7319 = vadd.f32 %v7192, %v7318
        %v7320 = vand.u32 %v6748, 4294901760
        %v7321 = vsub.f32 %v6748, %v7320
        %v7322 = vand.u32 %v7321, 4294901760
        %7323 = vmatmul.f32.gmra.mxu0 %v7322
        %v7324 = vpop.f32.mrf.mxu0
        %v7325 = vadd.f32 %v7197, %v7324
        %v7326 = vand.u32 %v6749, 4294901760
        %v7327 = vsub.f32 %v6749, %v7326
        %v7328 = vand.u32 %v7327, 4294901760
        %7329 = vmatmul.f32.gmra.mxu0 %v7328
        %v7330 = vpop.f32.mrf.mxu0
        %v7331 = vadd.f32 %v7202, %v7330
        %v7332 = vand.u32 %v6750, 4294901760
        %v7333 = vsub.f32 %v6750, %v7332
        %v7334 = vand.u32 %v7333, 4294901760
        %7335 = vmatmul.f32.gmra.mxu0 %v7334
        %v7336 = vpop.f32.mrf.mxu0
        %v7337 = vadd.f32 %v7207, %v7336
        %v7338 = vand.u32 %v6751, 4294901760
        %v7339 = vsub.f32 %v6751, %v7338
        %v7340 = vand.u32 %v7339, 4294901760
        %7341 = vmatmul.f32.gmra.mxu0 %v7340
        %v7342 = vpop.f32.mrf.mxu0
        %v7343 = vadd.f32 %v7212, %v7342
        %v7344 = vand.u32 %v6752, 4294901760
        %v7345 = vsub.f32 %v6752, %v7344
        %v7346 = vand.u32 %v7345, 4294901760
        %7347 = vmatmul.f32.gmra.mxu0 %v7346
        %v7348 = vpop.f32.mrf.mxu0
        %v7349 = vadd.f32 %v7217, %v7348
        %v7350 = vand.u32 %v6753, 4294901760
        %v7351 = vsub.f32 %v6753, %v7350
        %v7352 = vand.u32 %v7351, 4294901760
        %7353 = vmatmul.f32.gmra.mxu0 %v7352
        %v7354 = vpop.f32.mrf.mxu0
        %v7355 = vadd.f32 %v7222, %v7354
        %v7356 = vand.u32 %v6754, 4294901760
        %v7357 = vsub.f32 %v6754, %v7356
        %v7358 = vand.u32 %v7357, 4294901760
        %7359 = vmatmul.f32.gmra.mxu0 %v7358
        %v7360 = vpop.f32.mrf.mxu0
        %v7361 = vadd.f32 %v7227, %v7360
        %v7362 = vand.u32 %v6755, 4294901760
        %v7363 = vsub.f32 %v6755, %v7362
        %v7364 = vand.u32 %v7363, 4294901760
        %7365 = vmatmul.f32.gmra.mxu0 %v7364
        %v7366 = vpop.f32.mrf.mxu0
        %v7367 = vadd.f32 %v7232, %v7366
        %v7368 = vand.u32 %v6756, 4294901760
        %v7369 = vsub.f32 %v6756, %v7368
        %v7370 = vand.u32 %v7369, 4294901760
        %7371 = vmatmul.f32.gmra.mxu0 %v7370
        %v7372 = vpop.f32.mrf.mxu0
        %v7373 = vadd.f32 %v7237, %v7372
        %v7374 = vand.u32 %v6757, 4294901760
        %v7375 = vsub.f32 %v6757, %v7374
        %v7376 = vand.u32 %v7375, 4294901760
        %7377 = vmatmul.f32.gmra.mxu0 %v7376
        %v7378 = vpop.f32.mrf.mxu0
        %v7379 = vadd.f32 %v7242, %v7378
        %v7380 = vand.u32 %v6758, 4294901760
        %v7381 = vsub.f32 %v6758, %v7380
        %v7382 = vand.u32 %v7381, 4294901760
        %7383 = vmatmul.f32.gmra.mxu0 %v7382
        %v7384 = vpop.f32.mrf.mxu0
        %v7385 = vadd.f32 %v7247, %v7384
        %v7386 = vand.u32 %v6759, 4294901760
        %v7387 = vsub.f32 %v6759, %v7386
        %v7388 = vand.u32 %v7387, 4294901760
        %7389 = vmatmul.f32.gmra.mxu0 %v7388
        %v7390 = vpop.f32.mrf.mxu0
        %v7391 = vadd.f32 %v7252, %v7390
        %v7392 = vand.u32 %v6760, 4294901760
        %v7393 = vsub.f32 %v6760, %v7392
        %v7394 = vand.u32 %v7393, 4294901760
        %7395 = vmatmul.f32.gmra.mxu0 %v7394
        %v7396 = vpop.f32.mrf.mxu0
        %v7397 = vadd.f32 %v7257, %v7396
        %v7398 = vand.u32 %v6761, 4294901760
        %v7399 = vsub.f32 %v6761, %v7398
        %v7400 = vand.u32 %v7399, 4294901760
        %7401 = vmatmul.f32.gmra.mxu0 %v7400
        %v7402 = vpop.f32.mrf.mxu0
        %v7403 = vadd.f32 %v7262, %v7402
        %7404 = vdwg.mxu0
        %v7405 = vand.u32 %v6778, 4294901760
        %v7406 = vsub.f32 %v6778, %v7405
        %v7407 = vand.u32 %v7406, 4294901760
        %7408 = vmatpush.msra.mxu0 %v7407
        %v7409 = vand.u32 %v6777, 4294901760
        %v7410 = vsub.f32 %v6777, %v7409
        %v7411 = vand.u32 %v7410, 4294901760
        %7412 = vmatpush.msra.mxu0 %v7411
        %v7413 = vand.u32 %v6776, 4294901760
        %v7414 = vsub.f32 %v6776, %v7413
        %v7415 = vand.u32 %v7414, 4294901760
        %7416 = vmatpush.msra.mxu0 %v7415
        %v7417 = vand.u32 %v6775, 4294901760
        %v7418 = vsub.f32 %v6775, %v7417
        %v7419 = vand.u32 %v7418, 4294901760
        %7420 = vmatpush.msra.mxu0 %v7419
        %v7421 = vand.u32 %v6774, 4294901760
        %v7422 = vsub.f32 %v6774, %v7421
        %v7423 = vand.u32 %v7422, 4294901760
        %7424 = vmatpush.msra.mxu0 %v7423
        %v7425 = vand.u32 %v6773, 4294901760
        %v7426 = vsub.f32 %v6773, %v7425
        %v7427 = vand.u32 %v7426, 4294901760
        %7428 = vmatpush.msra.mxu0 %v7427
        %v7429 = vand.u32 %v6772, 4294901760
        %v7430 = vsub.f32 %v6772, %v7429
        %v7431 = vand.u32 %v7430, 4294901760
        %7432 = vmatpush.msra.mxu0 %v7431
        %v7433 = vand.u32 %v6771, 4294901760
        %v7434 = vsub.f32 %v6771, %v7433
        %v7435 = vand.u32 %v7434, 4294901760
        %7436 = vmatpush.msra.mxu0 %v7435
        %v7437 = vand.u32 %v6770, 4294901760
        %v7438 = vsub.f32 %v6770, %v7437
        %v7439 = vand.u32 %v7438, 4294901760
        %7440 = vmatpush.msra.mxu0 %v7439
        %v7441 = vand.u32 %v6769, 4294901760
        %v7442 = vsub.f32 %v6769, %v7441
        %v7443 = vand.u32 %v7442, 4294901760
        %7444 = vmatpush.msra.mxu0 %v7443
        %v7445 = vand.u32 %v6768, 4294901760
        %v7446 = vsub.f32 %v6768, %v7445
        %v7447 = vand.u32 %v7446, 4294901760
        %7448 = vmatpush.msra.mxu0 %v7447
        %v7449 = vand.u32 %v6767, 4294901760
        %v7450 = vsub.f32 %v6767, %v7449
        %v7451 = vand.u32 %v7450, 4294901760
        %7452 = vmatpush.msra.mxu0 %v7451
        %v7453 = vand.u32 %v6766, 4294901760
        %v7454 = vsub.f32 %v6766, %v7453
        %v7455 = vand.u32 %v7454, 4294901760
        %7456 = vmatpush.msra.mxu0 %v7455
        %v7457 = vand.u32 %v6765, 4294901760
        %v7458 = vsub.f32 %v6765, %v7457
        %v7459 = vand.u32 %v7458, 4294901760
        %7460 = vmatpush.msra.mxu0 %v7459
        %v7461 = vand.u32 %v6764, 4294901760
        %v7462 = vsub.f32 %v6764, %v7461
        %v7463 = vand.u32 %v7462, 4294901760
        %7464 = vmatpush.msra.mxu0 %v7463
        %v7465 = vand.u32 %v6763, 4294901760
        %v7466 = vsub.f32 %v6763, %v7465
        %v7467 = vand.u32 %v7466, 4294901760
        %7468 = vmatpush.msra.mxu0 %v7467
        %v7469 = vand.u32 %v6744, 4294901760
        %7470 = vmatmul.f32.gmra.mxu0 %v7469
        %v7471 = vpop.f32.mrf.mxu0
        %v7472 = vadd.f32 %v7301, %v7471
        %v7473 = vand.u32 %v6745, 4294901760
        %7474 = vmatmul.f32.gmra.mxu0 %v7473
        %v7475 = vpop.f32.mrf.mxu0
        %v7476 = vadd.f32 %v7307, %v7475
        %v7477 = vand.u32 %v6746, 4294901760
        %7478 = vmatmul.f32.gmra.mxu0 %v7477
        %v7479 = vpop.f32.mrf.mxu0
        %v7480 = vadd.f32 %v7313, %v7479
        %v7481 = vand.u32 %v6747, 4294901760
        %7482 = vmatmul.f32.gmra.mxu0 %v7481
        %v7483 = vpop.f32.mrf.mxu0
        %v7484 = vadd.f32 %v7319, %v7483
        %v7485 = vand.u32 %v6748, 4294901760
        %7486 = vmatmul.f32.gmra.mxu0 %v7485
        %v7487 = vpop.f32.mrf.mxu0
        %v7488 = vadd.f32 %v7325, %v7487
        %v7489 = vand.u32 %v6749, 4294901760
        %7490 = vmatmul.f32.gmra.mxu0 %v7489
        %v7491 = vpop.f32.mrf.mxu0
        %v7492 = vadd.f32 %v7331, %v7491
        %v7493 = vand.u32 %v6750, 4294901760
        %7494 = vmatmul.f32.gmra.mxu0 %v7493
        %v7495 = vpop.f32.mrf.mxu0
        %v7496 = vadd.f32 %v7337, %v7495
        %v7497 = vand.u32 %v6751, 4294901760
        %7498 = vmatmul.f32.gmra.mxu0 %v7497
        %v7499 = vpop.f32.mrf.mxu0
        %v7500 = vadd.f32 %v7343, %v7499
        %v7501 = vand.u32 %v6752, 4294901760
        %7502 = vmatmul.f32.gmra.mxu0 %v7501
        %v7503 = vpop.f32.mrf.mxu0
        %v7504 = vadd.f32 %v7349, %v7503
        %v7505 = vand.u32 %v6753, 4294901760
        %7506 = vmatmul.f32.gmra.mxu0 %v7505
        %v7507 = vpop.f32.mrf.mxu0
        %v7508 = vadd.f32 %v7355, %v7507
        %v7509 = vand.u32 %v6754, 4294901760
        %7510 = vmatmul.f32.gmra.mxu0 %v7509
        %v7511 = vpop.f32.mrf.mxu0
        %v7512 = vadd.f32 %v7361, %v7511
        %v7513 = vand.u32 %v6755, 4294901760
        %7514 = vmatmul.f32.gmra.mxu0 %v7513
        %v7515 = vpop.f32.mrf.mxu0
        %v7516 = vadd.f32 %v7367, %v7515
        %v7517 = vand.u32 %v6756, 4294901760
        %7518 = vmatmul.f32.gmra.mxu0 %v7517
        %v7519 = vpop.f32.mrf.mxu0
        %v7520 = vadd.f32 %v7373, %v7519
        %v7521 = vand.u32 %v6757, 4294901760
        %7522 = vmatmul.f32.gmra.mxu0 %v7521
        %v7523 = vpop.f32.mrf.mxu0
        %v7524 = vadd.f32 %v7379, %v7523
        %v7525 = vand.u32 %v6758, 4294901760
        %7526 = vmatmul.f32.gmra.mxu0 %v7525
        %v7527 = vpop.f32.mrf.mxu0
        %v7528 = vadd.f32 %v7385, %v7527
        %v7529 = vand.u32 %v6759, 4294901760
        %7530 = vmatmul.f32.gmra.mxu0 %v7529
        %v7531 = vpop.f32.mrf.mxu0
        %v7532 = vadd.f32 %v7391, %v7531
        %v7533 = vand.u32 %v6760, 4294901760
        %7534 = vmatmul.f32.gmra.mxu0 %v7533
        %v7535 = vpop.f32.mrf.mxu0
        %v7536 = vadd.f32 %v7397, %v7535
        %v7537 = vand.u32 %v6761, 4294901760
        %7538 = vmatmul.f32.gmra.mxu0 %v7537
        %v7539 = vpop.f32.mrf.mxu0
        %v7540 = vadd.f32 %v7403, %v7539
        %7541 = vdwg.mxu0
        %v7542 = vand.u32 %v6778, 4294901760
        %7543 = vmatpush.msra.mxu0 %v7542
        %v7544 = vand.u32 %v6777, 4294901760
        %7545 = vmatpush.msra.mxu0 %v7544
        %v7546 = vand.u32 %v6776, 4294901760
        %7547 = vmatpush.msra.mxu0 %v7546
        %v7548 = vand.u32 %v6775, 4294901760
        %7549 = vmatpush.msra.mxu0 %v7548
        %v7550 = vand.u32 %v6774, 4294901760
        %7551 = vmatpush.msra.mxu0 %v7550
        %v7552 = vand.u32 %v6773, 4294901760
        %7553 = vmatpush.msra.mxu0 %v7552
        %v7554 = vand.u32 %v6772, 4294901760
        %7555 = vmatpush.msra.mxu0 %v7554
        %v7556 = vand.u32 %v6771, 4294901760
        %7557 = vmatpush.msra.mxu0 %v7556
        %v7558 = vand.u32 %v6770, 4294901760
        %7559 = vmatpush.msra.mxu0 %v7558
        %v7560 = vand.u32 %v6769, 4294901760
        %7561 = vmatpush.msra.mxu0 %v7560
        %v7562 = vand.u32 %v6768, 4294901760
        %7563 = vmatpush.msra.mxu0 %v7562
        %v7564 = vand.u32 %v6767, 4294901760
        %7565 = vmatpush.msra.mxu0 %v7564
        %v7566 = vand.u32 %v6766, 4294901760
        %7567 = vmatpush.msra.mxu0 %v7566
        %v7568 = vand.u32 %v6765, 4294901760
        %7569 = vmatpush.msra.mxu0 %v7568
        %v7570 = vand.u32 %v6764, 4294901760
        %7571 = vmatpush.msra.mxu0 %v7570
        %v7572 = vand.u32 %v6763, 4294901760
        %7573 = vmatpush.msra.mxu0 %v7572
        %v7574 = vand.u32 %v6744, 4294901760
        %7575 = vmatmul.f32.gmra.mxu0 %v7574
        %v7576 = vpop.f32.mrf.mxu0
        %v7577 = vadd.f32 %v7472, %v7576
        %v7578 = vand.u32 %v6745, 4294901760
        %7579 = vmatmul.f32.gmra.mxu0 %v7578
        %v7580 = vpop.f32.mrf.mxu0
        %v7581 = vadd.f32 %v7476, %v7580
        %v7582 = vand.u32 %v6746, 4294901760
        %7583 = vmatmul.f32.gmra.mxu0 %v7582
        %v7584 = vpop.f32.mrf.mxu0
        %v7585 = vadd.f32 %v7480, %v7584
        %v7586 = vand.u32 %v6747, 4294901760
        %7587 = vmatmul.f32.gmra.mxu0 %v7586
        %v7588 = vpop.f32.mrf.mxu0
        %v7589 = vadd.f32 %v7484, %v7588
        %v7590 = vand.u32 %v6748, 4294901760
        %7591 = vmatmul.f32.gmra.mxu0 %v7590
        %v7592 = vpop.f32.mrf.mxu0
        %v7593 = vadd.f32 %v7488, %v7592
        %v7594 = vand.u32 %v6749, 4294901760
        %7595 = vmatmul.f32.gmra.mxu0 %v7594
        %v7596 = vpop.f32.mrf.mxu0
        %v7597 = vadd.f32 %v7492, %v7596
        %v7598 = vand.u32 %v6750, 4294901760
        %7599 = vmatmul.f32.gmra.mxu0 %v7598
        %v7600 = vpop.f32.mrf.mxu0
        %v7601 = vadd.f32 %v7496, %v7600
        %v7602 = vand.u32 %v6751, 4294901760
        %7603 = vmatmul.f32.gmra.mxu0 %v7602
        %v7604 = vpop.f32.mrf.mxu0
        %v7605 = vadd.f32 %v7500, %v7604
        %v7606 = vand.u32 %v6752, 4294901760
        %7607 = vmatmul.f32.gmra.mxu0 %v7606
        %v7608 = vpop.f32.mrf.mxu0
        %v7609 = vadd.f32 %v7504, %v7608
        %v7610 = vand.u32 %v6753, 4294901760
        %7611 = vmatmul.f32.gmra.mxu0 %v7610
        %v7612 = vpop.f32.mrf.mxu0
        %v7613 = vadd.f32 %v7508, %v7612
        %v7614 = vand.u32 %v6754, 4294901760
        %7615 = vmatmul.f32.gmra.mxu0 %v7614
        %v7616 = vpop.f32.mrf.mxu0
        %v7617 = vadd.f32 %v7512, %v7616
        %v7618 = vand.u32 %v6755, 4294901760
        %7619 = vmatmul.f32.gmra.mxu0 %v7618
        %v7620 = vpop.f32.mrf.mxu0
        %v7621 = vadd.f32 %v7516, %v7620
        %v7622 = vand.u32 %v6756, 4294901760
        %7623 = vmatmul.f32.gmra.mxu0 %v7622
        %v7624 = vpop.f32.mrf.mxu0
        %v7625 = vadd.f32 %v7520, %v7624
        %v7626 = vand.u32 %v6757, 4294901760
        %7627 = vmatmul.f32.gmra.mxu0 %v7626
        %v7628 = vpop.f32.mrf.mxu0
        %v7629 = vadd.f32 %v7524, %v7628
        %v7630 = vand.u32 %v6758, 4294901760
        %7631 = vmatmul.f32.gmra.mxu0 %v7630
        %v7632 = vpop.f32.mrf.mxu0
        %v7633 = vadd.f32 %v7528, %v7632
        %v7634 = vand.u32 %v6759, 4294901760
        %7635 = vmatmul.f32.gmra.mxu0 %v7634
        %v7636 = vpop.f32.mrf.mxu0
        %v7637 = vadd.f32 %v7532, %v7636
        %v7638 = vand.u32 %v6760, 4294901760
        %7639 = vmatmul.f32.gmra.mxu0 %v7638
        %v7640 = vpop.f32.mrf.mxu0
        %v7641 = vadd.f32 %v7536, %v7640
        %v7642 = vand.u32 %v6761, 4294901760
        %7643 = vmatmul.f32.gmra.mxu0 %v7642
        %v7644 = vpop.f32.mrf.mxu0
        %v7645 = vadd.f32 %v7540, %v7644
        %7646 = vdwg.mxu0
        %v7647 = vadd.f32 %v6726, %v7577
        %v7648 = vadd.f32 %v6727, %v7581
        %v7649 = vadd.f32 %v6728, %v7585
        %v7650 = vadd.f32 %v6729, %v7589
        %v7651 = vadd.f32 %v6730, %v7593
        %v7652 = vadd.f32 %v6731, %v7597
        %v7653 = vadd.f32 %v6732, %v7601
        %v7654 = vadd.f32 %v6733, %v7605
        %v7655 = vadd.f32 %v6734, %v7609
        %v7656 = vadd.f32 %v6735, %v7613
        %v7657 = vadd.f32 %v6736, %v7617
        %v7658 = vadd.f32 %v6737, %v7621
        %v7659 = vadd.f32 %v6738, %v7625
        %v7660 = vadd.f32 %v6739, %v7629
        %v7661 = vadd.f32 %v6740, %v7633
        %v7662 = vadd.f32 %v6741, %v7637
        %v7663 = vadd.f32 %v6742, %v7641
        %v7664 = vadd.f32 %v6743, %v7645
        %v7665 = vld [vmem:[%s333 + $0x26] sm:$0xff]
        %v7666 = vld [vmem:[%s333 + $0x2e] sm:$0xff]
        %v7667 = vld [vmem:[%s333 + $0x36] sm:$0xff]
        %v7668 = vld [vmem:[%s333 + $0x3e] sm:$0xff]
        %v7669 = vld [vmem:[%s333 + $0x46] sm:$0xff]
        %v7670 = vld [vmem:[%s333 + $0x4e] sm:$0xff]
        %v7671 = vld [vmem:[%s333 + $0x56] sm:$0xff]
        %v7672 = vld [vmem:[%s333 + $0x5e] sm:$0xff]
        %v7673 = vld [vmem:[%s333 + $0x66] sm:$0xff]
        %v7674 = vld [vmem:[%s333 + $0x6e] sm:$0xff]
        %v7675 = vld [vmem:[%s333 + $0x76] sm:$0xff]
        %v7676 = vld [vmem:[%s333 + $0x7e] sm:$0xff]
        %v7677 = vld [vmem:[%s333 + $0x86] sm:$0xff]
        %v7678 = vld [vmem:[%s333 + $0x8e] sm:$0xff]
        %v7679 = vld [vmem:[%s333 + $0x96] sm:$0xff]
        %v7680 = vld [vmem:[%s333 + $0x9e] sm:$0xff]
        %v7681 = vld [vmem:[%s333 + $0xa6] sm:$0xff]
        %v7682 = vld [vmem:[%s333 + $0xae] sm:$0xff]
        %s7683 = scalar_lea.vmem %s1, 1024
        %v7684 = vld [vmem:[%s7683] sm:$0xff]
        %v7685 = vld [vmem:[%s7683 + $0x8] sm:$0xff]
        %v7686 = vld [vmem:[%s7683 + $0x10] sm:$0xff]
        %v7687 = vld [vmem:[%s7683 + $0x18] sm:$0xff]
        %v7688 = vld [vmem:[%s7683 + $0x20] sm:$0xff]
        %v7689 = vld [vmem:[%s7683 + $0x28] sm:$0xff]
        %v7690 = vld [vmem:[%s7683 + $0x30] sm:$0xff]
        %v7691 = vld [vmem:[%s7683 + $0x38] sm:$0xff]
        %v7692 = vld [vmem:[%s7683 + $0x40] sm:$0xff]
        %v7693 = vld [vmem:[%s7683 + $0x48] sm:$0xff]
        %v7694 = vld [vmem:[%s7683 + $0x50] sm:$0xff]
        %v7695 = vld [vmem:[%s7683 + $0x58] sm:$0xff]
        %v7696 = vld [vmem:[%s7683 + $0x60] sm:$0xff]
        %v7697 = vld [vmem:[%s7683 + $0x68] sm:$0xff]
        %v7698 = vld [vmem:[%s7683 + $0x70] sm:$0xff]
        %v7699 = vld [vmem:[%s7683 + $0x78] sm:$0xff]
        %v7700 = vand.u32 %v7699, 4294901760
        %7701 = vmatpush.msra.mxu0 %v7700
        %v7702 = vand.u32 %v7698, 4294901760
        %7703 = vmatpush.msra.mxu0 %v7702
        %v7704 = vand.u32 %v7697, 4294901760
        %7705 = vmatpush.msra.mxu0 %v7704
        %v7706 = vand.u32 %v7696, 4294901760
        %7707 = vmatpush.msra.mxu0 %v7706
        %v7708 = vand.u32 %v7695, 4294901760
        %7709 = vmatpush.msra.mxu0 %v7708
        %v7710 = vand.u32 %v7694, 4294901760
        %7711 = vmatpush.msra.mxu0 %v7710
        %v7712 = vand.u32 %v7693, 4294901760
        %7713 = vmatpush.msra.mxu0 %v7712
        %v7714 = vand.u32 %v7692, 4294901760
        %7715 = vmatpush.msra.mxu0 %v7714
        %v7716 = vand.u32 %v7691, 4294901760
        %7717 = vmatpush.msra.mxu0 %v7716
        %v7718 = vand.u32 %v7690, 4294901760
        %7719 = vmatpush.msra.mxu0 %v7718
        %v7720 = vand.u32 %v7689, 4294901760
        %7721 = vmatpush.msra.mxu0 %v7720
        %v7722 = vand.u32 %v7688, 4294901760
        %7723 = vmatpush.msra.mxu0 %v7722
        %v7724 = vand.u32 %v7687, 4294901760
        %7725 = vmatpush.msra.mxu0 %v7724
        %v7726 = vand.u32 %v7686, 4294901760
        %7727 = vmatpush.msra.mxu0 %v7726
        %v7728 = vand.u32 %v7685, 4294901760
        %7729 = vmatpush.msra.mxu0 %v7728
        %v7730 = vand.u32 %v7684, 4294901760
        %7731 = vmatpush.msra.mxu0 %v7730
        %v7732 = vand.u32 %v7665, 4294901760
        %v7733 = vsub.f32 %v7665, %v7732
        %v7734 = vand.u32 %v7733, 4294901760
        %v7735 = vsub.f32 %v7733, %v7734
        %v7736 = vand.u32 %v7735, 4294901760
        %7737 = vmatmul.f32.gmra.mxu0 %v7736
        %v7738 = vpop.f32.mrf.mxu0
        %v7739 = vadd.f32 0.0, %v7738
        %v7740 = vand.u32 %v7666, 4294901760
        %v7741 = vsub.f32 %v7666, %v7740
        %v7742 = vand.u32 %v7741, 4294901760
        %v7743 = vsub.f32 %v7741, %v7742
        %v7744 = vand.u32 %v7743, 4294901760
        %7745 = vmatmul.f32.gmra.mxu0 %v7744
        %v7746 = vpop.f32.mrf.mxu0
        %v7747 = vadd.f32 0.0, %v7746
        %v7748 = vand.u32 %v7667, 4294901760
        %v7749 = vsub.f32 %v7667, %v7748
        %v7750 = vand.u32 %v7749, 4294901760
        %v7751 = vsub.f32 %v7749, %v7750
        %v7752 = vand.u32 %v7751, 4294901760
        %7753 = vmatmul.f32.gmra.mxu0 %v7752
        %v7754 = vpop.f32.mrf.mxu0
        %v7755 = vadd.f32 0.0, %v7754
        %v7756 = vand.u32 %v7668, 4294901760
        %v7757 = vsub.f32 %v7668, %v7756
        %v7758 = vand.u32 %v7757, 4294901760
        %v7759 = vsub.f32 %v7757, %v7758
        %v7760 = vand.u32 %v7759, 4294901760
        %7761 = vmatmul.f32.gmra.mxu0 %v7760
        %v7762 = vpop.f32.mrf.mxu0
        %v7763 = vadd.f32 0.0, %v7762
        %v7764 = vand.u32 %v7669, 4294901760
        %v7765 = vsub.f32 %v7669, %v7764
        %v7766 = vand.u32 %v7765, 4294901760
        %v7767 = vsub.f32 %v7765, %v7766
        %v7768 = vand.u32 %v7767, 4294901760
        %7769 = vmatmul.f32.gmra.mxu0 %v7768
        %v7770 = vpop.f32.mrf.mxu0
        %v7771 = vadd.f32 0.0, %v7770
        %v7772 = vand.u32 %v7670, 4294901760
        %v7773 = vsub.f32 %v7670, %v7772
        %v7774 = vand.u32 %v7773, 4294901760
        %v7775 = vsub.f32 %v7773, %v7774
        %v7776 = vand.u32 %v7775, 4294901760
        %7777 = vmatmul.f32.gmra.mxu0 %v7776
        %v7778 = vpop.f32.mrf.mxu0
        %v7779 = vadd.f32 0.0, %v7778
        %v7780 = vand.u32 %v7671, 4294901760
        %v7781 = vsub.f32 %v7671, %v7780
        %v7782 = vand.u32 %v7781, 4294901760
        %v7783 = vsub.f32 %v7781, %v7782
        %v7784 = vand.u32 %v7783, 4294901760
        %7785 = vmatmul.f32.gmra.mxu0 %v7784
        %v7786 = vpop.f32.mrf.mxu0
        %v7787 = vadd.f32 0.0, %v7786
        %v7788 = vand.u32 %v7672, 4294901760
        %v7789 = vsub.f32 %v7672, %v7788
        %v7790 = vand.u32 %v7789, 4294901760
        %v7791 = vsub.f32 %v7789, %v7790
        %v7792 = vand.u32 %v7791, 4294901760
        %7793 = vmatmul.f32.gmra.mxu0 %v7792
        %v7794 = vpop.f32.mrf.mxu0
        %v7795 = vadd.f32 0.0, %v7794
        %v7796 = vand.u32 %v7673, 4294901760
        %v7797 = vsub.f32 %v7673, %v7796
        %v7798 = vand.u32 %v7797, 4294901760
        %v7799 = vsub.f32 %v7797, %v7798
        %v7800 = vand.u32 %v7799, 4294901760
        %7801 = vmatmul.f32.gmra.mxu0 %v7800
        %v7802 = vpop.f32.mrf.mxu0
        %v7803 = vadd.f32 0.0, %v7802
        %v7804 = vand.u32 %v7674, 4294901760
        %v7805 = vsub.f32 %v7674, %v7804
        %v7806 = vand.u32 %v7805, 4294901760
        %v7807 = vsub.f32 %v7805, %v7806
        %v7808 = vand.u32 %v7807, 4294901760
        %7809 = vmatmul.f32.gmra.mxu0 %v7808
        %v7810 = vpop.f32.mrf.mxu0
        %v7811 = vadd.f32 0.0, %v7810
        %v7812 = vand.u32 %v7675, 4294901760
        %v7813 = vsub.f32 %v7675, %v7812
        %v7814 = vand.u32 %v7813, 4294901760
        %v7815 = vsub.f32 %v7813, %v7814
        %v7816 = vand.u32 %v7815, 4294901760
        %7817 = vmatmul.f32.gmra.mxu0 %v7816
        %v7818 = vpop.f32.mrf.mxu0
        %v7819 = vadd.f32 0.0, %v7818
        %v7820 = vand.u32 %v7676, 4294901760
        %v7821 = vsub.f32 %v7676, %v7820
        %v7822 = vand.u32 %v7821, 4294901760
        %v7823 = vsub.f32 %v7821, %v7822
        %v7824 = vand.u32 %v7823, 4294901760
        %7825 = vmatmul.f32.gmra.mxu0 %v7824
        %v7826 = vpop.f32.mrf.mxu0
        %v7827 = vadd.f32 0.0, %v7826
        %v7828 = vand.u32 %v7677, 4294901760
        %v7829 = vsub.f32 %v7677, %v7828
        %v7830 = vand.u32 %v7829, 4294901760
        %v7831 = vsub.f32 %v7829, %v7830
        %v7832 = vand.u32 %v7831, 4294901760
        %7833 = vmatmul.f32.gmra.mxu0 %v7832
        %v7834 = vpop.f32.mrf.mxu0
        %v7835 = vadd.f32 0.0, %v7834
        %v7836 = vand.u32 %v7678, 4294901760
        %v7837 = vsub.f32 %v7678, %v7836
        %v7838 = vand.u32 %v7837, 4294901760
        %v7839 = vsub.f32 %v7837, %v7838
        %v7840 = vand.u32 %v7839, 4294901760
        %7841 = vmatmul.f32.gmra.mxu0 %v7840
        %v7842 = vpop.f32.mrf.mxu0
        %v7843 = vadd.f32 0.0, %v7842
        %v7844 = vand.u32 %v7679, 4294901760
        %v7845 = vsub.f32 %v7679, %v7844
        %v7846 = vand.u32 %v7845, 4294901760
        %v7847 = vsub.f32 %v7845, %v7846
        %v7848 = vand.u32 %v7847, 4294901760
        %7849 = vmatmul.f32.gmra.mxu0 %v7848
        %v7850 = vpop.f32.mrf.mxu0
        %v7851 = vadd.f32 0.0, %v7850
        %v7852 = vand.u32 %v7680, 4294901760
        %v7853 = vsub.f32 %v7680, %v7852
        %v7854 = vand.u32 %v7853, 4294901760
        %v7855 = vsub.f32 %v7853, %v7854
        %v7856 = vand.u32 %v7855, 4294901760
        %7857 = vmatmul.f32.gmra.mxu0 %v7856
        %v7858 = vpop.f32.mrf.mxu0
        %v7859 = vadd.f32 0.0, %v7858
        %v7860 = vand.u32 %v7681, 4294901760
        %v7861 = vsub.f32 %v7681, %v7860
        %v7862 = vand.u32 %v7861, 4294901760
        %v7863 = vsub.f32 %v7861, %v7862
        %v7864 = vand.u32 %v7863, 4294901760
        %7865 = vmatmul.f32.gmra.mxu0 %v7864
        %v7866 = vpop.f32.mrf.mxu0
        %v7867 = vadd.f32 0.0, %v7866
        %v7868 = vand.u32 %v7682, 4294901760
        %v7869 = vsub.f32 %v7682, %v7868
        %v7870 = vand.u32 %v7869, 4294901760
        %v7871 = vsub.f32 %v7869, %v7870
        %v7872 = vand.u32 %v7871, 4294901760
        %7873 = vmatmul.f32.gmra.mxu0 %v7872
        %v7874 = vpop.f32.mrf.mxu0
        %v7875 = vadd.f32 0.0, %v7874
        %7876 = vdwg.mxu0
        %v7877 = vand.u32 %v7699, 4294901760
        %v7878 = vsub.f32 %v7699, %v7877
        %v7879 = vand.u32 %v7878, 4294901760
        %v7880 = vsub.f32 %v7878, %v7879
        %v7881 = vand.u32 %v7880, 4294901760
        %7882 = vmatpush.msra.mxu0 %v7881
        %v7883 = vand.u32 %v7698, 4294901760
        %v7884 = vsub.f32 %v7698, %v7883
        %v7885 = vand.u32 %v7884, 4294901760
        %v7886 = vsub.f32 %v7884, %v7885
        %v7887 = vand.u32 %v7886, 4294901760
        %7888 = vmatpush.msra.mxu0 %v7887
        %v7889 = vand.u32 %v7697, 4294901760
        %v7890 = vsub.f32 %v7697, %v7889
        %v7891 = vand.u32 %v7890, 4294901760
        %v7892 = vsub.f32 %v7890, %v7891
        %v7893 = vand.u32 %v7892, 4294901760
        %7894 = vmatpush.msra.mxu0 %v7893
        %v7895 = vand.u32 %v7696, 4294901760
        %v7896 = vsub.f32 %v7696, %v7895
        %v7897 = vand.u32 %v7896, 4294901760
        %v7898 = vsub.f32 %v7896, %v7897
        %v7899 = vand.u32 %v7898, 4294901760
        %7900 = vmatpush.msra.mxu0 %v7899
        %v7901 = vand.u32 %v7695, 4294901760
        %v7902 = vsub.f32 %v7695, %v7901
        %v7903 = vand.u32 %v7902, 4294901760
        %v7904 = vsub.f32 %v7902, %v7903
        %v7905 = vand.u32 %v7904, 4294901760
        %7906 = vmatpush.msra.mxu0 %v7905
        %v7907 = vand.u32 %v7694, 4294901760
        %v7908 = vsub.f32 %v7694, %v7907
        %v7909 = vand.u32 %v7908, 4294901760
        %v7910 = vsub.f32 %v7908, %v7909
        %v7911 = vand.u32 %v7910, 4294901760
        %7912 = vmatpush.msra.mxu0 %v7911
        %v7913 = vand.u32 %v7693, 4294901760
        %v7914 = vsub.f32 %v7693, %v7913
        %v7915 = vand.u32 %v7914, 4294901760
        %v7916 = vsub.f32 %v7914, %v7915
        %v7917 = vand.u32 %v7916, 4294901760
        %7918 = vmatpush.msra.mxu0 %v7917
        %v7919 = vand.u32 %v7692, 4294901760
        %v7920 = vsub.f32 %v7692, %v7919
        %v7921 = vand.u32 %v7920, 4294901760
        %v7922 = vsub.f32 %v7920, %v7921
        %v7923 = vand.u32 %v7922, 4294901760
        %7924 = vmatpush.msra.mxu0 %v7923
        %v7925 = vand.u32 %v7691, 4294901760
        %v7926 = vsub.f32 %v7691, %v7925
        %v7927 = vand.u32 %v7926, 4294901760
        %v7928 = vsub.f32 %v7926, %v7927
        %v7929 = vand.u32 %v7928, 4294901760
        %7930 = vmatpush.msra.mxu0 %v7929
        %v7931 = vand.u32 %v7690, 4294901760
        %v7932 = vsub.f32 %v7690, %v7931
        %v7933 = vand.u32 %v7932, 4294901760
        %v7934 = vsub.f32 %v7932, %v7933
        %v7935 = vand.u32 %v7934, 4294901760
        %7936 = vmatpush.msra.mxu0 %v7935
        %v7937 = vand.u32 %v7689, 4294901760
        %v7938 = vsub.f32 %v7689, %v7937
        %v7939 = vand.u32 %v7938, 4294901760
        %v7940 = vsub.f32 %v7938, %v7939
        %v7941 = vand.u32 %v7940, 4294901760
        %7942 = vmatpush.msra.mxu0 %v7941
        %v7943 = vand.u32 %v7688, 4294901760
        %v7944 = vsub.f32 %v7688, %v7943
        %v7945 = vand.u32 %v7944, 4294901760
        %v7946 = vsub.f32 %v7944, %v7945
        %v7947 = vand.u32 %v7946, 4294901760
        %7948 = vmatpush.msra.mxu0 %v7947
        %v7949 = vand.u32 %v7687, 4294901760
        %v7950 = vsub.f32 %v7687, %v7949
        %v7951 = vand.u32 %v7950, 4294901760
        %v7952 = vsub.f32 %v7950, %v7951
        %v7953 = vand.u32 %v7952, 4294901760
        %7954 = vmatpush.msra.mxu0 %v7953
        %v7955 = vand.u32 %v7686, 4294901760
        %v7956 = vsub.f32 %v7686, %v7955
        %v7957 = vand.u32 %v7956, 4294901760
        %v7958 = vsub.f32 %v7956, %v7957
        %v7959 = vand.u32 %v7958, 4294901760
        %7960 = vmatpush.msra.mxu0 %v7959
        %v7961 = vand.u32 %v7685, 4294901760
        %v7962 = vsub.f32 %v7685, %v7961
        %v7963 = vand.u32 %v7962, 4294901760
        %v7964 = vsub.f32 %v7962, %v7963
        %v7965 = vand.u32 %v7964, 4294901760
        %7966 = vmatpush.msra.mxu0 %v7965
        %v7967 = vand.u32 %v7684, 4294901760
        %v7968 = vsub.f32 %v7684, %v7967
        %v7969 = vand.u32 %v7968, 4294901760
        %v7970 = vsub.f32 %v7968, %v7969
        %v7971 = vand.u32 %v7970, 4294901760
        %7972 = vmatpush.msra.mxu0 %v7971
        %v7973 = vand.u32 %v7665, 4294901760
        %7974 = vmatmul.f32.gmra.mxu0 %v7973
        %v7975 = vpop.f32.mrf.mxu0
        %v7976 = vadd.f32 %v7739, %v7975
        %v7977 = vand.u32 %v7666, 4294901760
        %7978 = vmatmul.f32.gmra.mxu0 %v7977
        %v7979 = vpop.f32.mrf.mxu0
        %v7980 = vadd.f32 %v7747, %v7979
        %v7981 = vand.u32 %v7667, 4294901760
        %7982 = vmatmul.f32.gmra.mxu0 %v7981
        %v7983 = vpop.f32.mrf.mxu0
        %v7984 = vadd.f32 %v7755, %v7983
        %v7985 = vand.u32 %v7668, 4294901760
        %7986 = vmatmul.f32.gmra.mxu0 %v7985
        %v7987 = vpop.f32.mrf.mxu0
        %v7988 = vadd.f32 %v7763, %v7987
        %v7989 = vand.u32 %v7669, 4294901760
        %7990 = vmatmul.f32.gmra.mxu0 %v7989
        %v7991 = vpop.f32.mrf.mxu0
        %v7992 = vadd.f32 %v7771, %v7991
        %v7993 = vand.u32 %v7670, 4294901760
        %7994 = vmatmul.f32.gmra.mxu0 %v7993
        %v7995 = vpop.f32.mrf.mxu0
        %v7996 = vadd.f32 %v7779, %v7995
        %v7997 = vand.u32 %v7671, 4294901760
        %7998 = vmatmul.f32.gmra.mxu0 %v7997
        %v7999 = vpop.f32.mrf.mxu0
        %v8000 = vadd.f32 %v7787, %v7999
        %v8001 = vand.u32 %v7672, 4294901760
        %8002 = vmatmul.f32.gmra.mxu0 %v8001
        %v8003 = vpop.f32.mrf.mxu0
        %v8004 = vadd.f32 %v7795, %v8003
        %v8005 = vand.u32 %v7673, 4294901760
        %8006 = vmatmul.f32.gmra.mxu0 %v8005
        %v8007 = vpop.f32.mrf.mxu0
        %v8008 = vadd.f32 %v7803, %v8007
        %v8009 = vand.u32 %v7674, 4294901760
        %8010 = vmatmul.f32.gmra.mxu0 %v8009
        %v8011 = vpop.f32.mrf.mxu0
        %v8012 = vadd.f32 %v7811, %v8011
        %v8013 = vand.u32 %v7675, 4294901760
        %8014 = vmatmul.f32.gmra.mxu0 %v8013
        %v8015 = vpop.f32.mrf.mxu0
        %v8016 = vadd.f32 %v7819, %v8015
        %v8017 = vand.u32 %v7676, 4294901760
        %8018 = vmatmul.f32.gmra.mxu0 %v8017
        %v8019 = vpop.f32.mrf.mxu0
        %v8020 = vadd.f32 %v7827, %v8019
        %v8021 = vand.u32 %v7677, 4294901760
        %8022 = vmatmul.f32.gmra.mxu0 %v8021
        %v8023 = vpop.f32.mrf.mxu0
        %v8024 = vadd.f32 %v7835, %v8023
        %v8025 = vand.u32 %v7678, 4294901760
        %8026 = vmatmul.f32.gmra.mxu0 %v8025
        %v8027 = vpop.f32.mrf.mxu0
        %v8028 = vadd.f32 %v7843, %v8027
        %v8029 = vand.u32 %v7679, 4294901760
        %8030 = vmatmul.f32.gmra.mxu0 %v8029
        %v8031 = vpop.f32.mrf.mxu0
        %v8032 = vadd.f32 %v7851, %v8031
        %v8033 = vand.u32 %v7680, 4294901760
        %8034 = vmatmul.f32.gmra.mxu0 %v8033
        %v8035 = vpop.f32.mrf.mxu0
        %v8036 = vadd.f32 %v7859, %v8035
        %v8037 = vand.u32 %v7681, 4294901760
        %8038 = vmatmul.f32.gmra.mxu0 %v8037
        %v8039 = vpop.f32.mrf.mxu0
        %v8040 = vadd.f32 %v7867, %v8039
        %v8041 = vand.u32 %v7682, 4294901760
        %8042 = vmatmul.f32.gmra.mxu0 %v8041
        %v8043 = vpop.f32.mrf.mxu0
        %v8044 = vadd.f32 %v7875, %v8043
        %8045 = vdwg.mxu0
        %v8046 = vand.u32 %v7699, 4294901760
        %v8047 = vsub.f32 %v7699, %v8046
        %8048 = vmatpush.msra.mxu0 %v8047
        %v8049 = vand.u32 %v7698, 4294901760
        %v8050 = vsub.f32 %v7698, %v8049
        %8051 = vmatpush.msra.mxu0 %v8050
        %v8052 = vand.u32 %v7697, 4294901760
        %v8053 = vsub.f32 %v7697, %v8052
        %8054 = vmatpush.msra.mxu0 %v8053
        %v8055 = vand.u32 %v7696, 4294901760
        %v8056 = vsub.f32 %v7696, %v8055
        %8057 = vmatpush.msra.mxu0 %v8056
        %v8058 = vand.u32 %v7695, 4294901760
        %v8059 = vsub.f32 %v7695, %v8058
        %8060 = vmatpush.msra.mxu0 %v8059
        %v8061 = vand.u32 %v7694, 4294901760
        %v8062 = vsub.f32 %v7694, %v8061
        %8063 = vmatpush.msra.mxu0 %v8062
        %v8064 = vand.u32 %v7693, 4294901760
        %v8065 = vsub.f32 %v7693, %v8064
        %8066 = vmatpush.msra.mxu0 %v8065
        %v8067 = vand.u32 %v7692, 4294901760
        %v8068 = vsub.f32 %v7692, %v8067
        %8069 = vmatpush.msra.mxu0 %v8068
        %v8070 = vand.u32 %v7691, 4294901760
        %v8071 = vsub.f32 %v7691, %v8070
        %8072 = vmatpush.msra.mxu0 %v8071
        %v8073 = vand.u32 %v7690, 4294901760
        %v8074 = vsub.f32 %v7690, %v8073
        %8075 = vmatpush.msra.mxu0 %v8074
        %v8076 = vand.u32 %v7689, 4294901760
        %v8077 = vsub.f32 %v7689, %v8076
        %8078 = vmatpush.msra.mxu0 %v8077
        %v8079 = vand.u32 %v7688, 4294901760
        %v8080 = vsub.f32 %v7688, %v8079
        %8081 = vmatpush.msra.mxu0 %v8080
        %v8082 = vand.u32 %v7687, 4294901760
        %v8083 = vsub.f32 %v7687, %v8082
        %8084 = vmatpush.msra.mxu0 %v8083
        %v8085 = vand.u32 %v7686, 4294901760
        %v8086 = vsub.f32 %v7686, %v8085
        %8087 = vmatpush.msra.mxu0 %v8086
        %v8088 = vand.u32 %v7685, 4294901760
        %v8089 = vsub.f32 %v7685, %v8088
        %8090 = vmatpush.msra.mxu0 %v8089
        %v8091 = vand.u32 %v7684, 4294901760
        %v8092 = vsub.f32 %v7684, %v8091
        %8093 = vmatpush.msra.mxu0 %v8092
        %v8094 = vand.u32 %v7665, 4294901760
        %v8095 = vsub.f32 %v7665, %v8094
        %8096 = vmatmul.f32.gmra.mxu0 %v8095
        %v8097 = vpop.f32.mrf.mxu0
        %v8098 = vadd.f32 %v7976, %v8097
        %v8099 = vand.u32 %v7666, 4294901760
        %v8100 = vsub.f32 %v7666, %v8099
        %8101 = vmatmul.f32.gmra.mxu0 %v8100
        %v8102 = vpop.f32.mrf.mxu0
        %v8103 = vadd.f32 %v7980, %v8102
        %v8104 = vand.u32 %v7667, 4294901760
        %v8105 = vsub.f32 %v7667, %v8104
        %8106 = vmatmul.f32.gmra.mxu0 %v8105
        %v8107 = vpop.f32.mrf.mxu0
        %v8108 = vadd.f32 %v7984, %v8107
        %v8109 = vand.u32 %v7668, 4294901760
        %v8110 = vsub.f32 %v7668, %v8109
        %8111 = vmatmul.f32.gmra.mxu0 %v8110
        %v8112 = vpop.f32.mrf.mxu0
        %v8113 = vadd.f32 %v7988, %v8112
        %v8114 = vand.u32 %v7669, 4294901760
        %v8115 = vsub.f32 %v7669, %v8114
        %8116 = vmatmul.f32.gmra.mxu0 %v8115
        %v8117 = vpop.f32.mrf.mxu0
        %v8118 = vadd.f32 %v7992, %v8117
        %v8119 = vand.u32 %v7670, 4294901760
        %v8120 = vsub.f32 %v7670, %v8119
        %8121 = vmatmul.f32.gmra.mxu0 %v8120
        %v8122 = vpop.f32.mrf.mxu0
        %v8123 = vadd.f32 %v7996, %v8122
        %v8124 = vand.u32 %v7671, 4294901760
        %v8125 = vsub.f32 %v7671, %v8124
        %8126 = vmatmul.f32.gmra.mxu0 %v8125
        %v8127 = vpop.f32.mrf.mxu0
        %v8128 = vadd.f32 %v8000, %v8127
        %v8129 = vand.u32 %v7672, 4294901760
        %v8130 = vsub.f32 %v7672, %v8129
        %8131 = vmatmul.f32.gmra.mxu0 %v8130
        %v8132 = vpop.f32.mrf.mxu0
        %v8133 = vadd.f32 %v8004, %v8132
        %v8134 = vand.u32 %v7673, 4294901760
        %v8135 = vsub.f32 %v7673, %v8134
        %8136 = vmatmul.f32.gmra.mxu0 %v8135
        %v8137 = vpop.f32.mrf.mxu0
        %v8138 = vadd.f32 %v8008, %v8137
        %v8139 = vand.u32 %v7674, 4294901760
        %v8140 = vsub.f32 %v7674, %v8139
        %8141 = vmatmul.f32.gmra.mxu0 %v8140
        %v8142 = vpop.f32.mrf.mxu0
        %v8143 = vadd.f32 %v8012, %v8142
        %v8144 = vand.u32 %v7675, 4294901760
        %v8145 = vsub.f32 %v7675, %v8144
        %8146 = vmatmul.f32.gmra.mxu0 %v8145
        %v8147 = vpop.f32.mrf.mxu0
        %v8148 = vadd.f32 %v8016, %v8147
        %v8149 = vand.u32 %v7676, 4294901760
        %v8150 = vsub.f32 %v7676, %v8149
        %8151 = vmatmul.f32.gmra.mxu0 %v8150
        %v8152 = vpop.f32.mrf.mxu0
        %v8153 = vadd.f32 %v8020, %v8152
        %v8154 = vand.u32 %v7677, 4294901760
        %v8155 = vsub.f32 %v7677, %v8154
        %8156 = vmatmul.f32.gmra.mxu0 %v8155
        %v8157 = vpop.f32.mrf.mxu0
        %v8158 = vadd.f32 %v8024, %v8157
        %v8159 = vand.u32 %v7678, 4294901760
        %v8160 = vsub.f32 %v7678, %v8159
        %8161 = vmatmul.f32.gmra.mxu0 %v8160
        %v8162 = vpop.f32.mrf.mxu0
        %v8163 = vadd.f32 %v8028, %v8162
        %v8164 = vand.u32 %v7679, 4294901760
        %v8165 = vsub.f32 %v7679, %v8164
        %8166 = vmatmul.f32.gmra.mxu0 %v8165
        %v8167 = vpop.f32.mrf.mxu0
        %v8168 = vadd.f32 %v8032, %v8167
        %v8169 = vand.u32 %v7680, 4294901760
        %v8170 = vsub.f32 %v7680, %v8169
        %8171 = vmatmul.f32.gmra.mxu0 %v8170
        %v8172 = vpop.f32.mrf.mxu0
        %v8173 = vadd.f32 %v8036, %v8172
        %v8174 = vand.u32 %v7681, 4294901760
        %v8175 = vsub.f32 %v7681, %v8174
        %8176 = vmatmul.f32.gmra.mxu0 %v8175
        %v8177 = vpop.f32.mrf.mxu0
        %v8178 = vadd.f32 %v8040, %v8177
        %v8179 = vand.u32 %v7682, 4294901760
        %v8180 = vsub.f32 %v7682, %v8179
        %8181 = vmatmul.f32.gmra.mxu0 %v8180
        %v8182 = vpop.f32.mrf.mxu0
        %v8183 = vadd.f32 %v8044, %v8182
        %8184 = vdwg.mxu0
        %v8185 = vand.u32 %v7699, 4294901760
        %8186 = vmatpush.msra.mxu0 %v8185
        %v8187 = vand.u32 %v7698, 4294901760
        %8188 = vmatpush.msra.mxu0 %v8187
        %v8189 = vand.u32 %v7697, 4294901760
        %8190 = vmatpush.msra.mxu0 %v8189
        %v8191 = vand.u32 %v7696, 4294901760
        %8192 = vmatpush.msra.mxu0 %v8191
        %v8193 = vand.u32 %v7695, 4294901760
        %8194 = vmatpush.msra.mxu0 %v8193
        %v8195 = vand.u32 %v7694, 4294901760
        %8196 = vmatpush.msra.mxu0 %v8195
        %v8197 = vand.u32 %v7693, 4294901760
        %8198 = vmatpush.msra.mxu0 %v8197
        %v8199 = vand.u32 %v7692, 4294901760
        %8200 = vmatpush.msra.mxu0 %v8199
        %v8201 = vand.u32 %v7691, 4294901760
        %8202 = vmatpush.msra.mxu0 %v8201
        %v8203 = vand.u32 %v7690, 4294901760
        %8204 = vmatpush.msra.mxu0 %v8203
        %v8205 = vand.u32 %v7689, 4294901760
        %8206 = vmatpush.msra.mxu0 %v8205
        %v8207 = vand.u32 %v7688, 4294901760
        %8208 = vmatpush.msra.mxu0 %v8207
        %v8209 = vand.u32 %v7687, 4294901760
        %8210 = vmatpush.msra.mxu0 %v8209
        %v8211 = vand.u32 %v7686, 4294901760
        %8212 = vmatpush.msra.mxu0 %v8211
        %v8213 = vand.u32 %v7685, 4294901760
        %8214 = vmatpush.msra.mxu0 %v8213
        %v8215 = vand.u32 %v7684, 4294901760
        %8216 = vmatpush.msra.mxu0 %v8215
        %v8217 = vand.u32 %v7665, 4294901760
        %v8218 = vsub.f32 %v7665, %v8217
        %v8219 = vand.u32 %v8218, 4294901760
        %8220 = vmatmul.f32.gmra.mxu0 %v8219
        %v8221 = vpop.f32.mrf.mxu0
        %v8222 = vadd.f32 %v8098, %v8221
        %v8223 = vand.u32 %v7666, 4294901760
        %v8224 = vsub.f32 %v7666, %v8223
        %v8225 = vand.u32 %v8224, 4294901760
        %8226 = vmatmul.f32.gmra.mxu0 %v8225
        %v8227 = vpop.f32.mrf.mxu0
        %v8228 = vadd.f32 %v8103, %v8227
        %v8229 = vand.u32 %v7667, 4294901760
        %v8230 = vsub.f32 %v7667, %v8229
        %v8231 = vand.u32 %v8230, 4294901760
        %8232 = vmatmul.f32.gmra.mxu0 %v8231
        %v8233 = vpop.f32.mrf.mxu0
        %v8234 = vadd.f32 %v8108, %v8233
        %v8235 = vand.u32 %v7668, 4294901760
        %v8236 = vsub.f32 %v7668, %v8235
        %v8237 = vand.u32 %v8236, 4294901760
        %8238 = vmatmul.f32.gmra.mxu0 %v8237
        %v8239 = vpop.f32.mrf.mxu0
        %v8240 = vadd.f32 %v8113, %v8239
        %v8241 = vand.u32 %v7669, 4294901760
        %v8242 = vsub.f32 %v7669, %v8241
        %v8243 = vand.u32 %v8242, 4294901760
        %8244 = vmatmul.f32.gmra.mxu0 %v8243
        %v8245 = vpop.f32.mrf.mxu0
        %v8246 = vadd.f32 %v8118, %v8245
        %v8247 = vand.u32 %v7670, 4294901760
        %v8248 = vsub.f32 %v7670, %v8247
        %v8249 = vand.u32 %v8248, 4294901760
        %8250 = vmatmul.f32.gmra.mxu0 %v8249
        %v8251 = vpop.f32.mrf.mxu0
        %v8252 = vadd.f32 %v8123, %v8251
        %v8253 = vand.u32 %v7671, 4294901760
        %v8254 = vsub.f32 %v7671, %v8253
        %v8255 = vand.u32 %v8254, 4294901760
        %8256 = vmatmul.f32.gmra.mxu0 %v8255
        %v8257 = vpop.f32.mrf.mxu0
        %v8258 = vadd.f32 %v8128, %v8257
        %v8259 = vand.u32 %v7672, 4294901760
        %v8260 = vsub.f32 %v7672, %v8259
        %v8261 = vand.u32 %v8260, 4294901760
        %8262 = vmatmul.f32.gmra.mxu0 %v8261
        %v8263 = vpop.f32.mrf.mxu0
        %v8264 = vadd.f32 %v8133, %v8263
        %v8265 = vand.u32 %v7673, 4294901760
        %v8266 = vsub.f32 %v7673, %v8265
        %v8267 = vand.u32 %v8266, 4294901760
        %8268 = vmatmul.f32.gmra.mxu0 %v8267
        %v8269 = vpop.f32.mrf.mxu0
        %v8270 = vadd.f32 %v8138, %v8269
        %v8271 = vand.u32 %v7674, 4294901760
        %v8272 = vsub.f32 %v7674, %v8271
        %v8273 = vand.u32 %v8272, 4294901760
        %8274 = vmatmul.f32.gmra.mxu0 %v8273
        %v8275 = vpop.f32.mrf.mxu0
        %v8276 = vadd.f32 %v8143, %v8275
        %v8277 = vand.u32 %v7675, 4294901760
        %v8278 = vsub.f32 %v7675, %v8277
        %v8279 = vand.u32 %v8278, 4294901760
        %8280 = vmatmul.f32.gmra.mxu0 %v8279
        %v8281 = vpop.f32.mrf.mxu0
        %v8282 = vadd.f32 %v8148, %v8281
        %v8283 = vand.u32 %v7676, 4294901760
        %v8284 = vsub.f32 %v7676, %v8283
        %v8285 = vand.u32 %v8284, 4294901760
        %8286 = vmatmul.f32.gmra.mxu0 %v8285
        %v8287 = vpop.f32.mrf.mxu0
        %v8288 = vadd.f32 %v8153, %v8287
        %v8289 = vand.u32 %v7677, 4294901760
        %v8290 = vsub.f32 %v7677, %v8289
        %v8291 = vand.u32 %v8290, 4294901760
        %8292 = vmatmul.f32.gmra.mxu0 %v8291
        %v8293 = vpop.f32.mrf.mxu0
        %v8294 = vadd.f32 %v8158, %v8293
        %v8295 = vand.u32 %v7678, 4294901760
        %v8296 = vsub.f32 %v7678, %v8295
        %v8297 = vand.u32 %v8296, 4294901760
        %8298 = vmatmul.f32.gmra.mxu0 %v8297
        %v8299 = vpop.f32.mrf.mxu0
        %v8300 = vadd.f32 %v8163, %v8299
        %v8301 = vand.u32 %v7679, 4294901760
        %v8302 = vsub.f32 %v7679, %v8301
        %v8303 = vand.u32 %v8302, 4294901760
        %8304 = vmatmul.f32.gmra.mxu0 %v8303
        %v8305 = vpop.f32.mrf.mxu0
        %v8306 = vadd.f32 %v8168, %v8305
        %v8307 = vand.u32 %v7680, 4294901760
        %v8308 = vsub.f32 %v7680, %v8307
        %v8309 = vand.u32 %v8308, 4294901760
        %8310 = vmatmul.f32.gmra.mxu0 %v8309
        %v8311 = vpop.f32.mrf.mxu0
        %v8312 = vadd.f32 %v8173, %v8311
        %v8313 = vand.u32 %v7681, 4294901760
        %v8314 = vsub.f32 %v7681, %v8313
        %v8315 = vand.u32 %v8314, 4294901760
        %8316 = vmatmul.f32.gmra.mxu0 %v8315
        %v8317 = vpop.f32.mrf.mxu0
        %v8318 = vadd.f32 %v8178, %v8317
        %v8319 = vand.u32 %v7682, 4294901760
        %v8320 = vsub.f32 %v7682, %v8319
        %v8321 = vand.u32 %v8320, 4294901760
        %8322 = vmatmul.f32.gmra.mxu0 %v8321
        %v8323 = vpop.f32.mrf.mxu0
        %v8324 = vadd.f32 %v8183, %v8323
        %8325 = vdwg.mxu0
        %v8326 = vand.u32 %v7699, 4294901760
        %v8327 = vsub.f32 %v7699, %v8326
        %v8328 = vand.u32 %v8327, 4294901760
        %8329 = vmatpush.msra.mxu0 %v8328
        %v8330 = vand.u32 %v7698, 4294901760
        %v8331 = vsub.f32 %v7698, %v8330
        %v8332 = vand.u32 %v8331, 4294901760
        %8333 = vmatpush.msra.mxu0 %v8332
        %v8334 = vand.u32 %v7697, 4294901760
        %v8335 = vsub.f32 %v7697, %v8334
        %v8336 = vand.u32 %v8335, 4294901760
        %8337 = vmatpush.msra.mxu0 %v8336
        %v8338 = vand.u32 %v7696, 4294901760
        %v8339 = vsub.f32 %v7696, %v8338
        %v8340 = vand.u32 %v8339, 4294901760
        %8341 = vmatpush.msra.mxu0 %v8340
        %v8342 = vand.u32 %v7695, 4294901760
        %v8343 = vsub.f32 %v7695, %v8342
        %v8344 = vand.u32 %v8343, 4294901760
        %8345 = vmatpush.msra.mxu0 %v8344
        %v8346 = vand.u32 %v7694, 4294901760
        %v8347 = vsub.f32 %v7694, %v8346
        %v8348 = vand.u32 %v8347, 4294901760
        %8349 = vmatpush.msra.mxu0 %v8348
        %v8350 = vand.u32 %v7693, 4294901760
        %v8351 = vsub.f32 %v7693, %v8350
        %v8352 = vand.u32 %v8351, 4294901760
        %8353 = vmatpush.msra.mxu0 %v8352
        %v8354 = vand.u32 %v7692, 4294901760
        %v8355 = vsub.f32 %v7692, %v8354
        %v8356 = vand.u32 %v8355, 4294901760
        %8357 = vmatpush.msra.mxu0 %v8356
        %v8358 = vand.u32 %v7691, 4294901760
        %v8359 = vsub.f32 %v7691, %v8358
        %v8360 = vand.u32 %v8359, 4294901760
        %8361 = vmatpush.msra.mxu0 %v8360
        %v8362 = vand.u32 %v7690, 4294901760
        %v8363 = vsub.f32 %v7690, %v8362
        %v8364 = vand.u32 %v8363, 4294901760
        %8365 = vmatpush.msra.mxu0 %v8364
        %v8366 = vand.u32 %v7689, 4294901760
        %v8367 = vsub.f32 %v7689, %v8366
        %v8368 = vand.u32 %v8367, 4294901760
        %8369 = vmatpush.msra.mxu0 %v8368
        %v8370 = vand.u32 %v7688, 4294901760
        %v8371 = vsub.f32 %v7688, %v8370
        %v8372 = vand.u32 %v8371, 4294901760
        %8373 = vmatpush.msra.mxu0 %v8372
        %v8374 = vand.u32 %v7687, 4294901760
        %v8375 = vsub.f32 %v7687, %v8374
        %v8376 = vand.u32 %v8375, 4294901760
        %8377 = vmatpush.msra.mxu0 %v8376
        %v8378 = vand.u32 %v7686, 4294901760
        %v8379 = vsub.f32 %v7686, %v8378
        %v8380 = vand.u32 %v8379, 4294901760
        %8381 = vmatpush.msra.mxu0 %v8380
        %v8382 = vand.u32 %v7685, 4294901760
        %v8383 = vsub.f32 %v7685, %v8382
        %v8384 = vand.u32 %v8383, 4294901760
        %8385 = vmatpush.msra.mxu0 %v8384
        %v8386 = vand.u32 %v7684, 4294901760
        %v8387 = vsub.f32 %v7684, %v8386
        %v8388 = vand.u32 %v8387, 4294901760
        %8389 = vmatpush.msra.mxu0 %v8388
        %v8390 = vand.u32 %v7665, 4294901760
        %8391 = vmatmul.f32.gmra.mxu0 %v8390
        %v8392 = vpop.f32.mrf.mxu0
        %v8393 = vadd.f32 %v8222, %v8392
        %v8394 = vand.u32 %v7666, 4294901760
        %8395 = vmatmul.f32.gmra.mxu0 %v8394
        %v8396 = vpop.f32.mrf.mxu0
        %v8397 = vadd.f32 %v8228, %v8396
        %v8398 = vand.u32 %v7667, 4294901760
        %8399 = vmatmul.f32.gmra.mxu0 %v8398
        %v8400 = vpop.f32.mrf.mxu0
        %v8401 = vadd.f32 %v8234, %v8400
        %v8402 = vand.u32 %v7668, 4294901760
        %8403 = vmatmul.f32.gmra.mxu0 %v8402
        %v8404 = vpop.f32.mrf.mxu0
        %v8405 = vadd.f32 %v8240, %v8404
        %v8406 = vand.u32 %v7669, 4294901760
        %8407 = vmatmul.f32.gmra.mxu0 %v8406
        %v8408 = vpop.f32.mrf.mxu0
        %v8409 = vadd.f32 %v8246, %v8408
        %v8410 = vand.u32 %v7670, 4294901760
        %8411 = vmatmul.f32.gmra.mxu0 %v8410
        %v8412 = vpop.f32.mrf.mxu0
        %v8413 = vadd.f32 %v8252, %v8412
        %v8414 = vand.u32 %v7671, 4294901760
        %8415 = vmatmul.f32.gmra.mxu0 %v8414
        %v8416 = vpop.f32.mrf.mxu0
        %v8417 = vadd.f32 %v8258, %v8416
        %v8418 = vand.u32 %v7672, 4294901760
        %8419 = vmatmul.f32.gmra.mxu0 %v8418
        %v8420 = vpop.f32.mrf.mxu0
        %v8421 = vadd.f32 %v8264, %v8420
        %v8422 = vand.u32 %v7673, 4294901760
        %8423 = vmatmul.f32.gmra.mxu0 %v8422
        %v8424 = vpop.f32.mrf.mxu0
        %v8425 = vadd.f32 %v8270, %v8424
        %v8426 = vand.u32 %v7674, 4294901760
        %8427 = vmatmul.f32.gmra.mxu0 %v8426
        %v8428 = vpop.f32.mrf.mxu0
        %v8429 = vadd.f32 %v8276, %v8428
        %v8430 = vand.u32 %v7675, 4294901760
        %8431 = vmatmul.f32.gmra.mxu0 %v8430
        %v8432 = vpop.f32.mrf.mxu0
        %v8433 = vadd.f32 %v8282, %v8432
        %v8434 = vand.u32 %v7676, 4294901760
        %8435 = vmatmul.f32.gmra.mxu0 %v8434
        %v8436 = vpop.f32.mrf.mxu0
        %v8437 = vadd.f32 %v8288, %v8436
        %v8438 = vand.u32 %v7677, 4294901760
        %8439 = vmatmul.f32.gmra.mxu0 %v8438
        %v8440 = vpop.f32.mrf.mxu0
        %v8441 = vadd.f32 %v8294, %v8440
        %v8442 = vand.u32 %v7678, 4294901760
        %8443 = vmatmul.f32.gmra.mxu0 %v8442
        %v8444 = vpop.f32.mrf.mxu0
        %v8445 = vadd.f32 %v8300, %v8444
        %v8446 = vand.u32 %v7679, 4294901760
        %8447 = vmatmul.f32.gmra.mxu0 %v8446
        %v8448 = vpop.f32.mrf.mxu0
        %v8449 = vadd.f32 %v8306, %v8448
        %v8450 = vand.u32 %v7680, 4294901760
        %8451 = vmatmul.f32.gmra.mxu0 %v8450
        %v8452 = vpop.f32.mrf.mxu0
        %v8453 = vadd.f32 %v8312, %v8452
        %v8454 = vand.u32 %v7681, 4294901760
        %8455 = vmatmul.f32.gmra.mxu0 %v8454
        %v8456 = vpop.f32.mrf.mxu0
        %v8457 = vadd.f32 %v8318, %v8456
        %v8458 = vand.u32 %v7682, 4294901760
        %8459 = vmatmul.f32.gmra.mxu0 %v8458
        %v8460 = vpop.f32.mrf.mxu0
        %v8461 = vadd.f32 %v8324, %v8460
        %8462 = vdwg.mxu0
        %v8463 = vand.u32 %v7699, 4294901760
        %8464 = vmatpush.msra.mxu0 %v8463
        %v8465 = vand.u32 %v7698, 4294901760
        %8466 = vmatpush.msra.mxu0 %v8465
        %v8467 = vand.u32 %v7697, 4294901760
        %8468 = vmatpush.msra.mxu0 %v8467
        %v8469 = vand.u32 %v7696, 4294901760
        %8470 = vmatpush.msra.mxu0 %v8469
        %v8471 = vand.u32 %v7695, 4294901760
        %8472 = vmatpush.msra.mxu0 %v8471
        %v8473 = vand.u32 %v7694, 4294901760
        %8474 = vmatpush.msra.mxu0 %v8473
        %v8475 = vand.u32 %v7693, 4294901760
        %8476 = vmatpush.msra.mxu0 %v8475
        %v8477 = vand.u32 %v7692, 4294901760
        %8478 = vmatpush.msra.mxu0 %v8477
        %v8479 = vand.u32 %v7691, 4294901760
        %8480 = vmatpush.msra.mxu0 %v8479
        %v8481 = vand.u32 %v7690, 4294901760
        %8482 = vmatpush.msra.mxu0 %v8481
        %v8483 = vand.u32 %v7689, 4294901760
        %8484 = vmatpush.msra.mxu0 %v8483
        %v8485 = vand.u32 %v7688, 4294901760
        %8486 = vmatpush.msra.mxu0 %v8485
        %v8487 = vand.u32 %v7687, 4294901760
        %8488 = vmatpush.msra.mxu0 %v8487
        %v8489 = vand.u32 %v7686, 4294901760
        %8490 = vmatpush.msra.mxu0 %v8489
        %v8491 = vand.u32 %v7685, 4294901760
        %8492 = vmatpush.msra.mxu0 %v8491
        %v8493 = vand.u32 %v7684, 4294901760
        %8494 = vmatpush.msra.mxu0 %v8493
        %v8495 = vand.u32 %v7665, 4294901760
        %8496 = vmatmul.f32.gmra.mxu0 %v8495
        %v8497 = vpop.f32.mrf.mxu0
        %v8498 = vadd.f32 %v8393, %v8497
        %v8499 = vand.u32 %v7666, 4294901760
        %8500 = vmatmul.f32.gmra.mxu0 %v8499
        %v8501 = vpop.f32.mrf.mxu0
        %v8502 = vadd.f32 %v8397, %v8501
        %v8503 = vand.u32 %v7667, 4294901760
        %8504 = vmatmul.f32.gmra.mxu0 %v8503
        %v8505 = vpop.f32.mrf.mxu0
        %v8506 = vadd.f32 %v8401, %v8505
        %v8507 = vand.u32 %v7668, 4294901760
        %8508 = vmatmul.f32.gmra.mxu0 %v8507
        %v8509 = vpop.f32.mrf.mxu0
        %v8510 = vadd.f32 %v8405, %v8509
        %v8511 = vand.u32 %v7669, 4294901760
        %8512 = vmatmul.f32.gmra.mxu0 %v8511
        %v8513 = vpop.f32.mrf.mxu0
        %v8514 = vadd.f32 %v8409, %v8513
        %v8515 = vand.u32 %v7670, 4294901760
        %8516 = vmatmul.f32.gmra.mxu0 %v8515
        %v8517 = vpop.f32.mrf.mxu0
        %v8518 = vadd.f32 %v8413, %v8517
        %v8519 = vand.u32 %v7671, 4294901760
        %8520 = vmatmul.f32.gmra.mxu0 %v8519
        %v8521 = vpop.f32.mrf.mxu0
        %v8522 = vadd.f32 %v8417, %v8521
        %v8523 = vand.u32 %v7672, 4294901760
        %8524 = vmatmul.f32.gmra.mxu0 %v8523
        %v8525 = vpop.f32.mrf.mxu0
        %v8526 = vadd.f32 %v8421, %v8525
        %v8527 = vand.u32 %v7673, 4294901760
        %8528 = vmatmul.f32.gmra.mxu0 %v8527
        %v8529 = vpop.f32.mrf.mxu0
        %v8530 = vadd.f32 %v8425, %v8529
        %v8531 = vand.u32 %v7674, 4294901760
        %8532 = vmatmul.f32.gmra.mxu0 %v8531
        %v8533 = vpop.f32.mrf.mxu0
        %v8534 = vadd.f32 %v8429, %v8533
        %v8535 = vand.u32 %v7675, 4294901760
        %8536 = vmatmul.f32.gmra.mxu0 %v8535
        %v8537 = vpop.f32.mrf.mxu0
        %v8538 = vadd.f32 %v8433, %v8537
        %v8539 = vand.u32 %v7676, 4294901760
        %8540 = vmatmul.f32.gmra.mxu0 %v8539
        %v8541 = vpop.f32.mrf.mxu0
        %v8542 = vadd.f32 %v8437, %v8541
        %v8543 = vand.u32 %v7677, 4294901760
        %8544 = vmatmul.f32.gmra.mxu0 %v8543
        %v8545 = vpop.f32.mrf.mxu0
        %v8546 = vadd.f32 %v8441, %v8545
        %v8547 = vand.u32 %v7678, 4294901760
        %8548 = vmatmul.f32.gmra.mxu0 %v8547
        %v8549 = vpop.f32.mrf.mxu0
        %v8550 = vadd.f32 %v8445, %v8549
        %v8551 = vand.u32 %v7679, 4294901760
        %8552 = vmatmul.f32.gmra.mxu0 %v8551
        %v8553 = vpop.f32.mrf.mxu0
        %v8554 = vadd.f32 %v8449, %v8553
        %v8555 = vand.u32 %v7680, 4294901760
        %8556 = vmatmul.f32.gmra.mxu0 %v8555
        %v8557 = vpop.f32.mrf.mxu0
        %v8558 = vadd.f32 %v8453, %v8557
        %v8559 = vand.u32 %v7681, 4294901760
        %8560 = vmatmul.f32.gmra.mxu0 %v8559
        %v8561 = vpop.f32.mrf.mxu0
        %v8562 = vadd.f32 %v8457, %v8561
        %v8563 = vand.u32 %v7682, 4294901760
        %8564 = vmatmul.f32.gmra.mxu0 %v8563
        %v8565 = vpop.f32.mrf.mxu0
        %v8566 = vadd.f32 %v8461, %v8565
        %8567 = vdwg.mxu0
        %v8568 = vadd.f32 %v7647, %v8498
        %v8569 = vadd.f32 %v7648, %v8502
        %v8570 = vadd.f32 %v7649, %v8506
        %v8571 = vadd.f32 %v7650, %v8510
        %v8572 = vadd.f32 %v7651, %v8514
        %v8573 = vadd.f32 %v7652, %v8518
        %v8574 = vadd.f32 %v7653, %v8522
        %v8575 = vadd.f32 %v7654, %v8526
        %v8576 = vadd.f32 %v7655, %v8530
        %v8577 = vadd.f32 %v7656, %v8534
        %v8578 = vadd.f32 %v7657, %v8538
        %v8579 = vadd.f32 %v7658, %v8542
        %v8580 = vadd.f32 %v7659, %v8546
        %v8581 = vadd.f32 %v7660, %v8550
        %v8582 = vadd.f32 %v7661, %v8554
        %v8583 = vadd.f32 %v7662, %v8558
        %v8584 = vadd.f32 %v7663, %v8562
        %v8585 = vadd.f32 %v7664, %v8566
        %v8587 = vperm.slane %v331, 0
        %v8589 = vadd.f32 %v8568, %v8587
        %v8590 = vadd.f32 %v8569, %v8587
        %v8591 = vadd.f32 %v8570, %v8587
        %v8592 = vadd.f32 %v8571, %v8587
        %v8593 = vadd.f32 %v8572, %v8587
        %v8594 = vadd.f32 %v8573, %v8587
        %v8595 = vadd.f32 %v8574, %v8587
        %v8596 = vadd.f32 %v8575, %v8587
        %v8597 = vadd.f32 %v8576, %v8587
        %v8598 = vadd.f32 %v8577, %v8587
        %v8599 = vadd.f32 %v8578, %v8587
        %v8600 = vadd.f32 %v8579, %v8587
        %v8601 = vadd.f32 %v8580, %v8587
        %v8602 = vadd.f32 %v8581, %v8587
        %v8603 = vadd.f32 %v8582, %v8587
        %v8604 = vadd.f32 %v8583, %v8587
        %v8605 = vadd.f32 %v8584, %v8587
        %v8606 = vadd.f32 %v8585, %v8587
        %v8607 = vsub.f32 0.0, %v8589
        %v8608 = vsub.f32 0.0, %v8590
        %v8609 = vsub.f32 0.0, %v8591
        %v8610 = vsub.f32 0.0, %v8592
        %v8611 = vsub.f32 0.0, %v8593
        %v8612 = vsub.f32 0.0, %v8594
        %v8613 = vsub.f32 0.0, %v8595
        %v8614 = vsub.f32 0.0, %v8596
        %v8615 = vsub.f32 0.0, %v8597
        %v8616 = vsub.f32 0.0, %v8598
        %v8617 = vsub.f32 0.0, %v8599
        %v8618 = vsub.f32 0.0, %v8600
        %v8619 = vsub.f32 0.0, %v8601
        %v8620 = vsub.f32 0.0, %v8602
        %v8621 = vsub.f32 0.0, %v8603
        %v8622 = vsub.f32 0.0, %v8604
        %v8623 = vsub.f32 0.0, %v8605
        %v8624 = vsub.f32 0.0, %v8606
        %v8625 = vmul.f32 %v8607, 1.442695
        %v8626 = vpow.pop %v8625
        %v8627 = vmul.f32 %v8608, 1.442695
        %v8628 = vpow.pop %v8627
        %v8629 = vmul.f32 %v8609, 1.442695
        %v8630 = vpow.pop %v8629
        %v8631 = vmul.f32 %v8610, 1.442695
        %v8632 = vpow.pop %v8631
        %v8633 = vmul.f32 %v8611, 1.442695
        %v8634 = vpow.pop %v8633
        %v8635 = vmul.f32 %v8612, 1.442695
        %v8636 = vpow.pop %v8635
        %v8637 = vmul.f32 %v8613, 1.442695
        %v8638 = vpow.pop %v8637
        %v8639 = vmul.f32 %v8614, 1.442695
        %v8640 = vpow.pop %v8639
        %v8641 = vmul.f32 %v8615, 1.442695
        %v8642 = vpow.pop %v8641
        %v8643 = vmul.f32 %v8616, 1.442695
        %v8644 = vpow.pop %v8643
        %v8645 = vmul.f32 %v8617, 1.442695
        %v8646 = vpow.pop %v8645
        %v8647 = vmul.f32 %v8618, 1.442695
        %v8648 = vpow.pop %v8647
        %v8649 = vmul.f32 %v8619, 1.442695
        %v8650 = vpow.pop %v8649
        %v8651 = vmul.f32 %v8620, 1.442695
        %v8652 = vpow.pop %v8651
        %v8653 = vmul.f32 %v8621, 1.442695
        %v8654 = vpow.pop %v8653
        %v8655 = vmul.f32 %v8622, 1.442695
        %v8656 = vpow.pop %v8655
        %v8657 = vmul.f32 %v8623, 1.442695
        %v8658 = vpow.pop %v8657
        %v8659 = vmul.f32 %v8624, 1.442695
        %v8660 = vpow.pop %v8659
        %v8661 = vadd.f32 %v8626, 1.0
        %v8662 = vadd.f32 %v8628, 1.0
        %v8663 = vadd.f32 %v8630, 1.0
        %v8664 = vadd.f32 %v8632, 1.0
        %v8665 = vadd.f32 %v8634, 1.0
        %v8666 = vadd.f32 %v8636, 1.0
        %v8667 = vadd.f32 %v8638, 1.0
        %v8668 = vadd.f32 %v8640, 1.0
        %v8669 = vadd.f32 %v8642, 1.0
        %v8670 = vadd.f32 %v8644, 1.0
        %v8671 = vadd.f32 %v8646, 1.0
        %v8672 = vadd.f32 %v8648, 1.0
        %v8673 = vadd.f32 %v8650, 1.0
        %v8674 = vadd.f32 %v8652, 1.0
        %v8675 = vadd.f32 %v8654, 1.0
        %v8676 = vadd.f32 %v8656, 1.0
        %v8677 = vadd.f32 %v8658, 1.0
        %v8678 = vadd.f32 %v8660, 1.0
        %v8679 = vrcp.pop %v8661
        %v8680 = vmul.f32 %v8661, %v8679
        %v8681 = vsub.f32 1.0, %v8680
        %v8682 = vmul.f32 %v8679, %v8681
        %v8683 = vadd.f32 %v8679, %v8682
        %vm8684 = vweird.f32 %v8661
        %vm8685 = vweird.f32 %v8679
        %vm8686 = vmor %vm8684, %vm8685
        %v8687 = vsel %vm8686, %v8679, %v8683
        %v8688 = vand.u32 2147483647, %v8661
        %vm8689 = vcmp.eq.f32.partialorder %v8688, 8.507059e+37
        %v8690 = vand.u32 %v8661, 2147483648
        %v8691 = vor.u32 1.1754944e-38, %v8690
        %v8692 = vsel %vm8689, %v8691, %v8687
        %v8693 = vmul.f32 1.0, %v8692
        %v8694 = vrcp.pop %v8662
        %v8695 = vmul.f32 %v8662, %v8694
        %v8696 = vsub.f32 1.0, %v8695
        %v8697 = vmul.f32 %v8694, %v8696
        %v8698 = vadd.f32 %v8694, %v8697
        %vm8699 = vweird.f32 %v8662
        %vm8700 = vweird.f32 %v8694
        %vm8701 = vmor %vm8699, %vm8700
        %v8702 = vsel %vm8701, %v8694, %v8698
        %v8703 = vand.u32 2147483647, %v8662
        %vm8704 = vcmp.eq.f32.partialorder %v8703, 8.507059e+37
        %v8705 = vand.u32 %v8662, 2147483648
        %v8706 = vor.u32 1.1754944e-38, %v8705
        %v8707 = vsel %vm8704, %v8706, %v8702
        %v8708 = vmul.f32 1.0, %v8707
        %v8709 = vrcp.pop %v8663
        %v8710 = vmul.f32 %v8663, %v8709
        %v8711 = vsub.f32 1.0, %v8710
        %v8712 = vmul.f32 %v8709, %v8711
        %v8713 = vadd.f32 %v8709, %v8712
        %vm8714 = vweird.f32 %v8663
        %vm8715 = vweird.f32 %v8709
        %vm8716 = vmor %vm8714, %vm8715
        %v8717 = vsel %vm8716, %v8709, %v8713
        %v8718 = vand.u32 2147483647, %v8663
        %vm8719 = vcmp.eq.f32.partialorder %v8718, 8.507059e+37
        %v8720 = vand.u32 %v8663, 2147483648
        %v8721 = vor.u32 1.1754944e-38, %v8720
        %v8722 = vsel %vm8719, %v8721, %v8717
        %v8723 = vmul.f32 1.0, %v8722
        %v8724 = vrcp.pop %v8664
        %v8725 = vmul.f32 %v8664, %v8724
        %v8726 = vsub.f32 1.0, %v8725
        %v8727 = vmul.f32 %v8724, %v8726
        %v8728 = vadd.f32 %v8724, %v8727
        %vm8729 = vweird.f32 %v8664
        %vm8730 = vweird.f32 %v8724
        %vm8731 = vmor %vm8729, %vm8730
        %v8732 = vsel %vm8731, %v8724, %v8728
        %v8733 = vand.u32 2147483647, %v8664
        %vm8734 = vcmp.eq.f32.partialorder %v8733, 8.507059e+37
        %v8735 = vand.u32 %v8664, 2147483648
        %v8736 = vor.u32 1.1754944e-38, %v8735
        %v8737 = vsel %vm8734, %v8736, %v8732
        %v8738 = vmul.f32 1.0, %v8737
        %v8739 = vrcp.pop %v8665
        %v8740 = vmul.f32 %v8665, %v8739
        %v8741 = vsub.f32 1.0, %v8740
        %v8742 = vmul.f32 %v8739, %v8741
        %v8743 = vadd.f32 %v8739, %v8742
        %vm8744 = vweird.f32 %v8665
        %vm8745 = vweird.f32 %v8739
        %vm8746 = vmor %vm8744, %vm8745
        %v8747 = vsel %vm8746, %v8739, %v8743
        %v8748 = vand.u32 2147483647, %v8665
        %vm8749 = vcmp.eq.f32.partialorder %v8748, 8.507059e+37
        %v8750 = vand.u32 %v8665, 2147483648
        %v8751 = vor.u32 1.1754944e-38, %v8750
        %v8752 = vsel %vm8749, %v8751, %v8747
        %v8753 = vmul.f32 1.0, %v8752
        %v8754 = vrcp.pop %v8666
        %v8755 = vmul.f32 %v8666, %v8754
        %v8756 = vsub.f32 1.0, %v8755
        %v8757 = vmul.f32 %v8754, %v8756
        %v8758 = vadd.f32 %v8754, %v8757
        %vm8759 = vweird.f32 %v8666
        %vm8760 = vweird.f32 %v8754
        %vm8761 = vmor %vm8759, %vm8760
        %v8762 = vsel %vm8761, %v8754, %v8758
        %v8763 = vand.u32 2147483647, %v8666
        %vm8764 = vcmp.eq.f32.partialorder %v8763, 8.507059e+37
        %v8765 = vand.u32 %v8666, 2147483648
        %v8766 = vor.u32 1.1754944e-38, %v8765
        %v8767 = vsel %vm8764, %v8766, %v8762
        %v8768 = vmul.f32 1.0, %v8767
        %v8769 = vrcp.pop %v8667
        %v8770 = vmul.f32 %v8667, %v8769
        %v8771 = vsub.f32 1.0, %v8770
        %v8772 = vmul.f32 %v8769, %v8771
        %v8773 = vadd.f32 %v8769, %v8772
        %vm8774 = vweird.f32 %v8667
        %vm8775 = vweird.f32 %v8769
        %vm8776 = vmor %vm8774, %vm8775
        %v8777 = vsel %vm8776, %v8769, %v8773
        %v8778 = vand.u32 2147483647, %v8667
        %vm8779 = vcmp.eq.f32.partialorder %v8778, 8.507059e+37
        %v8780 = vand.u32 %v8667, 2147483648
        %v8781 = vor.u32 1.1754944e-38, %v8780
        %v8782 = vsel %vm8779, %v8781, %v8777
        %v8783 = vmul.f32 1.0, %v8782
        %v8784 = vrcp.pop %v8668
        %v8785 = vmul.f32 %v8668, %v8784
        %v8786 = vsub.f32 1.0, %v8785
        %v8787 = vmul.f32 %v8784, %v8786
        %v8788 = vadd.f32 %v8784, %v8787
        %vm8789 = vweird.f32 %v8668
        %vm8790 = vweird.f32 %v8784
        %vm8791 = vmor %vm8789, %vm8790
        %v8792 = vsel %vm8791, %v8784, %v8788
        %v8793 = vand.u32 2147483647, %v8668
        %vm8794 = vcmp.eq.f32.partialorder %v8793, 8.507059e+37
        %v8795 = vand.u32 %v8668, 2147483648
        %v8796 = vor.u32 1.1754944e-38, %v8795
        %v8797 = vsel %vm8794, %v8796, %v8792
        %v8798 = vmul.f32 1.0, %v8797
        %v8799 = vrcp.pop %v8669
        %v8800 = vmul.f32 %v8669, %v8799
        %v8801 = vsub.f32 1.0, %v8800
        %v8802 = vmul.f32 %v8799, %v8801
        %v8803 = vadd.f32 %v8799, %v8802
        %vm8804 = vweird.f32 %v8669
        %vm8805 = vweird.f32 %v8799
        %vm8806 = vmor %vm8804, %vm8805
        %v8807 = vsel %vm8806, %v8799, %v8803
        %v8808 = vand.u32 2147483647, %v8669
        %vm8809 = vcmp.eq.f32.partialorder %v8808, 8.507059e+37
        %v8810 = vand.u32 %v8669, 2147483648
        %v8811 = vor.u32 1.1754944e-38, %v8810
        %v8812 = vsel %vm8809, %v8811, %v8807
        %v8813 = vmul.f32 1.0, %v8812
        %v8814 = vrcp.pop %v8670
        %v8815 = vmul.f32 %v8670, %v8814
        %v8816 = vsub.f32 1.0, %v8815
        %v8817 = vmul.f32 %v8814, %v8816
        %v8818 = vadd.f32 %v8814, %v8817
        %vm8819 = vweird.f32 %v8670
        %vm8820 = vweird.f32 %v8814
        %vm8821 = vmor %vm8819, %vm8820
        %v8822 = vsel %vm8821, %v8814, %v8818
        %v8823 = vand.u32 2147483647, %v8670
        %vm8824 = vcmp.eq.f32.partialorder %v8823, 8.507059e+37
        %v8825 = vand.u32 %v8670, 2147483648
        %v8826 = vor.u32 1.1754944e-38, %v8825
        %v8827 = vsel %vm8824, %v8826, %v8822
        %v8828 = vmul.f32 1.0, %v8827
        %v8829 = vrcp.pop %v8671
        %v8830 = vmul.f32 %v8671, %v8829
        %v8831 = vsub.f32 1.0, %v8830
        %v8832 = vmul.f32 %v8829, %v8831
        %v8833 = vadd.f32 %v8829, %v8832
        %vm8834 = vweird.f32 %v8671
        %vm8835 = vweird.f32 %v8829
        %vm8836 = vmor %vm8834, %vm8835
        %v8837 = vsel %vm8836, %v8829, %v8833
        %v8838 = vand.u32 2147483647, %v8671
        %vm8839 = vcmp.eq.f32.partialorder %v8838, 8.507059e+37
        %v8840 = vand.u32 %v8671, 2147483648
        %v8841 = vor.u32 1.1754944e-38, %v8840
        %v8842 = vsel %vm8839, %v8841, %v8837
        %v8843 = vmul.f32 1.0, %v8842
        %v8844 = vrcp.pop %v8672
        %v8845 = vmul.f32 %v8672, %v8844
        %v8846 = vsub.f32 1.0, %v8845
        %v8847 = vmul.f32 %v8844, %v8846
        %v8848 = vadd.f32 %v8844, %v8847
        %vm8849 = vweird.f32 %v8672
        %vm8850 = vweird.f32 %v8844
        %vm8851 = vmor %vm8849, %vm8850
        %v8852 = vsel %vm8851, %v8844, %v8848
        %v8853 = vand.u32 2147483647, %v8672
        %vm8854 = vcmp.eq.f32.partialorder %v8853, 8.507059e+37
        %v8855 = vand.u32 %v8672, 2147483648
        %v8856 = vor.u32 1.1754944e-38, %v8855
        %v8857 = vsel %vm8854, %v8856, %v8852
        %v8858 = vmul.f32 1.0, %v8857
        %v8859 = vrcp.pop %v8673
        %v8860 = vmul.f32 %v8673, %v8859
        %v8861 = vsub.f32 1.0, %v8860
        %v8862 = vmul.f32 %v8859, %v8861
        %v8863 = vadd.f32 %v8859, %v8862
        %vm8864 = vweird.f32 %v8673
        %vm8865 = vweird.f32 %v8859
        %vm8866 = vmor %vm8864, %vm8865
        %v8867 = vsel %vm8866, %v8859, %v8863
        %v8868 = vand.u32 2147483647, %v8673
        %vm8869 = vcmp.eq.f32.partialorder %v8868, 8.507059e+37
        %v8870 = vand.u32 %v8673, 2147483648
        %v8871 = vor.u32 1.1754944e-38, %v8870
        %v8872 = vsel %vm8869, %v8871, %v8867
        %v8873 = vmul.f32 1.0, %v8872
        %v8874 = vrcp.pop %v8674
        %v8875 = vmul.f32 %v8674, %v8874
        %v8876 = vsub.f32 1.0, %v8875
        %v8877 = vmul.f32 %v8874, %v8876
        %v8878 = vadd.f32 %v8874, %v8877
        %vm8879 = vweird.f32 %v8674
        %vm8880 = vweird.f32 %v8874
        %vm8881 = vmor %vm8879, %vm8880
        %v8882 = vsel %vm8881, %v8874, %v8878
        %v8883 = vand.u32 2147483647, %v8674
        %vm8884 = vcmp.eq.f32.partialorder %v8883, 8.507059e+37
        %v8885 = vand.u32 %v8674, 2147483648
        %v8886 = vor.u32 1.1754944e-38, %v8885
        %v8887 = vsel %vm8884, %v8886, %v8882
        %v8888 = vmul.f32 1.0, %v8887
        %v8889 = vrcp.pop %v8675
        %v8890 = vmul.f32 %v8675, %v8889
        %v8891 = vsub.f32 1.0, %v8890
        %v8892 = vmul.f32 %v8889, %v8891
        %v8893 = vadd.f32 %v8889, %v8892
        %vm8894 = vweird.f32 %v8675
        %vm8895 = vweird.f32 %v8889
        %vm8896 = vmor %vm8894, %vm8895
        %v8897 = vsel %vm8896, %v8889, %v8893
        %v8898 = vand.u32 2147483647, %v8675
        %vm8899 = vcmp.eq.f32.partialorder %v8898, 8.507059e+37
        %v8900 = vand.u32 %v8675, 2147483648
        %v8901 = vor.u32 1.1754944e-38, %v8900
        %v8902 = vsel %vm8899, %v8901, %v8897
        %v8903 = vmul.f32 1.0, %v8902
        %v8904 = vrcp.pop %v8676
        %v8905 = vmul.f32 %v8676, %v8904
        %v8906 = vsub.f32 1.0, %v8905
        %v8907 = vmul.f32 %v8904, %v8906
        %v8908 = vadd.f32 %v8904, %v8907
        %vm8909 = vweird.f32 %v8676
        %vm8910 = vweird.f32 %v8904
        %vm8911 = vmor %vm8909, %vm8910
        %v8912 = vsel %vm8911, %v8904, %v8908
        %v8913 = vand.u32 2147483647, %v8676
        %vm8914 = vcmp.eq.f32.partialorder %v8913, 8.507059e+37
        %v8915 = vand.u32 %v8676, 2147483648
        %v8916 = vor.u32 1.1754944e-38, %v8915
        %v8917 = vsel %vm8914, %v8916, %v8912
        %v8918 = vmul.f32 1.0, %v8917
        %v8919 = vrcp.pop %v8677
        %v8920 = vmul.f32 %v8677, %v8919
        %v8921 = vsub.f32 1.0, %v8920
        %v8922 = vmul.f32 %v8919, %v8921
        %v8923 = vadd.f32 %v8919, %v8922
        %vm8924 = vweird.f32 %v8677
        %vm8925 = vweird.f32 %v8919
        %vm8926 = vmor %vm8924, %vm8925
        %v8927 = vsel %vm8926, %v8919, %v8923
        %v8928 = vand.u32 2147483647, %v8677
        %vm8929 = vcmp.eq.f32.partialorder %v8928, 8.507059e+37
        %v8930 = vand.u32 %v8677, 2147483648
        %v8931 = vor.u32 1.1754944e-38, %v8930
        %v8932 = vsel %vm8929, %v8931, %v8927
        %v8933 = vmul.f32 1.0, %v8932
        %v8934 = vrcp.pop %v8678
        %v8935 = vmul.f32 %v8678, %v8934
        %v8936 = vsub.f32 1.0, %v8935
        %v8937 = vmul.f32 %v8934, %v8936
        %v8938 = vadd.f32 %v8934, %v8937
        %vm8939 = vweird.f32 %v8678
        %vm8940 = vweird.f32 %v8934
        %vm8941 = vmor %vm8939, %vm8940
        %v8942 = vsel %vm8941, %v8934, %v8938
        %v8943 = vand.u32 2147483647, %v8678
        %vm8944 = vcmp.eq.f32.partialorder %v8943, 8.507059e+37
        %v8945 = vand.u32 %v8678, 2147483648
        %v8946 = vor.u32 1.1754944e-38, %v8945
        %v8947 = vsel %vm8944, %v8946, %v8942
        %v8948 = vmul.f32 1.0, %v8947
        %v8949 = vmul.f32 %v8589, %v8693
        %v8950 = vmul.f32 %v8590, %v8708
        %v8951 = vmul.f32 %v8591, %v8723
        %v8952 = vmul.f32 %v8592, %v8738
        %v8953 = vmul.f32 %v8593, %v8753
        %v8954 = vmul.f32 %v8594, %v8768
        %v8955 = vmul.f32 %v8595, %v8783
        %v8956 = vmul.f32 %v8596, %v8798
        %v8957 = vmul.f32 %v8597, %v8813
        %v8958 = vmul.f32 %v8598, %v8828
        %v8959 = vmul.f32 %v8599, %v8843
        %v8960 = vmul.f32 %v8600, %v8858
        %v8961 = vmul.f32 %v8601, %v8873
        %v8962 = vmul.f32 %v8602, %v8888
        %v8963 = vmul.f32 %v8603, %v8903
        %v8964 = vmul.f32 %v8604, %v8918
        %v8965 = vmul.f32 %v8605, %v8933
        %v8966 = vmul.f32 %v8606, %v8948
        %8967 = vst [vmem:[%s145] sm:$0xff] %v8949
        %8968 = vst [vmem:[%s145 + $0x8] sm:$0xff] %v8950
        %8969 = vst [vmem:[%s145 + $0x10] sm:$0xff] %v8951
        %8970 = vst [vmem:[%s145 + $0x18] sm:$0xff] %v8952
        %8971 = vst [vmem:[%s145 + $0x20] sm:$0xff] %v8953
        %8972 = vst [vmem:[%s145 + $0x28] sm:$0xff] %v8954
        %8973 = vst [vmem:[%s145 + $0x30] sm:$0xff] %v8955
        %8974 = vst [vmem:[%s145 + $0x38] sm:$0xff] %v8956
        %8975 = vst [vmem:[%s145 + $0x40] sm:$0xff] %v8957
        %8976 = vst [vmem:[%s145 + $0x48] sm:$0xff] %v8958
        %8977 = vst [vmem:[%s145 + $0x50] sm:$0xff] %v8959
        %8978 = vst [vmem:[%s145 + $0x58] sm:$0xff] %v8960
        %8979 = vst [vmem:[%s145 + $0x60] sm:$0xff] %v8961
        %8980 = vst [vmem:[%s145 + $0x68] sm:$0xff] %v8962
        %8981 = vst [vmem:[%s145 + $0x70] sm:$0xff] %v8963
        %8982 = vst [vmem:[%s145 + $0x78] sm:$0xff] %v8964
        %8983 = vst [vmem:[%s145 + $0x80] sm:$0xff] %v8965
        %8984 = vst [vmem:[%s145 + $0x88] sm:$0xff] %v8966
        %s8985 = sand.u32 %s90, 1
        %s8986 = scalar_lea.sflag [#allocation5], %s8985
        %s8987 = sand.u32 %s90, 1
        %s8988 = smul.addr %s8987, 144
        %s8989 = scalar_lea.vmem [#allocation4], %s8988
        // Predicated region
        $region85: #{tpu_custom_call.1} parent=27 // pred_check
          %p8990 = pneg %p100
        $region86: #{tpu_custom_call.1} parent=27 // pred_check_branch
          %8992 = sbr.rel (%p8990) target = $region88
        $region87: #{tpu_custom_call.1} parent=27 // pred_region
          %s8993 = smul.u32 18, %s23
          %8995 = vsyncadd %s8986, 0
          %s8996 = sadd.s32 %s24, %s8993
          %s8997 = smul.addr %s22, 36
          %s8998 = sadd.s32 %s8996, %s8997
          %s8999 = smul.addr %s8998, 8
          %s9000 = scalar_lea.hbm %s3, %s8999
          %s9001 = sshll.u32 %s8989, 4
          %s9002 = int_to_ptr.vmem [resolvable:$true] %s9001
          %s9003 = sshll.u32 %s9000, 4
          %s9004 = int_to_ptr.hbm [resolvable:$true] %s9003
          %9009 = dma.vmem_to_hbm [thread:$0]  %s9002, 2304, %s9004, %s8986, 128, 128, 8
        $region88: #{tpu_custom_call.1} parent=27 // pred_fallthru
          _
      $region28: #{tpu_custom_call.1} parent=5 // pred_fallthru
        _
      %p9010 = scmp.le.s32.totalorder 2, %s12
      // Predicated region
      $region89: #{tpu_custom_call.1} parent=5 // pred_check
        %p9011 = pneg %p9010
      $region90: #{tpu_custom_call.1} parent=5 // pred_check_branch
        %9013 = sbr.rel (%p9011) target = $region92
      $region91: #{tpu_custom_call.1} parent=5 // pred_region
        %s9014 = ssub.s32 %s12, 2
        // Predicated region
        $region93: #{tpu_custom_call.1} parent=91 // pred_check
          %p9015 = pneg %p106
        $region94: #{tpu_custom_call.1} parent=91 // pred_check_branch
          %9017 = sbr.rel (%p9015) target = $region96
        $region95: #{tpu_custom_call.1} parent=91 // pred_region
          %s9018 = sand.u32 %s91, 1
          %s9019 = scalar_lea.sflag [#allocation5], %s9018
          %s9020 = sand.u32 %s91, 1
          %s9021 = smul.addr %s9020, 144
          %s9022 = scalar_lea.vmem [#allocation4], %s9021
          %9024 = dma.done %s9019, 2304
        $region96: #{tpu_custom_call.1} parent=91 // pred_fallthru
          _
      $region92: #{tpu_custom_call.1} parent=5 // pred_fallthru
        _
    $region6: #{tpu_custom_call.1} parent=1 // loop_footer
      %s16 = sadd.s32 1, %s12
    $region7: #{tpu_custom_call.1} parent=1 // loop_footer_branch
      %11 = sbr.rel target = $region3
    $region8: #{tpu_custom_call.1} parent=1 // loop_exit
      _
    %9025 = vsyncpa [#allocation5], 1
    %s9026 = scalar_lea.sflag [#allocation5], 1
    %9027 = vsyncpa %s9026, 1
  %9028 = vsyncmov [#allocation3]
  %s9029 = vpop.sfrf %9028
  %p9030 = scmp.eq.s32.totalorder %s9029, 0
  %p9031 = pneg %p9030
  %9033 = shalt.err (%p9031)
  %s9034 = scalar_lea.sflag [#allocation3], 1
  %9035 = vsyncmov %s9034
  %s9036 = vpop.sfrf %9035
  %p9037 = scmp.eq.s32.totalorder %s9036, 0
  %p9038 = pneg %p9037
  %9040 = shalt.err (%p9038)

</llo_original>
